<compile_context>
chip_gen: v6e
topology: v6e:2x2x1
jax: 0.10.0
libtpu: 0.0.40
codegen_flags: <defaults>
</compile_context>

<pallas_src>
import functools

import jax
import jax.numpy as jnp
from jax.experimental import pallas as pl
from jax.experimental.pallas import tpu as pltpu

LATENT_DIM = 2048
BN_EPS = 1e-5


def _leaky_relu(x, slope=0.2):
    return jnp.where(x >= 0, x, slope * x)


def paper_generator_kernel(x_ref, w1_ref, b1_ref, w2_ref, b2_ref, w3_ref, b3_ref, o_ref):
    """(Linear+BN1 folded) -> LeakyReLU -> (Linear+BN2 folded) -> LeakyReLU -> Linear -> Tanh."""
    compute_dtype = w1_ref.dtype

    # Linear(2*latent -> inner); BN1 pre-folded into (w1, b1). bf16 MXU inputs, f32 accumulate.
    x = x_ref[...].astype(compute_dtype)
    h = jnp.dot(x, w1_ref[...], preferred_element_type=jnp.float32) + b1_ref[...]
    h = _leaky_relu(h)  # Dropout(p=0.5) == identity in eval mode

    # Linear(inner -> inner); BN2 pre-folded into (w2, b2).
    h = jnp.dot(h.astype(compute_dtype), w2_ref[...],
                preferred_element_type=jnp.float32) + b2_ref[...]
    h = _leaky_relu(h)

    # Linear(inner -> latent) + Tanh (f32 epilogue).
    h = jnp.dot(h.astype(compute_dtype), w3_ref[...],
                preferred_element_type=jnp.float32) + b3_ref[...]
    o_ref[...] = jnp.tanh(h).astype(o_ref.dtype)


def _vmem_limit_bytes():
    """Generation-aware VMEM budget: physical capacity minus headroom, capped at 100 MiB."""
    try:
        cap = int(pltpu.get_tpu_info().vmem_capacity_bytes)
    except Exception:
        cap = 64 << 20  # conservative default: v7x per-TensorCore VMEM
    return int(max(32 << 20, min(cap - (8 << 20), 100 << 20)))


def fold_and_cast_params(raw_params, compute_dtype=jnp.bfloat16):
    """Fold eval-mode BatchNorm into the preceding Linear; cast weights to the MXU dtype."""
    (w1, b1, g1, be1, rm1, rv1,
     w2, b2, g2, be2, rm2, rv2,
     w3, b3) = raw_params

    def fold(w, b, g, be, rm, rv):
        scale = g / jnp.sqrt(rv + BN_EPS)             # [1, out]
        return w * scale, (b - rm) * scale + be       # column-wise scale on W

    w1f, b1f = fold(w1, b1, g1, be1, rm1, rv1)
    w2f, b2f = fold(w2, b2, g2, be2, rm2, rv2)
    return (w1f.astype(compute_dtype), b1f.astype(jnp.float32),
            w2f.astype(compute_dtype), b2f.astype(jnp.float32),
            w3.astype(compute_dtype), b3.astype(jnp.float32))


def paper_generator_forward(x, folded_params, *, tile_b=128, single_buffer_weights=True):
    w1, b1, w2, b2, w3, b3 = folded_params
    B, in_dim = x.shape
    inner_dim = w1.shape[1]
    assert in_dim == 2 * LATENT_DIM
    assert tile_b % 8 == 0 and B % tile_b == 0, \
        "tile_b must divide B and be a multiple of 8 (sublane tiling)"

    compute_dtype = w1.dtype
    w_itemsize = jnp.dtype(compute_dtype).itemsize
    vmem_limit = _vmem_limit_bytes()

    weight_bytes = (in_dim * inner_dim + inner_dim * inner_dim
                    + inner_dim * LATENT_DIM) * w_itemsize
    # TODO(synk): if inner_dim grows so resident weights exceed ~half the VMEM budget, add a
    # K/N reduction-tiling grid axis with a VMEM f32 accumulator instead of failing here.
    assert weight_bytes <= vmem_limit // 2, "inner_dim too large for the resident-weight kernel"

    def batch_spec(cols):
        # batch-tiled input/output: grid index i selects batch block i
        return pl.BlockSpec((tile_b, cols), lambda i: (i, 0))

    def resident_spec(shape):
        # weights/biases: constant index_map -> resident across the grid; request 1 buffer
        kwargs = {}
        if single_buffer_weights and hasattr(pl, "Buffered"):
            kwargs["pipeline_mode"] = pl.Buffered(1)
        return pl.BlockSpec(shape, lambda i: (0,) * len(shape), **kwargs)

    flops = 2 * B * (in_dim * inner_dim + inner_dim * inner_dim + inner_dim * LATENT_DIM)
    bytes_accessed = (B * in_dim * jnp.dtype(x.dtype).itemsize        # x
                      + weight_bytes                                  # W1/W2/W3 (bf16)
                      + (2 * inner_dim + LATENT_DIM) * 4              # biases (f32)
                      + B * LATENT_DIM * jnp.dtype(x.dtype).itemsize)  # output

    return pl.pallas_call(
        paper_generator_kernel,
        out_shape=jax.ShapeDtypeStruct((B, LATENT_DIM), x.dtype),
        grid=(B // tile_b,),
        in_specs=[
            batch_spec(in_dim),
            resident_spec(w1.shape), resident_spec(b1.shape),
            resident_spec(w2.shape), resident_spec(b2.shape),
            resident_spec(w3.shape), resident_spec(b3.shape),
        ],
        out_specs=batch_spec(LATENT_DIM),
        compiler_params=pltpu.CompilerParams(
            dimension_semantics=("parallel",),   # batch blocks shard across v7x TensorCores
            vmem_limit_bytes=vmem_limit,
        ),
        cost_estimate=pl.CostEstimate(
            flops=flops,
            transcendentals=B * LATENT_DIM,      # tanh
            bytes_accessed=bytes_accessed,
        ),
    )(x, w1, b1, w2, b2, w3, b3)


def init_params(key, inner_dim, dtype=jnp.float32):
    """Deterministic synthetic parameter init (shapes follow the module __init__)."""
    ks = jax.random.split(key, 3)

    def lin(k, fan_in, fan_out):
        bound = 1.0 / jnp.sqrt(fan_in)
        kw, kb = jax.random.split(k)
        w = jax.random.uniform(kw, (fan_in, fan_out), dtype, -bound, bound)
        b = jax.random.uniform(kb, (1, fan_out), dtype, -bound, bound)
        return w, b

    w1, b1 = lin(ks[0], 2 * LATENT_DIM, inner_dim)
    w2, b2 = lin(ks[1], inner_dim, inner_dim)
    w3, b3 = lin(ks[2], inner_dim, LATENT_DIM)

    # BatchNorm1d defaults: gamma=1, beta=0, running_mean=0, running_var=1
    g1 = jnp.ones((1, inner_dim), dtype)
    be1 = jnp.zeros((1, inner_dim), dtype)
    rm1 = jnp.zeros((1, inner_dim), dtype)
    rv1 = jnp.ones((1, inner_dim), dtype)
    g2 = jnp.ones((1, inner_dim), dtype)
    be2 = jnp.zeros((1, inner_dim), dtype)
    rm2 = jnp.zeros((1, inner_dim), dtype)
    rv2 = jnp.ones((1, inner_dim), dtype)

    return (w1, b1, g1, be1, rm1, rv1,
            w2, b2, g2, be2, rm2, rv2,
            w3, b3)


def reference_forward(x, raw_params):
    """Plain-JAX f32 reference (eval-mode semantics, un-folded BN) for a sanity check."""
    (w1, b1, g1, be1, rm1, rv1,
     w2, b2, g2, be2, rm2, rv2,
     w3, b3) = raw_params
    h = x @ w1 + b1
    h = (h - rm1) * (g1 / jnp.sqrt(rv1 + BN_EPS)) + be1
    h = jnp.where(h >= 0, h, 0.2 * h)
    h = h @ w2 + b2
    h = (h - rm2) * (g2 / jnp.sqrt(rv2 + BN_EPS)) + be2
    h = jnp.where(h >= 0, h, 0.2 * h)
    h = h @ w3 + b3
    return jnp.tanh(h)


if __name__ == "__main__":
    inner_dim = 128   # latent_dim=2048 is hard-coded in the module (input width 4096 is fixed)
    batch = 128       # small demo batch; 2 batch blocks exercise the grid
    tile_b = 64

    key = jax.random.PRNGKey(0)
    k_x, k_p = jax.random.split(key)

    x = jax.random.normal(k_x, (batch, 2 * LATENT_DIM), jnp.float32)
    raw_params = init_params(k_p, inner_dim)
    folded_params = fold_and_cast_params(raw_params, jnp.bfloat16)

    fwd = jax.jit(functools.partial(paper_generator_forward, tile_b=tile_b))
    try:
        out = jax.block_until_ready(fwd(x, folded_params))
    except Exception:
        # Fallback: if this jax build rejects pl.Buffered(1), use default double-buffered weights.
        fwd = jax.jit(functools.partial(paper_generator_forward, tile_b=tile_b,
                                        single_buffer_weights=False))
        out = jax.block_until_ready(fwd(x, folded_params))

    ref = reference_forward(x, raw_params)
    assert out.shape == (batch, LATENT_DIM)
    max_err = float(jnp.max(jnp.abs(out.astype(jnp.float32) - ref)))
    # Loose tolerance: bf16 matmul inputs + BN folding re-association vs the f32 reference
    # (output is tanh-bounded in [-1, 1], so 5e-2 absolute is still a meaningful check).
    assert max_err < 5e-2, f"mismatch vs JAX reference: max abs err {max_err}"

    print("KERNEL_OK")
</pallas_src>

<mosaic_0001>
module attributes {stable_mosaic.version = 11 : i64} {
  func.func @paper_generator_kernel(%arg0: i32, %arg1: memref<64x4096xf32, #tpu.memory_space<vmem>>, %arg2: memref<4096x128xbf16, #tpu.memory_space<vmem>>, %arg3: memref<1x128xf32, #tpu.memory_space<vmem>>, %arg4: memref<128x128xbf16, #tpu.memory_space<vmem>>, %arg5: memref<1x128xf32, #tpu.memory_space<vmem>>, %arg6: memref<128x2048xbf16, #tpu.memory_space<vmem>>, %arg7: memref<1x2048xf32, #tpu.memory_space<vmem>>, %arg8: memref<64x2048xf32, #tpu.memory_space<vmem>>) attributes {dimension_semantics = [#tpu.dimension_semantics<parallel>], iteration_bounds = array<i64: 2>, scalar_prefetch = 0 : i64, scratch_operands = 0 : i64, tpu.core_type = #tpu.core_type<tc>, window_params = [{transform_indices = @transform_0, window_bounds = array<i64: 64, 4096>}, {pipeline_mode = #tpu.pipeline_mode<synchronous>, transform_indices = @transform_1, window_bounds = array<i64: 4096, 128>}, {pipeline_mode = #tpu.pipeline_mode<synchronous>, transform_indices = @transform_2, window_bounds = array<i64: 1, 128>}, {pipeline_mode = #tpu.pipeline_mode<synchronous>, transform_indices = @transform_3, window_bounds = array<i64: 128, 128>}, {pipeline_mode = #tpu.pipeline_mode<synchronous>, transform_indices = @transform_4, window_bounds = array<i64: 1, 128>}, {pipeline_mode = #tpu.pipeline_mode<synchronous>, transform_indices = @transform_5, window_bounds = array<i64: 128, 2048>}, {pipeline_mode = #tpu.pipeline_mode<synchronous>, transform_indices = @transform_6, window_bounds = array<i64: 1, 2048>}, {transform_indices = @transform_7, window_bounds = array<i64: 64, 2048>}]} {
    %c0 = arith.constant 0 : index
    %c0_0 = arith.constant 0 : index
    %0 = vector.load %arg1[%c0, %c0_0] : memref<64x4096xf32, #tpu.memory_space<vmem>>, vector<64x4096xf32>
    %1 = arith.truncf %0 : vector<64x4096xf32> to vector<64x4096xbf16>
    %c0_1 = arith.constant 0 : index
    %c0_2 = arith.constant 0 : index
    %2 = vector.load %arg2[%c0_1, %c0_2] : memref<4096x128xbf16, #tpu.memory_space<vmem>>, vector<4096x128xbf16>
    %cst = arith.constant dense<0.000000e+00> : vector<64x128xf32>
    %3 = tpu.matmul %1, %2, %cst {dimension_numbers = #tpu.dot_dimension_numbers<[1], [0], [0], [1], [0, 0, 1, 1], [], []>} : vector<64x4096xbf16>, vector<4096x128xbf16>, vector<64x128xf32> -> vector<64x128xf32>
    %c0_3 = arith.constant 0 : index
    %c0_4 = arith.constant 0 : index
    %4 = vector.load %arg3[%c0_3, %c0_4] : memref<1x128xf32, #tpu.memory_space<vmem>>, vector<1x128xf32>
    %5 = vector.broadcast %4 : vector<1x128xf32> to vector<64x128xf32>
    %6 = arith.addf %3, %5 : vector<64x128xf32>
    %cst_5 = arith.constant 0.000000e+00 : f32
    %7 = vector.broadcast %cst_5 : f32 to vector<64x128xf32>
    %8 = arith.cmpf oge, %6, %7 : vector<64x128xf32>
    %cst_6 = arith.constant 2.000000e-01 : f32
    %9 = vector.broadcast %cst_6 : f32 to vector<64x128xf32>
    %10 = arith.mulf %9, %6 : vector<64x128xf32>
    %11 = arith.select %8, %6, %10 : vector<64x128xi1>, vector<64x128xf32>
    %12 = arith.truncf %11 : vector<64x128xf32> to vector<64x128xbf16>
    %c0_7 = arith.constant 0 : index
    %c0_8 = arith.constant 0 : index
    %13 = vector.load %arg4[%c0_7, %c0_8] : memref<128x128xbf16, #tpu.memory_space<vmem>>, vector<128x128xbf16>
    %cst_9 = arith.constant dense<0.000000e+00> : vector<64x128xf32>
    %14 = tpu.matmul %12, %13, %cst_9 {dimension_numbers = #tpu.dot_dimension_numbers<[1], [0], [0], [1], [0, 0, 1, 1], [], []>} : vector<64x128xbf16>, vector<128x128xbf16>, vector<64x128xf32> -> vector<64x128xf32>
    %c0_10 = arith.constant 0 : index
    %c0_11 = arith.constant 0 : index
    %15 = vector.load %arg5[%c0_10, %c0_11] : memref<1x128xf32, #tpu.memory_space<vmem>>, vector<1x128xf32>
    %16 = vector.broadcast %15 : vector<1x128xf32> to vector<64x128xf32>
    %17 = arith.addf %14, %16 : vector<64x128xf32>
    %cst_12 = arith.constant 0.000000e+00 : f32
    %18 = vector.broadcast %cst_12 : f32 to vector<64x128xf32>
    %19 = arith.cmpf oge, %17, %18 : vector<64x128xf32>
    %cst_13 = arith.constant 2.000000e-01 : f32
    %20 = vector.broadcast %cst_13 : f32 to vector<64x128xf32>
    %21 = arith.mulf %20, %17 : vector<64x128xf32>
    %22 = arith.select %19, %17, %21 : vector<64x128xi1>, vector<64x128xf32>
    %23 = arith.truncf %22 : vector<64x128xf32> to vector<64x128xbf16>
    %c0_14 = arith.constant 0 : index
    %c0_15 = arith.constant 0 : index
    %24 = vector.load %arg6[%c0_14, %c0_15] : memref<128x2048xbf16, #tpu.memory_space<vmem>>, vector<128x2048xbf16>
    %cst_16 = arith.constant dense<0.000000e+00> : vector<64x2048xf32>
    %25 = tpu.matmul %23, %24, %cst_16 {dimension_numbers = #tpu.dot_dimension_numbers<[1], [0], [0], [1], [0, 0, 1, 1], [], []>} : vector<64x128xbf16>, vector<128x2048xbf16>, vector<64x2048xf32> -> vector<64x2048xf32>
    %c0_17 = arith.constant 0 : index
    %c0_18 = arith.constant 0 : index
    %26 = vector.load %arg7[%c0_17, %c0_18] : memref<1x2048xf32, #tpu.memory_space<vmem>>, vector<1x2048xf32>
    %27 = vector.broadcast %26 : vector<1x2048xf32> to vector<64x2048xf32>
    %28 = arith.addf %25, %27 : vector<64x2048xf32>
    %29 = math.tanh %28 : vector<64x2048xf32>
    %c0_19 = arith.constant 0 : index
    %c0_20 = arith.constant 0 : index
    %30 = vector.load %arg8[%c0_19, %c0_20] : memref<64x2048xf32, #tpu.memory_space<vmem>>, vector<64x2048xf32>
    tpu.vector_store %arg8[%c0_19, %c0_20], %29 {strides = array<i32>} : memref<64x2048xf32, #tpu.memory_space<vmem>>, vector<64x2048xf32>,
    return
  }
  func.func @transform_0(%arg0: i32) -> (i32, i32) {
    %c0_i32 = arith.constant 0 : i32
    %c0_i32_0 = arith.constant 0 : i32
    return %arg0, %c0_i32 : i32, i32
  }
  func.func @transform_1(%arg0: i32) -> (i32, i32) {
    %c0_i32 = arith.constant 0 : i32
    %c0_i32_0 = arith.constant 0 : i32
    %c0_i32_1 = arith.constant 0 : i32
    return %c0_i32, %c0_i32_0 : i32, i32
  }
  func.func @transform_2(%arg0: i32) -> (i32, i32) {
    %c0_i32 = arith.constant 0 : i32
    %c0_i32_0 = arith.constant 0 : i32
    %c0_i32_1 = arith.constant 0 : i32
    return %c0_i32, %c0_i32_0 : i32, i32
  }
  func.func @transform_3(%arg0: i32) -> (i32, i32) {
    %c0_i32 = arith.constant 0 : i32
    %c0_i32_0 = arith.constant 0 : i32
    %c0_i32_1 = arith.constant 0 : i32
    return %c0_i32, %c0_i32_0 : i32, i32
  }
  func.func @transform_4(%arg0: i32) -> (i32, i32) {
    %c0_i32 = arith.constant 0 : i32
    %c0_i32_0 = arith.constant 0 : i32
    %c0_i32_1 = arith.constant 0 : i32
    return %c0_i32, %c0_i32_0 : i32, i32
  }
  func.func @transform_5(%arg0: i32) -> (i32, i32) {
    %c0_i32 = arith.constant 0 : i32
    %c0_i32_0 = arith.constant 0 : i32
    %c0_i32_1 = arith.constant 0 : i32
    return %c0_i32, %c0_i32_0 : i32, i32
  }
  func.func @transform_6(%arg0: i32) -> (i32, i32) {
    %c0_i32 = arith.constant 0 : i32
    %c0_i32_0 = arith.constant 0 : i32
    %c0_i32_1 = arith.constant 0 : i32
    return %c0_i32, %c0_i32_0 : i32, i32
  }
  func.func @transform_7(%arg0: i32) -> (i32, i32) {
    %c0_i32 = arith.constant 0 : i32
    %c0_i32_0 = arith.constant 0 : i32
    return %arg0, %c0_i32 : i32, i32
  }
}

module attributes {stable_mosaic.version = 11 : i64} {
  func.func @paper_generator_kernel(%arg0: i32, %arg1: memref<64x4096xf32, #tpu.memory_space<vmem>>, %arg2: memref<4096x128xbf16, #tpu.memory_space<vmem>>, %arg3: memref<1x128xf32, #tpu.memory_space<vmem>>, %arg4: memref<128x128xbf16, #tpu.memory_space<vmem>>, %arg5: memref<1x128xf32, #tpu.memory_space<vmem>>, %arg6: memref<128x2048xbf16, #tpu.memory_space<vmem>>, %arg7: memref<1x2048xf32, #tpu.memory_space<vmem>>, %arg8: memref<64x2048xf32, #tpu.memory_space<vmem>>) attributes {dimension_semantics = [#tpu.dimension_semantics<parallel>], iteration_bounds = array<i64: 2>, scalar_prefetch = 0 : i64, scratch_operands = 0 : i64, tpu.core_type = #tpu.core_type<tc>, window_params = [{transform_indices = @transform_0, window_bounds = array<i64: 64, 4096>}, {pipeline_mode = #tpu.pipeline_mode<synchronous>, transform_indices = @transform_1, window_bounds = array<i64: 4096, 128>}, {pipeline_mode = #tpu.pipeline_mode<synchronous>, transform_indices = @transform_2, window_bounds = array<i64: 1, 128>}, {pipeline_mode = #tpu.pipeline_mode<synchronous>, transform_indices = @transform_3, window_bounds = array<i64: 128, 128>}, {pipeline_mode = #tpu.pipeline_mode<synchronous>, transform_indices = @transform_4, window_bounds = array<i64: 1, 128>}, {pipeline_mode = #tpu.pipeline_mode<synchronous>, transform_indices = @transform_5, window_bounds = array<i64: 128, 2048>}, {pipeline_mode = #tpu.pipeline_mode<synchronous>, transform_indices = @transform_6, window_bounds = array<i64: 1, 2048>}, {transform_indices = @transform_7, window_bounds = array<i64: 64, 2048>}]} {
    %c0 = arith.constant 0 : index
    %c0_0 = arith.constant 0 : index
    %0 = vector.load %arg1[%c0, %c0_0] : memref<64x4096xf32, #tpu.memory_space<vmem>>, vector<64x4096xf32>
    %1 = arith.truncf %0 : vector<64x4096xf32> to vector<64x4096xbf16>
    %c0_1 = arith.constant 0 : index
    %c0_2 = arith.constant 0 : index
    %2 = vector.load %arg2[%c0_1, %c0_2] : memref<4096x128xbf16, #tpu.memory_space<vmem>>, vector<4096x128xbf16>
    %cst = arith.constant dense<0.000000e+00> : vector<64x128xf32>
    %3 = tpu.matmul %1, %2, %cst {dimension_numbers = #tpu.dot_dimension_numbers<[1], [0], [0], [1], [0, 0, 1, 1], [], []>} : vector<64x4096xbf16>, vector<4096x128xbf16>, vector<64x128xf32> -> vector<64x128xf32>
    %c0_3 = arith.constant 0 : index
    %c0_4 = arith.constant 0 : index
    %4 = vector.load %arg3[%c0_3, %c0_4] : memref<1x128xf32, #tpu.memory_space<vmem>>, vector<1x128xf32>
    %5 = vector.broadcast %4 : vector<1x128xf32> to vector<64x128xf32>
    %6 = arith.addf %3, %5 : vector<64x128xf32>
    %cst_5 = arith.constant 0.000000e+00 : f32
    %7 = vector.broadcast %cst_5 : f32 to vector<64x128xf32>
    %8 = arith.cmpf oge, %6, %7 : vector<64x128xf32>
    %cst_6 = arith.constant 2.000000e-01 : f32
    %9 = vector.broadcast %cst_6 : f32 to vector<64x128xf32>
    %10 = arith.mulf %9, %6 : vector<64x128xf32>
    %11 = arith.select %8, %6, %10 : vector<64x128xi1>, vector<64x128xf32>
    %12 = arith.truncf %11 : vector<64x128xf32> to vector<64x128xbf16>
    %c0_7 = arith.constant 0 : index
    %c0_8 = arith.constant 0 : index
    %13 = vector.load %arg4[%c0_7, %c0_8] : memref<128x128xbf16, #tpu.memory_space<vmem>>, vector<128x128xbf16>
    %cst_9 = arith.constant dense<0.000000e+00> : vector<64x128xf32>
    %14 = tpu.matmul %12, %13, %cst_9 {dimension_numbers = #tpu.dot_dimension_numbers<[1], [0], [0], [1], [0, 0, 1, 1], [], []>} : vector<64x128xbf16>, vector<128x128xbf16>, vector<64x128xf32> -> vector<64x128xf32>
    %c0_10 = arith.constant 0 : index
    %c0_11 = arith.constant 0 : index
    %15 = vector.load %arg5[%c0_10, %c0_11] : memref<1x128xf32, #tpu.memory_space<vmem>>, vector<1x128xf32>
    %16 = vector.broadcast %15 : vector<1x128xf32> to vector<64x128xf32>
    %17 = arith.addf %14, %16 : vector<64x128xf32>
    %cst_12 = arith.constant 0.000000e+00 : f32
    %18 = vector.broadcast %cst_12 : f32 to vector<64x128xf32>
    %19 = arith.cmpf oge, %17, %18 : vector<64x128xf32>
    %cst_13 = arith.constant 2.000000e-01 : f32
    %20 = vector.broadcast %cst_13 : f32 to vector<64x128xf32>
    %21 = arith.mulf %20, %17 : vector<64x128xf32>
    %22 = arith.select %19, %17, %21 : vector<64x128xi1>, vector<64x128xf32>
    %23 = arith.truncf %22 : vector<64x128xf32> to vector<64x128xbf16>
    %c0_14 = arith.constant 0 : index
    %c0_15 = arith.constant 0 : index
    %24 = vector.load %arg6[%c0_14, %c0_15] : memref<128x2048xbf16, #tpu.memory_space<vmem>>, vector<128x2048xbf16>
    %cst_16 = arith.constant dense<0.000000e+00> : vector<64x2048xf32>
    %25 = tpu.matmul %23, %24, %cst_16 {dimension_numbers = #tpu.dot_dimension_numbers<[1], [0], [0], [1], [0, 0, 1, 1], [], []>} : vector<64x128xbf16>, vector<128x2048xbf16>, vector<64x2048xf32> -> vector<64x2048xf32>
    %c0_17 = arith.constant 0 : index
    %c0_18 = arith.constant 0 : index
    %26 = vector.load %arg7[%c0_17, %c0_18] : memref<1x2048xf32, #tpu.memory_space<vmem>>, vector<1x2048xf32>
    %27 = vector.broadcast %26 : vector<1x2048xf32> to vector<64x2048xf32>
    %28 = arith.addf %25, %27 : vector<64x2048xf32>
    %29 = math.tanh %28 : vector<64x2048xf32>
    %c0_19 = arith.constant 0 : index
    %c0_20 = arith.constant 0 : index
    %30 = vector.load %arg8[%c0_19, %c0_20] : memref<64x2048xf32, #tpu.memory_space<vmem>>, vector<64x2048xf32>
    tpu.vector_store %arg8[%c0_19, %c0_20], %29 {strides = array<i32>} : memref<64x2048xf32, #tpu.memory_space<vmem>>, vector<64x2048xf32>,
    return
  }
  func.func @transform_0(%arg0: i32) -> (i32, i32) {
    %c0_i32 = arith.constant 0 : i32
    %c0_i32_0 = arith.constant 0 : i32
    return %arg0, %c0_i32 : i32, i32
  }
  func.func @transform_1(%arg0: i32) -> (i32, i32) {
    %c0_i32 = arith.constant 0 : i32
    %c0_i32_0 = arith.constant 0 : i32
    %c0_i32_1 = arith.constant 0 : i32
    return %c0_i32, %c0_i32_0 : i32, i32
  }
  func.func @transform_2(%arg0: i32) -> (i32, i32) {
    %c0_i32 = arith.constant 0 : i32
    %c0_i32_0 = arith.constant 0 : i32
    %c0_i32_1 = arith.constant 0 : i32
    return %c0_i32, %c0_i32_0 : i32, i32
  }
  func.func @transform_3(%arg0: i32) -> (i32, i32) {
    %c0_i32 = arith.constant 0 : i32
    %c0_i32_0 = arith.constant 0 : i32
    %c0_i32_1 = arith.constant 0 : i32
    return %c0_i32, %c0_i32_0 : i32, i32
  }
  func.func @transform_4(%arg0: i32) -> (i32, i32) {
    %c0_i32 = arith.constant 0 : i32
    %c0_i32_0 = arith.constant 0 : i32
    %c0_i32_1 = arith.constant 0 : i32
    return %c0_i32, %c0_i32_0 : i32, i32
  }
  func.func @transform_5(%arg0: i32) -> (i32, i32) {
    %c0_i32 = arith.constant 0 : i32
    %c0_i32_0 = arith.constant 0 : i32
    %c0_i32_1 = arith.constant 0 : i32
    return %c0_i32, %c0_i32_0 : i32, i32
  }
  func.func @transform_6(%arg0: i32) -> (i32, i32) {
    %c0_i32 = arith.constant 0 : i32
    %c0_i32_0 = arith.constant 0 : i32
    %c0_i32_1 = arith.constant 0 : i32
    return %c0_i32, %c0_i32_0 : i32, i32
  }
  func.func @transform_7(%arg0: i32) -> (i32, i32) {
    %c0_i32 = arith.constant 0 : i32
    %c0_i32_0 = arith.constant 0 : i32
    return %arg0, %c0_i32 : i32, i32
  }
}

</mosaic_0001>

<llo_original>
// kernel: paper_generator_forward.1
$region0: #{paper_generator_forward.1}
  #allocation0 [shape = 'u32[]', space=smem, size = 0x4, offset = 0x4, fixed_abs, tag = 'smem constant byte address 0x4 - core index']
  #allocation1 [shape = 'u32[144,128]{1,0:T(1,128)}', space=vmem, size = 0x12000, scoped, tag = 'internal scratch']
  %s0 = inlined_call_operand.hbm [shape: f32[128,4096], index: 0, kind: input, shape index: {}]
  %s1 = inlined_call_operand.hbm [shape: bf16[4096,128], index: 1, kind: input, shape index: {}]
  %s2 = inlined_call_operand.hbm [shape: f32[1,128], index: 2, kind: input, shape index: {}]
  %s3 = inlined_call_operand.hbm [shape: bf16[128,128], index: 3, kind: input, shape index: {}]
  %s4 = inlined_call_operand.hbm [shape: f32[1,128], index: 4, kind: input, shape index: {}]
  %s5 = inlined_call_operand.hbm [shape: bf16[128,2048], index: 5, kind: input, shape index: {}]
  %s6 = inlined_call_operand.hbm [shape: f32[1,2048], index: 6, kind: input, shape index: {}]
  %s7 = inlined_call_operand.hbm [shape: f32[128,2048], index: 7, kind: output, shape index: {}]
  %s8 = sld [smem:[#allocation0]]
  $region89: #{paper_generator_forward.1} parent=0
    _
  %s10 = ssub.s32 1, %s8
  %s11 = scalar_select 0, %s10, %s8
  $region1: #{paper_generator_forward.1} parent=0
    #allocation2 [shape = 'u8[2097152]{0}', space=vmem, size = 0x200000, scoped, tag = 'input window, operand 0']
    #allocation3 [shape = 's32[2]{0}', space=sflag, size = 0x8, scoped, tag = 'scoped memory for paper_generator_forward.1']
    #allocation4 [shape = 's32[2]{0}', space=sflag, size = 0x8, scoped, tag = 'scoped memory for paper_generator_forward.1']
    #allocation5 [shape = 'u8[1048576]{0}', space=vmem, size = 0x100000, scoped, tag = 'input window, operand 1, single buffered']
    #allocation6 [shape = 's32[1]{0}', space=sflag, size = 0x4, scoped, tag = 'scoped memory for paper_generator_forward.1']
    #allocation7 [shape = 'u8[512]{0}', space=vmem, size = 0x400, scoped, tag = 'input window, operand 2, single buffered']
    #allocation8 [shape = 'u8[32768]{0}', space=vmem, size = 0x8000, scoped, tag = 'input window, operand 3, single buffered']
    #allocation9 [shape = 's32[1]{0}', space=sflag, size = 0x4, scoped, tag = 'scoped memory for paper_generator_forward.1']
    #allocation10 [shape = 'u8[512]{0}', space=vmem, size = 0x400, scoped, tag = 'input window, operand 4, single buffered']
    #allocation11 [shape = 'u8[524288]{0}', space=vmem, size = 0x80000, scoped, tag = 'input window, operand 5, single buffered']
    #allocation12 [shape = 's32[1]{0}', space=sflag, size = 0x4, scoped, tag = 'scoped memory for paper_generator_forward.1']
    #allocation13 [shape = 'u8[8192]{0}', space=vmem, size = 0x2000, scoped, tag = 'input window, operand 6, single buffered']
    #allocation14 [shape = 'u8[1048576]{0}', space=vmem, size = 0x100000, scoped, tag = 'output window, operand 0']
    %12 = vsyncpa [#allocation3], 0
    %s13 = scalar_lea.sflag [#allocation3], 1
    %14 = vsyncpa %s13, 0
    %15 = vsyncpa [#allocation6], 0
    %16 = vsyncpa [#allocation9], 0
    %17 = vsyncpa [#allocation12], 0
    %18 = vsyncpa [#allocation4], 0
    %s19 = scalar_lea.sflag [#allocation4], 1
    %20 = vsyncpa %s19, 0
    loop: start=0, step=1, limit=4
    $region2: #{paper_generator_forward.1} parent=1 // loop_pre_header
      _
    $region3: #{paper_generator_forward.1} parent=1 // loop_header
      %s22 = sphi 0, %s26
      %p23 = scmp.ge.s32.totalorder %s22, 4
      %s32 = sphi 0, %s34
      %s35 = sphi 0, %s32
      %s36 = sphi 0, %s35
      %s52 = sphi 0, %s36
      %s56 = sphi 0, %s56
      %s58 = sphi 0, %s56
      %s59 = sphi 0, %s58
      %s73 = sphi 0, %s59
      %s77 = sphi 0, %s77
      %s79 = sphi 0, %s77
      %s80 = sphi 0, %s79
      %s94 = sphi 0, %s80
      %s98 = sphi 0, %s98
      %s100 = sphi 0, %s98
      %s101 = sphi 0, %s100
      %s115 = sphi 0, %s101
      %s119 = sphi 0, %s119
      %s121 = sphi 0, %s119
      %s122 = sphi 0, %s121
      %s136 = sphi 0, %s122
      %s140 = sphi 0, %s140
      %s142 = sphi 0, %s140
      %s143 = sphi 0, %s142
      %s157 = sphi 0, %s143
      %s161 = sphi 0, %s161
      %s163 = sphi 0, %s161
      %s164 = sphi 0, %s163
      %s178 = sphi 0, %s164
      %s184 = sphi 0, %s186
      %s187 = sphi 0, %s184
      %s188 = sphi 0, %s187
      %s204 = sphi 0, %s188
    $region4: #{paper_generator_forward.1} parent=1 // loop_header_branch
      %25 = sbr.rel (%p23) target = $region8
    $region5: #{paper_generator_forward.1} parent=1 // loop_body
      %s27 = ssub.s32 %s22, 1
      %s28 = ssub.s32 %s22, 2
      %s29 = sadd.s32 %s22, 1
      %s30 = ssub.s32 %s22, %s29
      %p31 = scmp.eq.s32.totalorder %s30, 0
      %s33 = sadd.s32 %s32, 1
      %s34 = scalar_select %p31, %s32, %s33
      %p37 = pneg %p31
      %p38 = scmp.eq.s32.totalorder %s22, 1
      %p39 = por %p37, %p38
      %p40 = scmp.ne.s32.totalorder %s32, %s35
      %p41 = scmp.eq.s32.totalorder %s22, 0
      %p42 = por %p40, %p41
      %p43 = scmp.ne.s32.totalorder %s32, %s35
      %p44 = scmp.eq.s32.totalorder %s27, 1
      %p45 = por %p43, %p44
      %p46 = scmp.ne.s32.totalorder %s35, %s36
      %p47 = scmp.eq.s32.totalorder %s27, 0
      %p48 = por %p46, %p47
      %p49 = scmp.ne.s32.totalorder %s35, %s36
      %p50 = scmp.eq.s32.totalorder %s28, 1
      %p51 = por %p49, %p50
      %p53 = scmp.ne.s32.totalorder %s36, %s52
      %p54 = scmp.eq.s32.totalorder %s28, 0
      %p55 = por %p53, %p54
      %s57 = sadd.s32 %s56, 1
      %p60 = scmp.eq.s32.totalorder %s22, 1
      %p61 = scmp.ne.s32.totalorder %s56, %s58
      %p62 = scmp.eq.s32.totalorder %s22, 0
      %p63 = por %p61, %p62
      %p64 = scmp.ne.s32.totalorder %s56, %s58
      %p65 = scmp.eq.s32.totalorder %s27, 1
      %p66 = por %p64, %p65
      %p67 = scmp.ne.s32.totalorder %s58, %s59
      %p68 = scmp.eq.s32.totalorder %s27, 0
      %p69 = por %p67, %p68
      %p70 = scmp.ne.s32.totalorder %s58, %s59
      %p71 = scmp.eq.s32.totalorder %s28, 1
      %p72 = por %p70, %p71
      %p74 = scmp.ne.s32.totalorder %s59, %s73
      %p75 = scmp.eq.s32.totalorder %s28, 0
      %p76 = por %p74, %p75
      %s78 = sadd.s32 %s77, 1
      %p81 = scmp.eq.s32.totalorder %s22, 1
      %p82 = scmp.ne.s32.totalorder %s77, %s79
      %p83 = scmp.eq.s32.totalorder %s22, 0
      %p84 = por %p82, %p83
      %p85 = scmp.ne.s32.totalorder %s77, %s79
      %p86 = scmp.eq.s32.totalorder %s27, 1
      %p87 = por %p85, %p86
      %p88 = scmp.ne.s32.totalorder %s79, %s80
      %p89 = scmp.eq.s32.totalorder %s27, 0
      %p90 = por %p88, %p89
      %p91 = scmp.ne.s32.totalorder %s79, %s80
      %p92 = scmp.eq.s32.totalorder %s28, 1
      %p93 = por %p91, %p92
      %p95 = scmp.ne.s32.totalorder %s80, %s94
      %p96 = scmp.eq.s32.totalorder %s28, 0
      %p97 = por %p95, %p96
      %s99 = sadd.s32 %s98, 1
      %p102 = scmp.eq.s32.totalorder %s22, 1
      %p103 = scmp.ne.s32.totalorder %s98, %s100
      %p104 = scmp.eq.s32.totalorder %s22, 0
      %p105 = por %p103, %p104
      %p106 = scmp.ne.s32.totalorder %s98, %s100
      %p107 = scmp.eq.s32.totalorder %s27, 1
      %p108 = por %p106, %p107
      %p109 = scmp.ne.s32.totalorder %s100, %s101
      %p110 = scmp.eq.s32.totalorder %s27, 0
      %p111 = por %p109, %p110
      %p112 = scmp.ne.s32.totalorder %s100, %s101
      %p113 = scmp.eq.s32.totalorder %s28, 1
      %p114 = por %p112, %p113
      %p116 = scmp.ne.s32.totalorder %s101, %s115
      %p117 = scmp.eq.s32.totalorder %s28, 0
      %p118 = por %p116, %p117
      %s120 = sadd.s32 %s119, 1
      %p123 = scmp.eq.s32.totalorder %s22, 1
      %p124 = scmp.ne.s32.totalorder %s119, %s121
      %p125 = scmp.eq.s32.totalorder %s22, 0
      %p126 = por %p124, %p125
      %p127 = scmp.ne.s32.totalorder %s119, %s121
      %p128 = scmp.eq.s32.totalorder %s27, 1
      %p129 = por %p127, %p128
      %p130 = scmp.ne.s32.totalorder %s121, %s122
      %p131 = scmp.eq.s32.totalorder %s27, 0
      %p132 = por %p130, %p131
      %p133 = scmp.ne.s32.totalorder %s121, %s122
      %p134 = scmp.eq.s32.totalorder %s28, 1
      %p135 = por %p133, %p134
      %p137 = scmp.ne.s32.totalorder %s122, %s136
      %p138 = scmp.eq.s32.totalorder %s28, 0
      %p139 = por %p137, %p138
      %s141 = sadd.s32 %s140, 1
      %p144 = scmp.eq.s32.totalorder %s22, 1
      %p145 = scmp.ne.s32.totalorder %s140, %s142
      %p146 = scmp.eq.s32.totalorder %s22, 0
      %p147 = por %p145, %p146
      %p148 = scmp.ne.s32.totalorder %s140, %s142
      %p149 = scmp.eq.s32.totalorder %s27, 1
      %p150 = por %p148, %p149
      %p151 = scmp.ne.s32.totalorder %s142, %s143
      %p152 = scmp.eq.s32.totalorder %s27, 0
      %p153 = por %p151, %p152
      %p154 = scmp.ne.s32.totalorder %s142, %s143
      %p155 = scmp.eq.s32.totalorder %s28, 1
      %p156 = por %p154, %p155
      %p158 = scmp.ne.s32.totalorder %s143, %s157
      %p159 = scmp.eq.s32.totalorder %s28, 0
      %p160 = por %p158, %p159
      %s162 = sadd.s32 %s161, 1
      %p165 = scmp.eq.s32.totalorder %s22, 1
      %p166 = scmp.ne.s32.totalorder %s161, %s163
      %p167 = scmp.eq.s32.totalorder %s22, 0
      %p168 = por %p166, %p167
      %p169 = scmp.ne.s32.totalorder %s161, %s163
      %p170 = scmp.eq.s32.totalorder %s27, 1
      %p171 = por %p169, %p170
      %p172 = scmp.ne.s32.totalorder %s163, %s164
      %p173 = scmp.eq.s32.totalorder %s27, 0
      %p174 = por %p172, %p173
      %p175 = scmp.ne.s32.totalorder %s163, %s164
      %p176 = scmp.eq.s32.totalorder %s28, 1
      %p177 = por %p175, %p176
      %p179 = scmp.ne.s32.totalorder %s164, %s178
      %p180 = scmp.eq.s32.totalorder %s28, 0
      %p181 = por %p179, %p180
      %s182 = ssub.s32 %s22, %s29
      %p183 = scmp.eq.s32.totalorder %s182, 0
      %s185 = sadd.s32 %s184, 1
      %s186 = scalar_select %p183, %s184, %s185
      %p189 = pneg %p183
      %p190 = scmp.eq.s32.totalorder %s22, 1
      %p191 = por %p189, %p190
      %p192 = scmp.ne.s32.totalorder %s184, %s187
      %p193 = scmp.eq.s32.totalorder %s22, 0
      %p194 = por %p192, %p193
      %p195 = scmp.ne.s32.totalorder %s184, %s187
      %p196 = scmp.eq.s32.totalorder %s27, 1
      %p197 = por %p195, %p196
      %p198 = scmp.ne.s32.totalorder %s187, %s188
      %p199 = scmp.eq.s32.totalorder %s27, 0
      %p200 = por %p198, %p199
      %p201 = scmp.ne.s32.totalorder %s187, %s188
      %p202 = scmp.eq.s32.totalorder %s28, 1
      %p203 = por %p201, %p202
      %p205 = scmp.ne.s32.totalorder %s188, %s204
      %p206 = scmp.eq.s32.totalorder %s28, 0
      %p207 = por %p205, %p206
      %p208 = scmp.le.s32.totalorder 1, %s22
      %p209 = scmp.lt.s32.totalorder %s22, 3
      %p210 = pnand %p208, %p209
      %p211 = pneg %p210
      // Predicated region
      $region9: #{paper_generator_forward.1} parent=5 // pred_check
        _
      $region10: #{paper_generator_forward.1} parent=5 // pred_check_branch
        %213 = sbr.rel (%p210) target = $region12
      $region11: #{paper_generator_forward.1} parent=5 // pred_region
        %s214 = ssub.s32 %s22, 1
        // Predicated region
        $region13: #{paper_generator_forward.1} parent=11 // pred_check
          %p215 = pneg %p69
        $region14: #{paper_generator_forward.1} parent=11 // pred_check_branch
          %217 = sbr.rel (%p215) target = $region16
        $region15: #{paper_generator_forward.1} parent=11 // pred_region
          %s219 = ssub.s32 32768, 32768
          %220 = vsyncadd [#allocation6], %s219
          %s221 = sshll.u32 [#allocation5], 4
          %s222 = int_to_ptr.vmem [resolvable:$true] %s221
          %227 = dma.hbm_to_vmem [thread:$0]  %s1, 32768, %s222, [#allocation6], 64, 64, 4
        $region16: #{paper_generator_forward.1} parent=11 // pred_fallthru
          _
        // Predicated region
        $region17: #{paper_generator_forward.1} parent=11 // pred_check
          %p228 = pneg %p90
        $region18: #{paper_generator_forward.1} parent=11 // pred_check_branch
          %230 = sbr.rel (%p228) target = $region20
        $region19: #{paper_generator_forward.1} parent=11 // pred_region
          %s232 = ssub.s32 16, 16
          %233 = vsyncadd [#allocation6], %s232
          %s235 = sshll.u32 [#allocation7], 4
          %s236 = int_to_ptr.vmem [resolvable:$true] %s235
          %238 = dma.hbm_to_vmem [thread:$0]  %s2, 16, %s236, [#allocation6]
        $region20: #{paper_generator_forward.1} parent=11 // pred_fallthru
          _
        // Predicated region
        $region21: #{paper_generator_forward.1} parent=11 // pred_check
          %p239 = pneg %p111
        $region22: #{paper_generator_forward.1} parent=11 // pred_check_branch
          %241 = sbr.rel (%p239) target = $region24
        $region23: #{paper_generator_forward.1} parent=11 // pred_region
          %s243 = ssub.s32 1024, 1024
          %244 = vsyncadd [#allocation9], %s243
          %s245 = sshll.u32 [#allocation8], 4
          %s246 = int_to_ptr.vmem [resolvable:$true] %s245
          %251 = dma.hbm_to_vmem [thread:$0]  %s3, 1024, %s246, [#allocation9], 64, 64, 4
        $region24: #{paper_generator_forward.1} parent=11 // pred_fallthru
          _
        // Predicated region
        $region25: #{paper_generator_forward.1} parent=11 // pred_check
          %p252 = pneg %p132
        $region26: #{paper_generator_forward.1} parent=11 // pred_check_branch
          %254 = sbr.rel (%p252) target = $region28
        $region27: #{paper_generator_forward.1} parent=11 // pred_region
          %s256 = ssub.s32 16, 16
          %257 = vsyncadd [#allocation9], %s256
          %s259 = sshll.u32 [#allocation10], 4
          %s260 = int_to_ptr.vmem [resolvable:$true] %s259
          %262 = dma.hbm_to_vmem [thread:$0]  %s4, 16, %s260, [#allocation9]
        $region28: #{paper_generator_forward.1} parent=11 // pred_fallthru
          _
        // Predicated region
        $region29: #{paper_generator_forward.1} parent=11 // pred_check
          %p263 = pneg %p153
        $region30: #{paper_generator_forward.1} parent=11 // pred_check_branch
          %265 = sbr.rel (%p263) target = $region32
        $region31: #{paper_generator_forward.1} parent=11 // pred_region
          %s267 = ssub.s32 16384, 16384
          %268 = vsyncadd [#allocation12], %s267
          %s269 = sshll.u32 [#allocation11], 4
          %s270 = int_to_ptr.vmem [resolvable:$true] %s269
          %275 = dma.hbm_to_vmem [thread:$0]  %s5, 16384, %s270, [#allocation12], 1024, 1024, 64
        $region32: #{paper_generator_forward.1} parent=11 // pred_fallthru
          _
        // Predicated region
        $region33: #{paper_generator_forward.1} parent=11 // pred_check
          %p276 = pneg %p174
        $region34: #{paper_generator_forward.1} parent=11 // pred_check_branch
          %278 = sbr.rel (%p276) target = $region36
        $region35: #{paper_generator_forward.1} parent=11 // pred_region
          %s280 = ssub.s32 256, 256
          %281 = vsyncadd [#allocation12], %s280
          %s283 = sshll.u32 [#allocation13], 4
          %s284 = int_to_ptr.vmem [resolvable:$true] %s283
          %286 = dma.hbm_to_vmem [thread:$0]  %s6, 256, %s284, [#allocation12]
        $region36: #{paper_generator_forward.1} parent=11 // pred_fallthru
          _
      $region12: #{paper_generator_forward.1} parent=5 // pred_fallthru
        _
      %p287 = scmp.lt.s32.totalorder %s22, 2
      // Predicated region
      $region37: #{paper_generator_forward.1} parent=5 // pred_check
        %p288 = pneg %p287
      $region38: #{paper_generator_forward.1} parent=5 // pred_check_branch
        %290 = sbr.rel (%p288) target = $region40
      $region39: #{paper_generator_forward.1} parent=5 // pred_region
        // Predicated region
        $region41: #{paper_generator_forward.1} parent=39 // pred_check
          %p291 = pneg %p42
        $region42: #{paper_generator_forward.1} parent=39 // pred_check_branch
          %293 = sbr.rel (%p291) target = $region44
        $region43: #{paper_generator_forward.1} parent=39 // pred_region
          %s294 = sand.u32 %s32, 1
          %s295 = scalar_lea.sflag [#allocation3], %s294
          %s296 = sand.u32 %s32, 1
          %s297 = smul.addr %s296, 2048
          %s298 = scalar_lea.vmem [#allocation2], %s297
          %s299 = smul.u32 8, %s22
          %s301 = ssub.s32 32768, 32768
          %302 = vsyncadd %s295, %s301
          %s303 = smul.addr %s299, 32
          %s304 = smul.addr %s303, 128
          %s305 = scalar_lea.hbm %s0, %s304
          %s306 = sshll.u32 %s298, 4
          %s307 = int_to_ptr.vmem [resolvable:$true] %s306
          %312 = dma.hbm_to_vmem [thread:$0]  %s305, 32768, %s307, %s295, 4096, 4096, 256
        $region44: #{paper_generator_forward.1} parent=39 // pred_fallthru
          _
      $region40: #{paper_generator_forward.1} parent=5 // pred_fallthru
        _
      %p313 = scmp.le.s32.totalorder 1, %s22
      %p314 = scmp.lt.s32.totalorder %s22, 3
      %p315 = pnand %p313, %p314
      %p316 = pneg %p315
      // Predicated region
      $region45: #{paper_generator_forward.1} parent=5 // pred_check
        _
      $region46: #{paper_generator_forward.1} parent=5 // pred_check_branch
        %318 = sbr.rel (%p315) target = $region48
      $region47: #{paper_generator_forward.1} parent=5 // pred_region
        %s319 = ssub.s32 %s22, 1
        %s320 = sand.u32 %s35, 1
        %s321 = scalar_lea.sflag [#allocation3], %s320
        %s322 = sand.u32 %s35, 1
        %s323 = smul.addr %s322, 2048
        %s324 = scalar_lea.vmem [#allocation2], %s323
        // Predicated region
        $region49: #{paper_generator_forward.1} parent=47 // pred_check
          %p325 = pneg %p48
        $region50: #{paper_generator_forward.1} parent=47 // pred_check_branch
          %327 = sbr.rel (%p325) target = $region52
        $region51: #{paper_generator_forward.1} parent=47 // pred_region
          %328 = dma.done %s321, 32768
        $region52: #{paper_generator_forward.1} parent=47 // pred_fallthru
          _
        // Predicated region
        $region53: #{paper_generator_forward.1} parent=47 // pred_check
          %p329 = pneg %p69
        $region54: #{paper_generator_forward.1} parent=47 // pred_check_branch
          %331 = sbr.rel (%p329) target = $region56
        $region55: #{paper_generator_forward.1} parent=47 // pred_region
          %332 = dma.done [#allocation6], 32768
        $region56: #{paper_generator_forward.1} parent=47 // pred_fallthru
          _
        // Predicated region
        $region57: #{paper_generator_forward.1} parent=47 // pred_check
          %p333 = pneg %p90
        $region58: #{paper_generator_forward.1} parent=47 // pred_check_branch
          %335 = sbr.rel (%p333) target = $region60
        $region59: #{paper_generator_forward.1} parent=47 // pred_region
          %336 = dma.done [#allocation6], 16
        $region60: #{paper_generator_forward.1} parent=47 // pred_fallthru
          _
        // Predicated region
        $region61: #{paper_generator_forward.1} parent=47 // pred_check
          %p337 = pneg %p111
        $region62: #{paper_generator_forward.1} parent=47 // pred_check_branch
          %339 = sbr.rel (%p337) target = $region64
        $region63: #{paper_generator_forward.1} parent=47 // pred_region
          %340 = dma.done [#allocation9], 1024
        $region64: #{paper_generator_forward.1} parent=47 // pred_fallthru
          _
        // Predicated region
        $region65: #{paper_generator_forward.1} parent=47 // pred_check
          %p341 = pneg %p132
        $region66: #{paper_generator_forward.1} parent=47 // pred_check_branch
          %343 = sbr.rel (%p341) target = $region68
        $region67: #{paper_generator_forward.1} parent=47 // pred_region
          %344 = dma.done [#allocation9], 16
        $region68: #{paper_generator_forward.1} parent=47 // pred_fallthru
          _
        // Predicated region
        $region69: #{paper_generator_forward.1} parent=47 // pred_check
          %p345 = pneg %p153
        $region70: #{paper_generator_forward.1} parent=47 // pred_check_branch
          %347 = sbr.rel (%p345) target = $region72
        $region71: #{paper_generator_forward.1} parent=47 // pred_region
          %348 = dma.done [#allocation12], 16384
        $region72: #{paper_generator_forward.1} parent=47 // pred_fallthru
          _
        // Predicated region
        $region73: #{paper_generator_forward.1} parent=47 // pred_check
          %p349 = pneg %p174
        $region74: #{paper_generator_forward.1} parent=47 // pred_check_branch
          %351 = sbr.rel (%p349) target = $region76
        $region75: #{paper_generator_forward.1} parent=47 // pred_region
          %352 = dma.done [#allocation12], 256
        $region76: #{paper_generator_forward.1} parent=47 // pred_fallthru
          _
        %s353 = sand.u32 %s35, 1
        %s354 = scalar_lea.sflag [#allocation3], %s353
        %s355 = sand.u32 %s35, 1
        %s356 = smul.addr %s355, 2048
        %s357 = scalar_lea.vmem [#allocation2], %s356
        %p358 = pneg %p48
        %p359 = pneg %p45
        %p360 = pneg %p69
        %p361 = pneg %p66
        %p362 = pneg %p90
        %p363 = pneg %p87
        %p364 = pneg %p111
        %p365 = pneg %p108
        %p366 = pneg %p132
        %p367 = pneg %p129
        %p368 = pneg %p153
        %p369 = pneg %p150
        %p370 = pneg %p174
        %p371 = pneg %p171
        %p372 = pneg %p200
        %p373 = pneg %p197
        %s374 = sand.u32 %s187, 1
        %s375 = scalar_lea.sflag [#allocation4], %s374
        %s376 = sand.u32 %s187, 1
        %s377 = smul.addr %s376, 1024
        %s378 = scalar_lea.vmem [#allocation14], %s377
        %s379 = smul.u32 8, %s27
        %s380 = smul.u32 8, %s27
        %v382 = vld [vmem:[%s324] sm:$0xff]
        %v383 = vld [vmem:[%s324 + $0x8] sm:$0xff]
        %v384 = vld [vmem:[%s324 + $0x10] sm:$0xff]
        %v385 = vld [vmem:[%s324 + $0x18] sm:$0xff]
        %v386 = vld [vmem:[%s324 + $0x20] sm:$0xff]
        %v387 = vld [vmem:[%s324 + $0x28] sm:$0xff]
        %v388 = vld [vmem:[%s324 + $0x30] sm:$0xff]
        %v389 = vld [vmem:[%s324 + $0x38] sm:$0xff]
        %v390 = vld [vmem:[%s324 + $0x40] sm:$0xff]
        %v391 = vld [vmem:[%s324 + $0x48] sm:$0xff]
        %v392 = vld [vmem:[%s324 + $0x50] sm:$0xff]
        %v393 = vld [vmem:[%s324 + $0x58] sm:$0xff]
        %v394 = vld [vmem:[%s324 + $0x60] sm:$0xff]
        %v395 = vld [vmem:[%s324 + $0x68] sm:$0xff]
        %v396 = vld [vmem:[%s324 + $0x70] sm:$0xff]
        %v397 = vld [vmem:[%s324 + $0x78] sm:$0xff]
        %v398 = vld [vmem:[%s324 + $0x80] sm:$0xff]
        %v399 = vld [vmem:[%s324 + $0x88] sm:$0xff]
        %v400 = vld [vmem:[%s324 + $0x90] sm:$0xff]
        %v401 = vld [vmem:[%s324 + $0x98] sm:$0xff]
        %v402 = vld [vmem:[%s324 + $0xa0] sm:$0xff]
        %v403 = vld [vmem:[%s324 + $0xa8] sm:$0xff]
        %v404 = vld [vmem:[%s324 + $0xb0] sm:$0xff]
        %v405 = vld [vmem:[%s324 + $0xb8] sm:$0xff]
        %v406 = vld [vmem:[%s324 + $0xc0] sm:$0xff]
        %v407 = vld [vmem:[%s324 + $0xc8] sm:$0xff]
        %v408 = vld [vmem:[%s324 + $0xd0] sm:$0xff]
        %v409 = vld [vmem:[%s324 + $0xd8] sm:$0xff]
        %v410 = vld [vmem:[%s324 + $0xe0] sm:$0xff]
        %v411 = vld [vmem:[%s324 + $0xe8] sm:$0xff]
        %v412 = vld [vmem:[%s324 + $0xf0] sm:$0xff]
        %v413 = vld [vmem:[%s324 + $0xf8] sm:$0xff]
        %v414 = vld [vmem:[%s324 + $0x100] sm:$0xff]
        %v415 = vld [vmem:[%s324 + $0x108] sm:$0xff]
        %v416 = vld [vmem:[%s324 + $0x110] sm:$0xff]
        %v417 = vld [vmem:[%s324 + $0x118] sm:$0xff]
        %v418 = vld [vmem:[%s324 + $0x120] sm:$0xff]
        %v419 = vld [vmem:[%s324 + $0x128] sm:$0xff]
        %v420 = vld [vmem:[%s324 + $0x130] sm:$0xff]
        %v421 = vld [vmem:[%s324 + $0x138] sm:$0xff]
        %v422 = vld [vmem:[%s324 + $0x140] sm:$0xff]
        %v423 = vld [vmem:[%s324 + $0x148] sm:$0xff]
        %v424 = vld [vmem:[%s324 + $0x150] sm:$0xff]
        %v425 = vld [vmem:[%s324 + $0x158] sm:$0xff]
        %v426 = vld [vmem:[%s324 + $0x160] sm:$0xff]
        %v427 = vld [vmem:[%s324 + $0x168] sm:$0xff]
        %v428 = vld [vmem:[%s324 + $0x170] sm:$0xff]
        %v429 = vld [vmem:[%s324 + $0x178] sm:$0xff]
        %v430 = vld [vmem:[%s324 + $0x180] sm:$0xff]
        %v431 = vld [vmem:[%s324 + $0x188] sm:$0xff]
        %v432 = vld [vmem:[%s324 + $0x190] sm:$0xff]
        %v433 = vld [vmem:[%s324 + $0x198] sm:$0xff]
        %v434 = vld [vmem:[%s324 + $0x1a0] sm:$0xff]
        %v435 = vld [vmem:[%s324 + $0x1a8] sm:$0xff]
        %v436 = vld [vmem:[%s324 + $0x1b0] sm:$0xff]
        %v437 = vld [vmem:[%s324 + $0x1b8] sm:$0xff]
        %v438 = vld [vmem:[%s324 + $0x1c0] sm:$0xff]
        %v439 = vld [vmem:[%s324 + $0x1c8] sm:$0xff]
        %v440 = vld [vmem:[%s324 + $0x1d0] sm:$0xff]
        %v441 = vld [vmem:[%s324 + $0x1d8] sm:$0xff]
        %v442 = vld [vmem:[%s324 + $0x1e0] sm:$0xff]
        %v443 = vld [vmem:[%s324 + $0x1e8] sm:$0xff]
        %v444 = vld [vmem:[%s324 + $0x1f0] sm:$0xff]
        %v445 = vld [vmem:[%s324 + $0x1f8] sm:$0xff]
        %v446 = vld [vmem:[%s324 + $0x200] sm:$0xff]
        %v447 = vld [vmem:[%s324 + $0x208] sm:$0xff]
        %v448 = vld [vmem:[%s324 + $0x210] sm:$0xff]
        %v449 = vld [vmem:[%s324 + $0x218] sm:$0xff]
        %v450 = vld [vmem:[%s324 + $0x220] sm:$0xff]
        %v451 = vld [vmem:[%s324 + $0x228] sm:$0xff]
        %v452 = vld [vmem:[%s324 + $0x230] sm:$0xff]
        %v453 = vld [vmem:[%s324 + $0x238] sm:$0xff]
        %v454 = vld [vmem:[%s324 + $0x240] sm:$0xff]
        %v455 = vld [vmem:[%s324 + $0x248] sm:$0xff]
        %v456 = vld [vmem:[%s324 + $0x250] sm:$0xff]
        %v457 = vld [vmem:[%s324 + $0x258] sm:$0xff]
        %v458 = vld [vmem:[%s324 + $0x260] sm:$0xff]
        %v459 = vld [vmem:[%s324 + $0x268] sm:$0xff]
        %v460 = vld [vmem:[%s324 + $0x270] sm:$0xff]
        %v461 = vld [vmem:[%s324 + $0x278] sm:$0xff]
        %v462 = vld [vmem:[%s324 + $0x280] sm:$0xff]
        %v463 = vld [vmem:[%s324 + $0x288] sm:$0xff]
        %v464 = vld [vmem:[%s324 + $0x290] sm:$0xff]
        %v465 = vld [vmem:[%s324 + $0x298] sm:$0xff]
        %v466 = vld [vmem:[%s324 + $0x2a0] sm:$0xff]
        %v467 = vld [vmem:[%s324 + $0x2a8] sm:$0xff]
        %v468 = vld [vmem:[%s324 + $0x2b0] sm:$0xff]
        %v469 = vld [vmem:[%s324 + $0x2b8] sm:$0xff]
        %v470 = vld [vmem:[%s324 + $0x2c0] sm:$0xff]
        %v471 = vld [vmem:[%s324 + $0x2c8] sm:$0xff]
        %v472 = vld [vmem:[%s324 + $0x2d0] sm:$0xff]
        %v473 = vld [vmem:[%s324 + $0x2d8] sm:$0xff]
        %v474 = vld [vmem:[%s324 + $0x2e0] sm:$0xff]
        %v475 = vld [vmem:[%s324 + $0x2e8] sm:$0xff]
        %v476 = vld [vmem:[%s324 + $0x2f0] sm:$0xff]
        %v477 = vld [vmem:[%s324 + $0x2f8] sm:$0xff]
        %v478 = vld [vmem:[%s324 + $0x300] sm:$0xff]
        %v479 = vld [vmem:[%s324 + $0x308] sm:$0xff]
        %v480 = vld [vmem:[%s324 + $0x310] sm:$0xff]
        %v481 = vld [vmem:[%s324 + $0x318] sm:$0xff]
        %v482 = vld [vmem:[%s324 + $0x320] sm:$0xff]
        %v483 = vld [vmem:[%s324 + $0x328] sm:$0xff]
        %v484 = vld [vmem:[%s324 + $0x330] sm:$0xff]
        %v485 = vld [vmem:[%s324 + $0x338] sm:$0xff]
        %v486 = vld [vmem:[%s324 + $0x340] sm:$0xff]
        %v487 = vld [vmem:[%s324 + $0x348] sm:$0xff]
        %v488 = vld [vmem:[%s324 + $0x350] sm:$0xff]
        %v489 = vld [vmem:[%s324 + $0x358] sm:$0xff]
        %v490 = vld [vmem:[%s324 + $0x360] sm:$0xff]
        %v491 = vld [vmem:[%s324 + $0x368] sm:$0xff]
        %v492 = vld [vmem:[%s324 + $0x370] sm:$0xff]
        %v493 = vld [vmem:[%s324 + $0x378] sm:$0xff]
        %v494 = vld [vmem:[%s324 + $0x380] sm:$0xff]
        %v495 = vld [vmem:[%s324 + $0x388] sm:$0xff]
        %v496 = vld [vmem:[%s324 + $0x390] sm:$0xff]
        %v497 = vld [vmem:[%s324 + $0x398] sm:$0xff]
        %v498 = vld [vmem:[%s324 + $0x3a0] sm:$0xff]
        %v499 = vld [vmem:[%s324 + $0x3a8] sm:$0xff]
        %v500 = vld [vmem:[%s324 + $0x3b0] sm:$0xff]
        %v501 = vld [vmem:[%s324 + $0x3b8] sm:$0xff]
        %v502 = vld [vmem:[%s324 + $0x3c0] sm:$0xff]
        %v503 = vld [vmem:[%s324 + $0x3c8] sm:$0xff]
        %v504 = vld [vmem:[%s324 + $0x3d0] sm:$0xff]
        %v505 = vld [vmem:[%s324 + $0x3d8] sm:$0xff]
        %v506 = vld [vmem:[%s324 + $0x3e0] sm:$0xff]
        %v507 = vld [vmem:[%s324 + $0x3e8] sm:$0xff]
        %v508 = vld [vmem:[%s324 + $0x3f0] sm:$0xff]
        %v509 = vld [vmem:[%s324 + $0x3f8] sm:$0xff]
        %v510 = vld [vmem:[%s324 + $0x400] sm:$0xff]
        %v511 = vld [vmem:[%s324 + $0x408] sm:$0xff]
        %v512 = vld [vmem:[%s324 + $0x410] sm:$0xff]
        %v513 = vld [vmem:[%s324 + $0x418] sm:$0xff]
        %v514 = vld [vmem:[%s324 + $0x420] sm:$0xff]
        %v515 = vld [vmem:[%s324 + $0x428] sm:$0xff]
        %v516 = vld [vmem:[%s324 + $0x430] sm:$0xff]
        %v517 = vld [vmem:[%s324 + $0x438] sm:$0xff]
        %v518 = vld [vmem:[%s324 + $0x440] sm:$0xff]
        %v519 = vld [vmem:[%s324 + $0x448] sm:$0xff]
        %v520 = vld [vmem:[%s324 + $0x450] sm:$0xff]
        %v521 = vld [vmem:[%s324 + $0x458] sm:$0xff]
        %v522 = vld [vmem:[%s324 + $0x460] sm:$0xff]
        %v523 = vld [vmem:[%s324 + $0x468] sm:$0xff]
        %v524 = vld [vmem:[%s324 + $0x470] sm:$0xff]
        %v525 = vld [vmem:[%s324 + $0x478] sm:$0xff]
        %v526 = vld [vmem:[%s324 + $0x480] sm:$0xff]
        %v527 = vld [vmem:[%s324 + $0x488] sm:$0xff]
        %v528 = vld [vmem:[%s324 + $0x490] sm:$0xff]
        %v529 = vld [vmem:[%s324 + $0x498] sm:$0xff]
        %v530 = vld [vmem:[%s324 + $0x4a0] sm:$0xff]
        %v531 = vld [vmem:[%s324 + $0x4a8] sm:$0xff]
        %v532 = vld [vmem:[%s324 + $0x4b0] sm:$0xff]
        %v533 = vld [vmem:[%s324 + $0x4b8] sm:$0xff]
        %v534 = vld [vmem:[%s324 + $0x4c0] sm:$0xff]
        %v535 = vld [vmem:[%s324 + $0x4c8] sm:$0xff]
        %v536 = vld [vmem:[%s324 + $0x4d0] sm:$0xff]
        %v537 = vld [vmem:[%s324 + $0x4d8] sm:$0xff]
        %v538 = vld [vmem:[%s324 + $0x4e0] sm:$0xff]
        %v539 = vld [vmem:[%s324 + $0x4e8] sm:$0xff]
        %v540 = vld [vmem:[%s324 + $0x4f0] sm:$0xff]
        %v541 = vld [vmem:[%s324 + $0x4f8] sm:$0xff]
        %v542 = vld [vmem:[%s324 + $0x500] sm:$0xff]
        %v543 = vld [vmem:[%s324 + $0x508] sm:$0xff]
        %v544 = vld [vmem:[%s324 + $0x510] sm:$0xff]
        %v545 = vld [vmem:[%s324 + $0x518] sm:$0xff]
        %v546 = vld [vmem:[%s324 + $0x520] sm:$0xff]
        %v547 = vld [vmem:[%s324 + $0x528] sm:$0xff]
        %v548 = vld [vmem:[%s324 + $0x530] sm:$0xff]
        %v549 = vld [vmem:[%s324 + $0x538] sm:$0xff]
        %v550 = vld [vmem:[%s324 + $0x540] sm:$0xff]
        %v551 = vld [vmem:[%s324 + $0x548] sm:$0xff]
        %v552 = vld [vmem:[%s324 + $0x550] sm:$0xff]
        %v553 = vld [vmem:[%s324 + $0x558] sm:$0xff]
        %v554 = vld [vmem:[%s324 + $0x560] sm:$0xff]
        %v555 = vld [vmem:[%s324 + $0x568] sm:$0xff]
        %v556 = vld [vmem:[%s324 + $0x570] sm:$0xff]
        %v557 = vld [vmem:[%s324 + $0x578] sm:$0xff]
        %v558 = vld [vmem:[%s324 + $0x580] sm:$0xff]
        %v559 = vld [vmem:[%s324 + $0x588] sm:$0xff]
        %v560 = vld [vmem:[%s324 + $0x590] sm:$0xff]
        %v561 = vld [vmem:[%s324 + $0x598] sm:$0xff]
        %v562 = vld [vmem:[%s324 + $0x5a0] sm:$0xff]
        %v563 = vld [vmem:[%s324 + $0x5a8] sm:$0xff]
        %v564 = vld [vmem:[%s324 + $0x5b0] sm:$0xff]
        %v565 = vld [vmem:[%s324 + $0x5b8] sm:$0xff]
        %v566 = vld [vmem:[%s324 + $0x5c0] sm:$0xff]
        %v567 = vld [vmem:[%s324 + $0x5c8] sm:$0xff]
        %v568 = vld [vmem:[%s324 + $0x5d0] sm:$0xff]
        %v569 = vld [vmem:[%s324 + $0x5d8] sm:$0xff]
        %v570 = vld [vmem:[%s324 + $0x5e0] sm:$0xff]
        %v571 = vld [vmem:[%s324 + $0x5e8] sm:$0xff]
        %v572 = vld [vmem:[%s324 + $0x5f0] sm:$0xff]
        %v573 = vld [vmem:[%s324 + $0x5f8] sm:$0xff]
        %v574 = vld [vmem:[%s324 + $0x600] sm:$0xff]
        %v575 = vld [vmem:[%s324 + $0x608] sm:$0xff]
        %v576 = vld [vmem:[%s324 + $0x610] sm:$0xff]
        %v577 = vld [vmem:[%s324 + $0x618] sm:$0xff]
        %v578 = vld [vmem:[%s324 + $0x620] sm:$0xff]
        %v579 = vld [vmem:[%s324 + $0x628] sm:$0xff]
        %v580 = vld [vmem:[%s324 + $0x630] sm:$0xff]
        %v581 = vld [vmem:[%s324 + $0x638] sm:$0xff]
        %v582 = vld [vmem:[%s324 + $0x640] sm:$0xff]
        %v583 = vld [vmem:[%s324 + $0x648] sm:$0xff]
        %v584 = vld [vmem:[%s324 + $0x650] sm:$0xff]
        %v585 = vld [vmem:[%s324 + $0x658] sm:$0xff]
        %v586 = vld [vmem:[%s324 + $0x660] sm:$0xff]
        %v587 = vld [vmem:[%s324 + $0x668] sm:$0xff]
        %v588 = vld [vmem:[%s324 + $0x670] sm:$0xff]
        %v589 = vld [vmem:[%s324 + $0x678] sm:$0xff]
        %v590 = vld [vmem:[%s324 + $0x680] sm:$0xff]
        %v591 = vld [vmem:[%s324 + $0x688] sm:$0xff]
        %v592 = vld [vmem:[%s324 + $0x690] sm:$0xff]
        %v593 = vld [vmem:[%s324 + $0x698] sm:$0xff]
        %v594 = vld [vmem:[%s324 + $0x6a0] sm:$0xff]
        %v595 = vld [vmem:[%s324 + $0x6a8] sm:$0xff]
        %v596 = vld [vmem:[%s324 + $0x6b0] sm:$0xff]
        %v597 = vld [vmem:[%s324 + $0x6b8] sm:$0xff]
        %v598 = vld [vmem:[%s324 + $0x6c0] sm:$0xff]
        %v599 = vld [vmem:[%s324 + $0x6c8] sm:$0xff]
        %v600 = vld [vmem:[%s324 + $0x6d0] sm:$0xff]
        %v601 = vld [vmem:[%s324 + $0x6d8] sm:$0xff]
        %v602 = vld [vmem:[%s324 + $0x6e0] sm:$0xff]
        %v603 = vld [vmem:[%s324 + $0x6e8] sm:$0xff]
        %v604 = vld [vmem:[%s324 + $0x6f0] sm:$0xff]
        %v605 = vld [vmem:[%s324 + $0x6f8] sm:$0xff]
        %v606 = vld [vmem:[%s324 + $0x700] sm:$0xff]
        %v607 = vld [vmem:[%s324 + $0x708] sm:$0xff]
        %v608 = vld [vmem:[%s324 + $0x710] sm:$0xff]
        %v609 = vld [vmem:[%s324 + $0x718] sm:$0xff]
        %v610 = vld [vmem:[%s324 + $0x720] sm:$0xff]
        %v611 = vld [vmem:[%s324 + $0x728] sm:$0xff]
        %v612 = vld [vmem:[%s324 + $0x730] sm:$0xff]
        %v613 = vld [vmem:[%s324 + $0x738] sm:$0xff]
        %v614 = vld [vmem:[%s324 + $0x740] sm:$0xff]
        %v615 = vld [vmem:[%s324 + $0x748] sm:$0xff]
        %v616 = vld [vmem:[%s324 + $0x750] sm:$0xff]
        %v617 = vld [vmem:[%s324 + $0x758] sm:$0xff]
        %v618 = vld [vmem:[%s324 + $0x760] sm:$0xff]
        %v619 = vld [vmem:[%s324 + $0x768] sm:$0xff]
        %v620 = vld [vmem:[%s324 + $0x770] sm:$0xff]
        %v621 = vld [vmem:[%s324 + $0x778] sm:$0xff]
        %v622 = vld [vmem:[%s324 + $0x780] sm:$0xff]
        %v623 = vld [vmem:[%s324 + $0x788] sm:$0xff]
        %v624 = vld [vmem:[%s324 + $0x790] sm:$0xff]
        %v625 = vld [vmem:[%s324 + $0x798] sm:$0xff]
        %v626 = vld [vmem:[%s324 + $0x7a0] sm:$0xff]
        %v627 = vld [vmem:[%s324 + $0x7a8] sm:$0xff]
        %v628 = vld [vmem:[%s324 + $0x7b0] sm:$0xff]
        %v629 = vld [vmem:[%s324 + $0x7b8] sm:$0xff]
        %v630 = vld [vmem:[%s324 + $0x7c0] sm:$0xff]
        %v631 = vld [vmem:[%s324 + $0x7c8] sm:$0xff]
        %v632 = vld [vmem:[%s324 + $0x7d0] sm:$0xff]
        %v633 = vld [vmem:[%s324 + $0x7d8] sm:$0xff]
        %v634 = vld [vmem:[%s324 + $0x7e0] sm:$0xff]
        %v635 = vld [vmem:[%s324 + $0x7e8] sm:$0xff]
        %v636 = vld [vmem:[%s324 + $0x7f0] sm:$0xff]
        %v637 = vld [vmem:[%s324 + $0x7f8] sm:$0xff]
        %v638 = vpack.c.bf16 %v414, %v382
        %v639 = vpack.c.bf16 %v415, %v383
        %v640 = vpack.c.bf16 %v416, %v384
        %v641 = vpack.c.bf16 %v417, %v385
        %v642 = vpack.c.bf16 %v418, %v386
        %v643 = vpack.c.bf16 %v419, %v387
        %v644 = vpack.c.bf16 %v420, %v388
        %v645 = vpack.c.bf16 %v421, %v389
        %v646 = vpack.c.bf16 %v422, %v390
        %v647 = vpack.c.bf16 %v423, %v391
        %v648 = vpack.c.bf16 %v424, %v392
        %v649 = vpack.c.bf16 %v425, %v393
        %v650 = vpack.c.bf16 %v426, %v394
        %v651 = vpack.c.bf16 %v427, %v395
        %v652 = vpack.c.bf16 %v428, %v396
        %v653 = vpack.c.bf16 %v429, %v397
        %v654 = vpack.c.bf16 %v430, %v398
        %v655 = vpack.c.bf16 %v431, %v399
        %v656 = vpack.c.bf16 %v432, %v400
        %v657 = vpack.c.bf16 %v433, %v401
        %v658 = vpack.c.bf16 %v434, %v402
        %v659 = vpack.c.bf16 %v435, %v403
        %v660 = vpack.c.bf16 %v436, %v404
        %v661 = vpack.c.bf16 %v437, %v405
        %v662 = vpack.c.bf16 %v438, %v406
        %v663 = vpack.c.bf16 %v439, %v407
        %v664 = vpack.c.bf16 %v440, %v408
        %v665 = vpack.c.bf16 %v441, %v409
        %v666 = vpack.c.bf16 %v442, %v410
        %v667 = vpack.c.bf16 %v443, %v411
        %v668 = vpack.c.bf16 %v444, %v412
        %v669 = vpack.c.bf16 %v445, %v413
        %v670 = vpack.c.bf16 %v478, %v446
        %v671 = vpack.c.bf16 %v479, %v447
        %v672 = vpack.c.bf16 %v480, %v448
        %v673 = vpack.c.bf16 %v481, %v449
        %v674 = vpack.c.bf16 %v482, %v450
        %v675 = vpack.c.bf16 %v483, %v451
        %v676 = vpack.c.bf16 %v484, %v452
        %v677 = vpack.c.bf16 %v485, %v453
        %v678 = vpack.c.bf16 %v486, %v454
        %v679 = vpack.c.bf16 %v487, %v455
        %v680 = vpack.c.bf16 %v488, %v456
        %v681 = vpack.c.bf16 %v489, %v457
        %v682 = vpack.c.bf16 %v490, %v458
        %v683 = vpack.c.bf16 %v491, %v459
        %v684 = vpack.c.bf16 %v492, %v460
        %v685 = vpack.c.bf16 %v493, %v461
        %v686 = vpack.c.bf16 %v494, %v462
        %v687 = vpack.c.bf16 %v495, %v463
        %v688 = vpack.c.bf16 %v496, %v464
        %v689 = vpack.c.bf16 %v497, %v465
        %v690 = vpack.c.bf16 %v498, %v466
        %v691 = vpack.c.bf16 %v499, %v467
        %v692 = vpack.c.bf16 %v500, %v468
        %v693 = vpack.c.bf16 %v501, %v469
        %v694 = vpack.c.bf16 %v502, %v470
        %v695 = vpack.c.bf16 %v503, %v471
        %v696 = vpack.c.bf16 %v504, %v472
        %v697 = vpack.c.bf16 %v505, %v473
        %v698 = vpack.c.bf16 %v506, %v474
        %v699 = vpack.c.bf16 %v507, %v475
        %v700 = vpack.c.bf16 %v508, %v476
        %v701 = vpack.c.bf16 %v509, %v477
        %v702 = vpack.c.bf16 %v542, %v510
        %v703 = vpack.c.bf16 %v543, %v511
        %v704 = vpack.c.bf16 %v544, %v512
        %v705 = vpack.c.bf16 %v545, %v513
        %v706 = vpack.c.bf16 %v546, %v514
        %v707 = vpack.c.bf16 %v547, %v515
        %v708 = vpack.c.bf16 %v548, %v516
        %v709 = vpack.c.bf16 %v549, %v517
        %v710 = vpack.c.bf16 %v550, %v518
        %v711 = vpack.c.bf16 %v551, %v519
        %v712 = vpack.c.bf16 %v552, %v520
        %v713 = vpack.c.bf16 %v553, %v521
        %v714 = vpack.c.bf16 %v554, %v522
        %v715 = vpack.c.bf16 %v555, %v523
        %v716 = vpack.c.bf16 %v556, %v524
        %v717 = vpack.c.bf16 %v557, %v525
        %v718 = vpack.c.bf16 %v558, %v526
        %v719 = vpack.c.bf16 %v559, %v527
        %v720 = vpack.c.bf16 %v560, %v528
        %v721 = vpack.c.bf16 %v561, %v529
        %v722 = vpack.c.bf16 %v562, %v530
        %v723 = vpack.c.bf16 %v563, %v531
        %v724 = vpack.c.bf16 %v564, %v532
        %v725 = vpack.c.bf16 %v565, %v533
        %v726 = vpack.c.bf16 %v566, %v534
        %v727 = vpack.c.bf16 %v567, %v535
        %v728 = vpack.c.bf16 %v568, %v536
        %v729 = vpack.c.bf16 %v569, %v537
        %v730 = vpack.c.bf16 %v570, %v538
        %v731 = vpack.c.bf16 %v571, %v539
        %v732 = vpack.c.bf16 %v572, %v540
        %v733 = vpack.c.bf16 %v573, %v541
        %v734 = vpack.c.bf16 %v606, %v574
        %v735 = vpack.c.bf16 %v607, %v575
        %v736 = vpack.c.bf16 %v608, %v576
        %v737 = vpack.c.bf16 %v609, %v577
        %v738 = vpack.c.bf16 %v610, %v578
        %v739 = vpack.c.bf16 %v611, %v579
        %v740 = vpack.c.bf16 %v612, %v580
        %v741 = vpack.c.bf16 %v613, %v581
        %v742 = vpack.c.bf16 %v614, %v582
        %v743 = vpack.c.bf16 %v615, %v583
        %v744 = vpack.c.bf16 %v616, %v584
        %v745 = vpack.c.bf16 %v617, %v585
        %v746 = vpack.c.bf16 %v618, %v586
        %v747 = vpack.c.bf16 %v619, %v587
        %v748 = vpack.c.bf16 %v620, %v588
        %v749 = vpack.c.bf16 %v621, %v589
        %v750 = vpack.c.bf16 %v622, %v590
        %v751 = vpack.c.bf16 %v623, %v591
        %v752 = vpack.c.bf16 %v624, %v592
        %v753 = vpack.c.bf16 %v625, %v593
        %v754 = vpack.c.bf16 %v626, %v594
        %v755 = vpack.c.bf16 %v627, %v595
        %v756 = vpack.c.bf16 %v628, %v596
        %v757 = vpack.c.bf16 %v629, %v597
        %v758 = vpack.c.bf16 %v630, %v598
        %v759 = vpack.c.bf16 %v631, %v599
        %v760 = vpack.c.bf16 %v632, %v600
        %v761 = vpack.c.bf16 %v633, %v601
        %v762 = vpack.c.bf16 %v634, %v602
        %v763 = vpack.c.bf16 %v635, %v603
        %v764 = vpack.c.bf16 %v636, %v604
        %v765 = vpack.c.bf16 %v637, %v605
        %v766 = vld [vmem:[#allocation5] sm:$0xf]
        %v767 = vld [vmem:[#allocation5 + $0x4] sm:$0xf]
        %v768 = vld [vmem:[#allocation5 + $0x8] sm:$0xf]
        %v769 = vld [vmem:[#allocation5 + $0xc] sm:$0xf]
        %v770 = vld [vmem:[#allocation5 + $0x10] sm:$0xf]
        %v771 = vld [vmem:[#allocation5 + $0x14] sm:$0xf]
        %v772 = vld [vmem:[#allocation5 + $0x18] sm:$0xf]
        %v773 = vld [vmem:[#allocation5 + $0x1c] sm:$0xf]
        %v774 = vld [vmem:[#allocation5 + $0x20] sm:$0xf]
        %v775 = vld [vmem:[#allocation5 + $0x24] sm:$0xf]
        %v776 = vld [vmem:[#allocation5 + $0x28] sm:$0xf]
        %v777 = vld [vmem:[#allocation5 + $0x2c] sm:$0xf]
        %v778 = vld [vmem:[#allocation5 + $0x30] sm:$0xf]
        %v779 = vld [vmem:[#allocation5 + $0x34] sm:$0xf]
        %v780 = vld [vmem:[#allocation5 + $0x38] sm:$0xf]
        %v781 = vld [vmem:[#allocation5 + $0x3c] sm:$0xf]
        %v782 = vld [vmem:[#allocation5 + $0x40] sm:$0xf]
        %v783 = vld [vmem:[#allocation5 + $0x44] sm:$0xf]
        %v784 = vld [vmem:[#allocation5 + $0x48] sm:$0xf]
        %v785 = vld [vmem:[#allocation5 + $0x4c] sm:$0xf]
        %v786 = vld [vmem:[#allocation5 + $0x50] sm:$0xf]
        %v787 = vld [vmem:[#allocation5 + $0x54] sm:$0xf]
        %v788 = vld [vmem:[#allocation5 + $0x58] sm:$0xf]
        %v789 = vld [vmem:[#allocation5 + $0x5c] sm:$0xf]
        %v790 = vld [vmem:[#allocation5 + $0x60] sm:$0xf]
        %v791 = vld [vmem:[#allocation5 + $0x64] sm:$0xf]
        %v792 = vld [vmem:[#allocation5 + $0x68] sm:$0xf]
        %v793 = vld [vmem:[#allocation5 + $0x6c] sm:$0xf]
        %v794 = vld [vmem:[#allocation5 + $0x70] sm:$0xf]
        %v795 = vld [vmem:[#allocation5 + $0x74] sm:$0xf]
        %v796 = vld [vmem:[#allocation5 + $0x78] sm:$0xf]
        %v797 = vld [vmem:[#allocation5 + $0x7c] sm:$0xf]
        %v798 = vld [vmem:[#allocation5 + $0x80] sm:$0xf]
        %v799 = vld [vmem:[#allocation5 + $0x84] sm:$0xf]
        %v800 = vld [vmem:[#allocation5 + $0x88] sm:$0xf]
        %v801 = vld [vmem:[#allocation5 + $0x8c] sm:$0xf]
        %v802 = vld [vmem:[#allocation5 + $0x90] sm:$0xf]
        %v803 = vld [vmem:[#allocation5 + $0x94] sm:$0xf]
        %v804 = vld [vmem:[#allocation5 + $0x98] sm:$0xf]
        %v805 = vld [vmem:[#allocation5 + $0x9c] sm:$0xf]
        %v806 = vld [vmem:[#allocation5 + $0xa0] sm:$0xf]
        %v807 = vld [vmem:[#allocation5 + $0xa4] sm:$0xf]
        %v808 = vld [vmem:[#allocation5 + $0xa8] sm:$0xf]
        %v809 = vld [vmem:[#allocation5 + $0xac] sm:$0xf]
        %v810 = vld [vmem:[#allocation5 + $0xb0] sm:$0xf]
        %v811 = vld [vmem:[#allocation5 + $0xb4] sm:$0xf]
        %v812 = vld [vmem:[#allocation5 + $0xb8] sm:$0xf]
        %v813 = vld [vmem:[#allocation5 + $0xbc] sm:$0xf]
        %v814 = vld [vmem:[#allocation5 + $0xc0] sm:$0xf]
        %v815 = vld [vmem:[#allocation5 + $0xc4] sm:$0xf]
        %v816 = vld [vmem:[#allocation5 + $0xc8] sm:$0xf]
        %v817 = vld [vmem:[#allocation5 + $0xcc] sm:$0xf]
        %v818 = vld [vmem:[#allocation5 + $0xd0] sm:$0xf]
        %v819 = vld [vmem:[#allocation5 + $0xd4] sm:$0xf]
        %v820 = vld [vmem:[#allocation5 + $0xd8] sm:$0xf]
        %v821 = vld [vmem:[#allocation5 + $0xdc] sm:$0xf]
        %v822 = vld [vmem:[#allocation5 + $0xe0] sm:$0xf]
        %v823 = vld [vmem:[#allocation5 + $0xe4] sm:$0xf]
        %v824 = vld [vmem:[#allocation5 + $0xe8] sm:$0xf]
        %v825 = vld [vmem:[#allocation5 + $0xec] sm:$0xf]
        %v826 = vld [vmem:[#allocation5 + $0xf0] sm:$0xf]
        %v827 = vld [vmem:[#allocation5 + $0xf4] sm:$0xf]
        %v828 = vld [vmem:[#allocation5 + $0xf8] sm:$0xf]
        %v829 = vld [vmem:[#allocation5 + $0xfc] sm:$0xf]
        %v830 = vld [vmem:[#allocation5 + $0x100] sm:$0xf]
        %v831 = vld [vmem:[#allocation5 + $0x104] sm:$0xf]
        %v832 = vld [vmem:[#allocation5 + $0x108] sm:$0xf]
        %v833 = vld [vmem:[#allocation5 + $0x10c] sm:$0xf]
        %v834 = vld [vmem:[#allocation5 + $0x110] sm:$0xf]
        %v835 = vld [vmem:[#allocation5 + $0x114] sm:$0xf]
        %v836 = vld [vmem:[#allocation5 + $0x118] sm:$0xf]
        %v837 = vld [vmem:[#allocation5 + $0x11c] sm:$0xf]
        %v838 = vld [vmem:[#allocation5 + $0x120] sm:$0xf]
        %v839 = vld [vmem:[#allocation5 + $0x124] sm:$0xf]
        %v840 = vld [vmem:[#allocation5 + $0x128] sm:$0xf]
        %v841 = vld [vmem:[#allocation5 + $0x12c] sm:$0xf]
        %v842 = vld [vmem:[#allocation5 + $0x130] sm:$0xf]
        %v843 = vld [vmem:[#allocation5 + $0x134] sm:$0xf]
        %v844 = vld [vmem:[#allocation5 + $0x138] sm:$0xf]
        %v845 = vld [vmem:[#allocation5 + $0x13c] sm:$0xf]
        %v846 = vld [vmem:[#allocation5 + $0x140] sm:$0xf]
        %v847 = vld [vmem:[#allocation5 + $0x144] sm:$0xf]
        %v848 = vld [vmem:[#allocation5 + $0x148] sm:$0xf]
        %v849 = vld [vmem:[#allocation5 + $0x14c] sm:$0xf]
        %v850 = vld [vmem:[#allocation5 + $0x150] sm:$0xf]
        %v851 = vld [vmem:[#allocation5 + $0x154] sm:$0xf]
        %v852 = vld [vmem:[#allocation5 + $0x158] sm:$0xf]
        %v853 = vld [vmem:[#allocation5 + $0x15c] sm:$0xf]
        %v854 = vld [vmem:[#allocation5 + $0x160] sm:$0xf]
        %v855 = vld [vmem:[#allocation5 + $0x164] sm:$0xf]
        %v856 = vld [vmem:[#allocation5 + $0x168] sm:$0xf]
        %v857 = vld [vmem:[#allocation5 + $0x16c] sm:$0xf]
        %v858 = vld [vmem:[#allocation5 + $0x170] sm:$0xf]
        %v859 = vld [vmem:[#allocation5 + $0x174] sm:$0xf]
        %v860 = vld [vmem:[#allocation5 + $0x178] sm:$0xf]
        %v861 = vld [vmem:[#allocation5 + $0x17c] sm:$0xf]
        %v862 = vld [vmem:[#allocation5 + $0x180] sm:$0xf]
        %v863 = vld [vmem:[#allocation5 + $0x184] sm:$0xf]
        %v864 = vld [vmem:[#allocation5 + $0x188] sm:$0xf]
        %v865 = vld [vmem:[#allocation5 + $0x18c] sm:$0xf]
        %v866 = vld [vmem:[#allocation5 + $0x190] sm:$0xf]
        %v867 = vld [vmem:[#allocation5 + $0x194] sm:$0xf]
        %v868 = vld [vmem:[#allocation5 + $0x198] sm:$0xf]
        %v869 = vld [vmem:[#allocation5 + $0x19c] sm:$0xf]
        %v870 = vld [vmem:[#allocation5 + $0x1a0] sm:$0xf]
        %v871 = vld [vmem:[#allocation5 + $0x1a4] sm:$0xf]
        %v872 = vld [vmem:[#allocation5 + $0x1a8] sm:$0xf]
        %v873 = vld [vmem:[#allocation5 + $0x1ac] sm:$0xf]
        %v874 = vld [vmem:[#allocation5 + $0x1b0] sm:$0xf]
        %v875 = vld [vmem:[#allocation5 + $0x1b4] sm:$0xf]
        %v876 = vld [vmem:[#allocation5 + $0x1b8] sm:$0xf]
        %v877 = vld [vmem:[#allocation5 + $0x1bc] sm:$0xf]
        %v878 = vld [vmem:[#allocation5 + $0x1c0] sm:$0xf]
        %v879 = vld [vmem:[#allocation5 + $0x1c4] sm:$0xf]
        %v880 = vld [vmem:[#allocation5 + $0x1c8] sm:$0xf]
        %v881 = vld [vmem:[#allocation5 + $0x1cc] sm:$0xf]
        %v882 = vld [vmem:[#allocation5 + $0x1d0] sm:$0xf]
        %v883 = vld [vmem:[#allocation5 + $0x1d4] sm:$0xf]
        %v884 = vld [vmem:[#allocation5 + $0x1d8] sm:$0xf]
        %v885 = vld [vmem:[#allocation5 + $0x1dc] sm:$0xf]
        %v886 = vld [vmem:[#allocation5 + $0x1e0] sm:$0xf]
        %v887 = vld [vmem:[#allocation5 + $0x1e4] sm:$0xf]
        %v888 = vld [vmem:[#allocation5 + $0x1e8] sm:$0xf]
        %v889 = vld [vmem:[#allocation5 + $0x1ec] sm:$0xf]
        %v890 = vld [vmem:[#allocation5 + $0x1f0] sm:$0xf]
        %v891 = vld [vmem:[#allocation5 + $0x1f4] sm:$0xf]
        %v892 = vld [vmem:[#allocation5 + $0x1f8] sm:$0xf]
        %v893 = vld [vmem:[#allocation5 + $0x1fc] sm:$0xf]
        %v894 = vld [vmem:[#allocation5 + $0x200] sm:$0xf]
        %v895 = vld [vmem:[#allocation5 + $0x204] sm:$0xf]
        %v896 = vld [vmem:[#allocation5 + $0x208] sm:$0xf]
        %v897 = vld [vmem:[#allocation5 + $0x20c] sm:$0xf]
        %v898 = vld [vmem:[#allocation5 + $0x210] sm:$0xf]
        %v899 = vld [vmem:[#allocation5 + $0x214] sm:$0xf]
        %v900 = vld [vmem:[#allocation5 + $0x218] sm:$0xf]
        %v901 = vld [vmem:[#allocation5 + $0x21c] sm:$0xf]
        %v902 = vld [vmem:[#allocation5 + $0x220] sm:$0xf]
        %v903 = vld [vmem:[#allocation5 + $0x224] sm:$0xf]
        %v904 = vld [vmem:[#allocation5 + $0x228] sm:$0xf]
        %v905 = vld [vmem:[#allocation5 + $0x22c] sm:$0xf]
        %v906 = vld [vmem:[#allocation5 + $0x230] sm:$0xf]
        %v907 = vld [vmem:[#allocation5 + $0x234] sm:$0xf]
        %v908 = vld [vmem:[#allocation5 + $0x238] sm:$0xf]
        %v909 = vld [vmem:[#allocation5 + $0x23c] sm:$0xf]
        %v910 = vld [vmem:[#allocation5 + $0x240] sm:$0xf]
        %v911 = vld [vmem:[#allocation5 + $0x244] sm:$0xf]
        %v912 = vld [vmem:[#allocation5 + $0x248] sm:$0xf]
        %v913 = vld [vmem:[#allocation5 + $0x24c] sm:$0xf]
        %v914 = vld [vmem:[#allocation5 + $0x250] sm:$0xf]
        %v915 = vld [vmem:[#allocation5 + $0x254] sm:$0xf]
        %v916 = vld [vmem:[#allocation5 + $0x258] sm:$0xf]
        %v917 = vld [vmem:[#allocation5 + $0x25c] sm:$0xf]
        %v918 = vld [vmem:[#allocation5 + $0x260] sm:$0xf]
        %v919 = vld [vmem:[#allocation5 + $0x264] sm:$0xf]
        %v920 = vld [vmem:[#allocation5 + $0x268] sm:$0xf]
        %v921 = vld [vmem:[#allocation5 + $0x26c] sm:$0xf]
        %v922 = vld [vmem:[#allocation5 + $0x270] sm:$0xf]
        %v923 = vld [vmem:[#allocation5 + $0x274] sm:$0xf]
        %v924 = vld [vmem:[#allocation5 + $0x278] sm:$0xf]
        %v925 = vld [vmem:[#allocation5 + $0x27c] sm:$0xf]
        %v926 = vld [vmem:[#allocation5 + $0x280] sm:$0xf]
        %v927 = vld [vmem:[#allocation5 + $0x284] sm:$0xf]
        %v928 = vld [vmem:[#allocation5 + $0x288] sm:$0xf]
        %v929 = vld [vmem:[#allocation5 + $0x28c] sm:$0xf]
        %v930 = vld [vmem:[#allocation5 + $0x290] sm:$0xf]
        %v931 = vld [vmem:[#allocation5 + $0x294] sm:$0xf]
        %v932 = vld [vmem:[#allocation5 + $0x298] sm:$0xf]
        %v933 = vld [vmem:[#allocation5 + $0x29c] sm:$0xf]
        %v934 = vld [vmem:[#allocation5 + $0x2a0] sm:$0xf]
        %v935 = vld [vmem:[#allocation5 + $0x2a4] sm:$0xf]
        %v936 = vld [vmem:[#allocation5 + $0x2a8] sm:$0xf]
        %v937 = vld [vmem:[#allocation5 + $0x2ac] sm:$0xf]
        %v938 = vld [vmem:[#allocation5 + $0x2b0] sm:$0xf]
        %v939 = vld [vmem:[#allocation5 + $0x2b4] sm:$0xf]
        %v940 = vld [vmem:[#allocation5 + $0x2b8] sm:$0xf]
        %v941 = vld [vmem:[#allocation5 + $0x2bc] sm:$0xf]
        %v942 = vld [vmem:[#allocation5 + $0x2c0] sm:$0xf]
        %v943 = vld [vmem:[#allocation5 + $0x2c4] sm:$0xf]
        %v944 = vld [vmem:[#allocation5 + $0x2c8] sm:$0xf]
        %v945 = vld [vmem:[#allocation5 + $0x2cc] sm:$0xf]
        %v946 = vld [vmem:[#allocation5 + $0x2d0] sm:$0xf]
        %v947 = vld [vmem:[#allocation5 + $0x2d4] sm:$0xf]
        %v948 = vld [vmem:[#allocation5 + $0x2d8] sm:$0xf]
        %v949 = vld [vmem:[#allocation5 + $0x2dc] sm:$0xf]
        %v950 = vld [vmem:[#allocation5 + $0x2e0] sm:$0xf]
        %v951 = vld [vmem:[#allocation5 + $0x2e4] sm:$0xf]
        %v952 = vld [vmem:[#allocation5 + $0x2e8] sm:$0xf]
        %v953 = vld [vmem:[#allocation5 + $0x2ec] sm:$0xf]
        %v954 = vld [vmem:[#allocation5 + $0x2f0] sm:$0xf]
        %v955 = vld [vmem:[#allocation5 + $0x2f4] sm:$0xf]
        %v956 = vld [vmem:[#allocation5 + $0x2f8] sm:$0xf]
        %v957 = vld [vmem:[#allocation5 + $0x2fc] sm:$0xf]
        %v958 = vld [vmem:[#allocation5 + $0x300] sm:$0xf]
        %v959 = vld [vmem:[#allocation5 + $0x304] sm:$0xf]
        %v960 = vld [vmem:[#allocation5 + $0x308] sm:$0xf]
        %v961 = vld [vmem:[#allocation5 + $0x30c] sm:$0xf]
        %v962 = vld [vmem:[#allocation5 + $0x310] sm:$0xf]
        %v963 = vld [vmem:[#allocation5 + $0x314] sm:$0xf]
        %v964 = vld [vmem:[#allocation5 + $0x318] sm:$0xf]
        %v965 = vld [vmem:[#allocation5 + $0x31c] sm:$0xf]
        %v966 = vld [vmem:[#allocation5 + $0x320] sm:$0xf]
        %v967 = vld [vmem:[#allocation5 + $0x324] sm:$0xf]
        %v968 = vld [vmem:[#allocation5 + $0x328] sm:$0xf]
        %v969 = vld [vmem:[#allocation5 + $0x32c] sm:$0xf]
        %v970 = vld [vmem:[#allocation5 + $0x330] sm:$0xf]
        %v971 = vld [vmem:[#allocation5 + $0x334] sm:$0xf]
        %v972 = vld [vmem:[#allocation5 + $0x338] sm:$0xf]
        %v973 = vld [vmem:[#allocation5 + $0x33c] sm:$0xf]
        %v974 = vld [vmem:[#allocation5 + $0x340] sm:$0xf]
        %v975 = vld [vmem:[#allocation5 + $0x344] sm:$0xf]
        %v976 = vld [vmem:[#allocation5 + $0x348] sm:$0xf]
        %v977 = vld [vmem:[#allocation5 + $0x34c] sm:$0xf]
        %v978 = vld [vmem:[#allocation5 + $0x350] sm:$0xf]
        %v979 = vld [vmem:[#allocation5 + $0x354] sm:$0xf]
        %v980 = vld [vmem:[#allocation5 + $0x358] sm:$0xf]
        %v981 = vld [vmem:[#allocation5 + $0x35c] sm:$0xf]
        %v982 = vld [vmem:[#allocation5 + $0x360] sm:$0xf]
        %v983 = vld [vmem:[#allocation5 + $0x364] sm:$0xf]
        %v984 = vld [vmem:[#allocation5 + $0x368] sm:$0xf]
        %v985 = vld [vmem:[#allocation5 + $0x36c] sm:$0xf]
        %v986 = vld [vmem:[#allocation5 + $0x370] sm:$0xf]
        %v987 = vld [vmem:[#allocation5 + $0x374] sm:$0xf]
        %v988 = vld [vmem:[#allocation5 + $0x378] sm:$0xf]
        %v989 = vld [vmem:[#allocation5 + $0x37c] sm:$0xf]
        %v990 = vld [vmem:[#allocation5 + $0x380] sm:$0xf]
        %v991 = vld [vmem:[#allocation5 + $0x384] sm:$0xf]
        %v992 = vld [vmem:[#allocation5 + $0x388] sm:$0xf]
        %v993 = vld [vmem:[#allocation5 + $0x38c] sm:$0xf]
        %v994 = vld [vmem:[#allocation5 + $0x390] sm:$0xf]
        %v995 = vld [vmem:[#allocation5 + $0x394] sm:$0xf]
        %v996 = vld [vmem:[#allocation5 + $0x398] sm:$0xf]
        %v997 = vld [vmem:[#allocation5 + $0x39c] sm:$0xf]
        %v998 = vld [vmem:[#allocation5 + $0x3a0] sm:$0xf]
        %v999 = vld [vmem:[#allocation5 + $0x3a4] sm:$0xf]
        %v1000 = vld [vmem:[#allocation5 + $0x3a8] sm:$0xf]
        %v1001 = vld [vmem:[#allocation5 + $0x3ac] sm:$0xf]
        %v1002 = vld [vmem:[#allocation5 + $0x3b0] sm:$0xf]
        %v1003 = vld [vmem:[#allocation5 + $0x3b4] sm:$0xf]
        %v1004 = vld [vmem:[#allocation5 + $0x3b8] sm:$0xf]
        %v1005 = vld [vmem:[#allocation5 + $0x3bc] sm:$0xf]
        %v1006 = vld [vmem:[#allocation5 + $0x3c0] sm:$0xf]
        %v1007 = vld [vmem:[#allocation5 + $0x3c4] sm:$0xf]
        %v1008 = vld [vmem:[#allocation5 + $0x3c8] sm:$0xf]
        %v1009 = vld [vmem:[#allocation5 + $0x3cc] sm:$0xf]
        %v1010 = vld [vmem:[#allocation5 + $0x3d0] sm:$0xf]
        %v1011 = vld [vmem:[#allocation5 + $0x3d4] sm:$0xf]
        %v1012 = vld [vmem:[#allocation5 + $0x3d8] sm:$0xf]
        %v1013 = vld [vmem:[#allocation5 + $0x3dc] sm:$0xf]
        %v1014 = vld [vmem:[#allocation5 + $0x3e0] sm:$0xf]
        %v1015 = vld [vmem:[#allocation5 + $0x3e4] sm:$0xf]
        %v1016 = vld [vmem:[#allocation5 + $0x3e8] sm:$0xf]
        %v1017 = vld [vmem:[#allocation5 + $0x3ec] sm:$0xf]
        %v1018 = vld [vmem:[#allocation5 + $0x3f0] sm:$0xf]
        %v1019 = vld [vmem:[#allocation5 + $0x3f4] sm:$0xf]
        %v1020 = vld [vmem:[#allocation5 + $0x3f8] sm:$0xf]
        %v1021 = vld [vmem:[#allocation5 + $0x3fc] sm:$0xf]
        %v1022 = vld [vmem:[#allocation5 + $0x400] sm:$0xf]
        %v1023 = vld [vmem:[#allocation5 + $0x404] sm:$0xf]
        %v1024 = vld [vmem:[#allocation5 + $0x408] sm:$0xf]
        %v1025 = vld [vmem:[#allocation5 + $0x40c] sm:$0xf]
        %v1026 = vld [vmem:[#allocation5 + $0x410] sm:$0xf]
        %v1027 = vld [vmem:[#allocation5 + $0x414] sm:$0xf]
        %v1028 = vld [vmem:[#allocation5 + $0x418] sm:$0xf]
        %v1029 = vld [vmem:[#allocation5 + $0x41c] sm:$0xf]
        %v1030 = vld [vmem:[#allocation5 + $0x420] sm:$0xf]
        %v1031 = vld [vmem:[#allocation5 + $0x424] sm:$0xf]
        %v1032 = vld [vmem:[#allocation5 + $0x428] sm:$0xf]
        %v1033 = vld [vmem:[#allocation5 + $0x42c] sm:$0xf]
        %v1034 = vld [vmem:[#allocation5 + $0x430] sm:$0xf]
        %v1035 = vld [vmem:[#allocation5 + $0x434] sm:$0xf]
        %v1036 = vld [vmem:[#allocation5 + $0x438] sm:$0xf]
        %v1037 = vld [vmem:[#allocation5 + $0x43c] sm:$0xf]
        %v1038 = vld [vmem:[#allocation5 + $0x440] sm:$0xf]
        %v1039 = vld [vmem:[#allocation5 + $0x444] sm:$0xf]
        %v1040 = vld [vmem:[#allocation5 + $0x448] sm:$0xf]
        %v1041 = vld [vmem:[#allocation5 + $0x44c] sm:$0xf]
        %v1042 = vld [vmem:[#allocation5 + $0x450] sm:$0xf]
        %v1043 = vld [vmem:[#allocation5 + $0x454] sm:$0xf]
        %v1044 = vld [vmem:[#allocation5 + $0x458] sm:$0xf]
        %v1045 = vld [vmem:[#allocation5 + $0x45c] sm:$0xf]
        %v1046 = vld [vmem:[#allocation5 + $0x460] sm:$0xf]
        %v1047 = vld [vmem:[#allocation5 + $0x464] sm:$0xf]
        %v1048 = vld [vmem:[#allocation5 + $0x468] sm:$0xf]
        %v1049 = vld [vmem:[#allocation5 + $0x46c] sm:$0xf]
        %v1050 = vld [vmem:[#allocation5 + $0x470] sm:$0xf]
        %v1051 = vld [vmem:[#allocation5 + $0x474] sm:$0xf]
        %v1052 = vld [vmem:[#allocation5 + $0x478] sm:$0xf]
        %v1053 = vld [vmem:[#allocation5 + $0x47c] sm:$0xf]
        %v1054 = vld [vmem:[#allocation5 + $0x480] sm:$0xf]
        %v1055 = vld [vmem:[#allocation5 + $0x484] sm:$0xf]
        %v1056 = vld [vmem:[#allocation5 + $0x488] sm:$0xf]
        %v1057 = vld [vmem:[#allocation5 + $0x48c] sm:$0xf]
        %v1058 = vld [vmem:[#allocation5 + $0x490] sm:$0xf]
        %v1059 = vld [vmem:[#allocation5 + $0x494] sm:$0xf]
        %v1060 = vld [vmem:[#allocation5 + $0x498] sm:$0xf]
        %v1061 = vld [vmem:[#allocation5 + $0x49c] sm:$0xf]
        %v1062 = vld [vmem:[#allocation5 + $0x4a0] sm:$0xf]
        %v1063 = vld [vmem:[#allocation5 + $0x4a4] sm:$0xf]
        %v1064 = vld [vmem:[#allocation5 + $0x4a8] sm:$0xf]
        %v1065 = vld [vmem:[#allocation5 + $0x4ac] sm:$0xf]
        %v1066 = vld [vmem:[#allocation5 + $0x4b0] sm:$0xf]
        %v1067 = vld [vmem:[#allocation5 + $0x4b4] sm:$0xf]
        %v1068 = vld [vmem:[#allocation5 + $0x4b8] sm:$0xf]
        %v1069 = vld [vmem:[#allocation5 + $0x4bc] sm:$0xf]
        %v1070 = vld [vmem:[#allocation5 + $0x4c0] sm:$0xf]
        %v1071 = vld [vmem:[#allocation5 + $0x4c4] sm:$0xf]
        %v1072 = vld [vmem:[#allocation5 + $0x4c8] sm:$0xf]
        %v1073 = vld [vmem:[#allocation5 + $0x4cc] sm:$0xf]
        %v1074 = vld [vmem:[#allocation5 + $0x4d0] sm:$0xf]
        %v1075 = vld [vmem:[#allocation5 + $0x4d4] sm:$0xf]
        %v1076 = vld [vmem:[#allocation5 + $0x4d8] sm:$0xf]
        %v1077 = vld [vmem:[#allocation5 + $0x4dc] sm:$0xf]
        %v1078 = vld [vmem:[#allocation5 + $0x4e0] sm:$0xf]
        %v1079 = vld [vmem:[#allocation5 + $0x4e4] sm:$0xf]
        %v1080 = vld [vmem:[#allocation5 + $0x4e8] sm:$0xf]
        %v1081 = vld [vmem:[#allocation5 + $0x4ec] sm:$0xf]
        %v1082 = vld [vmem:[#allocation5 + $0x4f0] sm:$0xf]
        %v1083 = vld [vmem:[#allocation5 + $0x4f4] sm:$0xf]
        %v1084 = vld [vmem:[#allocation5 + $0x4f8] sm:$0xf]
        %v1085 = vld [vmem:[#allocation5 + $0x4fc] sm:$0xf]
        %v1086 = vld [vmem:[#allocation5 + $0x500] sm:$0xf]
        %v1087 = vld [vmem:[#allocation5 + $0x504] sm:$0xf]
        %v1088 = vld [vmem:[#allocation5 + $0x508] sm:$0xf]
        %v1089 = vld [vmem:[#allocation5 + $0x50c] sm:$0xf]
        %v1090 = vld [vmem:[#allocation5 + $0x510] sm:$0xf]
        %v1091 = vld [vmem:[#allocation5 + $0x514] sm:$0xf]
        %v1092 = vld [vmem:[#allocation5 + $0x518] sm:$0xf]
        %v1093 = vld [vmem:[#allocation5 + $0x51c] sm:$0xf]
        %v1094 = vld [vmem:[#allocation5 + $0x520] sm:$0xf]
        %v1095 = vld [vmem:[#allocation5 + $0x524] sm:$0xf]
        %v1096 = vld [vmem:[#allocation5 + $0x528] sm:$0xf]
        %v1097 = vld [vmem:[#allocation5 + $0x52c] sm:$0xf]
        %v1098 = vld [vmem:[#allocation5 + $0x530] sm:$0xf]
        %v1099 = vld [vmem:[#allocation5 + $0x534] sm:$0xf]
        %v1100 = vld [vmem:[#allocation5 + $0x538] sm:$0xf]
        %v1101 = vld [vmem:[#allocation5 + $0x53c] sm:$0xf]
        %v1102 = vld [vmem:[#allocation5 + $0x540] sm:$0xf]
        %v1103 = vld [vmem:[#allocation5 + $0x544] sm:$0xf]
        %v1104 = vld [vmem:[#allocation5 + $0x548] sm:$0xf]
        %v1105 = vld [vmem:[#allocation5 + $0x54c] sm:$0xf]
        %v1106 = vld [vmem:[#allocation5 + $0x550] sm:$0xf]
        %v1107 = vld [vmem:[#allocation5 + $0x554] sm:$0xf]
        %v1108 = vld [vmem:[#allocation5 + $0x558] sm:$0xf]
        %v1109 = vld [vmem:[#allocation5 + $0x55c] sm:$0xf]
        %v1110 = vld [vmem:[#allocation5 + $0x560] sm:$0xf]
        %v1111 = vld [vmem:[#allocation5 + $0x564] sm:$0xf]
        %v1112 = vld [vmem:[#allocation5 + $0x568] sm:$0xf]
        %v1113 = vld [vmem:[#allocation5 + $0x56c] sm:$0xf]
        %v1114 = vld [vmem:[#allocation5 + $0x570] sm:$0xf]
        %v1115 = vld [vmem:[#allocation5 + $0x574] sm:$0xf]
        %v1116 = vld [vmem:[#allocation5 + $0x578] sm:$0xf]
        %v1117 = vld [vmem:[#allocation5 + $0x57c] sm:$0xf]
        %v1118 = vld [vmem:[#allocation5 + $0x580] sm:$0xf]
        %v1119 = vld [vmem:[#allocation5 + $0x584] sm:$0xf]
        %v1120 = vld [vmem:[#allocation5 + $0x588] sm:$0xf]
        %v1121 = vld [vmem:[#allocation5 + $0x58c] sm:$0xf]
        %v1122 = vld [vmem:[#allocation5 + $0x590] sm:$0xf]
        %v1123 = vld [vmem:[#allocation5 + $0x594] sm:$0xf]
        %v1124 = vld [vmem:[#allocation5 + $0x598] sm:$0xf]
        %v1125 = vld [vmem:[#allocation5 + $0x59c] sm:$0xf]
        %v1126 = vld [vmem:[#allocation5 + $0x5a0] sm:$0xf]
        %v1127 = vld [vmem:[#allocation5 + $0x5a4] sm:$0xf]
        %v1128 = vld [vmem:[#allocation5 + $0x5a8] sm:$0xf]
        %v1129 = vld [vmem:[#allocation5 + $0x5ac] sm:$0xf]
        %v1130 = vld [vmem:[#allocation5 + $0x5b0] sm:$0xf]
        %v1131 = vld [vmem:[#allocation5 + $0x5b4] sm:$0xf]
        %v1132 = vld [vmem:[#allocation5 + $0x5b8] sm:$0xf]
        %v1133 = vld [vmem:[#allocation5 + $0x5bc] sm:$0xf]
        %v1134 = vld [vmem:[#allocation5 + $0x5c0] sm:$0xf]
        %v1135 = vld [vmem:[#allocation5 + $0x5c4] sm:$0xf]
        %v1136 = vld [vmem:[#allocation5 + $0x5c8] sm:$0xf]
        %v1137 = vld [vmem:[#allocation5 + $0x5cc] sm:$0xf]
        %v1138 = vld [vmem:[#allocation5 + $0x5d0] sm:$0xf]
        %v1139 = vld [vmem:[#allocation5 + $0x5d4] sm:$0xf]
        %v1140 = vld [vmem:[#allocation5 + $0x5d8] sm:$0xf]
        %v1141 = vld [vmem:[#allocation5 + $0x5dc] sm:$0xf]
        %v1142 = vld [vmem:[#allocation5 + $0x5e0] sm:$0xf]
        %v1143 = vld [vmem:[#allocation5 + $0x5e4] sm:$0xf]
        %v1144 = vld [vmem:[#allocation5 + $0x5e8] sm:$0xf]
        %v1145 = vld [vmem:[#allocation5 + $0x5ec] sm:$0xf]
        %v1146 = vld [vmem:[#allocation5 + $0x5f0] sm:$0xf]
        %v1147 = vld [vmem:[#allocation5 + $0x5f4] sm:$0xf]
        %v1148 = vld [vmem:[#allocation5 + $0x5f8] sm:$0xf]
        %v1149 = vld [vmem:[#allocation5 + $0x5fc] sm:$0xf]
        %v1150 = vld [vmem:[#allocation5 + $0x600] sm:$0xf]
        %v1151 = vld [vmem:[#allocation5 + $0x604] sm:$0xf]
        %v1152 = vld [vmem:[#allocation5 + $0x608] sm:$0xf]
        %v1153 = vld [vmem:[#allocation5 + $0x60c] sm:$0xf]
        %v1154 = vld [vmem:[#allocation5 + $0x610] sm:$0xf]
        %v1155 = vld [vmem:[#allocation5 + $0x614] sm:$0xf]
        %v1156 = vld [vmem:[#allocation5 + $0x618] sm:$0xf]
        %v1157 = vld [vmem:[#allocation5 + $0x61c] sm:$0xf]
        %v1158 = vld [vmem:[#allocation5 + $0x620] sm:$0xf]
        %v1159 = vld [vmem:[#allocation5 + $0x624] sm:$0xf]
        %v1160 = vld [vmem:[#allocation5 + $0x628] sm:$0xf]
        %v1161 = vld [vmem:[#allocation5 + $0x62c] sm:$0xf]
        %v1162 = vld [vmem:[#allocation5 + $0x630] sm:$0xf]
        %v1163 = vld [vmem:[#allocation5 + $0x634] sm:$0xf]
        %v1164 = vld [vmem:[#allocation5 + $0x638] sm:$0xf]
        %v1165 = vld [vmem:[#allocation5 + $0x63c] sm:$0xf]
        %v1166 = vld [vmem:[#allocation5 + $0x640] sm:$0xf]
        %v1167 = vld [vmem:[#allocation5 + $0x644] sm:$0xf]
        %v1168 = vld [vmem:[#allocation5 + $0x648] sm:$0xf]
        %v1169 = vld [vmem:[#allocation5 + $0x64c] sm:$0xf]
        %v1170 = vld [vmem:[#allocation5 + $0x650] sm:$0xf]
        %v1171 = vld [vmem:[#allocation5 + $0x654] sm:$0xf]
        %v1172 = vld [vmem:[#allocation5 + $0x658] sm:$0xf]
        %v1173 = vld [vmem:[#allocation5 + $0x65c] sm:$0xf]
        %v1174 = vld [vmem:[#allocation5 + $0x660] sm:$0xf]
        %v1175 = vld [vmem:[#allocation5 + $0x664] sm:$0xf]
        %v1176 = vld [vmem:[#allocation5 + $0x668] sm:$0xf]
        %v1177 = vld [vmem:[#allocation5 + $0x66c] sm:$0xf]
        %v1178 = vld [vmem:[#allocation5 + $0x670] sm:$0xf]
        %v1179 = vld [vmem:[#allocation5 + $0x674] sm:$0xf]
        %v1180 = vld [vmem:[#allocation5 + $0x678] sm:$0xf]
        %v1181 = vld [vmem:[#allocation5 + $0x67c] sm:$0xf]
        %v1182 = vld [vmem:[#allocation5 + $0x680] sm:$0xf]
        %v1183 = vld [vmem:[#allocation5 + $0x684] sm:$0xf]
        %v1184 = vld [vmem:[#allocation5 + $0x688] sm:$0xf]
        %v1185 = vld [vmem:[#allocation5 + $0x68c] sm:$0xf]
        %v1186 = vld [vmem:[#allocation5 + $0x690] sm:$0xf]
        %v1187 = vld [vmem:[#allocation5 + $0x694] sm:$0xf]
        %v1188 = vld [vmem:[#allocation5 + $0x698] sm:$0xf]
        %v1189 = vld [vmem:[#allocation5 + $0x69c] sm:$0xf]
        %v1190 = vld [vmem:[#allocation5 + $0x6a0] sm:$0xf]
        %v1191 = vld [vmem:[#allocation5 + $0x6a4] sm:$0xf]
        %v1192 = vld [vmem:[#allocation5 + $0x6a8] sm:$0xf]
        %v1193 = vld [vmem:[#allocation5 + $0x6ac] sm:$0xf]
        %v1194 = vld [vmem:[#allocation5 + $0x6b0] sm:$0xf]
        %v1195 = vld [vmem:[#allocation5 + $0x6b4] sm:$0xf]
        %v1196 = vld [vmem:[#allocation5 + $0x6b8] sm:$0xf]
        %v1197 = vld [vmem:[#allocation5 + $0x6bc] sm:$0xf]
        %v1198 = vld [vmem:[#allocation5 + $0x6c0] sm:$0xf]
        %v1199 = vld [vmem:[#allocation5 + $0x6c4] sm:$0xf]
        %v1200 = vld [vmem:[#allocation5 + $0x6c8] sm:$0xf]
        %v1201 = vld [vmem:[#allocation5 + $0x6cc] sm:$0xf]
        %v1202 = vld [vmem:[#allocation5 + $0x6d0] sm:$0xf]
        %v1203 = vld [vmem:[#allocation5 + $0x6d4] sm:$0xf]
        %v1204 = vld [vmem:[#allocation5 + $0x6d8] sm:$0xf]
        %v1205 = vld [vmem:[#allocation5 + $0x6dc] sm:$0xf]
        %v1206 = vld [vmem:[#allocation5 + $0x6e0] sm:$0xf]
        %v1207 = vld [vmem:[#allocation5 + $0x6e4] sm:$0xf]
        %v1208 = vld [vmem:[#allocation5 + $0x6e8] sm:$0xf]
        %v1209 = vld [vmem:[#allocation5 + $0x6ec] sm:$0xf]
        %v1210 = vld [vmem:[#allocation5 + $0x6f0] sm:$0xf]
        %v1211 = vld [vmem:[#allocation5 + $0x6f4] sm:$0xf]
        %v1212 = vld [vmem:[#allocation5 + $0x6f8] sm:$0xf]
        %v1213 = vld [vmem:[#allocation5 + $0x6fc] sm:$0xf]
        %v1214 = vld [vmem:[#allocation5 + $0x700] sm:$0xf]
        %v1215 = vld [vmem:[#allocation5 + $0x704] sm:$0xf]
        %v1216 = vld [vmem:[#allocation5 + $0x708] sm:$0xf]
        %v1217 = vld [vmem:[#allocation5 + $0x70c] sm:$0xf]
        %v1218 = vld [vmem:[#allocation5 + $0x710] sm:$0xf]
        %v1219 = vld [vmem:[#allocation5 + $0x714] sm:$0xf]
        %v1220 = vld [vmem:[#allocation5 + $0x718] sm:$0xf]
        %v1221 = vld [vmem:[#allocation5 + $0x71c] sm:$0xf]
        %v1222 = vld [vmem:[#allocation5 + $0x720] sm:$0xf]
        %v1223 = vld [vmem:[#allocation5 + $0x724] sm:$0xf]
        %v1224 = vld [vmem:[#allocation5 + $0x728] sm:$0xf]
        %v1225 = vld [vmem:[#allocation5 + $0x72c] sm:$0xf]
        %v1226 = vld [vmem:[#allocation5 + $0x730] sm:$0xf]
        %v1227 = vld [vmem:[#allocation5 + $0x734] sm:$0xf]
        %v1228 = vld [vmem:[#allocation5 + $0x738] sm:$0xf]
        %v1229 = vld [vmem:[#allocation5 + $0x73c] sm:$0xf]
        %v1230 = vld [vmem:[#allocation5 + $0x740] sm:$0xf]
        %v1231 = vld [vmem:[#allocation5 + $0x744] sm:$0xf]
        %v1232 = vld [vmem:[#allocation5 + $0x748] sm:$0xf]
        %v1233 = vld [vmem:[#allocation5 + $0x74c] sm:$0xf]
        %v1234 = vld [vmem:[#allocation5 + $0x750] sm:$0xf]
        %v1235 = vld [vmem:[#allocation5 + $0x754] sm:$0xf]
        %v1236 = vld [vmem:[#allocation5 + $0x758] sm:$0xf]
        %v1237 = vld [vmem:[#allocation5 + $0x75c] sm:$0xf]
        %v1238 = vld [vmem:[#allocation5 + $0x760] sm:$0xf]
        %v1239 = vld [vmem:[#allocation5 + $0x764] sm:$0xf]
        %v1240 = vld [vmem:[#allocation5 + $0x768] sm:$0xf]
        %v1241 = vld [vmem:[#allocation5 + $0x76c] sm:$0xf]
        %v1242 = vld [vmem:[#allocation5 + $0x770] sm:$0xf]
        %v1243 = vld [vmem:[#allocation5 + $0x774] sm:$0xf]
        %v1244 = vld [vmem:[#allocation5 + $0x778] sm:$0xf]
        %v1245 = vld [vmem:[#allocation5 + $0x77c] sm:$0xf]
        %v1246 = vld [vmem:[#allocation5 + $0x780] sm:$0xf]
        %v1247 = vld [vmem:[#allocation5 + $0x784] sm:$0xf]
        %v1248 = vld [vmem:[#allocation5 + $0x788] sm:$0xf]
        %v1249 = vld [vmem:[#allocation5 + $0x78c] sm:$0xf]
        %v1250 = vld [vmem:[#allocation5 + $0x790] sm:$0xf]
        %v1251 = vld [vmem:[#allocation5 + $0x794] sm:$0xf]
        %v1252 = vld [vmem:[#allocation5 + $0x798] sm:$0xf]
        %v1253 = vld [vmem:[#allocation5 + $0x79c] sm:$0xf]
        %v1254 = vld [vmem:[#allocation5 + $0x7a0] sm:$0xf]
        %v1255 = vld [vmem:[#allocation5 + $0x7a4] sm:$0xf]
        %v1256 = vld [vmem:[#allocation5 + $0x7a8] sm:$0xf]
        %v1257 = vld [vmem:[#allocation5 + $0x7ac] sm:$0xf]
        %v1258 = vld [vmem:[#allocation5 + $0x7b0] sm:$0xf]
        %v1259 = vld [vmem:[#allocation5 + $0x7b4] sm:$0xf]
        %v1260 = vld [vmem:[#allocation5 + $0x7b8] sm:$0xf]
        %v1261 = vld [vmem:[#allocation5 + $0x7bc] sm:$0xf]
        %v1262 = vld [vmem:[#allocation5 + $0x7c0] sm:$0xf]
        %v1263 = vld [vmem:[#allocation5 + $0x7c4] sm:$0xf]
        %v1264 = vld [vmem:[#allocation5 + $0x7c8] sm:$0xf]
        %v1265 = vld [vmem:[#allocation5 + $0x7cc] sm:$0xf]
        %v1266 = vld [vmem:[#allocation5 + $0x7d0] sm:$0xf]
        %v1267 = vld [vmem:[#allocation5 + $0x7d4] sm:$0xf]
        %v1268 = vld [vmem:[#allocation5 + $0x7d8] sm:$0xf]
        %v1269 = vld [vmem:[#allocation5 + $0x7dc] sm:$0xf]
        %v1270 = vld [vmem:[#allocation5 + $0x7e0] sm:$0xf]
        %v1271 = vld [vmem:[#allocation5 + $0x7e4] sm:$0xf]
        %v1272 = vld [vmem:[#allocation5 + $0x7e8] sm:$0xf]
        %v1273 = vld [vmem:[#allocation5 + $0x7ec] sm:$0xf]
        %v1274 = vld [vmem:[#allocation5 + $0x7f0] sm:$0xf]
        %v1275 = vld [vmem:[#allocation5 + $0x7f4] sm:$0xf]
        %v1276 = vld [vmem:[#allocation5 + $0x7f8] sm:$0xf]
        %v1277 = vld [vmem:[#allocation5 + $0x7fc] sm:$0xf]
        %v1278 = vld [vmem:[#allocation7] sm:$0x1]
        %v1280 = vlaneseq
        %v1281 = vshrl.u32 %v1280, 7
        %v1282 = vsub.s32 0, %v1281
        %v1283 = vrot.slane %v1278, %v1282
        %v1797 = vunpack.c.l.b16 %v766
        %v1798 = vunpack.c.l.b16 %v767
        %v1799 = vunpack.c.l.b16 %v768
        %v1800 = vunpack.c.l.b16 %v769
        %v1801 = vunpack.c.l.b16 %v770
        %v1802 = vunpack.c.l.b16 %v771
        %v1803 = vunpack.c.l.b16 %v772
        %v1804 = vunpack.c.l.b16 %v773
        %v1805 = vunpack.c.l.b16 %v774
        %v1806 = vunpack.c.l.b16 %v775
        %v1807 = vunpack.c.l.b16 %v776
        %v1808 = vunpack.c.l.b16 %v777
        %v1809 = vunpack.c.l.b16 %v778
        %v1810 = vunpack.c.l.b16 %v779
        %v1811 = vunpack.c.l.b16 %v780
        %v1812 = vunpack.c.l.b16 %v781
        %v1813 = vunpack.c.l.b16 %v782
        %v1814 = vunpack.c.l.b16 %v783
        %v1815 = vunpack.c.l.b16 %v784
        %v1816 = vunpack.c.l.b16 %v785
        %v1817 = vunpack.c.l.b16 %v786
        %v1818 = vunpack.c.l.b16 %v787
        %v1819 = vunpack.c.l.b16 %v788
        %v1820 = vunpack.c.l.b16 %v789
        %v1821 = vunpack.c.l.b16 %v790
        %v1822 = vunpack.c.l.b16 %v791
        %v1823 = vunpack.c.l.b16 %v792
        %v1824 = vunpack.c.l.b16 %v793
        %v1825 = vunpack.c.l.b16 %v794
        %v1826 = vunpack.c.l.b16 %v795
        %v1827 = vunpack.c.l.b16 %v796
        %v1828 = vunpack.c.l.b16 %v797
        %v1829 = vunpack.c.l.b16 %v798
        %v1830 = vunpack.c.l.b16 %v799
        %v1831 = vunpack.c.l.b16 %v800
        %v1832 = vunpack.c.l.b16 %v801
        %v1833 = vunpack.c.l.b16 %v802
        %v1834 = vunpack.c.l.b16 %v803
        %v1835 = vunpack.c.l.b16 %v804
        %v1836 = vunpack.c.l.b16 %v805
        %v1837 = vunpack.c.l.b16 %v806
        %v1838 = vunpack.c.l.b16 %v807
        %v1839 = vunpack.c.l.b16 %v808
        %v1840 = vunpack.c.l.b16 %v809
        %v1841 = vunpack.c.l.b16 %v810
        %v1842 = vunpack.c.l.b16 %v811
        %v1843 = vunpack.c.l.b16 %v812
        %v1844 = vunpack.c.l.b16 %v813
        %v1845 = vunpack.c.l.b16 %v814
        %v1846 = vunpack.c.l.b16 %v815
        %v1847 = vunpack.c.l.b16 %v816
        %v1848 = vunpack.c.l.b16 %v817
        %v1849 = vunpack.c.l.b16 %v818
        %v1850 = vunpack.c.l.b16 %v819
        %v1851 = vunpack.c.l.b16 %v820
        %v1852 = vunpack.c.l.b16 %v821
        %v1853 = vunpack.c.l.b16 %v822
        %v1854 = vunpack.c.l.b16 %v823
        %v1855 = vunpack.c.l.b16 %v824
        %v1856 = vunpack.c.l.b16 %v825
        %v1857 = vunpack.c.l.b16 %v826
        %v1858 = vunpack.c.l.b16 %v827
        %v1859 = vunpack.c.l.b16 %v828
        %v1860 = vunpack.c.l.b16 %v829
        %v1861 = vunpack.c.l.b16 %v830
        %v1862 = vunpack.c.l.b16 %v831
        %v1863 = vunpack.c.l.b16 %v832
        %v1864 = vunpack.c.l.b16 %v833
        %v1865 = vunpack.c.l.b16 %v834
        %v1866 = vunpack.c.l.b16 %v835
        %v1867 = vunpack.c.l.b16 %v836
        %v1868 = vunpack.c.l.b16 %v837
        %v1869 = vunpack.c.l.b16 %v838
        %v1870 = vunpack.c.l.b16 %v839
        %v1871 = vunpack.c.l.b16 %v840
        %v1872 = vunpack.c.l.b16 %v841
        %v1873 = vunpack.c.l.b16 %v842
        %v1874 = vunpack.c.l.b16 %v843
        %v1875 = vunpack.c.l.b16 %v844
        %v1876 = vunpack.c.l.b16 %v845
        %v1877 = vunpack.c.l.b16 %v846
        %v1878 = vunpack.c.l.b16 %v847
        %v1879 = vunpack.c.l.b16 %v848
        %v1880 = vunpack.c.l.b16 %v849
        %v1881 = vunpack.c.l.b16 %v850
        %v1882 = vunpack.c.l.b16 %v851
        %v1883 = vunpack.c.l.b16 %v852
        %v1884 = vunpack.c.l.b16 %v853
        %v1885 = vunpack.c.l.b16 %v854
        %v1886 = vunpack.c.l.b16 %v855
        %v1887 = vunpack.c.l.b16 %v856
        %v1888 = vunpack.c.l.b16 %v857
        %v1889 = vunpack.c.l.b16 %v858
        %v1890 = vunpack.c.l.b16 %v859
        %v1891 = vunpack.c.l.b16 %v860
        %v1892 = vunpack.c.l.b16 %v861
        %v1893 = vunpack.c.l.b16 %v862
        %v1894 = vunpack.c.l.b16 %v863
        %v1895 = vunpack.c.l.b16 %v864
        %v1896 = vunpack.c.l.b16 %v865
        %v1897 = vunpack.c.l.b16 %v866
        %v1898 = vunpack.c.l.b16 %v867
        %v1899 = vunpack.c.l.b16 %v868
        %v1900 = vunpack.c.l.b16 %v869
        %v1901 = vunpack.c.l.b16 %v870
        %v1902 = vunpack.c.l.b16 %v871
        %v1903 = vunpack.c.l.b16 %v872
        %v1904 = vunpack.c.l.b16 %v873
        %v1905 = vunpack.c.l.b16 %v874
        %v1906 = vunpack.c.l.b16 %v875
        %v1907 = vunpack.c.l.b16 %v876
        %v1908 = vunpack.c.l.b16 %v877
        %v1909 = vunpack.c.l.b16 %v878
        %v1910 = vunpack.c.l.b16 %v879
        %v1911 = vunpack.c.l.b16 %v880
        %v1912 = vunpack.c.l.b16 %v881
        %v1913 = vunpack.c.l.b16 %v882
        %v1914 = vunpack.c.l.b16 %v883
        %v1915 = vunpack.c.l.b16 %v884
        %v1916 = vunpack.c.l.b16 %v885
        %v1917 = vunpack.c.l.b16 %v886
        %v1918 = vunpack.c.l.b16 %v887
        %v1919 = vunpack.c.l.b16 %v888
        %v1920 = vunpack.c.l.b16 %v889
        %v1921 = vunpack.c.l.b16 %v890
        %v1922 = vunpack.c.l.b16 %v891
        %v1923 = vunpack.c.l.b16 %v892
        %v1924 = vunpack.c.l.b16 %v893
        %v1925 = vunpack.c.l.b16 %v894
        %v1926 = vunpack.c.l.b16 %v895
        %v1927 = vunpack.c.l.b16 %v896
        %v1928 = vunpack.c.l.b16 %v897
        %v1929 = vunpack.c.l.b16 %v898
        %v1930 = vunpack.c.l.b16 %v899
        %v1931 = vunpack.c.l.b16 %v900
        %v1932 = vunpack.c.l.b16 %v901
        %v1933 = vunpack.c.l.b16 %v902
        %v1934 = vunpack.c.l.b16 %v903
        %v1935 = vunpack.c.l.b16 %v904
        %v1936 = vunpack.c.l.b16 %v905
        %v1937 = vunpack.c.l.b16 %v906
        %v1938 = vunpack.c.l.b16 %v907
        %v1939 = vunpack.c.l.b16 %v908
        %v1940 = vunpack.c.l.b16 %v909
        %v1941 = vunpack.c.l.b16 %v910
        %v1942 = vunpack.c.l.b16 %v911
        %v1943 = vunpack.c.l.b16 %v912
        %v1944 = vunpack.c.l.b16 %v913
        %v1945 = vunpack.c.l.b16 %v914
        %v1946 = vunpack.c.l.b16 %v915
        %v1947 = vunpack.c.l.b16 %v916
        %v1948 = vunpack.c.l.b16 %v917
        %v1949 = vunpack.c.l.b16 %v918
        %v1950 = vunpack.c.l.b16 %v919
        %v1951 = vunpack.c.l.b16 %v920
        %v1952 = vunpack.c.l.b16 %v921
        %v1953 = vunpack.c.l.b16 %v922
        %v1954 = vunpack.c.l.b16 %v923
        %v1955 = vunpack.c.l.b16 %v924
        %v1956 = vunpack.c.l.b16 %v925
        %v1957 = vunpack.c.l.b16 %v926
        %v1958 = vunpack.c.l.b16 %v927
        %v1959 = vunpack.c.l.b16 %v928
        %v1960 = vunpack.c.l.b16 %v929
        %v1961 = vunpack.c.l.b16 %v930
        %v1962 = vunpack.c.l.b16 %v931
        %v1963 = vunpack.c.l.b16 %v932
        %v1964 = vunpack.c.l.b16 %v933
        %v1965 = vunpack.c.l.b16 %v934
        %v1966 = vunpack.c.l.b16 %v935
        %v1967 = vunpack.c.l.b16 %v936
        %v1968 = vunpack.c.l.b16 %v937
        %v1969 = vunpack.c.l.b16 %v938
        %v1970 = vunpack.c.l.b16 %v939
        %v1971 = vunpack.c.l.b16 %v940
        %v1972 = vunpack.c.l.b16 %v941
        %v1973 = vunpack.c.l.b16 %v942
        %v1974 = vunpack.c.l.b16 %v943
        %v1975 = vunpack.c.l.b16 %v944
        %v1976 = vunpack.c.l.b16 %v945
        %v1977 = vunpack.c.l.b16 %v946
        %v1978 = vunpack.c.l.b16 %v947
        %v1979 = vunpack.c.l.b16 %v948
        %v1980 = vunpack.c.l.b16 %v949
        %v1981 = vunpack.c.l.b16 %v950
        %v1982 = vunpack.c.l.b16 %v951
        %v1983 = vunpack.c.l.b16 %v952
        %v1984 = vunpack.c.l.b16 %v953
        %v1985 = vunpack.c.l.b16 %v954
        %v1986 = vunpack.c.l.b16 %v955
        %v1987 = vunpack.c.l.b16 %v956
        %v1988 = vunpack.c.l.b16 %v957
        %v1989 = vunpack.c.l.b16 %v958
        %v1990 = vunpack.c.l.b16 %v959
        %v1991 = vunpack.c.l.b16 %v960
        %v1992 = vunpack.c.l.b16 %v961
        %v1993 = vunpack.c.l.b16 %v962
        %v1994 = vunpack.c.l.b16 %v963
        %v1995 = vunpack.c.l.b16 %v964
        %v1996 = vunpack.c.l.b16 %v965
        %v1997 = vunpack.c.l.b16 %v966
        %v1998 = vunpack.c.l.b16 %v967
        %v1999 = vunpack.c.l.b16 %v968
        %v2000 = vunpack.c.l.b16 %v969
        %v2001 = vunpack.c.l.b16 %v970
        %v2002 = vunpack.c.l.b16 %v971
        %v2003 = vunpack.c.l.b16 %v972
        %v2004 = vunpack.c.l.b16 %v973
        %v2005 = vunpack.c.l.b16 %v974
        %v2006 = vunpack.c.l.b16 %v975
        %v2007 = vunpack.c.l.b16 %v976
        %v2008 = vunpack.c.l.b16 %v977
        %v2009 = vunpack.c.l.b16 %v978
        %v2010 = vunpack.c.l.b16 %v979
        %v2011 = vunpack.c.l.b16 %v980
        %v2012 = vunpack.c.l.b16 %v981
        %v2013 = vunpack.c.l.b16 %v982
        %v2014 = vunpack.c.l.b16 %v983
        %v2015 = vunpack.c.l.b16 %v984
        %v2016 = vunpack.c.l.b16 %v985
        %v2017 = vunpack.c.l.b16 %v986
        %v2018 = vunpack.c.l.b16 %v987
        %v2019 = vunpack.c.l.b16 %v988
        %v2020 = vunpack.c.l.b16 %v989
        %v2021 = vunpack.c.l.b16 %v990
        %v2022 = vunpack.c.l.b16 %v991
        %v2023 = vunpack.c.l.b16 %v992
        %v2024 = vunpack.c.l.b16 %v993
        %v2025 = vunpack.c.l.b16 %v994
        %v2026 = vunpack.c.l.b16 %v995
        %v2027 = vunpack.c.l.b16 %v996
        %v2028 = vunpack.c.l.b16 %v997
        %v2029 = vunpack.c.l.b16 %v998
        %v2030 = vunpack.c.l.b16 %v999
        %v2031 = vunpack.c.l.b16 %v1000
        %v2032 = vunpack.c.l.b16 %v1001
        %v2033 = vunpack.c.l.b16 %v1002
        %v2034 = vunpack.c.l.b16 %v1003
        %v2035 = vunpack.c.l.b16 %v1004
        %v2036 = vunpack.c.l.b16 %v1005
        %v2037 = vunpack.c.l.b16 %v1006
        %v2038 = vunpack.c.l.b16 %v1007
        %v2039 = vunpack.c.l.b16 %v1008
        %v2040 = vunpack.c.l.b16 %v1009
        %v2041 = vunpack.c.l.b16 %v1010
        %v2042 = vunpack.c.l.b16 %v1011
        %v2043 = vunpack.c.l.b16 %v1012
        %v2044 = vunpack.c.l.b16 %v1013
        %v2045 = vunpack.c.l.b16 %v1014
        %v2046 = vunpack.c.l.b16 %v1015
        %v2047 = vunpack.c.l.b16 %v1016
        %v2048 = vunpack.c.l.b16 %v1017
        %v2049 = vunpack.c.l.b16 %v1018
        %v2050 = vunpack.c.l.b16 %v1019
        %v2051 = vunpack.c.l.b16 %v1020
        %v2052 = vunpack.c.l.b16 %v1021
        %v2053 = vunpack.c.l.b16 %v1022
        %v2054 = vunpack.c.l.b16 %v1023
        %v2055 = vunpack.c.l.b16 %v1024
        %v2056 = vunpack.c.l.b16 %v1025
        %v2057 = vunpack.c.l.b16 %v1026
        %v2058 = vunpack.c.l.b16 %v1027
        %v2059 = vunpack.c.l.b16 %v1028
        %v2060 = vunpack.c.l.b16 %v1029
        %v2061 = vunpack.c.l.b16 %v1030
        %v2062 = vunpack.c.l.b16 %v1031
        %v2063 = vunpack.c.l.b16 %v1032
        %v2064 = vunpack.c.l.b16 %v1033
        %v2065 = vunpack.c.l.b16 %v1034
        %v2066 = vunpack.c.l.b16 %v1035
        %v2067 = vunpack.c.l.b16 %v1036
        %v2068 = vunpack.c.l.b16 %v1037
        %v2069 = vunpack.c.l.b16 %v1038
        %v2070 = vunpack.c.l.b16 %v1039
        %v2071 = vunpack.c.l.b16 %v1040
        %v2072 = vunpack.c.l.b16 %v1041
        %v2073 = vunpack.c.l.b16 %v1042
        %v2074 = vunpack.c.l.b16 %v1043
        %v2075 = vunpack.c.l.b16 %v1044
        %v2076 = vunpack.c.l.b16 %v1045
        %v2077 = vunpack.c.l.b16 %v1046
        %v2078 = vunpack.c.l.b16 %v1047
        %v2079 = vunpack.c.l.b16 %v1048
        %v2080 = vunpack.c.l.b16 %v1049
        %v2081 = vunpack.c.l.b16 %v1050
        %v2082 = vunpack.c.l.b16 %v1051
        %v2083 = vunpack.c.l.b16 %v1052
        %v2084 = vunpack.c.l.b16 %v1053
        %v2085 = vunpack.c.l.b16 %v1054
        %v2086 = vunpack.c.l.b16 %v1055
        %v2087 = vunpack.c.l.b16 %v1056
        %v2088 = vunpack.c.l.b16 %v1057
        %v2089 = vunpack.c.l.b16 %v1058
        %v2090 = vunpack.c.l.b16 %v1059
        %v2091 = vunpack.c.l.b16 %v1060
        %v2092 = vunpack.c.l.b16 %v1061
        %v2093 = vunpack.c.l.b16 %v1062
        %v2094 = vunpack.c.l.b16 %v1063
        %v2095 = vunpack.c.l.b16 %v1064
        %v2096 = vunpack.c.l.b16 %v1065
        %v2097 = vunpack.c.l.b16 %v1066
        %v2098 = vunpack.c.l.b16 %v1067
        %v2099 = vunpack.c.l.b16 %v1068
        %v2100 = vunpack.c.l.b16 %v1069
        %v2101 = vunpack.c.l.b16 %v1070
        %v2102 = vunpack.c.l.b16 %v1071
        %v2103 = vunpack.c.l.b16 %v1072
        %v2104 = vunpack.c.l.b16 %v1073
        %v2105 = vunpack.c.l.b16 %v1074
        %v2106 = vunpack.c.l.b16 %v1075
        %v2107 = vunpack.c.l.b16 %v1076
        %v2108 = vunpack.c.l.b16 %v1077
        %v2109 = vunpack.c.l.b16 %v1078
        %v2110 = vunpack.c.l.b16 %v1079
        %v2111 = vunpack.c.l.b16 %v1080
        %v2112 = vunpack.c.l.b16 %v1081
        %v2113 = vunpack.c.l.b16 %v1082
        %v2114 = vunpack.c.l.b16 %v1083
        %v2115 = vunpack.c.l.b16 %v1084
        %v2116 = vunpack.c.l.b16 %v1085
        %v2117 = vunpack.c.l.b16 %v1086
        %v2118 = vunpack.c.l.b16 %v1087
        %v2119 = vunpack.c.l.b16 %v1088
        %v2120 = vunpack.c.l.b16 %v1089
        %v2121 = vunpack.c.l.b16 %v1090
        %v2122 = vunpack.c.l.b16 %v1091
        %v2123 = vunpack.c.l.b16 %v1092
        %v2124 = vunpack.c.l.b16 %v1093
        %v2125 = vunpack.c.l.b16 %v1094
        %v2126 = vunpack.c.l.b16 %v1095
        %v2127 = vunpack.c.l.b16 %v1096
        %v2128 = vunpack.c.l.b16 %v1097
        %v2129 = vunpack.c.l.b16 %v1098
        %v2130 = vunpack.c.l.b16 %v1099
        %v2131 = vunpack.c.l.b16 %v1100
        %v2132 = vunpack.c.l.b16 %v1101
        %v2133 = vunpack.c.l.b16 %v1102
        %v2134 = vunpack.c.l.b16 %v1103
        %v2135 = vunpack.c.l.b16 %v1104
        %v2136 = vunpack.c.l.b16 %v1105
        %v2137 = vunpack.c.l.b16 %v1106
        %v2138 = vunpack.c.l.b16 %v1107
        %v2139 = vunpack.c.l.b16 %v1108
        %v2140 = vunpack.c.l.b16 %v1109
        %v2141 = vunpack.c.l.b16 %v1110
        %v2142 = vunpack.c.l.b16 %v1111
        %v2143 = vunpack.c.l.b16 %v1112
        %v2144 = vunpack.c.l.b16 %v1113
        %v2145 = vunpack.c.l.b16 %v1114
        %v2146 = vunpack.c.l.b16 %v1115
        %v2147 = vunpack.c.l.b16 %v1116
        %v2148 = vunpack.c.l.b16 %v1117
        %v2149 = vunpack.c.l.b16 %v1118
        %v2150 = vunpack.c.l.b16 %v1119
        %v2151 = vunpack.c.l.b16 %v1120
        %v2152 = vunpack.c.l.b16 %v1121
        %v2153 = vunpack.c.l.b16 %v1122
        %v2154 = vunpack.c.l.b16 %v1123
        %v2155 = vunpack.c.l.b16 %v1124
        %v2156 = vunpack.c.l.b16 %v1125
        %v2157 = vunpack.c.l.b16 %v1126
        %v2158 = vunpack.c.l.b16 %v1127
        %v2159 = vunpack.c.l.b16 %v1128
        %v2160 = vunpack.c.l.b16 %v1129
        %v2161 = vunpack.c.l.b16 %v1130
        %v2162 = vunpack.c.l.b16 %v1131
        %v2163 = vunpack.c.l.b16 %v1132
        %v2164 = vunpack.c.l.b16 %v1133
        %v2165 = vunpack.c.l.b16 %v1134
        %v2166 = vunpack.c.l.b16 %v1135
        %v2167 = vunpack.c.l.b16 %v1136
        %v2168 = vunpack.c.l.b16 %v1137
        %v2169 = vunpack.c.l.b16 %v1138
        %v2170 = vunpack.c.l.b16 %v1139
        %v2171 = vunpack.c.l.b16 %v1140
        %v2172 = vunpack.c.l.b16 %v1141
        %v2173 = vunpack.c.l.b16 %v1142
        %v2174 = vunpack.c.l.b16 %v1143
        %v2175 = vunpack.c.l.b16 %v1144
        %v2176 = vunpack.c.l.b16 %v1145
        %v2177 = vunpack.c.l.b16 %v1146
        %v2178 = vunpack.c.l.b16 %v1147
        %v2179 = vunpack.c.l.b16 %v1148
        %v2180 = vunpack.c.l.b16 %v1149
        %v2181 = vunpack.c.l.b16 %v1150
        %v2182 = vunpack.c.l.b16 %v1151
        %v2183 = vunpack.c.l.b16 %v1152
        %v2184 = vunpack.c.l.b16 %v1153
        %v2185 = vunpack.c.l.b16 %v1154
        %v2186 = vunpack.c.l.b16 %v1155
        %v2187 = vunpack.c.l.b16 %v1156
        %v2188 = vunpack.c.l.b16 %v1157
        %v2189 = vunpack.c.l.b16 %v1158
        %v2190 = vunpack.c.l.b16 %v1159
        %v2191 = vunpack.c.l.b16 %v1160
        %v2192 = vunpack.c.l.b16 %v1161
        %v2193 = vunpack.c.l.b16 %v1162
        %v2194 = vunpack.c.l.b16 %v1163
        %v2195 = vunpack.c.l.b16 %v1164
        %v2196 = vunpack.c.l.b16 %v1165
        %v2197 = vunpack.c.l.b16 %v1166
        %v2198 = vunpack.c.l.b16 %v1167
        %v2199 = vunpack.c.l.b16 %v1168
        %v2200 = vunpack.c.l.b16 %v1169
        %v2201 = vunpack.c.l.b16 %v1170
        %v2202 = vunpack.c.l.b16 %v1171
        %v2203 = vunpack.c.l.b16 %v1172
        %v2204 = vunpack.c.l.b16 %v1173
        %v2205 = vunpack.c.l.b16 %v1174
        %v2206 = vunpack.c.l.b16 %v1175
        %v2207 = vunpack.c.l.b16 %v1176
        %v2208 = vunpack.c.l.b16 %v1177
        %v2209 = vunpack.c.l.b16 %v1178
        %v2210 = vunpack.c.l.b16 %v1179
        %v2211 = vunpack.c.l.b16 %v1180
        %v2212 = vunpack.c.l.b16 %v1181
        %v2213 = vunpack.c.l.b16 %v1182
        %v2214 = vunpack.c.l.b16 %v1183
        %v2215 = vunpack.c.l.b16 %v1184
        %v2216 = vunpack.c.l.b16 %v1185
        %v2217 = vunpack.c.l.b16 %v1186
        %v2218 = vunpack.c.l.b16 %v1187
        %v2219 = vunpack.c.l.b16 %v1188
        %v2220 = vunpack.c.l.b16 %v1189
        %v2221 = vunpack.c.l.b16 %v1190
        %v2222 = vunpack.c.l.b16 %v1191
        %v2223 = vunpack.c.l.b16 %v1192
        %v2224 = vunpack.c.l.b16 %v1193
        %v2225 = vunpack.c.l.b16 %v1194
        %v2226 = vunpack.c.l.b16 %v1195
        %v2227 = vunpack.c.l.b16 %v1196
        %v2228 = vunpack.c.l.b16 %v1197
        %v2229 = vunpack.c.l.b16 %v1198
        %v2230 = vunpack.c.l.b16 %v1199
        %v2231 = vunpack.c.l.b16 %v1200
        %v2232 = vunpack.c.l.b16 %v1201
        %v2233 = vunpack.c.l.b16 %v1202
        %v2234 = vunpack.c.l.b16 %v1203
        %v2235 = vunpack.c.l.b16 %v1204
        %v2236 = vunpack.c.l.b16 %v1205
        %v2237 = vunpack.c.l.b16 %v1206
        %v2238 = vunpack.c.l.b16 %v1207
        %v2239 = vunpack.c.l.b16 %v1208
        %v2240 = vunpack.c.l.b16 %v1209
        %v2241 = vunpack.c.l.b16 %v1210
        %v2242 = vunpack.c.l.b16 %v1211
        %v2243 = vunpack.c.l.b16 %v1212
        %v2244 = vunpack.c.l.b16 %v1213
        %v2245 = vunpack.c.l.b16 %v1214
        %v2246 = vunpack.c.l.b16 %v1215
        %v2247 = vunpack.c.l.b16 %v1216
        %v2248 = vunpack.c.l.b16 %v1217
        %v2249 = vunpack.c.l.b16 %v1218
        %v2250 = vunpack.c.l.b16 %v1219
        %v2251 = vunpack.c.l.b16 %v1220
        %v2252 = vunpack.c.l.b16 %v1221
        %v2253 = vunpack.c.l.b16 %v1222
        %v2254 = vunpack.c.l.b16 %v1223
        %v2255 = vunpack.c.l.b16 %v1224
        %v2256 = vunpack.c.l.b16 %v1225
        %v2257 = vunpack.c.l.b16 %v1226
        %v2258 = vunpack.c.l.b16 %v1227
        %v2259 = vunpack.c.l.b16 %v1228
        %v2260 = vunpack.c.l.b16 %v1229
        %v2261 = vunpack.c.l.b16 %v1230
        %v2262 = vunpack.c.l.b16 %v1231
        %v2263 = vunpack.c.l.b16 %v1232
        %v2264 = vunpack.c.l.b16 %v1233
        %v2265 = vunpack.c.l.b16 %v1234
        %v2266 = vunpack.c.l.b16 %v1235
        %v2267 = vunpack.c.l.b16 %v1236
        %v2268 = vunpack.c.l.b16 %v1237
        %v2269 = vunpack.c.l.b16 %v1238
        %v2270 = vunpack.c.l.b16 %v1239
        %v2271 = vunpack.c.l.b16 %v1240
        %v2272 = vunpack.c.l.b16 %v1241
        %v2273 = vunpack.c.l.b16 %v1242
        %v2274 = vunpack.c.l.b16 %v1243
        %v2275 = vunpack.c.l.b16 %v1244
        %v2276 = vunpack.c.l.b16 %v1245
        %v2277 = vunpack.c.l.b16 %v1246
        %v2278 = vunpack.c.l.b16 %v1247
        %v2279 = vunpack.c.l.b16 %v1248
        %v2280 = vunpack.c.l.b16 %v1249
        %v2281 = vunpack.c.l.b16 %v1250
        %v2282 = vunpack.c.l.b16 %v1251
        %v2283 = vunpack.c.l.b16 %v1252
        %v2284 = vunpack.c.l.b16 %v1253
        %v2285 = vunpack.c.l.b16 %v1254
        %v2286 = vunpack.c.l.b16 %v1255
        %v2287 = vunpack.c.l.b16 %v1256
        %v2288 = vunpack.c.l.b16 %v1257
        %v2289 = vunpack.c.l.b16 %v1258
        %v2290 = vunpack.c.l.b16 %v1259
        %v2291 = vunpack.c.l.b16 %v1260
        %v2292 = vunpack.c.l.b16 %v1261
        %v2293 = vunpack.c.l.b16 %v1262
        %v2294 = vunpack.c.l.b16 %v1263
        %v2295 = vunpack.c.l.b16 %v1264
        %v2296 = vunpack.c.l.b16 %v1265
        %v2297 = vunpack.c.l.b16 %v1266
        %v2298 = vunpack.c.l.b16 %v1267
        %v2299 = vunpack.c.l.b16 %v1268
        %v2300 = vunpack.c.l.b16 %v1269
        %v2301 = vunpack.c.l.b16 %v1270
        %v2302 = vunpack.c.l.b16 %v1271
        %v2303 = vunpack.c.l.b16 %v1272
        %v2304 = vunpack.c.l.b16 %v1273
        %v2305 = vunpack.c.l.b16 %v1274
        %v2306 = vunpack.c.l.b16 %v1275
        %v2307 = vunpack.c.l.b16 %v1276
        %v2308 = vunpack.c.l.b16 %v1277
        %v2309 = vpack.c.b16 %v1798, %v1797
        %v2310 = vpack.c.b16 %v1800, %v1799
        %v2311 = vpack.c.b16 %v1802, %v1801
        %v2312 = vpack.c.b16 %v1804, %v1803
        %v2313 = vpack.c.b16 %v1806, %v1805
        %v2314 = vpack.c.b16 %v1808, %v1807
        %v2315 = vpack.c.b16 %v1810, %v1809
        %v2316 = vpack.c.b16 %v1812, %v1811
        %v2317 = vpack.c.b16 %v1814, %v1813
        %v2318 = vpack.c.b16 %v1816, %v1815
        %v2319 = vpack.c.b16 %v1818, %v1817
        %v2320 = vpack.c.b16 %v1820, %v1819
        %v2321 = vpack.c.b16 %v1822, %v1821
        %v2322 = vpack.c.b16 %v1824, %v1823
        %v2323 = vpack.c.b16 %v1826, %v1825
        %v2324 = vpack.c.b16 %v1828, %v1827
        %v2325 = vpack.c.b16 %v1830, %v1829
        %v2326 = vpack.c.b16 %v1832, %v1831
        %v2327 = vpack.c.b16 %v1834, %v1833
        %v2328 = vpack.c.b16 %v1836, %v1835
        %v2329 = vpack.c.b16 %v1838, %v1837
        %v2330 = vpack.c.b16 %v1840, %v1839
        %v2331 = vpack.c.b16 %v1842, %v1841
        %v2332 = vpack.c.b16 %v1844, %v1843
        %v2333 = vpack.c.b16 %v1846, %v1845
        %v2334 = vpack.c.b16 %v1848, %v1847
        %v2335 = vpack.c.b16 %v1850, %v1849
        %v2336 = vpack.c.b16 %v1852, %v1851
        %v2337 = vpack.c.b16 %v1854, %v1853
        %v2338 = vpack.c.b16 %v1856, %v1855
        %v2339 = vpack.c.b16 %v1858, %v1857
        %v2340 = vpack.c.b16 %v1860, %v1859
        %v2341 = vpack.c.b16 %v1862, %v1861
        %v2342 = vpack.c.b16 %v1864, %v1863
        %v2343 = vpack.c.b16 %v1866, %v1865
        %v2344 = vpack.c.b16 %v1868, %v1867
        %v2345 = vpack.c.b16 %v1870, %v1869
        %v2346 = vpack.c.b16 %v1872, %v1871
        %v2347 = vpack.c.b16 %v1874, %v1873
        %v2348 = vpack.c.b16 %v1876, %v1875
        %v2349 = vpack.c.b16 %v1878, %v1877
        %v2350 = vpack.c.b16 %v1880, %v1879
        %v2351 = vpack.c.b16 %v1882, %v1881
        %v2352 = vpack.c.b16 %v1884, %v1883
        %v2353 = vpack.c.b16 %v1886, %v1885
        %v2354 = vpack.c.b16 %v1888, %v1887
        %v2355 = vpack.c.b16 %v1890, %v1889
        %v2356 = vpack.c.b16 %v1892, %v1891
        %v2357 = vpack.c.b16 %v1894, %v1893
        %v2358 = vpack.c.b16 %v1896, %v1895
        %v2359 = vpack.c.b16 %v1898, %v1897
        %v2360 = vpack.c.b16 %v1900, %v1899
        %v2361 = vpack.c.b16 %v1902, %v1901
        %v2362 = vpack.c.b16 %v1904, %v1903
        %v2363 = vpack.c.b16 %v1906, %v1905
        %v2364 = vpack.c.b16 %v1908, %v1907
        %v2365 = vpack.c.b16 %v1910, %v1909
        %v2366 = vpack.c.b16 %v1912, %v1911
        %v2367 = vpack.c.b16 %v1914, %v1913
        %v2368 = vpack.c.b16 %v1916, %v1915
        %v2369 = vpack.c.b16 %v1918, %v1917
        %v2370 = vpack.c.b16 %v1920, %v1919
        %v2371 = vpack.c.b16 %v1922, %v1921
        %v2372 = vpack.c.b16 %v1924, %v1923
        %v2373 = vpack.c.b16 %v1926, %v1925
        %v2374 = vpack.c.b16 %v1928, %v1927
        %v2375 = vpack.c.b16 %v1930, %v1929
        %v2376 = vpack.c.b16 %v1932, %v1931
        %v2377 = vpack.c.b16 %v1934, %v1933
        %v2378 = vpack.c.b16 %v1936, %v1935
        %v2379 = vpack.c.b16 %v1938, %v1937
        %v2380 = vpack.c.b16 %v1940, %v1939
        %v2381 = vpack.c.b16 %v1942, %v1941
        %v2382 = vpack.c.b16 %v1944, %v1943
        %v2383 = vpack.c.b16 %v1946, %v1945
        %v2384 = vpack.c.b16 %v1948, %v1947
        %v2385 = vpack.c.b16 %v1950, %v1949
        %v2386 = vpack.c.b16 %v1952, %v1951
        %v2387 = vpack.c.b16 %v1954, %v1953
        %v2388 = vpack.c.b16 %v1956, %v1955
        %v2389 = vpack.c.b16 %v1958, %v1957
        %v2390 = vpack.c.b16 %v1960, %v1959
        %v2391 = vpack.c.b16 %v1962, %v1961
        %v2392 = vpack.c.b16 %v1964, %v1963
        %v2393 = vpack.c.b16 %v1966, %v1965
        %v2394 = vpack.c.b16 %v1968, %v1967
        %v2395 = vpack.c.b16 %v1970, %v1969
        %v2396 = vpack.c.b16 %v1972, %v1971
        %v2397 = vpack.c.b16 %v1974, %v1973
        %v2398 = vpack.c.b16 %v1976, %v1975
        %v2399 = vpack.c.b16 %v1978, %v1977
        %v2400 = vpack.c.b16 %v1980, %v1979
        %v2401 = vpack.c.b16 %v1982, %v1981
        %v2402 = vpack.c.b16 %v1984, %v1983
        %v2403 = vpack.c.b16 %v1986, %v1985
        %v2404 = vpack.c.b16 %v1988, %v1987
        %v2405 = vpack.c.b16 %v1990, %v1989
        %v2406 = vpack.c.b16 %v1992, %v1991
        %v2407 = vpack.c.b16 %v1994, %v1993
        %v2408 = vpack.c.b16 %v1996, %v1995
        %v2409 = vpack.c.b16 %v1998, %v1997
        %v2410 = vpack.c.b16 %v2000, %v1999
        %v2411 = vpack.c.b16 %v2002, %v2001
        %v2412 = vpack.c.b16 %v2004, %v2003
        %v2413 = vpack.c.b16 %v2006, %v2005
        %v2414 = vpack.c.b16 %v2008, %v2007
        %v2415 = vpack.c.b16 %v2010, %v2009
        %v2416 = vpack.c.b16 %v2012, %v2011
        %v2417 = vpack.c.b16 %v2014, %v2013
        %v2418 = vpack.c.b16 %v2016, %v2015
        %v2419 = vpack.c.b16 %v2018, %v2017
        %v2420 = vpack.c.b16 %v2020, %v2019
        %v2421 = vpack.c.b16 %v2022, %v2021
        %v2422 = vpack.c.b16 %v2024, %v2023
        %v2423 = vpack.c.b16 %v2026, %v2025
        %v2424 = vpack.c.b16 %v2028, %v2027
        %v2425 = vpack.c.b16 %v2030, %v2029
        %v2426 = vpack.c.b16 %v2032, %v2031
        %v2427 = vpack.c.b16 %v2034, %v2033
        %v2428 = vpack.c.b16 %v2036, %v2035
        %v2429 = vpack.c.b16 %v2038, %v2037
        %v2430 = vpack.c.b16 %v2040, %v2039
        %v2431 = vpack.c.b16 %v2042, %v2041
        %v2432 = vpack.c.b16 %v2044, %v2043
        %v2433 = vpack.c.b16 %v2046, %v2045
        %v2434 = vpack.c.b16 %v2048, %v2047
        %v2435 = vpack.c.b16 %v2050, %v2049
        %v2436 = vpack.c.b16 %v2052, %v2051
        %v2437 = vpack.c.b16 %v2054, %v2053
        %v2438 = vpack.c.b16 %v2056, %v2055
        %v2439 = vpack.c.b16 %v2058, %v2057
        %v2440 = vpack.c.b16 %v2060, %v2059
        %v2441 = vpack.c.b16 %v2062, %v2061
        %v2442 = vpack.c.b16 %v2064, %v2063
        %v2443 = vpack.c.b16 %v2066, %v2065
        %v2444 = vpack.c.b16 %v2068, %v2067
        %v2445 = vpack.c.b16 %v2070, %v2069
        %v2446 = vpack.c.b16 %v2072, %v2071
        %v2447 = vpack.c.b16 %v2074, %v2073
        %v2448 = vpack.c.b16 %v2076, %v2075
        %v2449 = vpack.c.b16 %v2078, %v2077
        %v2450 = vpack.c.b16 %v2080, %v2079
        %v2451 = vpack.c.b16 %v2082, %v2081
        %v2452 = vpack.c.b16 %v2084, %v2083
        %v2453 = vpack.c.b16 %v2086, %v2085
        %v2454 = vpack.c.b16 %v2088, %v2087
        %v2455 = vpack.c.b16 %v2090, %v2089
        %v2456 = vpack.c.b16 %v2092, %v2091
        %v2457 = vpack.c.b16 %v2094, %v2093
        %v2458 = vpack.c.b16 %v2096, %v2095
        %v2459 = vpack.c.b16 %v2098, %v2097
        %v2460 = vpack.c.b16 %v2100, %v2099
        %v2461 = vpack.c.b16 %v2102, %v2101
        %v2462 = vpack.c.b16 %v2104, %v2103
        %v2463 = vpack.c.b16 %v2106, %v2105
        %v2464 = vpack.c.b16 %v2108, %v2107
        %v2465 = vpack.c.b16 %v2110, %v2109
        %v2466 = vpack.c.b16 %v2112, %v2111
        %v2467 = vpack.c.b16 %v2114, %v2113
        %v2468 = vpack.c.b16 %v2116, %v2115
        %v2469 = vpack.c.b16 %v2118, %v2117
        %v2470 = vpack.c.b16 %v2120, %v2119
        %v2471 = vpack.c.b16 %v2122, %v2121
        %v2472 = vpack.c.b16 %v2124, %v2123
        %v2473 = vpack.c.b16 %v2126, %v2125
        %v2474 = vpack.c.b16 %v2128, %v2127
        %v2475 = vpack.c.b16 %v2130, %v2129
        %v2476 = vpack.c.b16 %v2132, %v2131
        %v2477 = vpack.c.b16 %v2134, %v2133
        %v2478 = vpack.c.b16 %v2136, %v2135
        %v2479 = vpack.c.b16 %v2138, %v2137
        %v2480 = vpack.c.b16 %v2140, %v2139
        %v2481 = vpack.c.b16 %v2142, %v2141
        %v2482 = vpack.c.b16 %v2144, %v2143
        %v2483 = vpack.c.b16 %v2146, %v2145
        %v2484 = vpack.c.b16 %v2148, %v2147
        %v2485 = vpack.c.b16 %v2150, %v2149
        %v2486 = vpack.c.b16 %v2152, %v2151
        %v2487 = vpack.c.b16 %v2154, %v2153
        %v2488 = vpack.c.b16 %v2156, %v2155
        %v2489 = vpack.c.b16 %v2158, %v2157
        %v2490 = vpack.c.b16 %v2160, %v2159
        %v2491 = vpack.c.b16 %v2162, %v2161
        %v2492 = vpack.c.b16 %v2164, %v2163
        %v2493 = vpack.c.b16 %v2166, %v2165
        %v2494 = vpack.c.b16 %v2168, %v2167
        %v2495 = vpack.c.b16 %v2170, %v2169
        %v2496 = vpack.c.b16 %v2172, %v2171
        %v2497 = vpack.c.b16 %v2174, %v2173
        %v2498 = vpack.c.b16 %v2176, %v2175
        %v2499 = vpack.c.b16 %v2178, %v2177
        %v2500 = vpack.c.b16 %v2180, %v2179
        %v2501 = vpack.c.b16 %v2182, %v2181
        %v2502 = vpack.c.b16 %v2184, %v2183
        %v2503 = vpack.c.b16 %v2186, %v2185
        %v2504 = vpack.c.b16 %v2188, %v2187
        %v2505 = vpack.c.b16 %v2190, %v2189
        %v2506 = vpack.c.b16 %v2192, %v2191
        %v2507 = vpack.c.b16 %v2194, %v2193
        %v2508 = vpack.c.b16 %v2196, %v2195
        %v2509 = vpack.c.b16 %v2198, %v2197
        %v2510 = vpack.c.b16 %v2200, %v2199
        %v2511 = vpack.c.b16 %v2202, %v2201
        %v2512 = vpack.c.b16 %v2204, %v2203
        %v2513 = vpack.c.b16 %v2206, %v2205
        %v2514 = vpack.c.b16 %v2208, %v2207
        %v2515 = vpack.c.b16 %v2210, %v2209
        %v2516 = vpack.c.b16 %v2212, %v2211
        %v2517 = vpack.c.b16 %v2214, %v2213
        %v2518 = vpack.c.b16 %v2216, %v2215
        %v2519 = vpack.c.b16 %v2218, %v2217
        %v2520 = vpack.c.b16 %v2220, %v2219
        %v2521 = vpack.c.b16 %v2222, %v2221
        %v2522 = vpack.c.b16 %v2224, %v2223
        %v2523 = vpack.c.b16 %v2226, %v2225
        %v2524 = vpack.c.b16 %v2228, %v2227
        %v2525 = vpack.c.b16 %v2230, %v2229
        %v2526 = vpack.c.b16 %v2232, %v2231
        %v2527 = vpack.c.b16 %v2234, %v2233
        %v2528 = vpack.c.b16 %v2236, %v2235
        %v2529 = vpack.c.b16 %v2238, %v2237
        %v2530 = vpack.c.b16 %v2240, %v2239
        %v2531 = vpack.c.b16 %v2242, %v2241
        %v2532 = vpack.c.b16 %v2244, %v2243
        %v2533 = vpack.c.b16 %v2246, %v2245
        %v2534 = vpack.c.b16 %v2248, %v2247
        %v2535 = vpack.c.b16 %v2250, %v2249
        %v2536 = vpack.c.b16 %v2252, %v2251
        %v2537 = vpack.c.b16 %v2254, %v2253
        %v2538 = vpack.c.b16 %v2256, %v2255
        %v2539 = vpack.c.b16 %v2258, %v2257
        %v2540 = vpack.c.b16 %v2260, %v2259
        %v2541 = vpack.c.b16 %v2262, %v2261
        %v2542 = vpack.c.b16 %v2264, %v2263
        %v2543 = vpack.c.b16 %v2266, %v2265
        %v2544 = vpack.c.b16 %v2268, %v2267
        %v2545 = vpack.c.b16 %v2270, %v2269
        %v2546 = vpack.c.b16 %v2272, %v2271
        %v2547 = vpack.c.b16 %v2274, %v2273
        %v2548 = vpack.c.b16 %v2276, %v2275
        %v2549 = vpack.c.b16 %v2278, %v2277
        %v2550 = vpack.c.b16 %v2280, %v2279
        %v2551 = vpack.c.b16 %v2282, %v2281
        %v2552 = vpack.c.b16 %v2284, %v2283
        %v2553 = vpack.c.b16 %v2286, %v2285
        %v2554 = vpack.c.b16 %v2288, %v2287
        %v2555 = vpack.c.b16 %v2290, %v2289
        %v2556 = vpack.c.b16 %v2292, %v2291
        %v2557 = vpack.c.b16 %v2294, %v2293
        %v2558 = vpack.c.b16 %v2296, %v2295
        %v2559 = vpack.c.b16 %v2298, %v2297
        %v2560 = vpack.c.b16 %v2300, %v2299
        %v2561 = vpack.c.b16 %v2302, %v2301
        %v2562 = vpack.c.b16 %v2304, %v2303
        %v2563 = vpack.c.b16 %v2306, %v2305
        %v2564 = vpack.c.b16 %v2308, %v2307
        %2821 = vmatprep.subr.bf16.mxu0 0
        %2822 = vmatpush1.bf16.msra.mxu0 %v2316
        %2823 = vmatprep.subr.bf16.mxu0 0
        %2824 = vmatpush1.bf16.msra.mxu0 %v2315
        %2825 = vmatprep.subr.bf16.mxu0 0
        %2826 = vmatpush1.bf16.msra.mxu0 %v2314
        %2827 = vmatprep.subr.bf16.mxu0 0
        %2828 = vmatpush1.bf16.msra.mxu0 %v2313
        %2829 = vmatprep.subr.bf16.mxu0 0
        %2830 = vmatpush1.bf16.msra.mxu0 %v2312
        %2831 = vmatprep.subr.bf16.mxu0 0
        %2832 = vmatpush1.bf16.msra.mxu0 %v2311
        %2833 = vmatprep.subr.bf16.mxu0 0
        %2834 = vmatpush1.bf16.msra.mxu0 %v2310
        %2835 = vmatprep.subr.bf16.mxu0 0
        %2836 = vmatpush1.bf16.msra.mxu0 %v2309
        %2837 = vmatprep.subr.bf16.mxu0 0
        %2838 = vmatpush2.bf16.msra.mxu0 %v2324
        %2839 = vmatprep.subr.bf16.mxu0 0
        %2840 = vmatpush2.bf16.msra.mxu0 %v2323
        %2841 = vmatprep.subr.bf16.mxu0 0
        %2842 = vmatpush2.bf16.msra.mxu0 %v2322
        %2843 = vmatprep.subr.bf16.mxu0 0
        %2844 = vmatpush2.bf16.msra.mxu0 %v2321
        %2845 = vmatprep.subr.bf16.mxu0 0
        %2846 = vmatpush2.bf16.msra.mxu0 %v2320
        %2847 = vmatprep.subr.bf16.mxu0 0
        %2848 = vmatpush2.bf16.msra.mxu0 %v2319
        %2849 = vmatprep.subr.bf16.mxu0 0
        %2850 = vmatpush2.bf16.msra.mxu0 %v2318
        %2851 = vmatprep.subr.bf16.mxu0 0
        %2852 = vmatpush2.bf16.msra.mxu0 %v2317
        %2853 = vmatprep.mubr.bf16.mxu0 %v639
        %2854 = vmatmul.mubr.bf16.gmra.mxu0 %v638
        %v2855 = vpop.f32.mrf.mxu0
        %v2856 = vadd.f32 %v1283, %v2855
        %v2857 = vpop.f32.mrf.mxu0
        %v2858 = vpop.f32.mrf.mxu0
        %v2859 = vadd.f32 %v1283, %v2858
        %v2860 = vpop.f32.mrf.mxu0
        %2861 = vmatprep.mubr.bf16.mxu0 %v671
        %2862 = vmatmul.mubr.bf16.gmra.mxu0 %v670
        %v2863 = vpop.f32.mrf.mxu0
        %v2864 = vadd.f32 %v1283, %v2863
        %v2865 = vpop.f32.mrf.mxu0
        %v2866 = vpop.f32.mrf.mxu0
        %v2867 = vadd.f32 %v1283, %v2866
        %v2868 = vpop.f32.mrf.mxu0
        %2869 = vmatprep.mubr.bf16.mxu0 %v703
        %2870 = vmatmul.mubr.bf16.gmra.mxu0 %v702
        %v2871 = vpop.f32.mrf.mxu0
        %v2872 = vadd.f32 %v1283, %v2871
        %v2873 = vpop.f32.mrf.mxu0
        %v2874 = vpop.f32.mrf.mxu0
        %v2875 = vadd.f32 %v1283, %v2874
        %v2876 = vpop.f32.mrf.mxu0
        %2877 = vmatprep.mubr.bf16.mxu0 %v735
        %2878 = vmatmul.mubr.bf16.gmra.mxu0 %v734
        %v2879 = vpop.f32.mrf.mxu0
        %v2880 = vadd.f32 %v1283, %v2879
        %v2881 = vpop.f32.mrf.mxu0
        %v2882 = vpop.f32.mrf.mxu0
        %v2883 = vadd.f32 %v1283, %v2882
        %v2884 = vpop.f32.mrf.mxu0
        %2885 = vdwg.mxu0
        %2886 = vmatprep.subr.bf16.mxu0 0
        %2887 = vmatpush1.bf16.msra.mxu0 %v2332
        %2888 = vmatprep.subr.bf16.mxu0 0
        %2889 = vmatpush1.bf16.msra.mxu0 %v2331
        %2890 = vmatprep.subr.bf16.mxu0 0
        %2891 = vmatpush1.bf16.msra.mxu0 %v2330
        %2892 = vmatprep.subr.bf16.mxu0 0
        %2893 = vmatpush1.bf16.msra.mxu0 %v2329
        %2894 = vmatprep.subr.bf16.mxu0 0
        %2895 = vmatpush1.bf16.msra.mxu0 %v2328
        %2896 = vmatprep.subr.bf16.mxu0 0
        %2897 = vmatpush1.bf16.msra.mxu0 %v2327
        %2898 = vmatprep.subr.bf16.mxu0 0
        %2899 = vmatpush1.bf16.msra.mxu0 %v2326
        %2900 = vmatprep.subr.bf16.mxu0 0
        %2901 = vmatpush1.bf16.msra.mxu0 %v2325
        %2902 = vmatprep.subr.bf16.mxu0 0
        %2903 = vmatpush2.bf16.msra.mxu0 %v2340
        %2904 = vmatprep.subr.bf16.mxu0 0
        %2905 = vmatpush2.bf16.msra.mxu0 %v2339
        %2906 = vmatprep.subr.bf16.mxu0 0
        %2907 = vmatpush2.bf16.msra.mxu0 %v2338
        %2908 = vmatprep.subr.bf16.mxu0 0
        %2909 = vmatpush2.bf16.msra.mxu0 %v2337
        %2910 = vmatprep.subr.bf16.mxu0 0
        %2911 = vmatpush2.bf16.msra.mxu0 %v2336
        %2912 = vmatprep.subr.bf16.mxu0 0
        %2913 = vmatpush2.bf16.msra.mxu0 %v2335
        %2914 = vmatprep.subr.bf16.mxu0 0
        %2915 = vmatpush2.bf16.msra.mxu0 %v2334
        %2916 = vmatprep.subr.bf16.mxu0 0
        %2917 = vmatpush2.bf16.msra.mxu0 %v2333
        %2918 = vmatprep.mubr.bf16.mxu0 %v641
        %2919 = vmatmul.mubr.bf16.gmra.mxu0 %v640
        %v2920 = vpop.f32.mrf.mxu0
        %v2921 = vadd.f32 %v2856, %v2920
        %v2922 = vpop.f32.mrf.mxu0
        %v2923 = vpop.f32.mrf.mxu0
        %v2924 = vadd.f32 %v2859, %v2923
        %v2925 = vpop.f32.mrf.mxu0
        %2926 = vmatprep.mubr.bf16.mxu0 %v673
        %2927 = vmatmul.mubr.bf16.gmra.mxu0 %v672
        %v2928 = vpop.f32.mrf.mxu0
        %v2929 = vadd.f32 %v2864, %v2928
        %v2930 = vpop.f32.mrf.mxu0
        %v2931 = vpop.f32.mrf.mxu0
        %v2932 = vadd.f32 %v2867, %v2931
        %v2933 = vpop.f32.mrf.mxu0
        %2934 = vmatprep.mubr.bf16.mxu0 %v705
        %2935 = vmatmul.mubr.bf16.gmra.mxu0 %v704
        %v2936 = vpop.f32.mrf.mxu0
        %v2937 = vadd.f32 %v2872, %v2936
        %v2938 = vpop.f32.mrf.mxu0
        %v2939 = vpop.f32.mrf.mxu0
        %v2940 = vadd.f32 %v2875, %v2939
        %v2941 = vpop.f32.mrf.mxu0
        %2942 = vmatprep.mubr.bf16.mxu0 %v737
        %2943 = vmatmul.mubr.bf16.gmra.mxu0 %v736
        %v2944 = vpop.f32.mrf.mxu0
        %v2945 = vadd.f32 %v2880, %v2944
        %v2946 = vpop.f32.mrf.mxu0
        %v2947 = vpop.f32.mrf.mxu0
        %v2948 = vadd.f32 %v2883, %v2947
        %v2949 = vpop.f32.mrf.mxu0
        %2950 = vdwg.mxu0
        %2951 = vmatprep.subr.bf16.mxu0 0
        %2952 = vmatpush1.bf16.msra.mxu0 %v2348
        %2953 = vmatprep.subr.bf16.mxu0 0
        %2954 = vmatpush1.bf16.msra.mxu0 %v2347
        %2955 = vmatprep.subr.bf16.mxu0 0
        %2956 = vmatpush1.bf16.msra.mxu0 %v2346
        %2957 = vmatprep.subr.bf16.mxu0 0
        %2958 = vmatpush1.bf16.msra.mxu0 %v2345
        %2959 = vmatprep.subr.bf16.mxu0 0
        %2960 = vmatpush1.bf16.msra.mxu0 %v2344
        %2961 = vmatprep.subr.bf16.mxu0 0
        %2962 = vmatpush1.bf16.msra.mxu0 %v2343
        %2963 = vmatprep.subr.bf16.mxu0 0
        %2964 = vmatpush1.bf16.msra.mxu0 %v2342
        %2965 = vmatprep.subr.bf16.mxu0 0
        %2966 = vmatpush1.bf16.msra.mxu0 %v2341
        %2967 = vmatprep.subr.bf16.mxu0 0
        %2968 = vmatpush2.bf16.msra.mxu0 %v2356
        %2969 = vmatprep.subr.bf16.mxu0 0
        %2970 = vmatpush2.bf16.msra.mxu0 %v2355
        %2971 = vmatprep.subr.bf16.mxu0 0
        %2972 = vmatpush2.bf16.msra.mxu0 %v2354
        %2973 = vmatprep.subr.bf16.mxu0 0
        %2974 = vmatpush2.bf16.msra.mxu0 %v2353
        %2975 = vmatprep.subr.bf16.mxu0 0
        %2976 = vmatpush2.bf16.msra.mxu0 %v2352
        %2977 = vmatprep.subr.bf16.mxu0 0
        %2978 = vmatpush2.bf16.msra.mxu0 %v2351
        %2979 = vmatprep.subr.bf16.mxu0 0
        %2980 = vmatpush2.bf16.msra.mxu0 %v2350
        %2981 = vmatprep.subr.bf16.mxu0 0
        %2982 = vmatpush2.bf16.msra.mxu0 %v2349
        %2983 = vmatprep.mubr.bf16.mxu0 %v643
        %2984 = vmatmul.mubr.bf16.gmra.mxu0 %v642
        %v2985 = vpop.f32.mrf.mxu0
        %v2986 = vadd.f32 %v2921, %v2985
        %v2987 = vpop.f32.mrf.mxu0
        %v2988 = vpop.f32.mrf.mxu0
        %v2989 = vadd.f32 %v2924, %v2988
        %v2990 = vpop.f32.mrf.mxu0
        %2991 = vmatprep.mubr.bf16.mxu0 %v675
        %2992 = vmatmul.mubr.bf16.gmra.mxu0 %v674
        %v2993 = vpop.f32.mrf.mxu0
        %v2994 = vadd.f32 %v2929, %v2993
        %v2995 = vpop.f32.mrf.mxu0
        %v2996 = vpop.f32.mrf.mxu0
        %v2997 = vadd.f32 %v2932, %v2996
        %v2998 = vpop.f32.mrf.mxu0
        %2999 = vmatprep.mubr.bf16.mxu0 %v707
        %3000 = vmatmul.mubr.bf16.gmra.mxu0 %v706
        %v3001 = vpop.f32.mrf.mxu0
        %v3002 = vadd.f32 %v2937, %v3001
        %v3003 = vpop.f32.mrf.mxu0
        %v3004 = vpop.f32.mrf.mxu0
        %v3005 = vadd.f32 %v2940, %v3004
        %v3006 = vpop.f32.mrf.mxu0
        %3007 = vmatprep.mubr.bf16.mxu0 %v739
        %3008 = vmatmul.mubr.bf16.gmra.mxu0 %v738
        %v3009 = vpop.f32.mrf.mxu0
        %v3010 = vadd.f32 %v2945, %v3009
        %v3011 = vpop.f32.mrf.mxu0
        %v3012 = vpop.f32.mrf.mxu0
        %v3013 = vadd.f32 %v2948, %v3012
        %v3014 = vpop.f32.mrf.mxu0
        %3015 = vdwg.mxu0
        %3016 = vmatprep.subr.bf16.mxu0 0
        %3017 = vmatpush1.bf16.msra.mxu0 %v2364
        %3018 = vmatprep.subr.bf16.mxu0 0
        %3019 = vmatpush1.bf16.msra.mxu0 %v2363
        %3020 = vmatprep.subr.bf16.mxu0 0
        %3021 = vmatpush1.bf16.msra.mxu0 %v2362
        %3022 = vmatprep.subr.bf16.mxu0 0
        %3023 = vmatpush1.bf16.msra.mxu0 %v2361
        %3024 = vmatprep.subr.bf16.mxu0 0
        %3025 = vmatpush1.bf16.msra.mxu0 %v2360
        %3026 = vmatprep.subr.bf16.mxu0 0
        %3027 = vmatpush1.bf16.msra.mxu0 %v2359
        %3028 = vmatprep.subr.bf16.mxu0 0
        %3029 = vmatpush1.bf16.msra.mxu0 %v2358
        %3030 = vmatprep.subr.bf16.mxu0 0
        %3031 = vmatpush1.bf16.msra.mxu0 %v2357
        %3032 = vmatprep.subr.bf16.mxu0 0
        %3033 = vmatpush2.bf16.msra.mxu0 %v2372
        %3034 = vmatprep.subr.bf16.mxu0 0
        %3035 = vmatpush2.bf16.msra.mxu0 %v2371
        %3036 = vmatprep.subr.bf16.mxu0 0
        %3037 = vmatpush2.bf16.msra.mxu0 %v2370
        %3038 = vmatprep.subr.bf16.mxu0 0
        %3039 = vmatpush2.bf16.msra.mxu0 %v2369
        %3040 = vmatprep.subr.bf16.mxu0 0
        %3041 = vmatpush2.bf16.msra.mxu0 %v2368
        %3042 = vmatprep.subr.bf16.mxu0 0
        %3043 = vmatpush2.bf16.msra.mxu0 %v2367
        %3044 = vmatprep.subr.bf16.mxu0 0
        %3045 = vmatpush2.bf16.msra.mxu0 %v2366
        %3046 = vmatprep.subr.bf16.mxu0 0
        %3047 = vmatpush2.bf16.msra.mxu0 %v2365
        %3048 = vmatprep.mubr.bf16.mxu0 %v645
        %3049 = vmatmul.mubr.bf16.gmra.mxu0 %v644
        %v3050 = vpop.f32.mrf.mxu0
        %v3051 = vadd.f32 %v2986, %v3050
        %v3052 = vpop.f32.mrf.mxu0
        %v3053 = vpop.f32.mrf.mxu0
        %v3054 = vadd.f32 %v2989, %v3053
        %v3055 = vpop.f32.mrf.mxu0
        %3056 = vmatprep.mubr.bf16.mxu0 %v677
        %3057 = vmatmul.mubr.bf16.gmra.mxu0 %v676
        %v3058 = vpop.f32.mrf.mxu0
        %v3059 = vadd.f32 %v2994, %v3058
        %v3060 = vpop.f32.mrf.mxu0
        %v3061 = vpop.f32.mrf.mxu0
        %v3062 = vadd.f32 %v2997, %v3061
        %v3063 = vpop.f32.mrf.mxu0
        %3064 = vmatprep.mubr.bf16.mxu0 %v709
        %3065 = vmatmul.mubr.bf16.gmra.mxu0 %v708
        %v3066 = vpop.f32.mrf.mxu0
        %v3067 = vadd.f32 %v3002, %v3066
        %v3068 = vpop.f32.mrf.mxu0
        %v3069 = vpop.f32.mrf.mxu0
        %v3070 = vadd.f32 %v3005, %v3069
        %v3071 = vpop.f32.mrf.mxu0
        %3072 = vmatprep.mubr.bf16.mxu0 %v741
        %3073 = vmatmul.mubr.bf16.gmra.mxu0 %v740
        %v3074 = vpop.f32.mrf.mxu0
        %v3075 = vadd.f32 %v3010, %v3074
        %v3076 = vpop.f32.mrf.mxu0
        %v3077 = vpop.f32.mrf.mxu0
        %v3078 = vadd.f32 %v3013, %v3077
        %v3079 = vpop.f32.mrf.mxu0
        %3080 = vdwg.mxu0
        %3081 = vmatprep.subr.bf16.mxu0 0
        %3082 = vmatpush1.bf16.msra.mxu0 %v2380
        %3083 = vmatprep.subr.bf16.mxu0 0
        %3084 = vmatpush1.bf16.msra.mxu0 %v2379
        %3085 = vmatprep.subr.bf16.mxu0 0
        %3086 = vmatpush1.bf16.msra.mxu0 %v2378
        %3087 = vmatprep.subr.bf16.mxu0 0
        %3088 = vmatpush1.bf16.msra.mxu0 %v2377
        %3089 = vmatprep.subr.bf16.mxu0 0
        %3090 = vmatpush1.bf16.msra.mxu0 %v2376
        %3091 = vmatprep.subr.bf16.mxu0 0
        %3092 = vmatpush1.bf16.msra.mxu0 %v2375
        %3093 = vmatprep.subr.bf16.mxu0 0
        %3094 = vmatpush1.bf16.msra.mxu0 %v2374
        %3095 = vmatprep.subr.bf16.mxu0 0
        %3096 = vmatpush1.bf16.msra.mxu0 %v2373
        %3097 = vmatprep.subr.bf16.mxu0 0
        %3098 = vmatpush2.bf16.msra.mxu0 %v2388
        %3099 = vmatprep.subr.bf16.mxu0 0
        %3100 = vmatpush2.bf16.msra.mxu0 %v2387
        %3101 = vmatprep.subr.bf16.mxu0 0
        %3102 = vmatpush2.bf16.msra.mxu0 %v2386
        %3103 = vmatprep.subr.bf16.mxu0 0
        %3104 = vmatpush2.bf16.msra.mxu0 %v2385
        %3105 = vmatprep.subr.bf16.mxu0 0
        %3106 = vmatpush2.bf16.msra.mxu0 %v2384
        %3107 = vmatprep.subr.bf16.mxu0 0
        %3108 = vmatpush2.bf16.msra.mxu0 %v2383
        %3109 = vmatprep.subr.bf16.mxu0 0
        %3110 = vmatpush2.bf16.msra.mxu0 %v2382
        %3111 = vmatprep.subr.bf16.mxu0 0
        %3112 = vmatpush2.bf16.msra.mxu0 %v2381
        %3113 = vmatprep.mubr.bf16.mxu0 %v647
        %3114 = vmatmul.mubr.bf16.gmra.mxu0 %v646
        %v3115 = vpop.f32.mrf.mxu0
        %v3116 = vadd.f32 %v3051, %v3115
        %v3117 = vpop.f32.mrf.mxu0
        %v3118 = vpop.f32.mrf.mxu0
        %v3119 = vadd.f32 %v3054, %v3118
        %v3120 = vpop.f32.mrf.mxu0
        %3121 = vmatprep.mubr.bf16.mxu0 %v679
        %3122 = vmatmul.mubr.bf16.gmra.mxu0 %v678
        %v3123 = vpop.f32.mrf.mxu0
        %v3124 = vadd.f32 %v3059, %v3123
        %v3125 = vpop.f32.mrf.mxu0
        %v3126 = vpop.f32.mrf.mxu0
        %v3127 = vadd.f32 %v3062, %v3126
        %v3128 = vpop.f32.mrf.mxu0
        %3129 = vmatprep.mubr.bf16.mxu0 %v711
        %3130 = vmatmul.mubr.bf16.gmra.mxu0 %v710
        %v3131 = vpop.f32.mrf.mxu0
        %v3132 = vadd.f32 %v3067, %v3131
        %v3133 = vpop.f32.mrf.mxu0
        %v3134 = vpop.f32.mrf.mxu0
        %v3135 = vadd.f32 %v3070, %v3134
        %v3136 = vpop.f32.mrf.mxu0
        %3137 = vmatprep.mubr.bf16.mxu0 %v743
        %3138 = vmatmul.mubr.bf16.gmra.mxu0 %v742
        %v3139 = vpop.f32.mrf.mxu0
        %v3140 = vadd.f32 %v3075, %v3139
        %v3141 = vpop.f32.mrf.mxu0
        %v3142 = vpop.f32.mrf.mxu0
        %v3143 = vadd.f32 %v3078, %v3142
        %v3144 = vpop.f32.mrf.mxu0
        %3145 = vdwg.mxu0
        %3146 = vmatprep.subr.bf16.mxu0 0
        %3147 = vmatpush1.bf16.msra.mxu0 %v2396
        %3148 = vmatprep.subr.bf16.mxu0 0
        %3149 = vmatpush1.bf16.msra.mxu0 %v2395
        %3150 = vmatprep.subr.bf16.mxu0 0
        %3151 = vmatpush1.bf16.msra.mxu0 %v2394
        %3152 = vmatprep.subr.bf16.mxu0 0
        %3153 = vmatpush1.bf16.msra.mxu0 %v2393
        %3154 = vmatprep.subr.bf16.mxu0 0
        %3155 = vmatpush1.bf16.msra.mxu0 %v2392
        %3156 = vmatprep.subr.bf16.mxu0 0
        %3157 = vmatpush1.bf16.msra.mxu0 %v2391
        %3158 = vmatprep.subr.bf16.mxu0 0
        %3159 = vmatpush1.bf16.msra.mxu0 %v2390
        %3160 = vmatprep.subr.bf16.mxu0 0
        %3161 = vmatpush1.bf16.msra.mxu0 %v2389
        %3162 = vmatprep.subr.bf16.mxu0 0
        %3163 = vmatpush2.bf16.msra.mxu0 %v2404
        %3164 = vmatprep.subr.bf16.mxu0 0
        %3165 = vmatpush2.bf16.msra.mxu0 %v2403
        %3166 = vmatprep.subr.bf16.mxu0 0
        %3167 = vmatpush2.bf16.msra.mxu0 %v2402
        %3168 = vmatprep.subr.bf16.mxu0 0
        %3169 = vmatpush2.bf16.msra.mxu0 %v2401
        %3170 = vmatprep.subr.bf16.mxu0 0
        %3171 = vmatpush2.bf16.msra.mxu0 %v2400
        %3172 = vmatprep.subr.bf16.mxu0 0
        %3173 = vmatpush2.bf16.msra.mxu0 %v2399
        %3174 = vmatprep.subr.bf16.mxu0 0
        %3175 = vmatpush2.bf16.msra.mxu0 %v2398
        %3176 = vmatprep.subr.bf16.mxu0 0
        %3177 = vmatpush2.bf16.msra.mxu0 %v2397
        %3178 = vmatprep.mubr.bf16.mxu0 %v649
        %3179 = vmatmul.mubr.bf16.gmra.mxu0 %v648
        %v3180 = vpop.f32.mrf.mxu0
        %v3181 = vadd.f32 %v3116, %v3180
        %v3182 = vpop.f32.mrf.mxu0
        %v3183 = vpop.f32.mrf.mxu0
        %v3184 = vadd.f32 %v3119, %v3183
        %v3185 = vpop.f32.mrf.mxu0
        %3186 = vmatprep.mubr.bf16.mxu0 %v681
        %3187 = vmatmul.mubr.bf16.gmra.mxu0 %v680
        %v3188 = vpop.f32.mrf.mxu0
        %v3189 = vadd.f32 %v3124, %v3188
        %v3190 = vpop.f32.mrf.mxu0
        %v3191 = vpop.f32.mrf.mxu0
        %v3192 = vadd.f32 %v3127, %v3191
        %v3193 = vpop.f32.mrf.mxu0
        %3194 = vmatprep.mubr.bf16.mxu0 %v713
        %3195 = vmatmul.mubr.bf16.gmra.mxu0 %v712
        %v3196 = vpop.f32.mrf.mxu0
        %v3197 = vadd.f32 %v3132, %v3196
        %v3198 = vpop.f32.mrf.mxu0
        %v3199 = vpop.f32.mrf.mxu0
        %v3200 = vadd.f32 %v3135, %v3199
        %v3201 = vpop.f32.mrf.mxu0
        %3202 = vmatprep.mubr.bf16.mxu0 %v745
        %3203 = vmatmul.mubr.bf16.gmra.mxu0 %v744
        %v3204 = vpop.f32.mrf.mxu0
        %v3205 = vadd.f32 %v3140, %v3204
        %v3206 = vpop.f32.mrf.mxu0
        %v3207 = vpop.f32.mrf.mxu0
        %v3208 = vadd.f32 %v3143, %v3207
        %v3209 = vpop.f32.mrf.mxu0
        %3210 = vdwg.mxu0
        %3211 = vmatprep.subr.bf16.mxu0 0
        %3212 = vmatpush1.bf16.msra.mxu0 %v2412
        %3213 = vmatprep.subr.bf16.mxu0 0
        %3214 = vmatpush1.bf16.msra.mxu0 %v2411
        %3215 = vmatprep.subr.bf16.mxu0 0
        %3216 = vmatpush1.bf16.msra.mxu0 %v2410
        %3217 = vmatprep.subr.bf16.mxu0 0
        %3218 = vmatpush1.bf16.msra.mxu0 %v2409
        %3219 = vmatprep.subr.bf16.mxu0 0
        %3220 = vmatpush1.bf16.msra.mxu0 %v2408
        %3221 = vmatprep.subr.bf16.mxu0 0
        %3222 = vmatpush1.bf16.msra.mxu0 %v2407
        %3223 = vmatprep.subr.bf16.mxu0 0
        %3224 = vmatpush1.bf16.msra.mxu0 %v2406
        %3225 = vmatprep.subr.bf16.mxu0 0
        %3226 = vmatpush1.bf16.msra.mxu0 %v2405
        %3227 = vmatprep.subr.bf16.mxu0 0
        %3228 = vmatpush2.bf16.msra.mxu0 %v2420
        %3229 = vmatprep.subr.bf16.mxu0 0
        %3230 = vmatpush2.bf16.msra.mxu0 %v2419
        %3231 = vmatprep.subr.bf16.mxu0 0
        %3232 = vmatpush2.bf16.msra.mxu0 %v2418
        %3233 = vmatprep.subr.bf16.mxu0 0
        %3234 = vmatpush2.bf16.msra.mxu0 %v2417
        %3235 = vmatprep.subr.bf16.mxu0 0
        %3236 = vmatpush2.bf16.msra.mxu0 %v2416
        %3237 = vmatprep.subr.bf16.mxu0 0
        %3238 = vmatpush2.bf16.msra.mxu0 %v2415
        %3239 = vmatprep.subr.bf16.mxu0 0
        %3240 = vmatpush2.bf16.msra.mxu0 %v2414
        %3241 = vmatprep.subr.bf16.mxu0 0
        %3242 = vmatpush2.bf16.msra.mxu0 %v2413
        %3243 = vmatprep.mubr.bf16.mxu0 %v651
        %3244 = vmatmul.mubr.bf16.gmra.mxu0 %v650
        %v3245 = vpop.f32.mrf.mxu0
        %v3246 = vadd.f32 %v3181, %v3245
        %v3247 = vpop.f32.mrf.mxu0
        %v3248 = vpop.f32.mrf.mxu0
        %v3249 = vadd.f32 %v3184, %v3248
        %v3250 = vpop.f32.mrf.mxu0
        %3251 = vmatprep.mubr.bf16.mxu0 %v683
        %3252 = vmatmul.mubr.bf16.gmra.mxu0 %v682
        %v3253 = vpop.f32.mrf.mxu0
        %v3254 = vadd.f32 %v3189, %v3253
        %v3255 = vpop.f32.mrf.mxu0
        %v3256 = vpop.f32.mrf.mxu0
        %v3257 = vadd.f32 %v3192, %v3256
        %v3258 = vpop.f32.mrf.mxu0
        %3259 = vmatprep.mubr.bf16.mxu0 %v715
        %3260 = vmatmul.mubr.bf16.gmra.mxu0 %v714
        %v3261 = vpop.f32.mrf.mxu0
        %v3262 = vadd.f32 %v3197, %v3261
        %v3263 = vpop.f32.mrf.mxu0
        %v3264 = vpop.f32.mrf.mxu0
        %v3265 = vadd.f32 %v3200, %v3264
        %v3266 = vpop.f32.mrf.mxu0
        %3267 = vmatprep.mubr.bf16.mxu0 %v747
        %3268 = vmatmul.mubr.bf16.gmra.mxu0 %v746
        %v3269 = vpop.f32.mrf.mxu0
        %v3270 = vadd.f32 %v3205, %v3269
        %v3271 = vpop.f32.mrf.mxu0
        %v3272 = vpop.f32.mrf.mxu0
        %v3273 = vadd.f32 %v3208, %v3272
        %v3274 = vpop.f32.mrf.mxu0
        %3275 = vdwg.mxu0
        %3276 = vmatprep.subr.bf16.mxu0 0
        %3277 = vmatpush1.bf16.msra.mxu0 %v2428
        %3278 = vmatprep.subr.bf16.mxu0 0
        %3279 = vmatpush1.bf16.msra.mxu0 %v2427
        %3280 = vmatprep.subr.bf16.mxu0 0
        %3281 = vmatpush1.bf16.msra.mxu0 %v2426
        %3282 = vmatprep.subr.bf16.mxu0 0
        %3283 = vmatpush1.bf16.msra.mxu0 %v2425
        %3284 = vmatprep.subr.bf16.mxu0 0
        %3285 = vmatpush1.bf16.msra.mxu0 %v2424
        %3286 = vmatprep.subr.bf16.mxu0 0
        %3287 = vmatpush1.bf16.msra.mxu0 %v2423
        %3288 = vmatprep.subr.bf16.mxu0 0
        %3289 = vmatpush1.bf16.msra.mxu0 %v2422
        %3290 = vmatprep.subr.bf16.mxu0 0
        %3291 = vmatpush1.bf16.msra.mxu0 %v2421
        %3292 = vmatprep.subr.bf16.mxu0 0
        %3293 = vmatpush2.bf16.msra.mxu0 %v2436
        %3294 = vmatprep.subr.bf16.mxu0 0
        %3295 = vmatpush2.bf16.msra.mxu0 %v2435
        %3296 = vmatprep.subr.bf16.mxu0 0
        %3297 = vmatpush2.bf16.msra.mxu0 %v2434
        %3298 = vmatprep.subr.bf16.mxu0 0
        %3299 = vmatpush2.bf16.msra.mxu0 %v2433
        %3300 = vmatprep.subr.bf16.mxu0 0
        %3301 = vmatpush2.bf16.msra.mxu0 %v2432
        %3302 = vmatprep.subr.bf16.mxu0 0
        %3303 = vmatpush2.bf16.msra.mxu0 %v2431
        %3304 = vmatprep.subr.bf16.mxu0 0
        %3305 = vmatpush2.bf16.msra.mxu0 %v2430
        %3306 = vmatprep.subr.bf16.mxu0 0
        %3307 = vmatpush2.bf16.msra.mxu0 %v2429
        %3308 = vmatprep.mubr.bf16.mxu0 %v653
        %3309 = vmatmul.mubr.bf16.gmra.mxu0 %v652
        %v3310 = vpop.f32.mrf.mxu0
        %v3311 = vadd.f32 %v3246, %v3310
        %v3312 = vpop.f32.mrf.mxu0
        %v3313 = vpop.f32.mrf.mxu0
        %v3314 = vadd.f32 %v3249, %v3313
        %v3315 = vpop.f32.mrf.mxu0
        %3316 = vmatprep.mubr.bf16.mxu0 %v685
        %3317 = vmatmul.mubr.bf16.gmra.mxu0 %v684
        %v3318 = vpop.f32.mrf.mxu0
        %v3319 = vadd.f32 %v3254, %v3318
        %v3320 = vpop.f32.mrf.mxu0
        %v3321 = vpop.f32.mrf.mxu0
        %v3322 = vadd.f32 %v3257, %v3321
        %v3323 = vpop.f32.mrf.mxu0
        %3324 = vmatprep.mubr.bf16.mxu0 %v717
        %3325 = vmatmul.mubr.bf16.gmra.mxu0 %v716
        %v3326 = vpop.f32.mrf.mxu0
        %v3327 = vadd.f32 %v3262, %v3326
        %v3328 = vpop.f32.mrf.mxu0
        %v3329 = vpop.f32.mrf.mxu0
        %v3330 = vadd.f32 %v3265, %v3329
        %v3331 = vpop.f32.mrf.mxu0
        %3332 = vmatprep.mubr.bf16.mxu0 %v749
        %3333 = vmatmul.mubr.bf16.gmra.mxu0 %v748
        %v3334 = vpop.f32.mrf.mxu0
        %v3335 = vadd.f32 %v3270, %v3334
        %v3336 = vpop.f32.mrf.mxu0
        %v3337 = vpop.f32.mrf.mxu0
        %v3338 = vadd.f32 %v3273, %v3337
        %v3339 = vpop.f32.mrf.mxu0
        %3340 = vdwg.mxu0
        %3341 = vmatprep.subr.bf16.mxu0 0
        %3342 = vmatpush1.bf16.msra.mxu0 %v2444
        %3343 = vmatprep.subr.bf16.mxu0 0
        %3344 = vmatpush1.bf16.msra.mxu0 %v2443
        %3345 = vmatprep.subr.bf16.mxu0 0
        %3346 = vmatpush1.bf16.msra.mxu0 %v2442
        %3347 = vmatprep.subr.bf16.mxu0 0
        %3348 = vmatpush1.bf16.msra.mxu0 %v2441
        %3349 = vmatprep.subr.bf16.mxu0 0
        %3350 = vmatpush1.bf16.msra.mxu0 %v2440
        %3351 = vmatprep.subr.bf16.mxu0 0
        %3352 = vmatpush1.bf16.msra.mxu0 %v2439
        %3353 = vmatprep.subr.bf16.mxu0 0
        %3354 = vmatpush1.bf16.msra.mxu0 %v2438
        %3355 = vmatprep.subr.bf16.mxu0 0
        %3356 = vmatpush1.bf16.msra.mxu0 %v2437
        %3357 = vmatprep.subr.bf16.mxu0 0
        %3358 = vmatpush2.bf16.msra.mxu0 %v2452
        %3359 = vmatprep.subr.bf16.mxu0 0
        %3360 = vmatpush2.bf16.msra.mxu0 %v2451
        %3361 = vmatprep.subr.bf16.mxu0 0
        %3362 = vmatpush2.bf16.msra.mxu0 %v2450
        %3363 = vmatprep.subr.bf16.mxu0 0
        %3364 = vmatpush2.bf16.msra.mxu0 %v2449
        %3365 = vmatprep.subr.bf16.mxu0 0
        %3366 = vmatpush2.bf16.msra.mxu0 %v2448
        %3367 = vmatprep.subr.bf16.mxu0 0
        %3368 = vmatpush2.bf16.msra.mxu0 %v2447
        %3369 = vmatprep.subr.bf16.mxu0 0
        %3370 = vmatpush2.bf16.msra.mxu0 %v2446
        %3371 = vmatprep.subr.bf16.mxu0 0
        %3372 = vmatpush2.bf16.msra.mxu0 %v2445
        %3373 = vmatprep.mubr.bf16.mxu0 %v655
        %3374 = vmatmul.mubr.bf16.gmra.mxu0 %v654
        %v3375 = vpop.f32.mrf.mxu0
        %v3376 = vadd.f32 %v3311, %v3375
        %v3377 = vpop.f32.mrf.mxu0
        %v3378 = vpop.f32.mrf.mxu0
        %v3379 = vadd.f32 %v3314, %v3378
        %v3380 = vpop.f32.mrf.mxu0
        %3381 = vmatprep.mubr.bf16.mxu0 %v687
        %3382 = vmatmul.mubr.bf16.gmra.mxu0 %v686
        %v3383 = vpop.f32.mrf.mxu0
        %v3384 = vadd.f32 %v3319, %v3383
        %v3385 = vpop.f32.mrf.mxu0
        %v3386 = vpop.f32.mrf.mxu0
        %v3387 = vadd.f32 %v3322, %v3386
        %v3388 = vpop.f32.mrf.mxu0
        %3389 = vmatprep.mubr.bf16.mxu0 %v719
        %3390 = vmatmul.mubr.bf16.gmra.mxu0 %v718
        %v3391 = vpop.f32.mrf.mxu0
        %v3392 = vadd.f32 %v3327, %v3391
        %v3393 = vpop.f32.mrf.mxu0
        %v3394 = vpop.f32.mrf.mxu0
        %v3395 = vadd.f32 %v3330, %v3394
        %v3396 = vpop.f32.mrf.mxu0
        %3397 = vmatprep.mubr.bf16.mxu0 %v751
        %3398 = vmatmul.mubr.bf16.gmra.mxu0 %v750
        %v3399 = vpop.f32.mrf.mxu0
        %v3400 = vadd.f32 %v3335, %v3399
        %v3401 = vpop.f32.mrf.mxu0
        %v3402 = vpop.f32.mrf.mxu0
        %v3403 = vadd.f32 %v3338, %v3402
        %v3404 = vpop.f32.mrf.mxu0
        %3405 = vdwg.mxu0
        %3406 = vmatprep.subr.bf16.mxu0 0
        %3407 = vmatpush1.bf16.msra.mxu0 %v2460
        %3408 = vmatprep.subr.bf16.mxu0 0
        %3409 = vmatpush1.bf16.msra.mxu0 %v2459
        %3410 = vmatprep.subr.bf16.mxu0 0
        %3411 = vmatpush1.bf16.msra.mxu0 %v2458
        %3412 = vmatprep.subr.bf16.mxu0 0
        %3413 = vmatpush1.bf16.msra.mxu0 %v2457
        %3414 = vmatprep.subr.bf16.mxu0 0
        %3415 = vmatpush1.bf16.msra.mxu0 %v2456
        %3416 = vmatprep.subr.bf16.mxu0 0
        %3417 = vmatpush1.bf16.msra.mxu0 %v2455
        %3418 = vmatprep.subr.bf16.mxu0 0
        %3419 = vmatpush1.bf16.msra.mxu0 %v2454
        %3420 = vmatprep.subr.bf16.mxu0 0
        %3421 = vmatpush1.bf16.msra.mxu0 %v2453
        %3422 = vmatprep.subr.bf16.mxu0 0
        %3423 = vmatpush2.bf16.msra.mxu0 %v2468
        %3424 = vmatprep.subr.bf16.mxu0 0
        %3425 = vmatpush2.bf16.msra.mxu0 %v2467
        %3426 = vmatprep.subr.bf16.mxu0 0
        %3427 = vmatpush2.bf16.msra.mxu0 %v2466
        %3428 = vmatprep.subr.bf16.mxu0 0
        %3429 = vmatpush2.bf16.msra.mxu0 %v2465
        %3430 = vmatprep.subr.bf16.mxu0 0
        %3431 = vmatpush2.bf16.msra.mxu0 %v2464
        %3432 = vmatprep.subr.bf16.mxu0 0
        %3433 = vmatpush2.bf16.msra.mxu0 %v2463
        %3434 = vmatprep.subr.bf16.mxu0 0
        %3435 = vmatpush2.bf16.msra.mxu0 %v2462
        %3436 = vmatprep.subr.bf16.mxu0 0
        %3437 = vmatpush2.bf16.msra.mxu0 %v2461
        %3438 = vmatprep.mubr.bf16.mxu0 %v657
        %3439 = vmatmul.mubr.bf16.gmra.mxu0 %v656
        %v3440 = vpop.f32.mrf.mxu0
        %v3441 = vadd.f32 %v3376, %v3440
        %v3442 = vpop.f32.mrf.mxu0
        %v3443 = vpop.f32.mrf.mxu0
        %v3444 = vadd.f32 %v3379, %v3443
        %v3445 = vpop.f32.mrf.mxu0
        %3446 = vmatprep.mubr.bf16.mxu0 %v689
        %3447 = vmatmul.mubr.bf16.gmra.mxu0 %v688
        %v3448 = vpop.f32.mrf.mxu0
        %v3449 = vadd.f32 %v3384, %v3448
        %v3450 = vpop.f32.mrf.mxu0
        %v3451 = vpop.f32.mrf.mxu0
        %v3452 = vadd.f32 %v3387, %v3451
        %v3453 = vpop.f32.mrf.mxu0
        %3454 = vmatprep.mubr.bf16.mxu0 %v721
        %3455 = vmatmul.mubr.bf16.gmra.mxu0 %v720
        %v3456 = vpop.f32.mrf.mxu0
        %v3457 = vadd.f32 %v3392, %v3456
        %v3458 = vpop.f32.mrf.mxu0
        %v3459 = vpop.f32.mrf.mxu0
        %v3460 = vadd.f32 %v3395, %v3459
        %v3461 = vpop.f32.mrf.mxu0
        %3462 = vmatprep.mubr.bf16.mxu0 %v753
        %3463 = vmatmul.mubr.bf16.gmra.mxu0 %v752
        %v3464 = vpop.f32.mrf.mxu0
        %v3465 = vadd.f32 %v3400, %v3464
        %v3466 = vpop.f32.mrf.mxu0
        %v3467 = vpop.f32.mrf.mxu0
        %v3468 = vadd.f32 %v3403, %v3467
        %v3469 = vpop.f32.mrf.mxu0
        %3470 = vdwg.mxu0
        %3471 = vmatprep.subr.bf16.mxu0 0
        %3472 = vmatpush1.bf16.msra.mxu0 %v2476
        %3473 = vmatprep.subr.bf16.mxu0 0
        %3474 = vmatpush1.bf16.msra.mxu0 %v2475
        %3475 = vmatprep.subr.bf16.mxu0 0
        %3476 = vmatpush1.bf16.msra.mxu0 %v2474
        %3477 = vmatprep.subr.bf16.mxu0 0
        %3478 = vmatpush1.bf16.msra.mxu0 %v2473
        %3479 = vmatprep.subr.bf16.mxu0 0
        %3480 = vmatpush1.bf16.msra.mxu0 %v2472
        %3481 = vmatprep.subr.bf16.mxu0 0
        %3482 = vmatpush1.bf16.msra.mxu0 %v2471
        %3483 = vmatprep.subr.bf16.mxu0 0
        %3484 = vmatpush1.bf16.msra.mxu0 %v2470
        %3485 = vmatprep.subr.bf16.mxu0 0
        %3486 = vmatpush1.bf16.msra.mxu0 %v2469
        %3487 = vmatprep.subr.bf16.mxu0 0
        %3488 = vmatpush2.bf16.msra.mxu0 %v2484
        %3489 = vmatprep.subr.bf16.mxu0 0
        %3490 = vmatpush2.bf16.msra.mxu0 %v2483
        %3491 = vmatprep.subr.bf16.mxu0 0
        %3492 = vmatpush2.bf16.msra.mxu0 %v2482
        %3493 = vmatprep.subr.bf16.mxu0 0
        %3494 = vmatpush2.bf16.msra.mxu0 %v2481
        %3495 = vmatprep.subr.bf16.mxu0 0
        %3496 = vmatpush2.bf16.msra.mxu0 %v2480
        %3497 = vmatprep.subr.bf16.mxu0 0
        %3498 = vmatpush2.bf16.msra.mxu0 %v2479
        %3499 = vmatprep.subr.bf16.mxu0 0
        %3500 = vmatpush2.bf16.msra.mxu0 %v2478
        %3501 = vmatprep.subr.bf16.mxu0 0
        %3502 = vmatpush2.bf16.msra.mxu0 %v2477
        %3503 = vmatprep.mubr.bf16.mxu0 %v659
        %3504 = vmatmul.mubr.bf16.gmra.mxu0 %v658
        %v3505 = vpop.f32.mrf.mxu0
        %v3506 = vadd.f32 %v3441, %v3505
        %v3507 = vpop.f32.mrf.mxu0
        %v3508 = vpop.f32.mrf.mxu0
        %v3509 = vadd.f32 %v3444, %v3508
        %v3510 = vpop.f32.mrf.mxu0
        %3511 = vmatprep.mubr.bf16.mxu0 %v691
        %3512 = vmatmul.mubr.bf16.gmra.mxu0 %v690
        %v3513 = vpop.f32.mrf.mxu0
        %v3514 = vadd.f32 %v3449, %v3513
        %v3515 = vpop.f32.mrf.mxu0
        %v3516 = vpop.f32.mrf.mxu0
        %v3517 = vadd.f32 %v3452, %v3516
        %v3518 = vpop.f32.mrf.mxu0
        %3519 = vmatprep.mubr.bf16.mxu0 %v723
        %3520 = vmatmul.mubr.bf16.gmra.mxu0 %v722
        %v3521 = vpop.f32.mrf.mxu0
        %v3522 = vadd.f32 %v3457, %v3521
        %v3523 = vpop.f32.mrf.mxu0
        %v3524 = vpop.f32.mrf.mxu0
        %v3525 = vadd.f32 %v3460, %v3524
        %v3526 = vpop.f32.mrf.mxu0
        %3527 = vmatprep.mubr.bf16.mxu0 %v755
        %3528 = vmatmul.mubr.bf16.gmra.mxu0 %v754
        %v3529 = vpop.f32.mrf.mxu0
        %v3530 = vadd.f32 %v3465, %v3529
        %v3531 = vpop.f32.mrf.mxu0
        %v3532 = vpop.f32.mrf.mxu0
        %v3533 = vadd.f32 %v3468, %v3532
        %v3534 = vpop.f32.mrf.mxu0
        %3535 = vdwg.mxu0
        %3536 = vmatprep.subr.bf16.mxu0 0
        %3537 = vmatpush1.bf16.msra.mxu0 %v2492
        %3538 = vmatprep.subr.bf16.mxu0 0
        %3539 = vmatpush1.bf16.msra.mxu0 %v2491
        %3540 = vmatprep.subr.bf16.mxu0 0
        %3541 = vmatpush1.bf16.msra.mxu0 %v2490
        %3542 = vmatprep.subr.bf16.mxu0 0
        %3543 = vmatpush1.bf16.msra.mxu0 %v2489
        %3544 = vmatprep.subr.bf16.mxu0 0
        %3545 = vmatpush1.bf16.msra.mxu0 %v2488
        %3546 = vmatprep.subr.bf16.mxu0 0
        %3547 = vmatpush1.bf16.msra.mxu0 %v2487
        %3548 = vmatprep.subr.bf16.mxu0 0
        %3549 = vmatpush1.bf16.msra.mxu0 %v2486
        %3550 = vmatprep.subr.bf16.mxu0 0
        %3551 = vmatpush1.bf16.msra.mxu0 %v2485
        %3552 = vmatprep.subr.bf16.mxu0 0
        %3553 = vmatpush2.bf16.msra.mxu0 %v2500
        %3554 = vmatprep.subr.bf16.mxu0 0
        %3555 = vmatpush2.bf16.msra.mxu0 %v2499
        %3556 = vmatprep.subr.bf16.mxu0 0
        %3557 = vmatpush2.bf16.msra.mxu0 %v2498
        %3558 = vmatprep.subr.bf16.mxu0 0
        %3559 = vmatpush2.bf16.msra.mxu0 %v2497
        %3560 = vmatprep.subr.bf16.mxu0 0
        %3561 = vmatpush2.bf16.msra.mxu0 %v2496
        %3562 = vmatprep.subr.bf16.mxu0 0
        %3563 = vmatpush2.bf16.msra.mxu0 %v2495
        %3564 = vmatprep.subr.bf16.mxu0 0
        %3565 = vmatpush2.bf16.msra.mxu0 %v2494
        %3566 = vmatprep.subr.bf16.mxu0 0
        %3567 = vmatpush2.bf16.msra.mxu0 %v2493
        %3568 = vmatprep.mubr.bf16.mxu0 %v661
        %3569 = vmatmul.mubr.bf16.gmra.mxu0 %v660
        %v3570 = vpop.f32.mrf.mxu0
        %v3571 = vadd.f32 %v3506, %v3570
        %v3572 = vpop.f32.mrf.mxu0
        %v3573 = vpop.f32.mrf.mxu0
        %v3574 = vadd.f32 %v3509, %v3573
        %v3575 = vpop.f32.mrf.mxu0
        %3576 = vmatprep.mubr.bf16.mxu0 %v693
        %3577 = vmatmul.mubr.bf16.gmra.mxu0 %v692
        %v3578 = vpop.f32.mrf.mxu0
        %v3579 = vadd.f32 %v3514, %v3578
        %v3580 = vpop.f32.mrf.mxu0
        %v3581 = vpop.f32.mrf.mxu0
        %v3582 = vadd.f32 %v3517, %v3581
        %v3583 = vpop.f32.mrf.mxu0
        %3584 = vmatprep.mubr.bf16.mxu0 %v725
        %3585 = vmatmul.mubr.bf16.gmra.mxu0 %v724
        %v3586 = vpop.f32.mrf.mxu0
        %v3587 = vadd.f32 %v3522, %v3586
        %v3588 = vpop.f32.mrf.mxu0
        %v3589 = vpop.f32.mrf.mxu0
        %v3590 = vadd.f32 %v3525, %v3589
        %v3591 = vpop.f32.mrf.mxu0
        %3592 = vmatprep.mubr.bf16.mxu0 %v757
        %3593 = vmatmul.mubr.bf16.gmra.mxu0 %v756
        %v3594 = vpop.f32.mrf.mxu0
        %v3595 = vadd.f32 %v3530, %v3594
        %v3596 = vpop.f32.mrf.mxu0
        %v3597 = vpop.f32.mrf.mxu0
        %v3598 = vadd.f32 %v3533, %v3597
        %v3599 = vpop.f32.mrf.mxu0
        %3600 = vdwg.mxu0
        %3601 = vmatprep.subr.bf16.mxu0 0
        %3602 = vmatpush1.bf16.msra.mxu0 %v2508
        %3603 = vmatprep.subr.bf16.mxu0 0
        %3604 = vmatpush1.bf16.msra.mxu0 %v2507
        %3605 = vmatprep.subr.bf16.mxu0 0
        %3606 = vmatpush1.bf16.msra.mxu0 %v2506
        %3607 = vmatprep.subr.bf16.mxu0 0
        %3608 = vmatpush1.bf16.msra.mxu0 %v2505
        %3609 = vmatprep.subr.bf16.mxu0 0
        %3610 = vmatpush1.bf16.msra.mxu0 %v2504
        %3611 = vmatprep.subr.bf16.mxu0 0
        %3612 = vmatpush1.bf16.msra.mxu0 %v2503
        %3613 = vmatprep.subr.bf16.mxu0 0
        %3614 = vmatpush1.bf16.msra.mxu0 %v2502
        %3615 = vmatprep.subr.bf16.mxu0 0
        %3616 = vmatpush1.bf16.msra.mxu0 %v2501
        %3617 = vmatprep.subr.bf16.mxu0 0
        %3618 = vmatpush2.bf16.msra.mxu0 %v2516
        %3619 = vmatprep.subr.bf16.mxu0 0
        %3620 = vmatpush2.bf16.msra.mxu0 %v2515
        %3621 = vmatprep.subr.bf16.mxu0 0
        %3622 = vmatpush2.bf16.msra.mxu0 %v2514
        %3623 = vmatprep.subr.bf16.mxu0 0
        %3624 = vmatpush2.bf16.msra.mxu0 %v2513
        %3625 = vmatprep.subr.bf16.mxu0 0
        %3626 = vmatpush2.bf16.msra.mxu0 %v2512
        %3627 = vmatprep.subr.bf16.mxu0 0
        %3628 = vmatpush2.bf16.msra.mxu0 %v2511
        %3629 = vmatprep.subr.bf16.mxu0 0
        %3630 = vmatpush2.bf16.msra.mxu0 %v2510
        %3631 = vmatprep.subr.bf16.mxu0 0
        %3632 = vmatpush2.bf16.msra.mxu0 %v2509
        %3633 = vmatprep.mubr.bf16.mxu0 %v663
        %3634 = vmatmul.mubr.bf16.gmra.mxu0 %v662
        %v3635 = vpop.f32.mrf.mxu0
        %v3636 = vadd.f32 %v3571, %v3635
        %v3637 = vpop.f32.mrf.mxu0
        %v3638 = vpop.f32.mrf.mxu0
        %v3639 = vadd.f32 %v3574, %v3638
        %v3640 = vpop.f32.mrf.mxu0
        %3641 = vmatprep.mubr.bf16.mxu0 %v695
        %3642 = vmatmul.mubr.bf16.gmra.mxu0 %v694
        %v3643 = vpop.f32.mrf.mxu0
        %v3644 = vadd.f32 %v3579, %v3643
        %v3645 = vpop.f32.mrf.mxu0
        %v3646 = vpop.f32.mrf.mxu0
        %v3647 = vadd.f32 %v3582, %v3646
        %v3648 = vpop.f32.mrf.mxu0
        %3649 = vmatprep.mubr.bf16.mxu0 %v727
        %3650 = vmatmul.mubr.bf16.gmra.mxu0 %v726
        %v3651 = vpop.f32.mrf.mxu0
        %v3652 = vadd.f32 %v3587, %v3651
        %v3653 = vpop.f32.mrf.mxu0
        %v3654 = vpop.f32.mrf.mxu0
        %v3655 = vadd.f32 %v3590, %v3654
        %v3656 = vpop.f32.mrf.mxu0
        %3657 = vmatprep.mubr.bf16.mxu0 %v759
        %3658 = vmatmul.mubr.bf16.gmra.mxu0 %v758
        %v3659 = vpop.f32.mrf.mxu0
        %v3660 = vadd.f32 %v3595, %v3659
        %v3661 = vpop.f32.mrf.mxu0
        %v3662 = vpop.f32.mrf.mxu0
        %v3663 = vadd.f32 %v3598, %v3662
        %v3664 = vpop.f32.mrf.mxu0
        %3665 = vdwg.mxu0
        %3666 = vmatprep.subr.bf16.mxu0 0
        %3667 = vmatpush1.bf16.msra.mxu0 %v2524
        %3668 = vmatprep.subr.bf16.mxu0 0
        %3669 = vmatpush1.bf16.msra.mxu0 %v2523
        %3670 = vmatprep.subr.bf16.mxu0 0
        %3671 = vmatpush1.bf16.msra.mxu0 %v2522
        %3672 = vmatprep.subr.bf16.mxu0 0
        %3673 = vmatpush1.bf16.msra.mxu0 %v2521
        %3674 = vmatprep.subr.bf16.mxu0 0
        %3675 = vmatpush1.bf16.msra.mxu0 %v2520
        %3676 = vmatprep.subr.bf16.mxu0 0
        %3677 = vmatpush1.bf16.msra.mxu0 %v2519
        %3678 = vmatprep.subr.bf16.mxu0 0
        %3679 = vmatpush1.bf16.msra.mxu0 %v2518
        %3680 = vmatprep.subr.bf16.mxu0 0
        %3681 = vmatpush1.bf16.msra.mxu0 %v2517
        %3682 = vmatprep.subr.bf16.mxu0 0
        %3683 = vmatpush2.bf16.msra.mxu0 %v2532
        %3684 = vmatprep.subr.bf16.mxu0 0
        %3685 = vmatpush2.bf16.msra.mxu0 %v2531
        %3686 = vmatprep.subr.bf16.mxu0 0
        %3687 = vmatpush2.bf16.msra.mxu0 %v2530
        %3688 = vmatprep.subr.bf16.mxu0 0
        %3689 = vmatpush2.bf16.msra.mxu0 %v2529
        %3690 = vmatprep.subr.bf16.mxu0 0
        %3691 = vmatpush2.bf16.msra.mxu0 %v2528
        %3692 = vmatprep.subr.bf16.mxu0 0
        %3693 = vmatpush2.bf16.msra.mxu0 %v2527
        %3694 = vmatprep.subr.bf16.mxu0 0
        %3695 = vmatpush2.bf16.msra.mxu0 %v2526
        %3696 = vmatprep.subr.bf16.mxu0 0
        %3697 = vmatpush2.bf16.msra.mxu0 %v2525
        %3698 = vmatprep.mubr.bf16.mxu0 %v665
        %3699 = vmatmul.mubr.bf16.gmra.mxu0 %v664
        %v3700 = vpop.f32.mrf.mxu0
        %v3701 = vadd.f32 %v3636, %v3700
        %v3702 = vpop.f32.mrf.mxu0
        %v3703 = vpop.f32.mrf.mxu0
        %v3704 = vadd.f32 %v3639, %v3703
        %v3705 = vpop.f32.mrf.mxu0
        %3706 = vmatprep.mubr.bf16.mxu0 %v697
        %3707 = vmatmul.mubr.bf16.gmra.mxu0 %v696
        %v3708 = vpop.f32.mrf.mxu0
        %v3709 = vadd.f32 %v3644, %v3708
        %v3710 = vpop.f32.mrf.mxu0
        %v3711 = vpop.f32.mrf.mxu0
        %v3712 = vadd.f32 %v3647, %v3711
        %v3713 = vpop.f32.mrf.mxu0
        %3714 = vmatprep.mubr.bf16.mxu0 %v729
        %3715 = vmatmul.mubr.bf16.gmra.mxu0 %v728
        %v3716 = vpop.f32.mrf.mxu0
        %v3717 = vadd.f32 %v3652, %v3716
        %v3718 = vpop.f32.mrf.mxu0
        %v3719 = vpop.f32.mrf.mxu0
        %v3720 = vadd.f32 %v3655, %v3719
        %v3721 = vpop.f32.mrf.mxu0
        %3722 = vmatprep.mubr.bf16.mxu0 %v761
        %3723 = vmatmul.mubr.bf16.gmra.mxu0 %v760
        %v3724 = vpop.f32.mrf.mxu0
        %v3725 = vadd.f32 %v3660, %v3724
        %v3726 = vpop.f32.mrf.mxu0
        %v3727 = vpop.f32.mrf.mxu0
        %v3728 = vadd.f32 %v3663, %v3727
        %v3729 = vpop.f32.mrf.mxu0
        %3730 = vdwg.mxu0
        %3731 = vmatprep.subr.bf16.mxu0 0
        %3732 = vmatpush1.bf16.msra.mxu0 %v2540
        %3733 = vmatprep.subr.bf16.mxu0 0
        %3734 = vmatpush1.bf16.msra.mxu0 %v2539
        %3735 = vmatprep.subr.bf16.mxu0 0
        %3736 = vmatpush1.bf16.msra.mxu0 %v2538
        %3737 = vmatprep.subr.bf16.mxu0 0
        %3738 = vmatpush1.bf16.msra.mxu0 %v2537
        %3739 = vmatprep.subr.bf16.mxu0 0
        %3740 = vmatpush1.bf16.msra.mxu0 %v2536
        %3741 = vmatprep.subr.bf16.mxu0 0
        %3742 = vmatpush1.bf16.msra.mxu0 %v2535
        %3743 = vmatprep.subr.bf16.mxu0 0
        %3744 = vmatpush1.bf16.msra.mxu0 %v2534
        %3745 = vmatprep.subr.bf16.mxu0 0
        %3746 = vmatpush1.bf16.msra.mxu0 %v2533
        %3747 = vmatprep.subr.bf16.mxu0 0
        %3748 = vmatpush2.bf16.msra.mxu0 %v2548
        %3749 = vmatprep.subr.bf16.mxu0 0
        %3750 = vmatpush2.bf16.msra.mxu0 %v2547
        %3751 = vmatprep.subr.bf16.mxu0 0
        %3752 = vmatpush2.bf16.msra.mxu0 %v2546
        %3753 = vmatprep.subr.bf16.mxu0 0
        %3754 = vmatpush2.bf16.msra.mxu0 %v2545
        %3755 = vmatprep.subr.bf16.mxu0 0
        %3756 = vmatpush2.bf16.msra.mxu0 %v2544
        %3757 = vmatprep.subr.bf16.mxu0 0
        %3758 = vmatpush2.bf16.msra.mxu0 %v2543
        %3759 = vmatprep.subr.bf16.mxu0 0
        %3760 = vmatpush2.bf16.msra.mxu0 %v2542
        %3761 = vmatprep.subr.bf16.mxu0 0
        %3762 = vmatpush2.bf16.msra.mxu0 %v2541
        %3763 = vmatprep.mubr.bf16.mxu0 %v667
        %3764 = vmatmul.mubr.bf16.gmra.mxu0 %v666
        %v3765 = vpop.f32.mrf.mxu0
        %v3766 = vadd.f32 %v3701, %v3765
        %v3767 = vpop.f32.mrf.mxu0
        %v3768 = vpop.f32.mrf.mxu0
        %v3769 = vadd.f32 %v3704, %v3768
        %v3770 = vpop.f32.mrf.mxu0
        %3771 = vmatprep.mubr.bf16.mxu0 %v699
        %3772 = vmatmul.mubr.bf16.gmra.mxu0 %v698
        %v3773 = vpop.f32.mrf.mxu0
        %v3774 = vadd.f32 %v3709, %v3773
        %v3775 = vpop.f32.mrf.mxu0
        %v3776 = vpop.f32.mrf.mxu0
        %v3777 = vadd.f32 %v3712, %v3776
        %v3778 = vpop.f32.mrf.mxu0
        %3779 = vmatprep.mubr.bf16.mxu0 %v731
        %3780 = vmatmul.mubr.bf16.gmra.mxu0 %v730
        %v3781 = vpop.f32.mrf.mxu0
        %v3782 = vadd.f32 %v3717, %v3781
        %v3783 = vpop.f32.mrf.mxu0
        %v3784 = vpop.f32.mrf.mxu0
        %v3785 = vadd.f32 %v3720, %v3784
        %v3786 = vpop.f32.mrf.mxu0
        %3787 = vmatprep.mubr.bf16.mxu0 %v763
        %3788 = vmatmul.mubr.bf16.gmra.mxu0 %v762
        %v3789 = vpop.f32.mrf.mxu0
        %v3790 = vadd.f32 %v3725, %v3789
        %v3791 = vpop.f32.mrf.mxu0
        %v3792 = vpop.f32.mrf.mxu0
        %v3793 = vadd.f32 %v3728, %v3792
        %v3794 = vpop.f32.mrf.mxu0
        %3795 = vdwg.mxu0
        %3796 = vmatprep.subr.bf16.mxu0 0
        %3797 = vmatpush1.bf16.msra.mxu0 %v2556
        %3798 = vmatprep.subr.bf16.mxu0 0
        %3799 = vmatpush1.bf16.msra.mxu0 %v2555
        %3800 = vmatprep.subr.bf16.mxu0 0
        %3801 = vmatpush1.bf16.msra.mxu0 %v2554
        %3802 = vmatprep.subr.bf16.mxu0 0
        %3803 = vmatpush1.bf16.msra.mxu0 %v2553
        %3804 = vmatprep.subr.bf16.mxu0 0
        %3805 = vmatpush1.bf16.msra.mxu0 %v2552
        %3806 = vmatprep.subr.bf16.mxu0 0
        %3807 = vmatpush1.bf16.msra.mxu0 %v2551
        %3808 = vmatprep.subr.bf16.mxu0 0
        %3809 = vmatpush1.bf16.msra.mxu0 %v2550
        %3810 = vmatprep.subr.bf16.mxu0 0
        %3811 = vmatpush1.bf16.msra.mxu0 %v2549
        %3812 = vmatprep.subr.bf16.mxu0 0
        %3813 = vmatpush2.bf16.msra.mxu0 %v2564
        %3814 = vmatprep.subr.bf16.mxu0 0
        %3815 = vmatpush2.bf16.msra.mxu0 %v2563
        %3816 = vmatprep.subr.bf16.mxu0 0
        %3817 = vmatpush2.bf16.msra.mxu0 %v2562
        %3818 = vmatprep.subr.bf16.mxu0 0
        %3819 = vmatpush2.bf16.msra.mxu0 %v2561
        %3820 = vmatprep.subr.bf16.mxu0 0
        %3821 = vmatpush2.bf16.msra.mxu0 %v2560
        %3822 = vmatprep.subr.bf16.mxu0 0
        %3823 = vmatpush2.bf16.msra.mxu0 %v2559
        %3824 = vmatprep.subr.bf16.mxu0 0
        %3825 = vmatpush2.bf16.msra.mxu0 %v2558
        %3826 = vmatprep.subr.bf16.mxu0 0
        %3827 = vmatpush2.bf16.msra.mxu0 %v2557
        %3828 = vmatprep.mubr.bf16.mxu0 %v669
        %3829 = vmatmul.mubr.bf16.gmra.mxu0 %v668
        %v3830 = vpop.f32.mrf.mxu0
        %v3831 = vadd.f32 %v3766, %v3830
        %v3832 = vpop.f32.mrf.mxu0
        %v3833 = vpop.f32.mrf.mxu0
        %v3834 = vadd.f32 %v3769, %v3833
        %v3835 = vpop.f32.mrf.mxu0
        %3836 = vmatprep.mubr.bf16.mxu0 %v701
        %3837 = vmatmul.mubr.bf16.gmra.mxu0 %v700
        %v3838 = vpop.f32.mrf.mxu0
        %v3839 = vadd.f32 %v3774, %v3838
        %v3840 = vpop.f32.mrf.mxu0
        %v3841 = vpop.f32.mrf.mxu0
        %v3842 = vadd.f32 %v3777, %v3841
        %v3843 = vpop.f32.mrf.mxu0
        %3844 = vmatprep.mubr.bf16.mxu0 %v733
        %3845 = vmatmul.mubr.bf16.gmra.mxu0 %v732
        %v3846 = vpop.f32.mrf.mxu0
        %v3847 = vadd.f32 %v3782, %v3846
        %v3848 = vpop.f32.mrf.mxu0
        %v3849 = vpop.f32.mrf.mxu0
        %v3850 = vadd.f32 %v3785, %v3849
        %v3851 = vpop.f32.mrf.mxu0
        %3852 = vmatprep.mubr.bf16.mxu0 %v765
        %3853 = vmatmul.mubr.bf16.gmra.mxu0 %v764
        %v3854 = vpop.f32.mrf.mxu0
        %v3855 = vadd.f32 %v3790, %v3854
        %v3856 = vpop.f32.mrf.mxu0
        %v3857 = vpop.f32.mrf.mxu0
        %v3858 = vadd.f32 %v3793, %v3857
        %v3859 = vpop.f32.mrf.mxu0
        %3860 = vdwg.mxu0
        %vm3861 = vcmp.ge.f32.partialorder %v3831, 0.0
        %vm3862 = vcmp.ge.f32.partialorder %v3834, 0.0
        %vm3863 = vcmp.ge.f32.partialorder %v3839, 0.0
        %vm3864 = vcmp.ge.f32.partialorder %v3842, 0.0
        %vm3865 = vcmp.ge.f32.partialorder %v3847, 0.0
        %vm3866 = vcmp.ge.f32.partialorder %v3850, 0.0
        %vm3867 = vcmp.ge.f32.partialorder %v3855, 0.0
        %vm3868 = vcmp.ge.f32.partialorder %v3858, 0.0
        %v3869 = vmul.f32 %v3831, 0.2
        %v3870 = vmul.f32 %v3834, 0.2
        %v3871 = vmul.f32 %v3839, 0.2
        %v3872 = vmul.f32 %v3842, 0.2
        %v3873 = vmul.f32 %v3847, 0.2
        %v3874 = vmul.f32 %v3850, 0.2
        %v3875 = vmul.f32 %v3855, 0.2
        %v3876 = vmul.f32 %v3858, 0.2
        %v3877 = vsel %vm3861, %v3831, %v3869
        %v3878 = vsel %vm3862, %v3834, %v3870
        %v3879 = vsel %vm3863, %v3839, %v3871
        %v3880 = vsel %vm3864, %v3842, %v3872
        %v3881 = vsel %vm3865, %v3847, %v3873
        %v3882 = vsel %vm3866, %v3850, %v3874
        %v3883 = vsel %vm3867, %v3855, %v3875
        %v3884 = vsel %vm3868, %v3858, %v3876
        %v3885 = vpack.c.bf16 %v3878, %v3877
        %v3886 = vpack.c.bf16 %v3880, %v3879
        %v3887 = vpack.c.bf16 %v3882, %v3881
        %v3888 = vpack.c.bf16 %v3884, %v3883
        %v3889 = vld [vmem:[#allocation8] sm:$0xf]
        %v3890 = vld [vmem:[#allocation8 + $0x4] sm:$0xf]
        %v3891 = vld [vmem:[#allocation8 + $0x8] sm:$0xf]
        %v3892 = vld [vmem:[#allocation8 + $0xc] sm:$0xf]
        %v3893 = vld [vmem:[#allocation8 + $0x10] sm:$0xf]
        %v3894 = vld [vmem:[#allocation8 + $0x14] sm:$0xf]
        %v3895 = vld [vmem:[#allocation8 + $0x18] sm:$0xf]
        %v3896 = vld [vmem:[#allocation8 + $0x1c] sm:$0xf]
        %v3897 = vld [vmem:[#allocation8 + $0x20] sm:$0xf]
        %v3898 = vld [vmem:[#allocation8 + $0x24] sm:$0xf]
        %v3899 = vld [vmem:[#allocation8 + $0x28] sm:$0xf]
        %v3900 = vld [vmem:[#allocation8 + $0x2c] sm:$0xf]
        %v3901 = vld [vmem:[#allocation8 + $0x30] sm:$0xf]
        %v3902 = vld [vmem:[#allocation8 + $0x34] sm:$0xf]
        %v3903 = vld [vmem:[#allocation8 + $0x38] sm:$0xf]
        %v3904 = vld [vmem:[#allocation8 + $0x3c] sm:$0xf]
        %v3905 = vld [vmem:[#allocation10] sm:$0x1]
        %v3907 = vlaneseq
        %v3908 = vshrl.u32 %v3907, 7
        %v3909 = vsub.s32 0, %v3908
        %v3910 = vrot.slane %v3905, %v3909
        %v3928 = vunpack.c.l.b16 %v3889
        %v3929 = vunpack.c.l.b16 %v3890
        %v3930 = vunpack.c.l.b16 %v3891
        %v3931 = vunpack.c.l.b16 %v3892
        %v3932 = vunpack.c.l.b16 %v3893
        %v3933 = vunpack.c.l.b16 %v3894
        %v3934 = vunpack.c.l.b16 %v3895
        %v3935 = vunpack.c.l.b16 %v3896
        %v3936 = vunpack.c.l.b16 %v3897
        %v3937 = vunpack.c.l.b16 %v3898
        %v3938 = vunpack.c.l.b16 %v3899
        %v3939 = vunpack.c.l.b16 %v3900
        %v3940 = vunpack.c.l.b16 %v3901
        %v3941 = vunpack.c.l.b16 %v3902
        %v3942 = vunpack.c.l.b16 %v3903
        %v3943 = vunpack.c.l.b16 %v3904
        %v3944 = vpack.c.b16 %v3929, %v3928
        %v3945 = vpack.c.b16 %v3931, %v3930
        %v3946 = vpack.c.b16 %v3933, %v3932
        %v3947 = vpack.c.b16 %v3935, %v3934
        %v3948 = vpack.c.b16 %v3937, %v3936
        %v3949 = vpack.c.b16 %v3939, %v3938
        %v3950 = vpack.c.b16 %v3941, %v3940
        %v3951 = vpack.c.b16 %v3943, %v3942
        %3960 = vmatprep.subr.bf16.mxu0 0
        %3961 = vmatpush1.bf16.msra.mxu0 %v3951
        %3962 = vmatprep.subr.bf16.mxu0 0
        %3963 = vmatpush1.bf16.msra.mxu0 %v3950
        %3964 = vmatprep.subr.bf16.mxu0 0
        %3965 = vmatpush1.bf16.msra.mxu0 %v3949
        %3966 = vmatprep.subr.bf16.mxu0 0
        %3967 = vmatpush1.bf16.msra.mxu0 %v3948
        %3968 = vmatprep.subr.bf16.mxu0 0
        %3969 = vmatpush1.bf16.msra.mxu0 %v3947
        %3970 = vmatprep.subr.bf16.mxu0 0
        %3971 = vmatpush1.bf16.msra.mxu0 %v3946
        %3972 = vmatprep.subr.bf16.mxu0 0
        %3973 = vmatpush1.bf16.msra.mxu0 %v3945
        %3974 = vmatprep.subr.bf16.mxu0 0
        %3975 = vmatpush1.bf16.msra.mxu0 %v3944
        %3976 = vmatprep.subr.bf16.mxu0 0
        %3977 = vmatpush2.bf16.msra.mxu0 0
        %3978 = vmatprep.subr.bf16.mxu0 0
        %3979 = vmatpush2.bf16.msra.mxu0 0
        %3980 = vmatprep.subr.bf16.mxu0 0
        %3981 = vmatpush2.bf16.msra.mxu0 0
        %3982 = vmatprep.subr.bf16.mxu0 0
        %3983 = vmatpush2.bf16.msra.mxu0 0
        %3984 = vmatprep.subr.bf16.mxu0 0
        %3985 = vmatpush2.bf16.msra.mxu0 0
        %3986 = vmatprep.subr.bf16.mxu0 0
        %3987 = vmatpush2.bf16.msra.mxu0 0
        %3988 = vmatprep.subr.bf16.mxu0 0
        %3989 = vmatpush2.bf16.msra.mxu0 0
        %3990 = vmatprep.subr.bf16.mxu0 0
        %3991 = vmatpush2.bf16.msra.mxu0 0
        %3992 = vmatprep.mubr.bf16.mxu0 0
        %3993 = vmatmul.mubr.bf16.gmra.mxu0 %v3885
        %v3994 = vpop.f32.mrf.mxu0
        %v3995 = vadd.f32 %v3910, %v3994
        %v3996 = vpop.f32.mrf.mxu0
        %v3997 = vpop.f32.mrf.mxu0
        %v3998 = vadd.f32 %v3910, %v3997
        %v3999 = vpop.f32.mrf.mxu0
        %4000 = vmatprep.mubr.bf16.mxu0 0
        %4001 = vmatmul.mubr.bf16.gmra.mxu0 %v3886
        %v4002 = vpop.f32.mrf.mxu0
        %v4003 = vadd.f32 %v3910, %v4002
        %v4004 = vpop.f32.mrf.mxu0
        %v4005 = vpop.f32.mrf.mxu0
        %v4006 = vadd.f32 %v3910, %v4005
        %v4007 = vpop.f32.mrf.mxu0
        %4008 = vmatprep.mubr.bf16.mxu0 0
        %4009 = vmatmul.mubr.bf16.gmra.mxu0 %v3887
        %v4010 = vpop.f32.mrf.mxu0
        %v4011 = vadd.f32 %v3910, %v4010
        %v4012 = vpop.f32.mrf.mxu0
        %v4013 = vpop.f32.mrf.mxu0
        %v4014 = vadd.f32 %v3910, %v4013
        %v4015 = vpop.f32.mrf.mxu0
        %4016 = vmatprep.mubr.bf16.mxu0 0
        %4017 = vmatmul.mubr.bf16.gmra.mxu0 %v3888
        %v4018 = vpop.f32.mrf.mxu0
        %v4019 = vadd.f32 %v3910, %v4018
        %v4020 = vpop.f32.mrf.mxu0
        %v4021 = vpop.f32.mrf.mxu0
        %v4022 = vadd.f32 %v3910, %v4021
        %v4023 = vpop.f32.mrf.mxu0
        %4024 = vdwg.mxu0
        %vm4025 = vcmp.ge.f32.partialorder %v3995, 0.0
        %vm4026 = vcmp.ge.f32.partialorder %v3998, 0.0
        %vm4027 = vcmp.ge.f32.partialorder %v4003, 0.0
        %vm4028 = vcmp.ge.f32.partialorder %v4006, 0.0
        %vm4029 = vcmp.ge.f32.partialorder %v4011, 0.0
        %vm4030 = vcmp.ge.f32.partialorder %v4014, 0.0
        %vm4031 = vcmp.ge.f32.partialorder %v4019, 0.0
        %vm4032 = vcmp.ge.f32.partialorder %v4022, 0.0
        %v4033 = vmul.f32 %v3995, 0.2
        %v4034 = vmul.f32 %v3998, 0.2
        %v4035 = vmul.f32 %v4003, 0.2
        %v4036 = vmul.f32 %v4006, 0.2
        %v4037 = vmul.f32 %v4011, 0.2
        %v4038 = vmul.f32 %v4014, 0.2
        %v4039 = vmul.f32 %v4019, 0.2
        %v4040 = vmul.f32 %v4022, 0.2
        %v4041 = vsel %vm4025, %v3995, %v4033
        %v4042 = vsel %vm4026, %v3998, %v4034
        %v4043 = vsel %vm4027, %v4003, %v4035
        %v4044 = vsel %vm4028, %v4006, %v4036
        %v4045 = vsel %vm4029, %v4011, %v4037
        %v4046 = vsel %vm4030, %v4014, %v4038
        %v4047 = vsel %vm4031, %v4019, %v4039
        %v4048 = vsel %vm4032, %v4022, %v4040
        %v4049 = vpack.c.bf16 %v4042, %v4041
        %v4050 = vpack.c.bf16 %v4044, %v4043
        %v4051 = vpack.c.bf16 %v4046, %v4045
        %v4052 = vpack.c.bf16 %v4048, %v4047
        %v4053 = vld [vmem:[#allocation11] sm:$0xff]
        %v4054 = vld [vmem:[#allocation11 + $0x8] sm:$0xff]
        %v4055 = vld [vmem:[#allocation11 + $0x10] sm:$0xff]
        %v4056 = vld [vmem:[#allocation11 + $0x18] sm:$0xff]
        %v4057 = vld [vmem:[#allocation11 + $0x20] sm:$0xff]
        %v4058 = vld [vmem:[#allocation11 + $0x28] sm:$0xff]
        %v4059 = vld [vmem:[#allocation11 + $0x30] sm:$0xff]
        %v4060 = vld [vmem:[#allocation11 + $0x38] sm:$0xff]
        %v4061 = vld [vmem:[#allocation11 + $0x40] sm:$0xff]
        %v4062 = vld [vmem:[#allocation11 + $0x48] sm:$0xff]
        %v4063 = vld [vmem:[#allocation11 + $0x50] sm:$0xff]
        %v4064 = vld [vmem:[#allocation11 + $0x58] sm:$0xff]
        %v4065 = vld [vmem:[#allocation11 + $0x60] sm:$0xff]
        %v4066 = vld [vmem:[#allocation11 + $0x68] sm:$0xff]
        %v4067 = vld [vmem:[#allocation11 + $0x70] sm:$0xff]
        %v4068 = vld [vmem:[#allocation11 + $0x78] sm:$0xff]
        %v4069 = vld [vmem:[#allocation11 + $0x80] sm:$0xff]
        %v4070 = vld [vmem:[#allocation11 + $0x88] sm:$0xff]
        %v4071 = vld [vmem:[#allocation11 + $0x90] sm:$0xff]
        %v4072 = vld [vmem:[#allocation11 + $0x98] sm:$0xff]
        %v4073 = vld [vmem:[#allocation11 + $0xa0] sm:$0xff]
        %v4074 = vld [vmem:[#allocation11 + $0xa8] sm:$0xff]
        %v4075 = vld [vmem:[#allocation11 + $0xb0] sm:$0xff]
        %v4076 = vld [vmem:[#allocation11 + $0xb8] sm:$0xff]
        %v4077 = vld [vmem:[#allocation11 + $0xc0] sm:$0xff]
        %v4078 = vld [vmem:[#allocation11 + $0xc8] sm:$0xff]
        %v4079 = vld [vmem:[#allocation11 + $0xd0] sm:$0xff]
        %v4080 = vld [vmem:[#allocation11 + $0xd8] sm:$0xff]
        %v4081 = vld [vmem:[#allocation11 + $0xe0] sm:$0xff]
        %v4082 = vld [vmem:[#allocation11 + $0xe8] sm:$0xff]
        %v4083 = vld [vmem:[#allocation11 + $0xf0] sm:$0xff]
        %v4084 = vld [vmem:[#allocation11 + $0xf8] sm:$0xff]
        %v4085 = vld [vmem:[#allocation11 + $0x100] sm:$0xff]
        %v4086 = vld [vmem:[#allocation11 + $0x108] sm:$0xff]
        %v4087 = vld [vmem:[#allocation11 + $0x110] sm:$0xff]
        %v4088 = vld [vmem:[#allocation11 + $0x118] sm:$0xff]
        %v4089 = vld [vmem:[#allocation11 + $0x120] sm:$0xff]
        %v4090 = vld [vmem:[#allocation11 + $0x128] sm:$0xff]
        %v4091 = vld [vmem:[#allocation11 + $0x130] sm:$0xff]
        %v4092 = vld [vmem:[#allocation11 + $0x138] sm:$0xff]
        %v4093 = vld [vmem:[#allocation11 + $0x140] sm:$0xff]
        %v4094 = vld [vmem:[#allocation11 + $0x148] sm:$0xff]
        %v4095 = vld [vmem:[#allocation11 + $0x150] sm:$0xff]
        %v4096 = vld [vmem:[#allocation11 + $0x158] sm:$0xff]
        %v4097 = vld [vmem:[#allocation11 + $0x160] sm:$0xff]
        %v4098 = vld [vmem:[#allocation11 + $0x168] sm:$0xff]
        %v4099 = vld [vmem:[#allocation11 + $0x170] sm:$0xff]
        %v4100 = vld [vmem:[#allocation11 + $0x178] sm:$0xff]
        %v4101 = vld [vmem:[#allocation11 + $0x180] sm:$0xff]
        %v4102 = vld [vmem:[#allocation11 + $0x188] sm:$0xff]
        %v4103 = vld [vmem:[#allocation11 + $0x190] sm:$0xff]
        %v4104 = vld [vmem:[#allocation11 + $0x198] sm:$0xff]
        %v4105 = vld [vmem:[#allocation11 + $0x1a0] sm:$0xff]
        %v4106 = vld [vmem:[#allocation11 + $0x1a8] sm:$0xff]
        %v4107 = vld [vmem:[#allocation11 + $0x1b0] sm:$0xff]
        %v4108 = vld [vmem:[#allocation11 + $0x1b8] sm:$0xff]
        %v4109 = vld [vmem:[#allocation11 + $0x1c0] sm:$0xff]
        %v4110 = vld [vmem:[#allocation11 + $0x1c8] sm:$0xff]
        %v4111 = vld [vmem:[#allocation11 + $0x1d0] sm:$0xff]
        %v4112 = vld [vmem:[#allocation11 + $0x1d8] sm:$0xff]
        %v4113 = vld [vmem:[#allocation11 + $0x1e0] sm:$0xff]
        %v4114 = vld [vmem:[#allocation11 + $0x1e8] sm:$0xff]
        %v4115 = vld [vmem:[#allocation11 + $0x1f0] sm:$0xff]
        %v4116 = vld [vmem:[#allocation11 + $0x1f8] sm:$0xff]
        %v4117 = vld [vmem:[#allocation11 + $0x200] sm:$0xff]
        %v4118 = vld [vmem:[#allocation11 + $0x208] sm:$0xff]
        %v4119 = vld [vmem:[#allocation11 + $0x210] sm:$0xff]
        %v4120 = vld [vmem:[#allocation11 + $0x218] sm:$0xff]
        %v4121 = vld [vmem:[#allocation11 + $0x220] sm:$0xff]
        %v4122 = vld [vmem:[#allocation11 + $0x228] sm:$0xff]
        %v4123 = vld [vmem:[#allocation11 + $0x230] sm:$0xff]
        %v4124 = vld [vmem:[#allocation11 + $0x238] sm:$0xff]
        %v4125 = vld [vmem:[#allocation11 + $0x240] sm:$0xff]
        %v4126 = vld [vmem:[#allocation11 + $0x248] sm:$0xff]
        %v4127 = vld [vmem:[#allocation11 + $0x250] sm:$0xff]
        %v4128 = vld [vmem:[#allocation11 + $0x258] sm:$0xff]
        %v4129 = vld [vmem:[#allocation11 + $0x260] sm:$0xff]
        %v4130 = vld [vmem:[#allocation11 + $0x268] sm:$0xff]
        %v4131 = vld [vmem:[#allocation11 + $0x270] sm:$0xff]
        %v4132 = vld [vmem:[#allocation11 + $0x278] sm:$0xff]
        %v4133 = vld [vmem:[#allocation11 + $0x280] sm:$0xff]
        %v4134 = vld [vmem:[#allocation11 + $0x288] sm:$0xff]
        %v4135 = vld [vmem:[#allocation11 + $0x290] sm:$0xff]
        %v4136 = vld [vmem:[#allocation11 + $0x298] sm:$0xff]
        %v4137 = vld [vmem:[#allocation11 + $0x2a0] sm:$0xff]
        %v4138 = vld [vmem:[#allocation11 + $0x2a8] sm:$0xff]
        %v4139 = vld [vmem:[#allocation11 + $0x2b0] sm:$0xff]
        %v4140 = vld [vmem:[#allocation11 + $0x2b8] sm:$0xff]
        %v4141 = vld [vmem:[#allocation11 + $0x2c0] sm:$0xff]
        %v4142 = vld [vmem:[#allocation11 + $0x2c8] sm:$0xff]
        %v4143 = vld [vmem:[#allocation11 + $0x2d0] sm:$0xff]
        %v4144 = vld [vmem:[#allocation11 + $0x2d8] sm:$0xff]
        %v4145 = vld [vmem:[#allocation11 + $0x2e0] sm:$0xff]
        %v4146 = vld [vmem:[#allocation11 + $0x2e8] sm:$0xff]
        %v4147 = vld [vmem:[#allocation11 + $0x2f0] sm:$0xff]
        %v4148 = vld [vmem:[#allocation11 + $0x2f8] sm:$0xff]
        %v4149 = vld [vmem:[#allocation11 + $0x300] sm:$0xff]
        %v4150 = vld [vmem:[#allocation11 + $0x308] sm:$0xff]
        %v4151 = vld [vmem:[#allocation11 + $0x310] sm:$0xff]
        %v4152 = vld [vmem:[#allocation11 + $0x318] sm:$0xff]
        %v4153 = vld [vmem:[#allocation11 + $0x320] sm:$0xff]
        %v4154 = vld [vmem:[#allocation11 + $0x328] sm:$0xff]
        %v4155 = vld [vmem:[#allocation11 + $0x330] sm:$0xff]
        %v4156 = vld [vmem:[#allocation11 + $0x338] sm:$0xff]
        %v4157 = vld [vmem:[#allocation11 + $0x340] sm:$0xff]
        %v4158 = vld [vmem:[#allocation11 + $0x348] sm:$0xff]
        %v4159 = vld [vmem:[#allocation11 + $0x350] sm:$0xff]
        %v4160 = vld [vmem:[#allocation11 + $0x358] sm:$0xff]
        %v4161 = vld [vmem:[#allocation11 + $0x360] sm:$0xff]
        %v4162 = vld [vmem:[#allocation11 + $0x368] sm:$0xff]
        %v4163 = vld [vmem:[#allocation11 + $0x370] sm:$0xff]
        %v4164 = vld [vmem:[#allocation11 + $0x378] sm:$0xff]
        %v4165 = vld [vmem:[#allocation11 + $0x380] sm:$0xff]
        %v4166 = vld [vmem:[#allocation11 + $0x388] sm:$0xff]
        %v4167 = vld [vmem:[#allocation11 + $0x390] sm:$0xff]
        %v4168 = vld [vmem:[#allocation11 + $0x398] sm:$0xff]
        %v4169 = vld [vmem:[#allocation11 + $0x3a0] sm:$0xff]
        %v4170 = vld [vmem:[#allocation11 + $0x3a8] sm:$0xff]
        %v4171 = vld [vmem:[#allocation11 + $0x3b0] sm:$0xff]
        %v4172 = vld [vmem:[#allocation11 + $0x3b8] sm:$0xff]
        %v4173 = vld [vmem:[#allocation11 + $0x3c0] sm:$0xff]
        %v4174 = vld [vmem:[#allocation11 + $0x3c8] sm:$0xff]
        %v4175 = vld [vmem:[#allocation11 + $0x3d0] sm:$0xff]
        %v4176 = vld [vmem:[#allocation11 + $0x3d8] sm:$0xff]
        %v4177 = vld [vmem:[#allocation11 + $0x3e0] sm:$0xff]
        %v4178 = vld [vmem:[#allocation11 + $0x3e8] sm:$0xff]
        %v4179 = vld [vmem:[#allocation11 + $0x3f0] sm:$0xff]
        %v4180 = vld [vmem:[#allocation11 + $0x3f8] sm:$0xff]
        %v4181 = vld [vmem:[#allocation13] sm:$0xff]
        %v4182 = vld [vmem:[#allocation13 + $0x8] sm:$0xff]
        %v4185 = vlaneseq
        %v4186 = vshrl.u32 %v4185, 7
        %v4187 = vsub.s32 0, %v4186
        %v4188 = vrot.slane %v4181, %v4187
        %v4189 = vlaneseq
        %v4190 = vshrl.u32 %v4189, 7
        %v4191 = vsub.s32 1, %v4190
        %v4192 = vrot.slane %v4181, %v4191
        %v4193 = vlaneseq
        %v4194 = vshrl.u32 %v4193, 7
        %v4195 = vsub.s32 2, %v4194
        %v4196 = vrot.slane %v4181, %v4195
        %v4197 = vlaneseq
        %v4198 = vshrl.u32 %v4197, 7
        %v4199 = vsub.s32 3, %v4198
        %v4200 = vrot.slane %v4181, %v4199
        %v4201 = vlaneseq
        %v4202 = vshrl.u32 %v4201, 7
        %v4203 = vsub.s32 4, %v4202
        %v4204 = vrot.slane %v4181, %v4203
        %v4205 = vlaneseq
        %v4206 = vshrl.u32 %v4205, 7
        %v4207 = vsub.s32 5, %v4206
        %v4208 = vrot.slane %v4181, %v4207
        %v4209 = vlaneseq
        %v4210 = vshrl.u32 %v4209, 7
        %v4211 = vsub.s32 6, %v4210
        %v4212 = vrot.slane %v4181, %v4211
        %v4213 = vlaneseq
        %v4214 = vshrl.u32 %v4213, 7
        %v4215 = vsub.s32 7, %v4214
        %v4216 = vrot.slane %v4181, %v4215
        %v4217 = vlaneseq
        %v4218 = vshrl.u32 %v4217, 7
        %v4219 = vsub.s32 0, %v4218
        %v4220 = vrot.slane %v4182, %v4219
        %v4221 = vlaneseq
        %v4222 = vshrl.u32 %v4221, 7
        %v4223 = vsub.s32 1, %v4222
        %v4224 = vrot.slane %v4182, %v4223
        %v4225 = vlaneseq
        %v4226 = vshrl.u32 %v4225, 7
        %v4227 = vsub.s32 2, %v4226
        %v4228 = vrot.slane %v4182, %v4227
        %v4229 = vlaneseq
        %v4230 = vshrl.u32 %v4229, 7
        %v4231 = vsub.s32 3, %v4230
        %v4232 = vrot.slane %v4182, %v4231
        %v4233 = vlaneseq
        %v4234 = vshrl.u32 %v4233, 7
        %v4235 = vsub.s32 4, %v4234
        %v4236 = vrot.slane %v4182, %v4235
        %v4237 = vlaneseq
        %v4238 = vshrl.u32 %v4237, 7
        %v4239 = vsub.s32 5, %v4238
        %v4240 = vrot.slane %v4182, %v4239
        %v4241 = vlaneseq
        %v4242 = vshrl.u32 %v4241, 7
        %v4243 = vsub.s32 6, %v4242
        %v4244 = vrot.slane %v4182, %v4243
        %v4245 = vlaneseq
        %v4246 = vshrl.u32 %v4245, 7
        %v4247 = vsub.s32 7, %v4246
        %v4248 = vrot.slane %v4182, %v4247
        %v4393 = vunpack.c.l.b16 %v4053
        %v4394 = vunpack.c.h.b16 %v4053
        %v4395 = vunpack.c.l.b16 %v4054
        %v4396 = vunpack.c.h.b16 %v4054
        %v4397 = vunpack.c.l.b16 %v4055
        %v4398 = vunpack.c.h.b16 %v4055
        %v4399 = vunpack.c.l.b16 %v4056
        %v4400 = vunpack.c.h.b16 %v4056
        %v4401 = vunpack.c.l.b16 %v4057
        %v4402 = vunpack.c.h.b16 %v4057
        %v4403 = vunpack.c.l.b16 %v4058
        %v4404 = vunpack.c.h.b16 %v4058
        %v4405 = vunpack.c.l.b16 %v4059
        %v4406 = vunpack.c.h.b16 %v4059
        %v4407 = vunpack.c.l.b16 %v4060
        %v4408 = vunpack.c.h.b16 %v4060
        %v4409 = vunpack.c.l.b16 %v4061
        %v4410 = vunpack.c.h.b16 %v4061
        %v4411 = vunpack.c.l.b16 %v4062
        %v4412 = vunpack.c.h.b16 %v4062
        %v4413 = vunpack.c.l.b16 %v4063
        %v4414 = vunpack.c.h.b16 %v4063
        %v4415 = vunpack.c.l.b16 %v4064
        %v4416 = vunpack.c.h.b16 %v4064
        %v4417 = vunpack.c.l.b16 %v4065
        %v4418 = vunpack.c.h.b16 %v4065
        %v4419 = vunpack.c.l.b16 %v4066
        %v4420 = vunpack.c.h.b16 %v4066
        %v4421 = vunpack.c.l.b16 %v4067
        %v4422 = vunpack.c.h.b16 %v4067
        %v4423 = vunpack.c.l.b16 %v4068
        %v4424 = vunpack.c.h.b16 %v4068
        %v4425 = vunpack.c.l.b16 %v4069
        %v4426 = vunpack.c.h.b16 %v4069
        %v4427 = vunpack.c.l.b16 %v4070
        %v4428 = vunpack.c.h.b16 %v4070
        %v4429 = vunpack.c.l.b16 %v4071
        %v4430 = vunpack.c.h.b16 %v4071
        %v4431 = vunpack.c.l.b16 %v4072
        %v4432 = vunpack.c.h.b16 %v4072
        %v4433 = vunpack.c.l.b16 %v4073
        %v4434 = vunpack.c.h.b16 %v4073
        %v4435 = vunpack.c.l.b16 %v4074
        %v4436 = vunpack.c.h.b16 %v4074
        %v4437 = vunpack.c.l.b16 %v4075
        %v4438 = vunpack.c.h.b16 %v4075
        %v4439 = vunpack.c.l.b16 %v4076
        %v4440 = vunpack.c.h.b16 %v4076
        %v4441 = vunpack.c.l.b16 %v4077
        %v4442 = vunpack.c.h.b16 %v4077
        %v4443 = vunpack.c.l.b16 %v4078
        %v4444 = vunpack.c.h.b16 %v4078
        %v4445 = vunpack.c.l.b16 %v4079
        %v4446 = vunpack.c.h.b16 %v4079
        %v4447 = vunpack.c.l.b16 %v4080
        %v4448 = vunpack.c.h.b16 %v4080
        %v4449 = vunpack.c.l.b16 %v4081
        %v4450 = vunpack.c.h.b16 %v4081
        %v4451 = vunpack.c.l.b16 %v4082
        %v4452 = vunpack.c.h.b16 %v4082
        %v4453 = vunpack.c.l.b16 %v4083
        %v4454 = vunpack.c.h.b16 %v4083
        %v4455 = vunpack.c.l.b16 %v4084
        %v4456 = vunpack.c.h.b16 %v4084
        %v4457 = vunpack.c.l.b16 %v4085
        %v4458 = vunpack.c.h.b16 %v4085
        %v4459 = vunpack.c.l.b16 %v4086
        %v4460 = vunpack.c.h.b16 %v4086
        %v4461 = vunpack.c.l.b16 %v4087
        %v4462 = vunpack.c.h.b16 %v4087
        %v4463 = vunpack.c.l.b16 %v4088
        %v4464 = vunpack.c.h.b16 %v4088
        %v4465 = vunpack.c.l.b16 %v4089
        %v4466 = vunpack.c.h.b16 %v4089
        %v4467 = vunpack.c.l.b16 %v4090
        %v4468 = vunpack.c.h.b16 %v4090
        %v4469 = vunpack.c.l.b16 %v4091
        %v4470 = vunpack.c.h.b16 %v4091
        %v4471 = vunpack.c.l.b16 %v4092
        %v4472 = vunpack.c.h.b16 %v4092
        %v4473 = vunpack.c.l.b16 %v4093
        %v4474 = vunpack.c.h.b16 %v4093
        %v4475 = vunpack.c.l.b16 %v4094
        %v4476 = vunpack.c.h.b16 %v4094
        %v4477 = vunpack.c.l.b16 %v4095
        %v4478 = vunpack.c.h.b16 %v4095
        %v4479 = vunpack.c.l.b16 %v4096
        %v4480 = vunpack.c.h.b16 %v4096
        %v4481 = vunpack.c.l.b16 %v4097
        %v4482 = vunpack.c.h.b16 %v4097
        %v4483 = vunpack.c.l.b16 %v4098
        %v4484 = vunpack.c.h.b16 %v4098
        %v4485 = vunpack.c.l.b16 %v4099
        %v4486 = vunpack.c.h.b16 %v4099
        %v4487 = vunpack.c.l.b16 %v4100
        %v4488 = vunpack.c.h.b16 %v4100
        %v4489 = vunpack.c.l.b16 %v4101
        %v4490 = vunpack.c.h.b16 %v4101
        %v4491 = vunpack.c.l.b16 %v4102
        %v4492 = vunpack.c.h.b16 %v4102
        %v4493 = vunpack.c.l.b16 %v4103
        %v4494 = vunpack.c.h.b16 %v4103
        %v4495 = vunpack.c.l.b16 %v4104
        %v4496 = vunpack.c.h.b16 %v4104
        %v4497 = vunpack.c.l.b16 %v4105
        %v4498 = vunpack.c.h.b16 %v4105
        %v4499 = vunpack.c.l.b16 %v4106
        %v4500 = vunpack.c.h.b16 %v4106
        %v4501 = vunpack.c.l.b16 %v4107
        %v4502 = vunpack.c.h.b16 %v4107
        %v4503 = vunpack.c.l.b16 %v4108
        %v4504 = vunpack.c.h.b16 %v4108
        %v4505 = vunpack.c.l.b16 %v4109
        %v4506 = vunpack.c.h.b16 %v4109
        %v4507 = vunpack.c.l.b16 %v4110
        %v4508 = vunpack.c.h.b16 %v4110
        %v4509 = vunpack.c.l.b16 %v4111
        %v4510 = vunpack.c.h.b16 %v4111
        %v4511 = vunpack.c.l.b16 %v4112
        %v4512 = vunpack.c.h.b16 %v4112
        %v4513 = vunpack.c.l.b16 %v4113
        %v4514 = vunpack.c.h.b16 %v4113
        %v4515 = vunpack.c.l.b16 %v4114
        %v4516 = vunpack.c.h.b16 %v4114
        %v4517 = vunpack.c.l.b16 %v4115
        %v4518 = vunpack.c.h.b16 %v4115
        %v4519 = vunpack.c.l.b16 %v4116
        %v4520 = vunpack.c.h.b16 %v4116
        %v4521 = vunpack.c.l.b16 %v4117
        %v4522 = vunpack.c.h.b16 %v4117
        %v4523 = vunpack.c.l.b16 %v4118
        %v4524 = vunpack.c.h.b16 %v4118
        %v4525 = vunpack.c.l.b16 %v4119
        %v4526 = vunpack.c.h.b16 %v4119
        %v4527 = vunpack.c.l.b16 %v4120
        %v4528 = vunpack.c.h.b16 %v4120
        %v4529 = vunpack.c.l.b16 %v4121
        %v4530 = vunpack.c.h.b16 %v4121
        %v4531 = vunpack.c.l.b16 %v4122
        %v4532 = vunpack.c.h.b16 %v4122
        %v4533 = vunpack.c.l.b16 %v4123
        %v4534 = vunpack.c.h.b16 %v4123
        %v4535 = vunpack.c.l.b16 %v4124
        %v4536 = vunpack.c.h.b16 %v4124
        %v4537 = vunpack.c.l.b16 %v4125
        %v4538 = vunpack.c.h.b16 %v4125
        %v4539 = vunpack.c.l.b16 %v4126
        %v4540 = vunpack.c.h.b16 %v4126
        %v4541 = vunpack.c.l.b16 %v4127
        %v4542 = vunpack.c.h.b16 %v4127
        %v4543 = vunpack.c.l.b16 %v4128
        %v4544 = vunpack.c.h.b16 %v4128
        %v4545 = vunpack.c.l.b16 %v4129
        %v4546 = vunpack.c.h.b16 %v4129
        %v4547 = vunpack.c.l.b16 %v4130
        %v4548 = vunpack.c.h.b16 %v4130
        %v4549 = vunpack.c.l.b16 %v4131
        %v4550 = vunpack.c.h.b16 %v4131
        %v4551 = vunpack.c.l.b16 %v4132
        %v4552 = vunpack.c.h.b16 %v4132
        %v4553 = vunpack.c.l.b16 %v4133
        %v4554 = vunpack.c.h.b16 %v4133
        %v4555 = vunpack.c.l.b16 %v4134
        %v4556 = vunpack.c.h.b16 %v4134
        %v4557 = vunpack.c.l.b16 %v4135
        %v4558 = vunpack.c.h.b16 %v4135
        %v4559 = vunpack.c.l.b16 %v4136
        %v4560 = vunpack.c.h.b16 %v4136
        %v4561 = vunpack.c.l.b16 %v4137
        %v4562 = vunpack.c.h.b16 %v4137
        %v4563 = vunpack.c.l.b16 %v4138
        %v4564 = vunpack.c.h.b16 %v4138
        %v4565 = vunpack.c.l.b16 %v4139
        %v4566 = vunpack.c.h.b16 %v4139
        %v4567 = vunpack.c.l.b16 %v4140
        %v4568 = vunpack.c.h.b16 %v4140
        %v4569 = vunpack.c.l.b16 %v4141
        %v4570 = vunpack.c.h.b16 %v4141
        %v4571 = vunpack.c.l.b16 %v4142
        %v4572 = vunpack.c.h.b16 %v4142
        %v4573 = vunpack.c.l.b16 %v4143
        %v4574 = vunpack.c.h.b16 %v4143
        %v4575 = vunpack.c.l.b16 %v4144
        %v4576 = vunpack.c.h.b16 %v4144
        %v4577 = vunpack.c.l.b16 %v4145
        %v4578 = vunpack.c.h.b16 %v4145
        %v4579 = vunpack.c.l.b16 %v4146
        %v4580 = vunpack.c.h.b16 %v4146
        %v4581 = vunpack.c.l.b16 %v4147
        %v4582 = vunpack.c.h.b16 %v4147
        %v4583 = vunpack.c.l.b16 %v4148
        %v4584 = vunpack.c.h.b16 %v4148
        %v4585 = vunpack.c.l.b16 %v4149
        %v4586 = vunpack.c.h.b16 %v4149
        %v4587 = vunpack.c.l.b16 %v4150
        %v4588 = vunpack.c.h.b16 %v4150
        %v4589 = vunpack.c.l.b16 %v4151
        %v4590 = vunpack.c.h.b16 %v4151
        %v4591 = vunpack.c.l.b16 %v4152
        %v4592 = vunpack.c.h.b16 %v4152
        %v4593 = vunpack.c.l.b16 %v4153
        %v4594 = vunpack.c.h.b16 %v4153
        %v4595 = vunpack.c.l.b16 %v4154
        %v4596 = vunpack.c.h.b16 %v4154
        %v4597 = vunpack.c.l.b16 %v4155
        %v4598 = vunpack.c.h.b16 %v4155
        %v4599 = vunpack.c.l.b16 %v4156
        %v4600 = vunpack.c.h.b16 %v4156
        %v4601 = vunpack.c.l.b16 %v4157
        %v4602 = vunpack.c.h.b16 %v4157
        %v4603 = vunpack.c.l.b16 %v4158
        %v4604 = vunpack.c.h.b16 %v4158
        %v4605 = vunpack.c.l.b16 %v4159
        %v4606 = vunpack.c.h.b16 %v4159
        %v4607 = vunpack.c.l.b16 %v4160
        %v4608 = vunpack.c.h.b16 %v4160
        %v4609 = vunpack.c.l.b16 %v4161
        %v4610 = vunpack.c.h.b16 %v4161
        %v4611 = vunpack.c.l.b16 %v4162
        %v4612 = vunpack.c.h.b16 %v4162
        %v4613 = vunpack.c.l.b16 %v4163
        %v4614 = vunpack.c.h.b16 %v4163
        %v4615 = vunpack.c.l.b16 %v4164
        %v4616 = vunpack.c.h.b16 %v4164
        %v4617 = vunpack.c.l.b16 %v4165
        %v4618 = vunpack.c.h.b16 %v4165
        %v4619 = vunpack.c.l.b16 %v4166
        %v4620 = vunpack.c.h.b16 %v4166
        %v4621 = vunpack.c.l.b16 %v4167
        %v4622 = vunpack.c.h.b16 %v4167
        %v4623 = vunpack.c.l.b16 %v4168
        %v4624 = vunpack.c.h.b16 %v4168
        %v4625 = vunpack.c.l.b16 %v4169
        %v4626 = vunpack.c.h.b16 %v4169
        %v4627 = vunpack.c.l.b16 %v4170
        %v4628 = vunpack.c.h.b16 %v4170
        %v4629 = vunpack.c.l.b16 %v4171
        %v4630 = vunpack.c.h.b16 %v4171
        %v4631 = vunpack.c.l.b16 %v4172
        %v4632 = vunpack.c.h.b16 %v4172
        %v4633 = vunpack.c.l.b16 %v4173
        %v4634 = vunpack.c.h.b16 %v4173
        %v4635 = vunpack.c.l.b16 %v4174
        %v4636 = vunpack.c.h.b16 %v4174
        %v4637 = vunpack.c.l.b16 %v4175
        %v4638 = vunpack.c.h.b16 %v4175
        %v4639 = vunpack.c.l.b16 %v4176
        %v4640 = vunpack.c.h.b16 %v4176
        %v4641 = vunpack.c.l.b16 %v4177
        %v4642 = vunpack.c.h.b16 %v4177
        %v4643 = vunpack.c.l.b16 %v4178
        %v4644 = vunpack.c.h.b16 %v4178
        %v4645 = vunpack.c.l.b16 %v4179
        %v4646 = vunpack.c.h.b16 %v4179
        %v4647 = vunpack.c.l.b16 %v4180
        %v4648 = vunpack.c.h.b16 %v4180
        %v4649 = vpack.c.b16 %v4409, %v4393
        %v4650 = vpack.c.b16 %v4410, %v4394
        %v4651 = vpack.c.b16 %v4411, %v4395
        %v4652 = vpack.c.b16 %v4412, %v4396
        %v4653 = vpack.c.b16 %v4413, %v4397
        %v4654 = vpack.c.b16 %v4414, %v4398
        %v4655 = vpack.c.b16 %v4415, %v4399
        %v4656 = vpack.c.b16 %v4416, %v4400
        %v4657 = vpack.c.b16 %v4417, %v4401
        %v4658 = vpack.c.b16 %v4418, %v4402
        %v4659 = vpack.c.b16 %v4419, %v4403
        %v4660 = vpack.c.b16 %v4420, %v4404
        %v4661 = vpack.c.b16 %v4421, %v4405
        %v4662 = vpack.c.b16 %v4422, %v4406
        %v4663 = vpack.c.b16 %v4423, %v4407
        %v4664 = vpack.c.b16 %v4424, %v4408
        %v4665 = vpack.c.b16 %v4441, %v4425
        %v4666 = vpack.c.b16 %v4442, %v4426
        %v4667 = vpack.c.b16 %v4443, %v4427
        %v4668 = vpack.c.b16 %v4444, %v4428
        %v4669 = vpack.c.b16 %v4445, %v4429
        %v4670 = vpack.c.b16 %v4446, %v4430
        %v4671 = vpack.c.b16 %v4447, %v4431
        %v4672 = vpack.c.b16 %v4448, %v4432
        %v4673 = vpack.c.b16 %v4449, %v4433
        %v4674 = vpack.c.b16 %v4450, %v4434
        %v4675 = vpack.c.b16 %v4451, %v4435
        %v4676 = vpack.c.b16 %v4452, %v4436
        %v4677 = vpack.c.b16 %v4453, %v4437
        %v4678 = vpack.c.b16 %v4454, %v4438
        %v4679 = vpack.c.b16 %v4455, %v4439
        %v4680 = vpack.c.b16 %v4456, %v4440
        %v4681 = vpack.c.b16 %v4473, %v4457
        %v4682 = vpack.c.b16 %v4474, %v4458
        %v4683 = vpack.c.b16 %v4475, %v4459
        %v4684 = vpack.c.b16 %v4476, %v4460
        %v4685 = vpack.c.b16 %v4477, %v4461
        %v4686 = vpack.c.b16 %v4478, %v4462
        %v4687 = vpack.c.b16 %v4479, %v4463
        %v4688 = vpack.c.b16 %v4480, %v4464
        %v4689 = vpack.c.b16 %v4481, %v4465
        %v4690 = vpack.c.b16 %v4482, %v4466
        %v4691 = vpack.c.b16 %v4483, %v4467
        %v4692 = vpack.c.b16 %v4484, %v4468
        %v4693 = vpack.c.b16 %v4485, %v4469
        %v4694 = vpack.c.b16 %v4486, %v4470
        %v4695 = vpack.c.b16 %v4487, %v4471
        %v4696 = vpack.c.b16 %v4488, %v4472
        %v4697 = vpack.c.b16 %v4505, %v4489
        %v4698 = vpack.c.b16 %v4506, %v4490
        %v4699 = vpack.c.b16 %v4507, %v4491
        %v4700 = vpack.c.b16 %v4508, %v4492
        %v4701 = vpack.c.b16 %v4509, %v4493
        %v4702 = vpack.c.b16 %v4510, %v4494
        %v4703 = vpack.c.b16 %v4511, %v4495
        %v4704 = vpack.c.b16 %v4512, %v4496
        %v4705 = vpack.c.b16 %v4513, %v4497
        %v4706 = vpack.c.b16 %v4514, %v4498
        %v4707 = vpack.c.b16 %v4515, %v4499
        %v4708 = vpack.c.b16 %v4516, %v4500
        %v4709 = vpack.c.b16 %v4517, %v4501
        %v4710 = vpack.c.b16 %v4518, %v4502
        %v4711 = vpack.c.b16 %v4519, %v4503
        %v4712 = vpack.c.b16 %v4520, %v4504
        %v4713 = vpack.c.b16 %v4537, %v4521
        %v4714 = vpack.c.b16 %v4538, %v4522
        %v4715 = vpack.c.b16 %v4539, %v4523
        %v4716 = vpack.c.b16 %v4540, %v4524
        %v4717 = vpack.c.b16 %v4541, %v4525
        %v4718 = vpack.c.b16 %v4542, %v4526
        %v4719 = vpack.c.b16 %v4543, %v4527
        %v4720 = vpack.c.b16 %v4544, %v4528
        %v4721 = vpack.c.b16 %v4545, %v4529
        %v4722 = vpack.c.b16 %v4546, %v4530
        %v4723 = vpack.c.b16 %v4547, %v4531
        %v4724 = vpack.c.b16 %v4548, %v4532
        %v4725 = vpack.c.b16 %v4549, %v4533
        %v4726 = vpack.c.b16 %v4550, %v4534
        %v4727 = vpack.c.b16 %v4551, %v4535
        %v4728 = vpack.c.b16 %v4552, %v4536
        %v4729 = vpack.c.b16 %v4569, %v4553
        %v4730 = vpack.c.b16 %v4570, %v4554
        %v4731 = vpack.c.b16 %v4571, %v4555
        %v4732 = vpack.c.b16 %v4572, %v4556
        %v4733 = vpack.c.b16 %v4573, %v4557
        %v4734 = vpack.c.b16 %v4574, %v4558
        %v4735 = vpack.c.b16 %v4575, %v4559
        %v4736 = vpack.c.b16 %v4576, %v4560
        %v4737 = vpack.c.b16 %v4577, %v4561
        %v4738 = vpack.c.b16 %v4578, %v4562
        %v4739 = vpack.c.b16 %v4579, %v4563
        %v4740 = vpack.c.b16 %v4580, %v4564
        %v4741 = vpack.c.b16 %v4581, %v4565
        %v4742 = vpack.c.b16 %v4582, %v4566
        %v4743 = vpack.c.b16 %v4583, %v4567
        %v4744 = vpack.c.b16 %v4584, %v4568
        %v4745 = vpack.c.b16 %v4601, %v4585
        %v4746 = vpack.c.b16 %v4602, %v4586
        %v4747 = vpack.c.b16 %v4603, %v4587
        %v4748 = vpack.c.b16 %v4604, %v4588
        %v4749 = vpack.c.b16 %v4605, %v4589
        %v4750 = vpack.c.b16 %v4606, %v4590
        %v4751 = vpack.c.b16 %v4607, %v4591
        %v4752 = vpack.c.b16 %v4608, %v4592
        %v4753 = vpack.c.b16 %v4609, %v4593
        %v4754 = vpack.c.b16 %v4610, %v4594
        %v4755 = vpack.c.b16 %v4611, %v4595
        %v4756 = vpack.c.b16 %v4612, %v4596
        %v4757 = vpack.c.b16 %v4613, %v4597
        %v4758 = vpack.c.b16 %v4614, %v4598
        %v4759 = vpack.c.b16 %v4615, %v4599
        %v4760 = vpack.c.b16 %v4616, %v4600
        %v4761 = vpack.c.b16 %v4633, %v4617
        %v4762 = vpack.c.b16 %v4634, %v4618
        %v4763 = vpack.c.b16 %v4635, %v4619
        %v4764 = vpack.c.b16 %v4636, %v4620
        %v4765 = vpack.c.b16 %v4637, %v4621
        %v4766 = vpack.c.b16 %v4638, %v4622
        %v4767 = vpack.c.b16 %v4639, %v4623
        %v4768 = vpack.c.b16 %v4640, %v4624
        %v4769 = vpack.c.b16 %v4641, %v4625
        %v4770 = vpack.c.b16 %v4642, %v4626
        %v4771 = vpack.c.b16 %v4643, %v4627
        %v4772 = vpack.c.b16 %v4644, %v4628
        %v4773 = vpack.c.b16 %v4645, %v4629
        %v4774 = vpack.c.b16 %v4646, %v4630
        %v4775 = vpack.c.b16 %v4647, %v4631
        %v4776 = vpack.c.b16 %v4648, %v4632
        %4905 = vmatprep.subr.bf16.mxu0 %v4762
        %4906 = vmatpush1.bf16.msra.mxu0 %v4761
        %4907 = vmatprep.subr.bf16.mxu0 %v4746
        %4908 = vmatpush1.bf16.msra.mxu0 %v4745
        %4909 = vmatprep.subr.bf16.mxu0 %v4730
        %4910 = vmatpush1.bf16.msra.mxu0 %v4729
        %4911 = vmatprep.subr.bf16.mxu0 %v4714
        %4912 = vmatpush1.bf16.msra.mxu0 %v4713
        %4913 = vmatprep.subr.bf16.mxu0 %v4698
        %4914 = vmatpush1.bf16.msra.mxu0 %v4697
        %4915 = vmatprep.subr.bf16.mxu0 %v4682
        %4916 = vmatpush1.bf16.msra.mxu0 %v4681
        %4917 = vmatprep.subr.bf16.mxu0 %v4666
        %4918 = vmatpush1.bf16.msra.mxu0 %v4665
        %4919 = vmatprep.subr.bf16.mxu0 %v4650
        %4920 = vmatpush1.bf16.msra.mxu0 %v4649
        %4921 = vmatprep.subr.bf16.mxu0 0
        %4922 = vmatpush2.bf16.msra.mxu0 0
        %4923 = vmatprep.subr.bf16.mxu0 0
        %4924 = vmatpush2.bf16.msra.mxu0 0
        %4925 = vmatprep.subr.bf16.mxu0 0
        %4926 = vmatpush2.bf16.msra.mxu0 0
        %4927 = vmatprep.subr.bf16.mxu0 0
        %4928 = vmatpush2.bf16.msra.mxu0 0
        %4929 = vmatprep.subr.bf16.mxu0 0
        %4930 = vmatpush2.bf16.msra.mxu0 0
        %4931 = vmatprep.subr.bf16.mxu0 0
        %4932 = vmatpush2.bf16.msra.mxu0 0
        %4933 = vmatprep.subr.bf16.mxu0 0
        %4934 = vmatpush2.bf16.msra.mxu0 0
        %4935 = vmatprep.subr.bf16.mxu0 0
        %4936 = vmatpush2.bf16.msra.mxu0 0
        %4937 = vmatprep.mubr.bf16.mxu0 0
        %4938 = vmatmul.mubr.bf16.gmra.mxu0 %v4049
        %v4939 = vpop.f32.mrf.mxu0
        %v4940 = vadd.f32 %v4188, %v4939
        %v4941 = vpop.f32.mrf.mxu0
        %v4942 = vadd.f32 %v4192, %v4941
        %v4943 = vpop.f32.mrf.mxu0
        %v4944 = vadd.f32 %v4188, %v4943
        %v4945 = vpop.f32.mrf.mxu0
        %v4946 = vadd.f32 %v4192, %v4945
        %4947 = vmatprep.mubr.bf16.mxu0 0
        %4948 = vmatmul.mubr.bf16.gmra.mxu0 %v4050
        %v4949 = vpop.f32.mrf.mxu0
        %v4950 = vadd.f32 %v4188, %v4949
        %v4951 = vpop.f32.mrf.mxu0
        %v4952 = vadd.f32 %v4192, %v4951
        %v4953 = vpop.f32.mrf.mxu0
        %v4954 = vadd.f32 %v4188, %v4953
        %v4955 = vpop.f32.mrf.mxu0
        %v4956 = vadd.f32 %v4192, %v4955
        %4957 = vmatprep.mubr.bf16.mxu0 0
        %4958 = vmatmul.mubr.bf16.gmra.mxu0 %v4051
        %v4959 = vpop.f32.mrf.mxu0
        %v4960 = vadd.f32 %v4188, %v4959
        %v4961 = vpop.f32.mrf.mxu0
        %v4962 = vadd.f32 %v4192, %v4961
        %v4963 = vpop.f32.mrf.mxu0
        %v4964 = vadd.f32 %v4188, %v4963
        %v4965 = vpop.f32.mrf.mxu0
        %v4966 = vadd.f32 %v4192, %v4965
        %4967 = vmatprep.mubr.bf16.mxu0 0
        %4968 = vmatmul.mubr.bf16.gmra.mxu0 %v4052
        %v4969 = vpop.f32.mrf.mxu0
        %v4970 = vadd.f32 %v4188, %v4969
        %v4971 = vpop.f32.mrf.mxu0
        %v4972 = vadd.f32 %v4192, %v4971
        %v4973 = vpop.f32.mrf.mxu0
        %v4974 = vadd.f32 %v4188, %v4973
        %v4975 = vpop.f32.mrf.mxu0
        %v4976 = vadd.f32 %v4192, %v4975
        %4977 = vdwg.mxu0
        %4978 = vmatprep.subr.bf16.mxu0 %v4764
        %4979 = vmatpush1.bf16.msra.mxu0 %v4763
        %4980 = vmatprep.subr.bf16.mxu0 %v4748
        %4981 = vmatpush1.bf16.msra.mxu0 %v4747
        %4982 = vmatprep.subr.bf16.mxu0 %v4732
        %4983 = vmatpush1.bf16.msra.mxu0 %v4731
        %4984 = vmatprep.subr.bf16.mxu0 %v4716
        %4985 = vmatpush1.bf16.msra.mxu0 %v4715
        %4986 = vmatprep.subr.bf16.mxu0 %v4700
        %4987 = vmatpush1.bf16.msra.mxu0 %v4699
        %4988 = vmatprep.subr.bf16.mxu0 %v4684
        %4989 = vmatpush1.bf16.msra.mxu0 %v4683
        %4990 = vmatprep.subr.bf16.mxu0 %v4668
        %4991 = vmatpush1.bf16.msra.mxu0 %v4667
        %4992 = vmatprep.subr.bf16.mxu0 %v4652
        %4993 = vmatpush1.bf16.msra.mxu0 %v4651
        %4994 = vmatprep.subr.bf16.mxu0 0
        %4995 = vmatpush2.bf16.msra.mxu0 0
        %4996 = vmatprep.subr.bf16.mxu0 0
        %4997 = vmatpush2.bf16.msra.mxu0 0
        %4998 = vmatprep.subr.bf16.mxu0 0
        %4999 = vmatpush2.bf16.msra.mxu0 0
        %5000 = vmatprep.subr.bf16.mxu0 0
        %5001 = vmatpush2.bf16.msra.mxu0 0
        %5002 = vmatprep.subr.bf16.mxu0 0
        %5003 = vmatpush2.bf16.msra.mxu0 0
        %5004 = vmatprep.subr.bf16.mxu0 0
        %5005 = vmatpush2.bf16.msra.mxu0 0
        %5006 = vmatprep.subr.bf16.mxu0 0
        %5007 = vmatpush2.bf16.msra.mxu0 0
        %5008 = vmatprep.subr.bf16.mxu0 0
        %5009 = vmatpush2.bf16.msra.mxu0 0
        %5010 = vmatprep.mubr.bf16.mxu0 0
        %5011 = vmatmul.mubr.bf16.gmra.mxu0 %v4049
        %v5012 = vpop.f32.mrf.mxu0
        %v5013 = vadd.f32 %v4196, %v5012
        %v5014 = vpop.f32.mrf.mxu0
        %v5015 = vadd.f32 %v4200, %v5014
        %v5016 = vpop.f32.mrf.mxu0
        %v5017 = vadd.f32 %v4196, %v5016
        %v5018 = vpop.f32.mrf.mxu0
        %v5019 = vadd.f32 %v4200, %v5018
        %5020 = vmatprep.mubr.bf16.mxu0 0
        %5021 = vmatmul.mubr.bf16.gmra.mxu0 %v4050
        %v5022 = vpop.f32.mrf.mxu0
        %v5023 = vadd.f32 %v4196, %v5022
        %v5024 = vpop.f32.mrf.mxu0
        %v5025 = vadd.f32 %v4200, %v5024
        %v5026 = vpop.f32.mrf.mxu0
        %v5027 = vadd.f32 %v4196, %v5026
        %v5028 = vpop.f32.mrf.mxu0
        %v5029 = vadd.f32 %v4200, %v5028
        %5030 = vmatprep.mubr.bf16.mxu0 0
        %5031 = vmatmul.mubr.bf16.gmra.mxu0 %v4051
        %v5032 = vpop.f32.mrf.mxu0
        %v5033 = vadd.f32 %v4196, %v5032
        %v5034 = vpop.f32.mrf.mxu0
        %v5035 = vadd.f32 %v4200, %v5034
        %v5036 = vpop.f32.mrf.mxu0
        %v5037 = vadd.f32 %v4196, %v5036
        %v5038 = vpop.f32.mrf.mxu0
        %v5039 = vadd.f32 %v4200, %v5038
        %5040 = vmatprep.mubr.bf16.mxu0 0
        %5041 = vmatmul.mubr.bf16.gmra.mxu0 %v4052
        %v5042 = vpop.f32.mrf.mxu0
        %v5043 = vadd.f32 %v4196, %v5042
        %v5044 = vpop.f32.mrf.mxu0
        %v5045 = vadd.f32 %v4200, %v5044
        %v5046 = vpop.f32.mrf.mxu0
        %v5047 = vadd.f32 %v4196, %v5046
        %v5048 = vpop.f32.mrf.mxu0
        %v5049 = vadd.f32 %v4200, %v5048
        %5050 = vdwg.mxu0
        %5051 = vmatprep.subr.bf16.mxu0 %v4766
        %5052 = vmatpush1.bf16.msra.mxu0 %v4765
        %5053 = vmatprep.subr.bf16.mxu0 %v4750
        %5054 = vmatpush1.bf16.msra.mxu0 %v4749
        %5055 = vmatprep.subr.bf16.mxu0 %v4734
        %5056 = vmatpush1.bf16.msra.mxu0 %v4733
        %5057 = vmatprep.subr.bf16.mxu0 %v4718
        %5058 = vmatpush1.bf16.msra.mxu0 %v4717
        %5059 = vmatprep.subr.bf16.mxu0 %v4702
        %5060 = vmatpush1.bf16.msra.mxu0 %v4701
        %5061 = vmatprep.subr.bf16.mxu0 %v4686
        %5062 = vmatpush1.bf16.msra.mxu0 %v4685
        %5063 = vmatprep.subr.bf16.mxu0 %v4670
        %5064 = vmatpush1.bf16.msra.mxu0 %v4669
        %5065 = vmatprep.subr.bf16.mxu0 %v4654
        %5066 = vmatpush1.bf16.msra.mxu0 %v4653
        %5067 = vmatprep.subr.bf16.mxu0 0
        %5068 = vmatpush2.bf16.msra.mxu0 0
        %5069 = vmatprep.subr.bf16.mxu0 0
        %5070 = vmatpush2.bf16.msra.mxu0 0
        %5071 = vmatprep.subr.bf16.mxu0 0
        %5072 = vmatpush2.bf16.msra.mxu0 0
        %5073 = vmatprep.subr.bf16.mxu0 0
        %5074 = vmatpush2.bf16.msra.mxu0 0
        %5075 = vmatprep.subr.bf16.mxu0 0
        %5076 = vmatpush2.bf16.msra.mxu0 0
        %5077 = vmatprep.subr.bf16.mxu0 0
        %5078 = vmatpush2.bf16.msra.mxu0 0
        %5079 = vmatprep.subr.bf16.mxu0 0
        %5080 = vmatpush2.bf16.msra.mxu0 0
        %5081 = vmatprep.subr.bf16.mxu0 0
        %5082 = vmatpush2.bf16.msra.mxu0 0
        %5083 = vmatprep.mubr.bf16.mxu0 0
        %5084 = vmatmul.mubr.bf16.gmra.mxu0 %v4049
        %v5085 = vpop.f32.mrf.mxu0
        %v5086 = vadd.f32 %v4204, %v5085
        %v5087 = vpop.f32.mrf.mxu0
        %v5088 = vadd.f32 %v4208, %v5087
        %v5089 = vpop.f32.mrf.mxu0
        %v5090 = vadd.f32 %v4204, %v5089
        %v5091 = vpop.f32.mrf.mxu0
        %v5092 = vadd.f32 %v4208, %v5091
        %5093 = vmatprep.mubr.bf16.mxu0 0
        %5094 = vmatmul.mubr.bf16.gmra.mxu0 %v4050
        %v5095 = vpop.f32.mrf.mxu0
        %v5096 = vadd.f32 %v4204, %v5095
        %v5097 = vpop.f32.mrf.mxu0
        %v5098 = vadd.f32 %v4208, %v5097
        %v5099 = vpop.f32.mrf.mxu0
        %v5100 = vadd.f32 %v4204, %v5099
        %v5101 = vpop.f32.mrf.mxu0
        %v5102 = vadd.f32 %v4208, %v5101
        %5103 = vmatprep.mubr.bf16.mxu0 0
        %5104 = vmatmul.mubr.bf16.gmra.mxu0 %v4051
        %v5105 = vpop.f32.mrf.mxu0
        %v5106 = vadd.f32 %v4204, %v5105
        %v5107 = vpop.f32.mrf.mxu0
        %v5108 = vadd.f32 %v4208, %v5107
        %v5109 = vpop.f32.mrf.mxu0
        %v5110 = vadd.f32 %v4204, %v5109
        %v5111 = vpop.f32.mrf.mxu0
        %v5112 = vadd.f32 %v4208, %v5111
        %5113 = vmatprep.mubr.bf16.mxu0 0
        %5114 = vmatmul.mubr.bf16.gmra.mxu0 %v4052
        %v5115 = vpop.f32.mrf.mxu0
        %v5116 = vadd.f32 %v4204, %v5115
        %v5117 = vpop.f32.mrf.mxu0
        %v5118 = vadd.f32 %v4208, %v5117
        %v5119 = vpop.f32.mrf.mxu0
        %v5120 = vadd.f32 %v4204, %v5119
        %v5121 = vpop.f32.mrf.mxu0
        %v5122 = vadd.f32 %v4208, %v5121
        %5123 = vdwg.mxu0
        %5124 = vmatprep.subr.bf16.mxu0 %v4768
        %5125 = vmatpush1.bf16.msra.mxu0 %v4767
        %5126 = vmatprep.subr.bf16.mxu0 %v4752
        %5127 = vmatpush1.bf16.msra.mxu0 %v4751
        %5128 = vmatprep.subr.bf16.mxu0 %v4736
        %5129 = vmatpush1.bf16.msra.mxu0 %v4735
        %5130 = vmatprep.subr.bf16.mxu0 %v4720
        %5131 = vmatpush1.bf16.msra.mxu0 %v4719
        %5132 = vmatprep.subr.bf16.mxu0 %v4704
        %5133 = vmatpush1.bf16.msra.mxu0 %v4703
        %5134 = vmatprep.subr.bf16.mxu0 %v4688
        %5135 = vmatpush1.bf16.msra.mxu0 %v4687
        %5136 = vmatprep.subr.bf16.mxu0 %v4672
        %5137 = vmatpush1.bf16.msra.mxu0 %v4671
        %5138 = vmatprep.subr.bf16.mxu0 %v4656
        %5139 = vmatpush1.bf16.msra.mxu0 %v4655
        %5140 = vmatprep.subr.bf16.mxu0 0
        %5141 = vmatpush2.bf16.msra.mxu0 0
        %5142 = vmatprep.subr.bf16.mxu0 0
        %5143 = vmatpush2.bf16.msra.mxu0 0
        %5144 = vmatprep.subr.bf16.mxu0 0
        %5145 = vmatpush2.bf16.msra.mxu0 0
        %5146 = vmatprep.subr.bf16.mxu0 0
        %5147 = vmatpush2.bf16.msra.mxu0 0
        %5148 = vmatprep.subr.bf16.mxu0 0
        %5149 = vmatpush2.bf16.msra.mxu0 0
        %5150 = vmatprep.subr.bf16.mxu0 0
        %5151 = vmatpush2.bf16.msra.mxu0 0
        %5152 = vmatprep.subr.bf16.mxu0 0
        %5153 = vmatpush2.bf16.msra.mxu0 0
        %5154 = vmatprep.subr.bf16.mxu0 0
        %5155 = vmatpush2.bf16.msra.mxu0 0
        %5156 = vmatprep.mubr.bf16.mxu0 0
        %5157 = vmatmul.mubr.bf16.gmra.mxu0 %v4049
        %v5158 = vpop.f32.mrf.mxu0
        %v5159 = vadd.f32 %v4212, %v5158
        %v5160 = vpop.f32.mrf.mxu0
        %v5161 = vadd.f32 %v4216, %v5160
        %v5162 = vpop.f32.mrf.mxu0
        %v5163 = vadd.f32 %v4212, %v5162
        %v5164 = vpop.f32.mrf.mxu0
        %v5165 = vadd.f32 %v4216, %v5164
        %5166 = vmatprep.mubr.bf16.mxu0 0
        %5167 = vmatmul.mubr.bf16.gmra.mxu0 %v4050
        %v5168 = vpop.f32.mrf.mxu0
        %v5169 = vadd.f32 %v4212, %v5168
        %v5170 = vpop.f32.mrf.mxu0
        %v5171 = vadd.f32 %v4216, %v5170
        %v5172 = vpop.f32.mrf.mxu0
        %v5173 = vadd.f32 %v4212, %v5172
        %v5174 = vpop.f32.mrf.mxu0
        %v5175 = vadd.f32 %v4216, %v5174
        %5176 = vmatprep.mubr.bf16.mxu0 0
        %5177 = vmatmul.mubr.bf16.gmra.mxu0 %v4051
        %v5178 = vpop.f32.mrf.mxu0
        %v5179 = vadd.f32 %v4212, %v5178
        %v5180 = vpop.f32.mrf.mxu0
        %v5181 = vadd.f32 %v4216, %v5180
        %v5182 = vpop.f32.mrf.mxu0
        %v5183 = vadd.f32 %v4212, %v5182
        %v5184 = vpop.f32.mrf.mxu0
        %v5185 = vadd.f32 %v4216, %v5184
        %5186 = vmatprep.mubr.bf16.mxu0 0
        %5187 = vmatmul.mubr.bf16.gmra.mxu0 %v4052
        %v5188 = vpop.f32.mrf.mxu0
        %v5189 = vadd.f32 %v4212, %v5188
        %v5190 = vpop.f32.mrf.mxu0
        %v5191 = vadd.f32 %v4216, %v5190
        %v5192 = vpop.f32.mrf.mxu0
        %v5193 = vadd.f32 %v4212, %v5192
        %v5194 = vpop.f32.mrf.mxu0
        %v5195 = vadd.f32 %v4216, %v5194
        %5196 = vdwg.mxu0
        %5197 = vmatprep.subr.bf16.mxu0 %v4770
        %5198 = vmatpush1.bf16.msra.mxu0 %v4769
        %5199 = vmatprep.subr.bf16.mxu0 %v4754
        %5200 = vmatpush1.bf16.msra.mxu0 %v4753
        %5201 = vmatprep.subr.bf16.mxu0 %v4738
        %5202 = vmatpush1.bf16.msra.mxu0 %v4737
        %5203 = vmatprep.subr.bf16.mxu0 %v4722
        %5204 = vmatpush1.bf16.msra.mxu0 %v4721
        %5205 = vmatprep.subr.bf16.mxu0 %v4706
        %5206 = vmatpush1.bf16.msra.mxu0 %v4705
        %5207 = vmatprep.subr.bf16.mxu0 %v4690
        %5208 = vmatpush1.bf16.msra.mxu0 %v4689
        %5209 = vmatprep.subr.bf16.mxu0 %v4674
        %5210 = vmatpush1.bf16.msra.mxu0 %v4673
        %5211 = vmatprep.subr.bf16.mxu0 %v4658
        %5212 = vmatpush1.bf16.msra.mxu0 %v4657
        %5213 = vmatprep.subr.bf16.mxu0 0
        %5214 = vmatpush2.bf16.msra.mxu0 0
        %5215 = vmatprep.subr.bf16.mxu0 0
        %5216 = vmatpush2.bf16.msra.mxu0 0
        %5217 = vmatprep.subr.bf16.mxu0 0
        %5218 = vmatpush2.bf16.msra.mxu0 0
        %5219 = vmatprep.subr.bf16.mxu0 0
        %5220 = vmatpush2.bf16.msra.mxu0 0
        %5221 = vmatprep.subr.bf16.mxu0 0
        %5222 = vmatpush2.bf16.msra.mxu0 0
        %5223 = vmatprep.subr.bf16.mxu0 0
        %5224 = vmatpush2.bf16.msra.mxu0 0
        %5225 = vmatprep.subr.bf16.mxu0 0
        %5226 = vmatpush2.bf16.msra.mxu0 0
        %5227 = vmatprep.subr.bf16.mxu0 0
        %5228 = vmatpush2.bf16.msra.mxu0 0
        %5229 = vmatprep.mubr.bf16.mxu0 0
        %5230 = vmatmul.mubr.bf16.gmra.mxu0 %v4049
        %v5231 = vpop.f32.mrf.mxu0
        %v5232 = vadd.f32 %v4220, %v5231
        %v5233 = vpop.f32.mrf.mxu0
        %v5234 = vadd.f32 %v4224, %v5233
        %v5235 = vpop.f32.mrf.mxu0
        %v5236 = vadd.f32 %v4220, %v5235
        %v5237 = vpop.f32.mrf.mxu0
        %v5238 = vadd.f32 %v4224, %v5237
        %5239 = vmatprep.mubr.bf16.mxu0 0
        %5240 = vmatmul.mubr.bf16.gmra.mxu0 %v4050
        %v5241 = vpop.f32.mrf.mxu0
        %v5242 = vadd.f32 %v4220, %v5241
        %v5243 = vpop.f32.mrf.mxu0
        %v5244 = vadd.f32 %v4224, %v5243
        %v5245 = vpop.f32.mrf.mxu0
        %v5246 = vadd.f32 %v4220, %v5245
        %v5247 = vpop.f32.mrf.mxu0
        %v5248 = vadd.f32 %v4224, %v5247
        %5249 = vmatprep.mubr.bf16.mxu0 0
        %5250 = vmatmul.mubr.bf16.gmra.mxu0 %v4051
        %v5251 = vpop.f32.mrf.mxu0
        %v5252 = vadd.f32 %v4220, %v5251
        %v5253 = vpop.f32.mrf.mxu0
        %v5254 = vadd.f32 %v4224, %v5253
        %v5255 = vpop.f32.mrf.mxu0
        %v5256 = vadd.f32 %v4220, %v5255
        %v5257 = vpop.f32.mrf.mxu0
        %v5258 = vadd.f32 %v4224, %v5257
        %5259 = vmatprep.mubr.bf16.mxu0 0
        %5260 = vmatmul.mubr.bf16.gmra.mxu0 %v4052
        %v5261 = vpop.f32.mrf.mxu0
        %v5262 = vadd.f32 %v4220, %v5261
        %v5263 = vpop.f32.mrf.mxu0
        %v5264 = vadd.f32 %v4224, %v5263
        %v5265 = vpop.f32.mrf.mxu0
        %v5266 = vadd.f32 %v4220, %v5265
        %v5267 = vpop.f32.mrf.mxu0
        %v5268 = vadd.f32 %v4224, %v5267
        %5269 = vdwg.mxu0
        %5270 = vmatprep.subr.bf16.mxu0 %v4772
        %5271 = vmatpush1.bf16.msra.mxu0 %v4771
        %5272 = vmatprep.subr.bf16.mxu0 %v4756
        %5273 = vmatpush1.bf16.msra.mxu0 %v4755
        %5274 = vmatprep.subr.bf16.mxu0 %v4740
        %5275 = vmatpush1.bf16.msra.mxu0 %v4739
        %5276 = vmatprep.subr.bf16.mxu0 %v4724
        %5277 = vmatpush1.bf16.msra.mxu0 %v4723
        %5278 = vmatprep.subr.bf16.mxu0 %v4708
        %5279 = vmatpush1.bf16.msra.mxu0 %v4707
        %5280 = vmatprep.subr.bf16.mxu0 %v4692
        %5281 = vmatpush1.bf16.msra.mxu0 %v4691
        %5282 = vmatprep.subr.bf16.mxu0 %v4676
        %5283 = vmatpush1.bf16.msra.mxu0 %v4675
        %5284 = vmatprep.subr.bf16.mxu0 %v4660
        %5285 = vmatpush1.bf16.msra.mxu0 %v4659
        %5286 = vmatprep.subr.bf16.mxu0 0
        %5287 = vmatpush2.bf16.msra.mxu0 0
        %5288 = vmatprep.subr.bf16.mxu0 0
        %5289 = vmatpush2.bf16.msra.mxu0 0
        %5290 = vmatprep.subr.bf16.mxu0 0
        %5291 = vmatpush2.bf16.msra.mxu0 0
        %5292 = vmatprep.subr.bf16.mxu0 0
        %5293 = vmatpush2.bf16.msra.mxu0 0
        %5294 = vmatprep.subr.bf16.mxu0 0
        %5295 = vmatpush2.bf16.msra.mxu0 0
        %5296 = vmatprep.subr.bf16.mxu0 0
        %5297 = vmatpush2.bf16.msra.mxu0 0
        %5298 = vmatprep.subr.bf16.mxu0 0
        %5299 = vmatpush2.bf16.msra.mxu0 0
        %5300 = vmatprep.subr.bf16.mxu0 0
        %5301 = vmatpush2.bf16.msra.mxu0 0
        %5302 = vmatprep.mubr.bf16.mxu0 0
        %5303 = vmatmul.mubr.bf16.gmra.mxu0 %v4049
        %v5304 = vpop.f32.mrf.mxu0
        %v5305 = vadd.f32 %v4228, %v5304
        %v5306 = vpop.f32.mrf.mxu0
        %v5307 = vadd.f32 %v4232, %v5306
        %v5308 = vpop.f32.mrf.mxu0
        %v5309 = vadd.f32 %v4228, %v5308
        %v5310 = vpop.f32.mrf.mxu0
        %v5311 = vadd.f32 %v4232, %v5310
        %5312 = vmatprep.mubr.bf16.mxu0 0
        %5313 = vmatmul.mubr.bf16.gmra.mxu0 %v4050
        %v5314 = vpop.f32.mrf.mxu0
        %v5315 = vadd.f32 %v4228, %v5314
        %v5316 = vpop.f32.mrf.mxu0
        %v5317 = vadd.f32 %v4232, %v5316
        %v5318 = vpop.f32.mrf.mxu0
        %v5319 = vadd.f32 %v4228, %v5318
        %v5320 = vpop.f32.mrf.mxu0
        %v5321 = vadd.f32 %v4232, %v5320
        %5322 = vmatprep.mubr.bf16.mxu0 0
        %5323 = vmatmul.mubr.bf16.gmra.mxu0 %v4051
        %v5324 = vpop.f32.mrf.mxu0
        %v5325 = vadd.f32 %v4228, %v5324
        %v5326 = vpop.f32.mrf.mxu0
        %v5327 = vadd.f32 %v4232, %v5326
        %v5328 = vpop.f32.mrf.mxu0
        %v5329 = vadd.f32 %v4228, %v5328
        %v5330 = vpop.f32.mrf.mxu0
        %v5331 = vadd.f32 %v4232, %v5330
        %5332 = vmatprep.mubr.bf16.mxu0 0
        %5333 = vmatmul.mubr.bf16.gmra.mxu0 %v4052
        %v5334 = vpop.f32.mrf.mxu0
        %v5335 = vadd.f32 %v4228, %v5334
        %v5336 = vpop.f32.mrf.mxu0
        %v5337 = vadd.f32 %v4232, %v5336
        %v5338 = vpop.f32.mrf.mxu0
        %v5339 = vadd.f32 %v4228, %v5338
        %v5340 = vpop.f32.mrf.mxu0
        %v5341 = vadd.f32 %v4232, %v5340
        %5342 = vdwg.mxu0
        %5343 = vmatprep.subr.bf16.mxu0 %v4774
        %5344 = vmatpush1.bf16.msra.mxu0 %v4773
        %5345 = vmatprep.subr.bf16.mxu0 %v4758
        %5346 = vmatpush1.bf16.msra.mxu0 %v4757
        %5347 = vmatprep.subr.bf16.mxu0 %v4742
        %5348 = vmatpush1.bf16.msra.mxu0 %v4741
        %5349 = vmatprep.subr.bf16.mxu0 %v4726
        %5350 = vmatpush1.bf16.msra.mxu0 %v4725
        %5351 = vmatprep.subr.bf16.mxu0 %v4710
        %5352 = vmatpush1.bf16.msra.mxu0 %v4709
        %5353 = vmatprep.subr.bf16.mxu0 %v4694
        %5354 = vmatpush1.bf16.msra.mxu0 %v4693
        %5355 = vmatprep.subr.bf16.mxu0 %v4678
        %5356 = vmatpush1.bf16.msra.mxu0 %v4677
        %5357 = vmatprep.subr.bf16.mxu0 %v4662
        %5358 = vmatpush1.bf16.msra.mxu0 %v4661
        %5359 = vmatprep.subr.bf16.mxu0 0
        %5360 = vmatpush2.bf16.msra.mxu0 0
        %5361 = vmatprep.subr.bf16.mxu0 0
        %5362 = vmatpush2.bf16.msra.mxu0 0
        %5363 = vmatprep.subr.bf16.mxu0 0
        %5364 = vmatpush2.bf16.msra.mxu0 0
        %5365 = vmatprep.subr.bf16.mxu0 0
        %5366 = vmatpush2.bf16.msra.mxu0 0
        %5367 = vmatprep.subr.bf16.mxu0 0
        %5368 = vmatpush2.bf16.msra.mxu0 0
        %5369 = vmatprep.subr.bf16.mxu0 0
        %5370 = vmatpush2.bf16.msra.mxu0 0
        %5371 = vmatprep.subr.bf16.mxu0 0
        %5372 = vmatpush2.bf16.msra.mxu0 0
        %5373 = vmatprep.subr.bf16.mxu0 0
        %5374 = vmatpush2.bf16.msra.mxu0 0
        %5375 = vmatprep.mubr.bf16.mxu0 0
        %5376 = vmatmul.mubr.bf16.gmra.mxu0 %v4049
        %v5377 = vpop.f32.mrf.mxu0
        %v5378 = vadd.f32 %v4236, %v5377
        %v5379 = vpop.f32.mrf.mxu0
        %v5380 = vadd.f32 %v4240, %v5379
        %v5381 = vpop.f32.mrf.mxu0
        %v5382 = vadd.f32 %v4236, %v5381
        %v5383 = vpop.f32.mrf.mxu0
        %v5384 = vadd.f32 %v4240, %v5383
        %5385 = vmatprep.mubr.bf16.mxu0 0
        %5386 = vmatmul.mubr.bf16.gmra.mxu0 %v4050
        %v5387 = vpop.f32.mrf.mxu0
        %v5388 = vadd.f32 %v4236, %v5387
        %v5389 = vpop.f32.mrf.mxu0
        %v5390 = vadd.f32 %v4240, %v5389
        %v5391 = vpop.f32.mrf.mxu0
        %v5392 = vadd.f32 %v4236, %v5391
        %v5393 = vpop.f32.mrf.mxu0
        %v5394 = vadd.f32 %v4240, %v5393
        %5395 = vmatprep.mubr.bf16.mxu0 0
        %5396 = vmatmul.mubr.bf16.gmra.mxu0 %v4051
        %v5397 = vpop.f32.mrf.mxu0
        %v5398 = vadd.f32 %v4236, %v5397
        %v5399 = vpop.f32.mrf.mxu0
        %v5400 = vadd.f32 %v4240, %v5399
        %v5401 = vpop.f32.mrf.mxu0
        %v5402 = vadd.f32 %v4236, %v5401
        %v5403 = vpop.f32.mrf.mxu0
        %v5404 = vadd.f32 %v4240, %v5403
        %5405 = vmatprep.mubr.bf16.mxu0 0
        %5406 = vmatmul.mubr.bf16.gmra.mxu0 %v4052
        %v5407 = vpop.f32.mrf.mxu0
        %v5408 = vadd.f32 %v4236, %v5407
        %v5409 = vpop.f32.mrf.mxu0
        %v5410 = vadd.f32 %v4240, %v5409
        %v5411 = vpop.f32.mrf.mxu0
        %v5412 = vadd.f32 %v4236, %v5411
        %v5413 = vpop.f32.mrf.mxu0
        %v5414 = vadd.f32 %v4240, %v5413
        %5415 = vdwg.mxu0
        %5416 = vmatprep.subr.bf16.mxu0 %v4776
        %5417 = vmatpush1.bf16.msra.mxu0 %v4775
        %5418 = vmatprep.subr.bf16.mxu0 %v4760
        %5419 = vmatpush1.bf16.msra.mxu0 %v4759
        %5420 = vmatprep.subr.bf16.mxu0 %v4744
        %5421 = vmatpush1.bf16.msra.mxu0 %v4743
        %5422 = vmatprep.subr.bf16.mxu0 %v4728
        %5423 = vmatpush1.bf16.msra.mxu0 %v4727
        %5424 = vmatprep.subr.bf16.mxu0 %v4712
        %5425 = vmatpush1.bf16.msra.mxu0 %v4711
        %5426 = vmatprep.subr.bf16.mxu0 %v4696
        %5427 = vmatpush1.bf16.msra.mxu0 %v4695
        %5428 = vmatprep.subr.bf16.mxu0 %v4680
        %5429 = vmatpush1.bf16.msra.mxu0 %v4679
        %5430 = vmatprep.subr.bf16.mxu0 %v4664
        %5431 = vmatpush1.bf16.msra.mxu0 %v4663
        %5432 = vmatprep.subr.bf16.mxu0 0
        %5433 = vmatpush2.bf16.msra.mxu0 0
        %5434 = vmatprep.subr.bf16.mxu0 0
        %5435 = vmatpush2.bf16.msra.mxu0 0
        %5436 = vmatprep.subr.bf16.mxu0 0
        %5437 = vmatpush2.bf16.msra.mxu0 0
        %5438 = vmatprep.subr.bf16.mxu0 0
        %5439 = vmatpush2.bf16.msra.mxu0 0
        %5440 = vmatprep.subr.bf16.mxu0 0
        %5441 = vmatpush2.bf16.msra.mxu0 0
        %5442 = vmatprep.subr.bf16.mxu0 0
        %5443 = vmatpush2.bf16.msra.mxu0 0
        %5444 = vmatprep.subr.bf16.mxu0 0
        %5445 = vmatpush2.bf16.msra.mxu0 0
        %5446 = vmatprep.subr.bf16.mxu0 0
        %5447 = vmatpush2.bf16.msra.mxu0 0
        %5448 = vmatprep.mubr.bf16.mxu0 0
        %5449 = vmatmul.mubr.bf16.gmra.mxu0 %v4049
        %v5450 = vpop.f32.mrf.mxu0
        %v5451 = vadd.f32 %v4244, %v5450
        %v5452 = vpop.f32.mrf.mxu0
        %v5453 = vadd.f32 %v4248, %v5452
        %v5454 = vpop.f32.mrf.mxu0
        %v5455 = vadd.f32 %v4244, %v5454
        %v5456 = vpop.f32.mrf.mxu0
        %v5457 = vadd.f32 %v4248, %v5456
        %5458 = vmatprep.mubr.bf16.mxu0 0
        %5459 = vmatmul.mubr.bf16.gmra.mxu0 %v4050
        %v5460 = vpop.f32.mrf.mxu0
        %v5461 = vadd.f32 %v4244, %v5460
        %v5462 = vpop.f32.mrf.mxu0
        %v5463 = vadd.f32 %v4248, %v5462
        %v5464 = vpop.f32.mrf.mxu0
        %v5465 = vadd.f32 %v4244, %v5464
        %v5466 = vpop.f32.mrf.mxu0
        %v5467 = vadd.f32 %v4248, %v5466
        %5468 = vmatprep.mubr.bf16.mxu0 0
        %5469 = vmatmul.mubr.bf16.gmra.mxu0 %v4051
        %v5470 = vpop.f32.mrf.mxu0
        %v5471 = vadd.f32 %v4244, %v5470
        %v5472 = vpop.f32.mrf.mxu0
        %v5473 = vadd.f32 %v4248, %v5472
        %v5474 = vpop.f32.mrf.mxu0
        %v5475 = vadd.f32 %v4244, %v5474
        %v5476 = vpop.f32.mrf.mxu0
        %v5477 = vadd.f32 %v4248, %v5476
        %5478 = vmatprep.mubr.bf16.mxu0 0
        %5479 = vmatmul.mubr.bf16.gmra.mxu0 %v4052
        %v5480 = vpop.f32.mrf.mxu0
        %v5481 = vadd.f32 %v4244, %v5480
        %v5482 = vpop.f32.mrf.mxu0
        %v5483 = vadd.f32 %v4248, %v5482
        %v5484 = vpop.f32.mrf.mxu0
        %v5485 = vadd.f32 %v4244, %v5484
        %v5486 = vpop.f32.mrf.mxu0
        %v5487 = vadd.f32 %v4248, %v5486
        %5488 = vdwg.mxu0
        %v5489 = vtanh.pop %v4940
        %v5490 = vtanh.pop %v4942
        %v5491 = vtanh.pop %v5013
        %v5492 = vtanh.pop %v5015
        %v5493 = vtanh.pop %v5086
        %v5494 = vtanh.pop %v5088
        %v5495 = vtanh.pop %v5159
        %v5496 = vtanh.pop %v5161
        %v5497 = vtanh.pop %v5232
        %v5498 = vtanh.pop %v5234
        %v5499 = vtanh.pop %v5305
        %v5500 = vtanh.pop %v5307
        %v5501 = vtanh.pop %v5378
        %v5502 = vtanh.pop %v5380
        %v5503 = vtanh.pop %v5451
        %v5504 = vtanh.pop %v5453
        %v5505 = vtanh.pop %v4944
        %v5506 = vtanh.pop %v4946
        %v5507 = vtanh.pop %v5017
        %v5508 = vtanh.pop %v5019
        %v5509 = vtanh.pop %v5090
        %v5510 = vtanh.pop %v5092
        %v5511 = vtanh.pop %v5163
        %v5512 = vtanh.pop %v5165
        %v5513 = vtanh.pop %v5236
        %v5514 = vtanh.pop %v5238
        %v5515 = vtanh.pop %v5309
        %v5516 = vtanh.pop %v5311
        %v5517 = vtanh.pop %v5382
        %v5518 = vtanh.pop %v5384
        %v5519 = vtanh.pop %v5455
        %v5520 = vtanh.pop %v5457
        %v5521 = vtanh.pop %v4950
        %v5522 = vtanh.pop %v4952
        %v5523 = vtanh.pop %v5023
        %v5524 = vtanh.pop %v5025
        %v5525 = vtanh.pop %v5096
        %v5526 = vtanh.pop %v5098
        %v5527 = vtanh.pop %v5169
        %v5528 = vtanh.pop %v5171
        %v5529 = vtanh.pop %v5242
        %v5530 = vtanh.pop %v5244
        %v5531 = vtanh.pop %v5315
        %v5532 = vtanh.pop %v5317
        %v5533 = vtanh.pop %v5388
        %v5534 = vtanh.pop %v5390
        %v5535 = vtanh.pop %v5461
        %v5536 = vtanh.pop %v5463
        %v5537 = vtanh.pop %v4954
        %v5538 = vtanh.pop %v4956
        %v5539 = vtanh.pop %v5027
        %v5540 = vtanh.pop %v5029
        %v5541 = vtanh.pop %v5100
        %v5542 = vtanh.pop %v5102
        %v5543 = vtanh.pop %v5173
        %v5544 = vtanh.pop %v5175
        %v5545 = vtanh.pop %v5246
        %v5546 = vtanh.pop %v5248
        %v5547 = vtanh.pop %v5319
        %v5548 = vtanh.pop %v5321
        %v5549 = vtanh.pop %v5392
        %v5550 = vtanh.pop %v5394
        %v5551 = vtanh.pop %v5465
        %v5552 = vtanh.pop %v5467
        %v5553 = vtanh.pop %v4960
        %v5554 = vtanh.pop %v4962
        %v5555 = vtanh.pop %v5033
        %v5556 = vtanh.pop %v5035
        %v5557 = vtanh.pop %v5106
        %v5558 = vtanh.pop %v5108
        %v5559 = vtanh.pop %v5179
        %v5560 = vtanh.pop %v5181
        %v5561 = vtanh.pop %v5252
        %v5562 = vtanh.pop %v5254
        %v5563 = vtanh.pop %v5325
        %v5564 = vtanh.pop %v5327
        %v5565 = vtanh.pop %v5398
        %v5566 = vtanh.pop %v5400
        %v5567 = vtanh.pop %v5471
        %v5568 = vtanh.pop %v5473
        %v5569 = vtanh.pop %v4964
        %v5570 = vtanh.pop %v4966
        %v5571 = vtanh.pop %v5037
        %v5572 = vtanh.pop %v5039
        %v5573 = vtanh.pop %v5110
        %v5574 = vtanh.pop %v5112
        %v5575 = vtanh.pop %v5183
        %v5576 = vtanh.pop %v5185
        %v5577 = vtanh.pop %v5256
        %v5578 = vtanh.pop %v5258
        %v5579 = vtanh.pop %v5329
        %v5580 = vtanh.pop %v5331
        %v5581 = vtanh.pop %v5402
        %v5582 = vtanh.pop %v5404
        %v5583 = vtanh.pop %v5475
        %v5584 = vtanh.pop %v5477
        %v5585 = vtanh.pop %v4970
        %v5586 = vtanh.pop %v4972
        %v5587 = vtanh.pop %v5043
        %v5588 = vtanh.pop %v5045
        %v5589 = vtanh.pop %v5116
        %v5590 = vtanh.pop %v5118
        %v5591 = vtanh.pop %v5189
        %v5592 = vtanh.pop %v5191
        %v5593 = vtanh.pop %v5262
        %v5594 = vtanh.pop %v5264
        %v5595 = vtanh.pop %v5335
        %v5596 = vtanh.pop %v5337
        %v5597 = vtanh.pop %v5408
        %v5598 = vtanh.pop %v5410
        %v5599 = vtanh.pop %v5481
        %v5600 = vtanh.pop %v5483
        %v5601 = vtanh.pop %v4974
        %v5602 = vtanh.pop %v4976
        %v5603 = vtanh.pop %v5047
        %v5604 = vtanh.pop %v5049
        %v5605 = vtanh.pop %v5120
        %v5606 = vtanh.pop %v5122
        %v5607 = vtanh.pop %v5193
        %v5608 = vtanh.pop %v5195
        %v5609 = vtanh.pop %v5266
        %v5610 = vtanh.pop %v5268
        %v5611 = vtanh.pop %v5339
        %v5612 = vtanh.pop %v5341
        %v5613 = vtanh.pop %v5412
        %v5614 = vtanh.pop %v5414
        %v5615 = vtanh.pop %v5485
        %v5616 = vtanh.pop %v5487
        %5617 = vst [vmem:[%s378] sm:$0xff] %v5489
        %5618 = vst [vmem:[%s378 + $0x8] sm:$0xff] %v5490
        %5619 = vst [vmem:[%s378 + $0x10] sm:$0xff] %v5491
        %5620 = vst [vmem:[%s378 + $0x18] sm:$0xff] %v5492
        %5621 = vst [vmem:[%s378 + $0x20] sm:$0xff] %v5493
        %5622 = vst [vmem:[%s378 + $0x28] sm:$0xff] %v5494
        %5623 = vst [vmem:[%s378 + $0x30] sm:$0xff] %v5495
        %5624 = vst [vmem:[%s378 + $0x38] sm:$0xff] %v5496
        %5625 = vst [vmem:[%s378 + $0x40] sm:$0xff] %v5497
        %5626 = vst [vmem:[%s378 + $0x48] sm:$0xff] %v5498
        %5627 = vst [vmem:[%s378 + $0x50] sm:$0xff] %v5499
        %5628 = vst [vmem:[%s378 + $0x58] sm:$0xff] %v5500
        %5629 = vst [vmem:[%s378 + $0x60] sm:$0xff] %v5501
        %5630 = vst [vmem:[%s378 + $0x68] sm:$0xff] %v5502
        %5631 = vst [vmem:[%s378 + $0x70] sm:$0xff] %v5503
        %5632 = vst [vmem:[%s378 + $0x78] sm:$0xff] %v5504
        %5633 = vst [vmem:[%s378 + $0x80] sm:$0xff] %v5505
        %5634 = vst [vmem:[%s378 + $0x88] sm:$0xff] %v5506
        %5635 = vst [vmem:[%s378 + $0x90] sm:$0xff] %v5507
        %5636 = vst [vmem:[%s378 + $0x98] sm:$0xff] %v5508
        %5637 = vst [vmem:[%s378 + $0xa0] sm:$0xff] %v5509
        %5638 = vst [vmem:[%s378 + $0xa8] sm:$0xff] %v5510
        %5639 = vst [vmem:[%s378 + $0xb0] sm:$0xff] %v5511
        %5640 = vst [vmem:[%s378 + $0xb8] sm:$0xff] %v5512
        %5641 = vst [vmem:[%s378 + $0xc0] sm:$0xff] %v5513
        %5642 = vst [vmem:[%s378 + $0xc8] sm:$0xff] %v5514
        %5643 = vst [vmem:[%s378 + $0xd0] sm:$0xff] %v5515
        %5644 = vst [vmem:[%s378 + $0xd8] sm:$0xff] %v5516
        %5645 = vst [vmem:[%s378 + $0xe0] sm:$0xff] %v5517
        %5646 = vst [vmem:[%s378 + $0xe8] sm:$0xff] %v5518
        %5647 = vst [vmem:[%s378 + $0xf0] sm:$0xff] %v5519
        %5648 = vst [vmem:[%s378 + $0xf8] sm:$0xff] %v5520
        %5649 = vst [vmem:[%s378 + $0x100] sm:$0xff] %v5521
        %5650 = vst [vmem:[%s378 + $0x108] sm:$0xff] %v5522
        %5651 = vst [vmem:[%s378 + $0x110] sm:$0xff] %v5523
        %5652 = vst [vmem:[%s378 + $0x118] sm:$0xff] %v5524
        %5653 = vst [vmem:[%s378 + $0x120] sm:$0xff] %v5525
        %5654 = vst [vmem:[%s378 + $0x128] sm:$0xff] %v5526
        %5655 = vst [vmem:[%s378 + $0x130] sm:$0xff] %v5527
        %5656 = vst [vmem:[%s378 + $0x138] sm:$0xff] %v5528
        %5657 = vst [vmem:[%s378 + $0x140] sm:$0xff] %v5529
        %5658 = vst [vmem:[%s378 + $0x148] sm:$0xff] %v5530
        %5659 = vst [vmem:[%s378 + $0x150] sm:$0xff] %v5531
        %5660 = vst [vmem:[%s378 + $0x158] sm:$0xff] %v5532
        %5661 = vst [vmem:[%s378 + $0x160] sm:$0xff] %v5533
        %5662 = vst [vmem:[%s378 + $0x168] sm:$0xff] %v5534
        %5663 = vst [vmem:[%s378 + $0x170] sm:$0xff] %v5535
        %5664 = vst [vmem:[%s378 + $0x178] sm:$0xff] %v5536
        %5665 = vst [vmem:[%s378 + $0x180] sm:$0xff] %v5537
        %5666 = vst [vmem:[%s378 + $0x188] sm:$0xff] %v5538
        %5667 = vst [vmem:[%s378 + $0x190] sm:$0xff] %v5539
        %5668 = vst [vmem:[%s378 + $0x198] sm:$0xff] %v5540
        %5669 = vst [vmem:[%s378 + $0x1a0] sm:$0xff] %v5541
        %5670 = vst [vmem:[%s378 + $0x1a8] sm:$0xff] %v5542
        %5671 = vst [vmem:[%s378 + $0x1b0] sm:$0xff] %v5543
        %5672 = vst [vmem:[%s378 + $0x1b8] sm:$0xff] %v5544
        %5673 = vst [vmem:[%s378 + $0x1c0] sm:$0xff] %v5545
        %5674 = vst [vmem:[%s378 + $0x1c8] sm:$0xff] %v5546
        %5675 = vst [vmem:[%s378 + $0x1d0] sm:$0xff] %v5547
        %5676 = vst [vmem:[%s378 + $0x1d8] sm:$0xff] %v5548
        %5677 = vst [vmem:[%s378 + $0x1e0] sm:$0xff] %v5549
        %5678 = vst [vmem:[%s378 + $0x1e8] sm:$0xff] %v5550
        %5679 = vst [vmem:[%s378 + $0x1f0] sm:$0xff] %v5551
        %5680 = vst [vmem:[%s378 + $0x1f8] sm:$0xff] %v5552
        %5681 = vst [vmem:[%s378 + $0x200] sm:$0xff] %v5553
        %5682 = vst [vmem:[%s378 + $0x208] sm:$0xff] %v5554
        %5683 = vst [vmem:[%s378 + $0x210] sm:$0xff] %v5555
        %5684 = vst [vmem:[%s378 + $0x218] sm:$0xff] %v5556
        %5685 = vst [vmem:[%s378 + $0x220] sm:$0xff] %v5557
        %5686 = vst [vmem:[%s378 + $0x228] sm:$0xff] %v5558
        %5687 = vst [vmem:[%s378 + $0x230] sm:$0xff] %v5559
        %5688 = vst [vmem:[%s378 + $0x238] sm:$0xff] %v5560
        %5689 = vst [vmem:[%s378 + $0x240] sm:$0xff] %v5561
        %5690 = vst [vmem:[%s378 + $0x248] sm:$0xff] %v5562
        %5691 = vst [vmem:[%s378 + $0x250] sm:$0xff] %v5563
        %5692 = vst [vmem:[%s378 + $0x258] sm:$0xff] %v5564
        %5693 = vst [vmem:[%s378 + $0x260] sm:$0xff] %v5565
        %5694 = vst [vmem:[%s378 + $0x268] sm:$0xff] %v5566
        %5695 = vst [vmem:[%s378 + $0x270] sm:$0xff] %v5567
        %5696 = vst [vmem:[%s378 + $0x278] sm:$0xff] %v5568
        %5697 = vst [vmem:[%s378 + $0x280] sm:$0xff] %v5569
        %5698 = vst [vmem:[%s378 + $0x288] sm:$0xff] %v5570
        %5699 = vst [vmem:[%s378 + $0x290] sm:$0xff] %v5571
        %5700 = vst [vmem:[%s378 + $0x298] sm:$0xff] %v5572
        %5701 = vst [vmem:[%s378 + $0x2a0] sm:$0xff] %v5573
        %5702 = vst [vmem:[%s378 + $0x2a8] sm:$0xff] %v5574
        %5703 = vst [vmem:[%s378 + $0x2b0] sm:$0xff] %v5575
        %5704 = vst [vmem:[%s378 + $0x2b8] sm:$0xff] %v5576
        %5705 = vst [vmem:[%s378 + $0x2c0] sm:$0xff] %v5577
        %5706 = vst [vmem:[%s378 + $0x2c8] sm:$0xff] %v5578
        %5707 = vst [vmem:[%s378 + $0x2d0] sm:$0xff] %v5579
        %5708 = vst [vmem:[%s378 + $0x2d8] sm:$0xff] %v5580
        %5709 = vst [vmem:[%s378 + $0x2e0] sm:$0xff] %v5581
        %5710 = vst [vmem:[%s378 + $0x2e8] sm:$0xff] %v5582
        %5711 = vst [vmem:[%s378 + $0x2f0] sm:$0xff] %v5583
        %5712 = vst [vmem:[%s378 + $0x2f8] sm:$0xff] %v5584
        %5713 = vst [vmem:[%s378 + $0x300] sm:$0xff] %v5585
        %5714 = vst [vmem:[%s378 + $0x308] sm:$0xff] %v5586
        %5715 = vst [vmem:[%s378 + $0x310] sm:$0xff] %v5587
        %5716 = vst [vmem:[%s378 + $0x318] sm:$0xff] %v5588
        %5717 = vst [vmem:[%s378 + $0x320] sm:$0xff] %v5589
        %5718 = vst [vmem:[%s378 + $0x328] sm:$0xff] %v5590
        %5719 = vst [vmem:[%s378 + $0x330] sm:$0xff] %v5591
        %5720 = vst [vmem:[%s378 + $0x338] sm:$0xff] %v5592
        %5721 = vst [vmem:[%s378 + $0x340] sm:$0xff] %v5593
        %5722 = vst [vmem:[%s378 + $0x348] sm:$0xff] %v5594
        %5723 = vst [vmem:[%s378 + $0x350] sm:$0xff] %v5595
        %5724 = vst [vmem:[%s378 + $0x358] sm:$0xff] %v5596
        %5725 = vst [vmem:[%s378 + $0x360] sm:$0xff] %v5597
        %5726 = vst [vmem:[%s378 + $0x368] sm:$0xff] %v5598
        %5727 = vst [vmem:[%s378 + $0x370] sm:$0xff] %v5599
        %5728 = vst [vmem:[%s378 + $0x378] sm:$0xff] %v5600
        %5729 = vst [vmem:[%s378 + $0x380] sm:$0xff] %v5601
        %5730 = vst [vmem:[%s378 + $0x388] sm:$0xff] %v5602
        %5731 = vst [vmem:[%s378 + $0x390] sm:$0xff] %v5603
        %5732 = vst [vmem:[%s378 + $0x398] sm:$0xff] %v5604
        %5733 = vst [vmem:[%s378 + $0x3a0] sm:$0xff] %v5605
        %5734 = vst [vmem:[%s378 + $0x3a8] sm:$0xff] %v5606
        %5735 = vst [vmem:[%s378 + $0x3b0] sm:$0xff] %v5607
        %5736 = vst [vmem:[%s378 + $0x3b8] sm:$0xff] %v5608
        %5737 = vst [vmem:[%s378 + $0x3c0] sm:$0xff] %v5609
        %5738 = vst [vmem:[%s378 + $0x3c8] sm:$0xff] %v5610
        %5739 = vst [vmem:[%s378 + $0x3d0] sm:$0xff] %v5611
        %5740 = vst [vmem:[%s378 + $0x3d8] sm:$0xff] %v5612
        %5741 = vst [vmem:[%s378 + $0x3e0] sm:$0xff] %v5613
        %5742 = vst [vmem:[%s378 + $0x3e8] sm:$0xff] %v5614
        %5743 = vst [vmem:[%s378 + $0x3f0] sm:$0xff] %v5615
        %5744 = vst [vmem:[%s378 + $0x3f8] sm:$0xff] %v5616
        %s5745 = sand.u32 %s187, 1
        %s5746 = scalar_lea.sflag [#allocation4], %s5745
        %s5747 = sand.u32 %s187, 1
        %s5748 = smul.addr %s5747, 1024
        %s5749 = scalar_lea.vmem [#allocation14], %s5748
        // Predicated region
        $region77: #{paper_generator_forward.1} parent=47 // pred_check
          %p5750 = pneg %p197
        $region78: #{paper_generator_forward.1} parent=47 // pred_check_branch
          %5752 = sbr.rel (%p5750) target = $region80
        $region79: #{paper_generator_forward.1} parent=47 // pred_region
          %s5753 = smul.u32 8, %s27
          %s5755 = ssub.s32 16384, 16384
          %5756 = vsyncadd %s5746, %s5755
          %s5757 = smul.addr %s5753, 16
          %s5758 = smul.addr %s5757, 128
          %s5759 = scalar_lea.hbm %s7, %s5758
          %s5760 = sshll.u32 %s5749, 4
          %s5761 = int_to_ptr.vmem [resolvable:$true] %s5760
          %5766 = dma.vmem_to_hbm [thread:$0]  %s5761, 16384, %s5759, %s5746, 2048, 2048, 128
        $region80: #{paper_generator_forward.1} parent=47 // pred_fallthru
          _
      $region48: #{paper_generator_forward.1} parent=5 // pred_fallthru
        _
      %p5767 = scmp.le.s32.totalorder 2, %s22
      // Predicated region
      $region81: #{paper_generator_forward.1} parent=5 // pred_check
        %p5768 = pneg %p5767
      $region82: #{paper_generator_forward.1} parent=5 // pred_check_branch
        %5770 = sbr.rel (%p5768) target = $region84
      $region83: #{paper_generator_forward.1} parent=5 // pred_region
        %s5771 = ssub.s32 %s22, 2
        // Predicated region
        $region85: #{paper_generator_forward.1} parent=83 // pred_check
          %p5772 = pneg %p203
        $region86: #{paper_generator_forward.1} parent=83 // pred_check_branch
          %5774 = sbr.rel (%p5772) target = $region88
        $region87: #{paper_generator_forward.1} parent=83 // pred_region
          %s5775 = sand.u32 %s188, 1
          %s5776 = scalar_lea.sflag [#allocation4], %s5775
          %s5777 = sand.u32 %s188, 1
          %s5778 = smul.addr %s5777, 1024
          %s5779 = scalar_lea.vmem [#allocation14], %s5778
          %5780 = dma.done %s5776, 16384
        $region88: #{paper_generator_forward.1} parent=83 // pred_fallthru
          _
      $region84: #{paper_generator_forward.1} parent=5 // pred_fallthru
        _
    $region6: #{paper_generator_forward.1} parent=1 // loop_footer
      %s26 = sadd.s32 1, %s22
    $region7: #{paper_generator_forward.1} parent=1 // loop_footer_branch
      %21 = sbr.rel target = $region3
    $region8: #{paper_generator_forward.1} parent=1 // loop_exit
      _
    %5781 = vsyncpa [#allocation3], 1
    %s5782 = scalar_lea.sflag [#allocation3], 1
    %5783 = vsyncpa %s5782, 1
    %5784 = vsyncpa [#allocation6], 1
    %5785 = vsyncpa [#allocation9], 1
    %5786 = vsyncpa [#allocation12], 1
    %5787 = vsyncpa [#allocation4], 1
    %s5788 = scalar_lea.sflag [#allocation4], 1
    %5789 = vsyncpa %s5788, 1

// kernel: paper_generator_forward.1
$region0: #{paper_generator_forward.1}
  #allocation0 [shape = 'u32[]', space=smem, size = 0x4, offset = 0x4, fixed_abs, tag = 'smem constant byte address 0x4 - core index']
  #allocation1 [shape = 'u32[144,128]{1,0:T(1,128)}', space=vmem, size = 0x12000, scoped, tag = 'internal scratch']
  %s0 = inlined_call_operand.hbm [shape: f32[128,4096], index: 0, kind: input, shape index: {}]
  %s1 = inlined_call_operand.hbm [shape: bf16[4096,128], index: 1, kind: input, shape index: {}]
  %s2 = inlined_call_operand.hbm [shape: f32[1,128], index: 2, kind: input, shape index: {}]
  %s3 = inlined_call_operand.hbm [shape: bf16[128,128], index: 3, kind: input, shape index: {}]
  %s4 = inlined_call_operand.hbm [shape: f32[1,128], index: 4, kind: input, shape index: {}]
  %s5 = inlined_call_operand.hbm [shape: bf16[128,2048], index: 5, kind: input, shape index: {}]
  %s6 = inlined_call_operand.hbm [shape: f32[1,2048], index: 6, kind: input, shape index: {}]
  %s7 = inlined_call_operand.hbm [shape: f32[128,2048], index: 7, kind: output, shape index: {}]
  %s8 = sld [smem:[#allocation0]]
  $region89: #{paper_generator_forward.1} parent=0
    _
  %s10 = ssub.s32 1, %s8
  %s11 = scalar_select 0, %s10, %s8
  $region1: #{paper_generator_forward.1} parent=0
    #allocation2 [shape = 'u8[2097152]{0}', space=vmem, size = 0x200000, scoped, tag = 'input window, operand 0']
    #allocation3 [shape = 's32[2]{0}', space=sflag, size = 0x8, scoped, tag = 'scoped memory for paper_generator_forward.1']
    #allocation4 [shape = 's32[2]{0}', space=sflag, size = 0x8, scoped, tag = 'scoped memory for paper_generator_forward.1']
    #allocation5 [shape = 'u8[1048576]{0}', space=vmem, size = 0x100000, scoped, tag = 'input window, operand 1, single buffered']
    #allocation6 [shape = 's32[1]{0}', space=sflag, size = 0x4, scoped, tag = 'scoped memory for paper_generator_forward.1']
    #allocation7 [shape = 'u8[512]{0}', space=vmem, size = 0x400, scoped, tag = 'input window, operand 2, single buffered']
    #allocation8 [shape = 'u8[32768]{0}', space=vmem, size = 0x8000, scoped, tag = 'input window, operand 3, single buffered']
    #allocation9 [shape = 's32[1]{0}', space=sflag, size = 0x4, scoped, tag = 'scoped memory for paper_generator_forward.1']
    #allocation10 [shape = 'u8[512]{0}', space=vmem, size = 0x400, scoped, tag = 'input window, operand 4, single buffered']
    #allocation11 [shape = 'u8[524288]{0}', space=vmem, size = 0x80000, scoped, tag = 'input window, operand 5, single buffered']
    #allocation12 [shape = 's32[1]{0}', space=sflag, size = 0x4, scoped, tag = 'scoped memory for paper_generator_forward.1']
    #allocation13 [shape = 'u8[8192]{0}', space=vmem, size = 0x2000, scoped, tag = 'input window, operand 6, single buffered']
    #allocation14 [shape = 'u8[1048576]{0}', space=vmem, size = 0x100000, scoped, tag = 'output window, operand 0']
    %12 = vsyncpa [#allocation3], 0
    %s13 = scalar_lea.sflag [#allocation3], 1
    %14 = vsyncpa %s13, 0
    %15 = vsyncpa [#allocation6], 0
    %16 = vsyncpa [#allocation9], 0
    %17 = vsyncpa [#allocation12], 0
    %18 = vsyncpa [#allocation4], 0
    %s19 = scalar_lea.sflag [#allocation4], 1
    %20 = vsyncpa %s19, 0
    loop: start=0, step=1, limit=4
    $region2: #{paper_generator_forward.1} parent=1 // loop_pre_header
      _
    $region3: #{paper_generator_forward.1} parent=1 // loop_header
      %s22 = sphi 0, %s26
      %p23 = scmp.ge.s32.totalorder %s22, 4
      %s32 = sphi 0, %s34
      %s35 = sphi 0, %s32
      %s36 = sphi 0, %s35
      %s52 = sphi 0, %s36
      %s56 = sphi 0, %s56
      %s58 = sphi 0, %s56
      %s59 = sphi 0, %s58
      %s73 = sphi 0, %s59
      %s77 = sphi 0, %s77
      %s79 = sphi 0, %s77
      %s80 = sphi 0, %s79
      %s94 = sphi 0, %s80
      %s98 = sphi 0, %s98
      %s100 = sphi 0, %s98
      %s101 = sphi 0, %s100
      %s115 = sphi 0, %s101
      %s119 = sphi 0, %s119
      %s121 = sphi 0, %s119
      %s122 = sphi 0, %s121
      %s136 = sphi 0, %s122
      %s140 = sphi 0, %s140
      %s142 = sphi 0, %s140
      %s143 = sphi 0, %s142
      %s157 = sphi 0, %s143
      %s161 = sphi 0, %s161
      %s163 = sphi 0, %s161
      %s164 = sphi 0, %s163
      %s178 = sphi 0, %s164
      %s184 = sphi 0, %s186
      %s187 = sphi 0, %s184
      %s188 = sphi 0, %s187
      %s204 = sphi 0, %s188
    $region4: #{paper_generator_forward.1} parent=1 // loop_header_branch
      %25 = sbr.rel (%p23) target = $region8
    $region5: #{paper_generator_forward.1} parent=1 // loop_body
      %s27 = ssub.s32 %s22, 1
      %s28 = ssub.s32 %s22, 2
      %s29 = sadd.s32 %s22, 1
      %s30 = ssub.s32 %s22, %s29
      %p31 = scmp.eq.s32.totalorder %s30, 0
      %s33 = sadd.s32 %s32, 1
      %s34 = scalar_select %p31, %s32, %s33
      %p37 = pneg %p31
      %p38 = scmp.eq.s32.totalorder %s22, 1
      %p39 = por %p37, %p38
      %p40 = scmp.ne.s32.totalorder %s32, %s35
      %p41 = scmp.eq.s32.totalorder %s22, 0
      %p42 = por %p40, %p41
      %p43 = scmp.ne.s32.totalorder %s32, %s35
      %p44 = scmp.eq.s32.totalorder %s27, 1
      %p45 = por %p43, %p44
      %p46 = scmp.ne.s32.totalorder %s35, %s36
      %p47 = scmp.eq.s32.totalorder %s27, 0
      %p48 = por %p46, %p47
      %p49 = scmp.ne.s32.totalorder %s35, %s36
      %p50 = scmp.eq.s32.totalorder %s28, 1
      %p51 = por %p49, %p50
      %p53 = scmp.ne.s32.totalorder %s36, %s52
      %p54 = scmp.eq.s32.totalorder %s28, 0
      %p55 = por %p53, %p54
      %s57 = sadd.s32 %s56, 1
      %p60 = scmp.eq.s32.totalorder %s22, 1
      %p61 = scmp.ne.s32.totalorder %s56, %s58
      %p62 = scmp.eq.s32.totalorder %s22, 0
      %p63 = por %p61, %p62
      %p64 = scmp.ne.s32.totalorder %s56, %s58
      %p65 = scmp.eq.s32.totalorder %s27, 1
      %p66 = por %p64, %p65
      %p67 = scmp.ne.s32.totalorder %s58, %s59
      %p68 = scmp.eq.s32.totalorder %s27, 0
      %p69 = por %p67, %p68
      %p70 = scmp.ne.s32.totalorder %s58, %s59
      %p71 = scmp.eq.s32.totalorder %s28, 1
      %p72 = por %p70, %p71
      %p74 = scmp.ne.s32.totalorder %s59, %s73
      %p75 = scmp.eq.s32.totalorder %s28, 0
      %p76 = por %p74, %p75
      %s78 = sadd.s32 %s77, 1
      %p81 = scmp.eq.s32.totalorder %s22, 1
      %p82 = scmp.ne.s32.totalorder %s77, %s79
      %p83 = scmp.eq.s32.totalorder %s22, 0
      %p84 = por %p82, %p83
      %p85 = scmp.ne.s32.totalorder %s77, %s79
      %p86 = scmp.eq.s32.totalorder %s27, 1
      %p87 = por %p85, %p86
      %p88 = scmp.ne.s32.totalorder %s79, %s80
      %p89 = scmp.eq.s32.totalorder %s27, 0
      %p90 = por %p88, %p89
      %p91 = scmp.ne.s32.totalorder %s79, %s80
      %p92 = scmp.eq.s32.totalorder %s28, 1
      %p93 = por %p91, %p92
      %p95 = scmp.ne.s32.totalorder %s80, %s94
      %p96 = scmp.eq.s32.totalorder %s28, 0
      %p97 = por %p95, %p96
      %s99 = sadd.s32 %s98, 1
      %p102 = scmp.eq.s32.totalorder %s22, 1
      %p103 = scmp.ne.s32.totalorder %s98, %s100
      %p104 = scmp.eq.s32.totalorder %s22, 0
      %p105 = por %p103, %p104
      %p106 = scmp.ne.s32.totalorder %s98, %s100
      %p107 = scmp.eq.s32.totalorder %s27, 1
      %p108 = por %p106, %p107
      %p109 = scmp.ne.s32.totalorder %s100, %s101
      %p110 = scmp.eq.s32.totalorder %s27, 0
      %p111 = por %p109, %p110
      %p112 = scmp.ne.s32.totalorder %s100, %s101
      %p113 = scmp.eq.s32.totalorder %s28, 1
      %p114 = por %p112, %p113
      %p116 = scmp.ne.s32.totalorder %s101, %s115
      %p117 = scmp.eq.s32.totalorder %s28, 0
      %p118 = por %p116, %p117
      %s120 = sadd.s32 %s119, 1
      %p123 = scmp.eq.s32.totalorder %s22, 1
      %p124 = scmp.ne.s32.totalorder %s119, %s121
      %p125 = scmp.eq.s32.totalorder %s22, 0
      %p126 = por %p124, %p125
      %p127 = scmp.ne.s32.totalorder %s119, %s121
      %p128 = scmp.eq.s32.totalorder %s27, 1
      %p129 = por %p127, %p128
      %p130 = scmp.ne.s32.totalorder %s121, %s122
      %p131 = scmp.eq.s32.totalorder %s27, 0
      %p132 = por %p130, %p131
      %p133 = scmp.ne.s32.totalorder %s121, %s122
      %p134 = scmp.eq.s32.totalorder %s28, 1
      %p135 = por %p133, %p134
      %p137 = scmp.ne.s32.totalorder %s122, %s136
      %p138 = scmp.eq.s32.totalorder %s28, 0
      %p139 = por %p137, %p138
      %s141 = sadd.s32 %s140, 1
      %p144 = scmp.eq.s32.totalorder %s22, 1
      %p145 = scmp.ne.s32.totalorder %s140, %s142
      %p146 = scmp.eq.s32.totalorder %s22, 0
      %p147 = por %p145, %p146
      %p148 = scmp.ne.s32.totalorder %s140, %s142
      %p149 = scmp.eq.s32.totalorder %s27, 1
      %p150 = por %p148, %p149
      %p151 = scmp.ne.s32.totalorder %s142, %s143
      %p152 = scmp.eq.s32.totalorder %s27, 0
      %p153 = por %p151, %p152
      %p154 = scmp.ne.s32.totalorder %s142, %s143
      %p155 = scmp.eq.s32.totalorder %s28, 1
      %p156 = por %p154, %p155
      %p158 = scmp.ne.s32.totalorder %s143, %s157
      %p159 = scmp.eq.s32.totalorder %s28, 0
      %p160 = por %p158, %p159
      %s162 = sadd.s32 %s161, 1
      %p165 = scmp.eq.s32.totalorder %s22, 1
      %p166 = scmp.ne.s32.totalorder %s161, %s163
      %p167 = scmp.eq.s32.totalorder %s22, 0
      %p168 = por %p166, %p167
      %p169 = scmp.ne.s32.totalorder %s161, %s163
      %p170 = scmp.eq.s32.totalorder %s27, 1
      %p171 = por %p169, %p170
      %p172 = scmp.ne.s32.totalorder %s163, %s164
      %p173 = scmp.eq.s32.totalorder %s27, 0
      %p174 = por %p172, %p173
      %p175 = scmp.ne.s32.totalorder %s163, %s164
      %p176 = scmp.eq.s32.totalorder %s28, 1
      %p177 = por %p175, %p176
      %p179 = scmp.ne.s32.totalorder %s164, %s178
      %p180 = scmp.eq.s32.totalorder %s28, 0
      %p181 = por %p179, %p180
      %s182 = ssub.s32 %s22, %s29
      %p183 = scmp.eq.s32.totalorder %s182, 0
      %s185 = sadd.s32 %s184, 1
      %s186 = scalar_select %p183, %s184, %s185
      %p189 = pneg %p183
      %p190 = scmp.eq.s32.totalorder %s22, 1
      %p191 = por %p189, %p190
      %p192 = scmp.ne.s32.totalorder %s184, %s187
      %p193 = scmp.eq.s32.totalorder %s22, 0
      %p194 = por %p192, %p193
      %p195 = scmp.ne.s32.totalorder %s184, %s187
      %p196 = scmp.eq.s32.totalorder %s27, 1
      %p197 = por %p195, %p196
      %p198 = scmp.ne.s32.totalorder %s187, %s188
      %p199 = scmp.eq.s32.totalorder %s27, 0
      %p200 = por %p198, %p199
      %p201 = scmp.ne.s32.totalorder %s187, %s188
      %p202 = scmp.eq.s32.totalorder %s28, 1
      %p203 = por %p201, %p202
      %p205 = scmp.ne.s32.totalorder %s188, %s204
      %p206 = scmp.eq.s32.totalorder %s28, 0
      %p207 = por %p205, %p206
      %p208 = scmp.le.s32.totalorder 1, %s22
      %p209 = scmp.lt.s32.totalorder %s22, 3
      %p210 = pnand %p208, %p209
      %p211 = pneg %p210
      // Predicated region
      $region9: #{paper_generator_forward.1} parent=5 // pred_check
        _
      $region10: #{paper_generator_forward.1} parent=5 // pred_check_branch
        %213 = sbr.rel (%p210) target = $region12
      $region11: #{paper_generator_forward.1} parent=5 // pred_region
        %s214 = ssub.s32 %s22, 1
        // Predicated region
        $region13: #{paper_generator_forward.1} parent=11 // pred_check
          %p215 = pneg %p69
        $region14: #{paper_generator_forward.1} parent=11 // pred_check_branch
          %217 = sbr.rel (%p215) target = $region16
        $region15: #{paper_generator_forward.1} parent=11 // pred_region
          %s219 = ssub.s32 32768, 32768
          %220 = vsyncadd [#allocation6], %s219
          %s221 = sshll.u32 [#allocation5], 4
          %s222 = int_to_ptr.vmem [resolvable:$true] %s221
          %227 = dma.hbm_to_vmem [thread:$0]  %s1, 32768, %s222, [#allocation6], 64, 64, 4
        $region16: #{paper_generator_forward.1} parent=11 // pred_fallthru
          _
        // Predicated region
        $region17: #{paper_generator_forward.1} parent=11 // pred_check
          %p228 = pneg %p90
        $region18: #{paper_generator_forward.1} parent=11 // pred_check_branch
          %230 = sbr.rel (%p228) target = $region20
        $region19: #{paper_generator_forward.1} parent=11 // pred_region
          %s232 = ssub.s32 16, 16
          %233 = vsyncadd [#allocation6], %s232
          %s235 = sshll.u32 [#allocation7], 4
          %s236 = int_to_ptr.vmem [resolvable:$true] %s235
          %238 = dma.hbm_to_vmem [thread:$0]  %s2, 16, %s236, [#allocation6]
        $region20: #{paper_generator_forward.1} parent=11 // pred_fallthru
          _
        // Predicated region
        $region21: #{paper_generator_forward.1} parent=11 // pred_check
          %p239 = pneg %p111
        $region22: #{paper_generator_forward.1} parent=11 // pred_check_branch
          %241 = sbr.rel (%p239) target = $region24
        $region23: #{paper_generator_forward.1} parent=11 // pred_region
          %s243 = ssub.s32 1024, 1024
          %244 = vsyncadd [#allocation9], %s243
          %s245 = sshll.u32 [#allocation8], 4
          %s246 = int_to_ptr.vmem [resolvable:$true] %s245
          %251 = dma.hbm_to_vmem [thread:$0]  %s3, 1024, %s246, [#allocation9], 64, 64, 4
        $region24: #{paper_generator_forward.1} parent=11 // pred_fallthru
          _
        // Predicated region
        $region25: #{paper_generator_forward.1} parent=11 // pred_check
          %p252 = pneg %p132
        $region26: #{paper_generator_forward.1} parent=11 // pred_check_branch
          %254 = sbr.rel (%p252) target = $region28
        $region27: #{paper_generator_forward.1} parent=11 // pred_region
          %s256 = ssub.s32 16, 16
          %257 = vsyncadd [#allocation9], %s256
          %s259 = sshll.u32 [#allocation10], 4
          %s260 = int_to_ptr.vmem [resolvable:$true] %s259
          %262 = dma.hbm_to_vmem [thread:$0]  %s4, 16, %s260, [#allocation9]
        $region28: #{paper_generator_forward.1} parent=11 // pred_fallthru
          _
        // Predicated region
        $region29: #{paper_generator_forward.1} parent=11 // pred_check
          %p263 = pneg %p153
        $region30: #{paper_generator_forward.1} parent=11 // pred_check_branch
          %265 = sbr.rel (%p263) target = $region32
        $region31: #{paper_generator_forward.1} parent=11 // pred_region
          %s267 = ssub.s32 16384, 16384
          %268 = vsyncadd [#allocation12], %s267
          %s269 = sshll.u32 [#allocation11], 4
          %s270 = int_to_ptr.vmem [resolvable:$true] %s269
          %275 = dma.hbm_to_vmem [thread:$0]  %s5, 16384, %s270, [#allocation12], 1024, 1024, 64
        $region32: #{paper_generator_forward.1} parent=11 // pred_fallthru
          _
        // Predicated region
        $region33: #{paper_generator_forward.1} parent=11 // pred_check
          %p276 = pneg %p174
        $region34: #{paper_generator_forward.1} parent=11 // pred_check_branch
          %278 = sbr.rel (%p276) target = $region36
        $region35: #{paper_generator_forward.1} parent=11 // pred_region
          %s280 = ssub.s32 256, 256
          %281 = vsyncadd [#allocation12], %s280
          %s283 = sshll.u32 [#allocation13], 4
          %s284 = int_to_ptr.vmem [resolvable:$true] %s283
          %286 = dma.hbm_to_vmem [thread:$0]  %s6, 256, %s284, [#allocation12]
        $region36: #{paper_generator_forward.1} parent=11 // pred_fallthru
          _
      $region12: #{paper_generator_forward.1} parent=5 // pred_fallthru
        _
      %p287 = scmp.lt.s32.totalorder %s22, 2
      // Predicated region
      $region37: #{paper_generator_forward.1} parent=5 // pred_check
        %p288 = pneg %p287
      $region38: #{paper_generator_forward.1} parent=5 // pred_check_branch
        %290 = sbr.rel (%p288) target = $region40
      $region39: #{paper_generator_forward.1} parent=5 // pred_region
        // Predicated region
        $region41: #{paper_generator_forward.1} parent=39 // pred_check
          %p291 = pneg %p42
        $region42: #{paper_generator_forward.1} parent=39 // pred_check_branch
          %293 = sbr.rel (%p291) target = $region44
        $region43: #{paper_generator_forward.1} parent=39 // pred_region
          %s294 = sand.u32 %s32, 1
          %s295 = scalar_lea.sflag [#allocation3], %s294
          %s296 = sand.u32 %s32, 1
          %s297 = smul.addr %s296, 2048
          %s298 = scalar_lea.vmem [#allocation2], %s297
          %s299 = smul.u32 8, %s22
          %s301 = ssub.s32 32768, 32768
          %302 = vsyncadd %s295, %s301
          %s303 = smul.addr %s299, 32
          %s304 = smul.addr %s303, 128
          %s305 = scalar_lea.hbm %s0, %s304
          %s306 = sshll.u32 %s298, 4
          %s307 = int_to_ptr.vmem [resolvable:$true] %s306
          %312 = dma.hbm_to_vmem [thread:$0]  %s305, 32768, %s307, %s295, 4096, 4096, 256
        $region44: #{paper_generator_forward.1} parent=39 // pred_fallthru
          _
      $region40: #{paper_generator_forward.1} parent=5 // pred_fallthru
        _
      %p313 = scmp.le.s32.totalorder 1, %s22
      %p314 = scmp.lt.s32.totalorder %s22, 3
      %p315 = pnand %p313, %p314
      %p316 = pneg %p315
      // Predicated region
      $region45: #{paper_generator_forward.1} parent=5 // pred_check
        _
      $region46: #{paper_generator_forward.1} parent=5 // pred_check_branch
        %318 = sbr.rel (%p315) target = $region48
      $region47: #{paper_generator_forward.1} parent=5 // pred_region
        %s319 = ssub.s32 %s22, 1
        %s320 = sand.u32 %s35, 1
        %s321 = scalar_lea.sflag [#allocation3], %s320
        %s322 = sand.u32 %s35, 1
        %s323 = smul.addr %s322, 2048
        %s324 = scalar_lea.vmem [#allocation2], %s323
        // Predicated region
        $region49: #{paper_generator_forward.1} parent=47 // pred_check
          %p325 = pneg %p48
        $region50: #{paper_generator_forward.1} parent=47 // pred_check_branch
          %327 = sbr.rel (%p325) target = $region52
        $region51: #{paper_generator_forward.1} parent=47 // pred_region
          %328 = dma.done %s321, 32768
        $region52: #{paper_generator_forward.1} parent=47 // pred_fallthru
          _
        // Predicated region
        $region53: #{paper_generator_forward.1} parent=47 // pred_check
          %p329 = pneg %p69
        $region54: #{paper_generator_forward.1} parent=47 // pred_check_branch
          %331 = sbr.rel (%p329) target = $region56
        $region55: #{paper_generator_forward.1} parent=47 // pred_region
          %332 = dma.done [#allocation6], 32768
        $region56: #{paper_generator_forward.1} parent=47 // pred_fallthru
          _
        // Predicated region
        $region57: #{paper_generator_forward.1} parent=47 // pred_check
          %p333 = pneg %p90
        $region58: #{paper_generator_forward.1} parent=47 // pred_check_branch
          %335 = sbr.rel (%p333) target = $region60
        $region59: #{paper_generator_forward.1} parent=47 // pred_region
          %336 = dma.done [#allocation6], 16
        $region60: #{paper_generator_forward.1} parent=47 // pred_fallthru
          _
        // Predicated region
        $region61: #{paper_generator_forward.1} parent=47 // pred_check
          %p337 = pneg %p111
        $region62: #{paper_generator_forward.1} parent=47 // pred_check_branch
          %339 = sbr.rel (%p337) target = $region64
        $region63: #{paper_generator_forward.1} parent=47 // pred_region
          %340 = dma.done [#allocation9], 1024
        $region64: #{paper_generator_forward.1} parent=47 // pred_fallthru
          _
        // Predicated region
        $region65: #{paper_generator_forward.1} parent=47 // pred_check
          %p341 = pneg %p132
        $region66: #{paper_generator_forward.1} parent=47 // pred_check_branch
          %343 = sbr.rel (%p341) target = $region68
        $region67: #{paper_generator_forward.1} parent=47 // pred_region
          %344 = dma.done [#allocation9], 16
        $region68: #{paper_generator_forward.1} parent=47 // pred_fallthru
          _
        // Predicated region
        $region69: #{paper_generator_forward.1} parent=47 // pred_check
          %p345 = pneg %p153
        $region70: #{paper_generator_forward.1} parent=47 // pred_check_branch
          %347 = sbr.rel (%p345) target = $region72
        $region71: #{paper_generator_forward.1} parent=47 // pred_region
          %348 = dma.done [#allocation12], 16384
        $region72: #{paper_generator_forward.1} parent=47 // pred_fallthru
          _
        // Predicated region
        $region73: #{paper_generator_forward.1} parent=47 // pred_check
          %p349 = pneg %p174
        $region74: #{paper_generator_forward.1} parent=47 // pred_check_branch
          %351 = sbr.rel (%p349) target = $region76
        $region75: #{paper_generator_forward.1} parent=47 // pred_region
          %352 = dma.done [#allocation12], 256
        $region76: #{paper_generator_forward.1} parent=47 // pred_fallthru
          _
        %s353 = sand.u32 %s35, 1
        %s354 = scalar_lea.sflag [#allocation3], %s353
        %s355 = sand.u32 %s35, 1
        %s356 = smul.addr %s355, 2048
        %s357 = scalar_lea.vmem [#allocation2], %s356
        %p358 = pneg %p48
        %p359 = pneg %p45
        %p360 = pneg %p69
        %p361 = pneg %p66
        %p362 = pneg %p90
        %p363 = pneg %p87
        %p364 = pneg %p111
        %p365 = pneg %p108
        %p366 = pneg %p132
        %p367 = pneg %p129
        %p368 = pneg %p153
        %p369 = pneg %p150
        %p370 = pneg %p174
        %p371 = pneg %p171
        %p372 = pneg %p200
        %p373 = pneg %p197
        %s374 = sand.u32 %s187, 1
        %s375 = scalar_lea.sflag [#allocation4], %s374
        %s376 = sand.u32 %s187, 1
        %s377 = smul.addr %s376, 1024
        %s378 = scalar_lea.vmem [#allocation14], %s377
        %s379 = smul.u32 8, %s27
        %s380 = smul.u32 8, %s27
        %v382 = vld [vmem:[%s324] sm:$0xff]
        %v383 = vld [vmem:[%s324 + $0x8] sm:$0xff]
        %v384 = vld [vmem:[%s324 + $0x10] sm:$0xff]
        %v385 = vld [vmem:[%s324 + $0x18] sm:$0xff]
        %v386 = vld [vmem:[%s324 + $0x20] sm:$0xff]
        %v387 = vld [vmem:[%s324 + $0x28] sm:$0xff]
        %v388 = vld [vmem:[%s324 + $0x30] sm:$0xff]
        %v389 = vld [vmem:[%s324 + $0x38] sm:$0xff]
        %v390 = vld [vmem:[%s324 + $0x40] sm:$0xff]
        %v391 = vld [vmem:[%s324 + $0x48] sm:$0xff]
        %v392 = vld [vmem:[%s324 + $0x50] sm:$0xff]
        %v393 = vld [vmem:[%s324 + $0x58] sm:$0xff]
        %v394 = vld [vmem:[%s324 + $0x60] sm:$0xff]
        %v395 = vld [vmem:[%s324 + $0x68] sm:$0xff]
        %v396 = vld [vmem:[%s324 + $0x70] sm:$0xff]
        %v397 = vld [vmem:[%s324 + $0x78] sm:$0xff]
        %v398 = vld [vmem:[%s324 + $0x80] sm:$0xff]
        %v399 = vld [vmem:[%s324 + $0x88] sm:$0xff]
        %v400 = vld [vmem:[%s324 + $0x90] sm:$0xff]
        %v401 = vld [vmem:[%s324 + $0x98] sm:$0xff]
        %v402 = vld [vmem:[%s324 + $0xa0] sm:$0xff]
        %v403 = vld [vmem:[%s324 + $0xa8] sm:$0xff]
        %v404 = vld [vmem:[%s324 + $0xb0] sm:$0xff]
        %v405 = vld [vmem:[%s324 + $0xb8] sm:$0xff]
        %v406 = vld [vmem:[%s324 + $0xc0] sm:$0xff]
        %v407 = vld [vmem:[%s324 + $0xc8] sm:$0xff]
        %v408 = vld [vmem:[%s324 + $0xd0] sm:$0xff]
        %v409 = vld [vmem:[%s324 + $0xd8] sm:$0xff]
        %v410 = vld [vmem:[%s324 + $0xe0] sm:$0xff]
        %v411 = vld [vmem:[%s324 + $0xe8] sm:$0xff]
        %v412 = vld [vmem:[%s324 + $0xf0] sm:$0xff]
        %v413 = vld [vmem:[%s324 + $0xf8] sm:$0xff]
        %v414 = vld [vmem:[%s324 + $0x100] sm:$0xff]
        %v415 = vld [vmem:[%s324 + $0x108] sm:$0xff]
        %v416 = vld [vmem:[%s324 + $0x110] sm:$0xff]
        %v417 = vld [vmem:[%s324 + $0x118] sm:$0xff]
        %v418 = vld [vmem:[%s324 + $0x120] sm:$0xff]
        %v419 = vld [vmem:[%s324 + $0x128] sm:$0xff]
        %v420 = vld [vmem:[%s324 + $0x130] sm:$0xff]
        %v421 = vld [vmem:[%s324 + $0x138] sm:$0xff]
        %v422 = vld [vmem:[%s324 + $0x140] sm:$0xff]
        %v423 = vld [vmem:[%s324 + $0x148] sm:$0xff]
        %v424 = vld [vmem:[%s324 + $0x150] sm:$0xff]
        %v425 = vld [vmem:[%s324 + $0x158] sm:$0xff]
        %v426 = vld [vmem:[%s324 + $0x160] sm:$0xff]
        %v427 = vld [vmem:[%s324 + $0x168] sm:$0xff]
        %v428 = vld [vmem:[%s324 + $0x170] sm:$0xff]
        %v429 = vld [vmem:[%s324 + $0x178] sm:$0xff]
        %v430 = vld [vmem:[%s324 + $0x180] sm:$0xff]
        %v431 = vld [vmem:[%s324 + $0x188] sm:$0xff]
        %v432 = vld [vmem:[%s324 + $0x190] sm:$0xff]
        %v433 = vld [vmem:[%s324 + $0x198] sm:$0xff]
        %v434 = vld [vmem:[%s324 + $0x1a0] sm:$0xff]
        %v435 = vld [vmem:[%s324 + $0x1a8] sm:$0xff]
        %v436 = vld [vmem:[%s324 + $0x1b0] sm:$0xff]
        %v437 = vld [vmem:[%s324 + $0x1b8] sm:$0xff]
        %v438 = vld [vmem:[%s324 + $0x1c0] sm:$0xff]
        %v439 = vld [vmem:[%s324 + $0x1c8] sm:$0xff]
        %v440 = vld [vmem:[%s324 + $0x1d0] sm:$0xff]
        %v441 = vld [vmem:[%s324 + $0x1d8] sm:$0xff]
        %v442 = vld [vmem:[%s324 + $0x1e0] sm:$0xff]
        %v443 = vld [vmem:[%s324 + $0x1e8] sm:$0xff]
        %v444 = vld [vmem:[%s324 + $0x1f0] sm:$0xff]
        %v445 = vld [vmem:[%s324 + $0x1f8] sm:$0xff]
        %v446 = vld [vmem:[%s324 + $0x200] sm:$0xff]
        %v447 = vld [vmem:[%s324 + $0x208] sm:$0xff]
        %v448 = vld [vmem:[%s324 + $0x210] sm:$0xff]
        %v449 = vld [vmem:[%s324 + $0x218] sm:$0xff]
        %v450 = vld [vmem:[%s324 + $0x220] sm:$0xff]
        %v451 = vld [vmem:[%s324 + $0x228] sm:$0xff]
        %v452 = vld [vmem:[%s324 + $0x230] sm:$0xff]
        %v453 = vld [vmem:[%s324 + $0x238] sm:$0xff]
        %v454 = vld [vmem:[%s324 + $0x240] sm:$0xff]
        %v455 = vld [vmem:[%s324 + $0x248] sm:$0xff]
        %v456 = vld [vmem:[%s324 + $0x250] sm:$0xff]
        %v457 = vld [vmem:[%s324 + $0x258] sm:$0xff]
        %v458 = vld [vmem:[%s324 + $0x260] sm:$0xff]
        %v459 = vld [vmem:[%s324 + $0x268] sm:$0xff]
        %v460 = vld [vmem:[%s324 + $0x270] sm:$0xff]
        %v461 = vld [vmem:[%s324 + $0x278] sm:$0xff]
        %v462 = vld [vmem:[%s324 + $0x280] sm:$0xff]
        %v463 = vld [vmem:[%s324 + $0x288] sm:$0xff]
        %v464 = vld [vmem:[%s324 + $0x290] sm:$0xff]
        %v465 = vld [vmem:[%s324 + $0x298] sm:$0xff]
        %v466 = vld [vmem:[%s324 + $0x2a0] sm:$0xff]
        %v467 = vld [vmem:[%s324 + $0x2a8] sm:$0xff]
        %v468 = vld [vmem:[%s324 + $0x2b0] sm:$0xff]
        %v469 = vld [vmem:[%s324 + $0x2b8] sm:$0xff]
        %v470 = vld [vmem:[%s324 + $0x2c0] sm:$0xff]
        %v471 = vld [vmem:[%s324 + $0x2c8] sm:$0xff]
        %v472 = vld [vmem:[%s324 + $0x2d0] sm:$0xff]
        %v473 = vld [vmem:[%s324 + $0x2d8] sm:$0xff]
        %v474 = vld [vmem:[%s324 + $0x2e0] sm:$0xff]
        %v475 = vld [vmem:[%s324 + $0x2e8] sm:$0xff]
        %v476 = vld [vmem:[%s324 + $0x2f0] sm:$0xff]
        %v477 = vld [vmem:[%s324 + $0x2f8] sm:$0xff]
        %v478 = vld [vmem:[%s324 + $0x300] sm:$0xff]
        %v479 = vld [vmem:[%s324 + $0x308] sm:$0xff]
        %v480 = vld [vmem:[%s324 + $0x310] sm:$0xff]
        %v481 = vld [vmem:[%s324 + $0x318] sm:$0xff]
        %v482 = vld [vmem:[%s324 + $0x320] sm:$0xff]
        %v483 = vld [vmem:[%s324 + $0x328] sm:$0xff]
        %v484 = vld [vmem:[%s324 + $0x330] sm:$0xff]
        %v485 = vld [vmem:[%s324 + $0x338] sm:$0xff]
        %v486 = vld [vmem:[%s324 + $0x340] sm:$0xff]
        %v487 = vld [vmem:[%s324 + $0x348] sm:$0xff]
        %v488 = vld [vmem:[%s324 + $0x350] sm:$0xff]
        %v489 = vld [vmem:[%s324 + $0x358] sm:$0xff]
        %v490 = vld [vmem:[%s324 + $0x360] sm:$0xff]
        %v491 = vld [vmem:[%s324 + $0x368] sm:$0xff]
        %v492 = vld [vmem:[%s324 + $0x370] sm:$0xff]
        %v493 = vld [vmem:[%s324 + $0x378] sm:$0xff]
        %v494 = vld [vmem:[%s324 + $0x380] sm:$0xff]
        %v495 = vld [vmem:[%s324 + $0x388] sm:$0xff]
        %v496 = vld [vmem:[%s324 + $0x390] sm:$0xff]
        %v497 = vld [vmem:[%s324 + $0x398] sm:$0xff]
        %v498 = vld [vmem:[%s324 + $0x3a0] sm:$0xff]
        %v499 = vld [vmem:[%s324 + $0x3a8] sm:$0xff]
        %v500 = vld [vmem:[%s324 + $0x3b0] sm:$0xff]
        %v501 = vld [vmem:[%s324 + $0x3b8] sm:$0xff]
        %v502 = vld [vmem:[%s324 + $0x3c0] sm:$0xff]
        %v503 = vld [vmem:[%s324 + $0x3c8] sm:$0xff]
        %v504 = vld [vmem:[%s324 + $0x3d0] sm:$0xff]
        %v505 = vld [vmem:[%s324 + $0x3d8] sm:$0xff]
        %v506 = vld [vmem:[%s324 + $0x3e0] sm:$0xff]
        %v507 = vld [vmem:[%s324 + $0x3e8] sm:$0xff]
        %v508 = vld [vmem:[%s324 + $0x3f0] sm:$0xff]
        %v509 = vld [vmem:[%s324 + $0x3f8] sm:$0xff]
        %v510 = vld [vmem:[%s324 + $0x400] sm:$0xff]
        %v511 = vld [vmem:[%s324 + $0x408] sm:$0xff]
        %v512 = vld [vmem:[%s324 + $0x410] sm:$0xff]
        %v513 = vld [vmem:[%s324 + $0x418] sm:$0xff]
        %v514 = vld [vmem:[%s324 + $0x420] sm:$0xff]
        %v515 = vld [vmem:[%s324 + $0x428] sm:$0xff]
        %v516 = vld [vmem:[%s324 + $0x430] sm:$0xff]
        %v517 = vld [vmem:[%s324 + $0x438] sm:$0xff]
        %v518 = vld [vmem:[%s324 + $0x440] sm:$0xff]
        %v519 = vld [vmem:[%s324 + $0x448] sm:$0xff]
        %v520 = vld [vmem:[%s324 + $0x450] sm:$0xff]
        %v521 = vld [vmem:[%s324 + $0x458] sm:$0xff]
        %v522 = vld [vmem:[%s324 + $0x460] sm:$0xff]
        %v523 = vld [vmem:[%s324 + $0x468] sm:$0xff]
        %v524 = vld [vmem:[%s324 + $0x470] sm:$0xff]
        %v525 = vld [vmem:[%s324 + $0x478] sm:$0xff]
        %v526 = vld [vmem:[%s324 + $0x480] sm:$0xff]
        %v527 = vld [vmem:[%s324 + $0x488] sm:$0xff]
        %v528 = vld [vmem:[%s324 + $0x490] sm:$0xff]
        %v529 = vld [vmem:[%s324 + $0x498] sm:$0xff]
        %v530 = vld [vmem:[%s324 + $0x4a0] sm:$0xff]
        %v531 = vld [vmem:[%s324 + $0x4a8] sm:$0xff]
        %v532 = vld [vmem:[%s324 + $0x4b0] sm:$0xff]
        %v533 = vld [vmem:[%s324 + $0x4b8] sm:$0xff]
        %v534 = vld [vmem:[%s324 + $0x4c0] sm:$0xff]
        %v535 = vld [vmem:[%s324 + $0x4c8] sm:$0xff]
        %v536 = vld [vmem:[%s324 + $0x4d0] sm:$0xff]
        %v537 = vld [vmem:[%s324 + $0x4d8] sm:$0xff]
        %v538 = vld [vmem:[%s324 + $0x4e0] sm:$0xff]
        %v539 = vld [vmem:[%s324 + $0x4e8] sm:$0xff]
        %v540 = vld [vmem:[%s324 + $0x4f0] sm:$0xff]
        %v541 = vld [vmem:[%s324 + $0x4f8] sm:$0xff]
        %v542 = vld [vmem:[%s324 + $0x500] sm:$0xff]
        %v543 = vld [vmem:[%s324 + $0x508] sm:$0xff]
        %v544 = vld [vmem:[%s324 + $0x510] sm:$0xff]
        %v545 = vld [vmem:[%s324 + $0x518] sm:$0xff]
        %v546 = vld [vmem:[%s324 + $0x520] sm:$0xff]
        %v547 = vld [vmem:[%s324 + $0x528] sm:$0xff]
        %v548 = vld [vmem:[%s324 + $0x530] sm:$0xff]
        %v549 = vld [vmem:[%s324 + $0x538] sm:$0xff]
        %v550 = vld [vmem:[%s324 + $0x540] sm:$0xff]
        %v551 = vld [vmem:[%s324 + $0x548] sm:$0xff]
        %v552 = vld [vmem:[%s324 + $0x550] sm:$0xff]
        %v553 = vld [vmem:[%s324 + $0x558] sm:$0xff]
        %v554 = vld [vmem:[%s324 + $0x560] sm:$0xff]
        %v555 = vld [vmem:[%s324 + $0x568] sm:$0xff]
        %v556 = vld [vmem:[%s324 + $0x570] sm:$0xff]
        %v557 = vld [vmem:[%s324 + $0x578] sm:$0xff]
        %v558 = vld [vmem:[%s324 + $0x580] sm:$0xff]
        %v559 = vld [vmem:[%s324 + $0x588] sm:$0xff]
        %v560 = vld [vmem:[%s324 + $0x590] sm:$0xff]
        %v561 = vld [vmem:[%s324 + $0x598] sm:$0xff]
        %v562 = vld [vmem:[%s324 + $0x5a0] sm:$0xff]
        %v563 = vld [vmem:[%s324 + $0x5a8] sm:$0xff]
        %v564 = vld [vmem:[%s324 + $0x5b0] sm:$0xff]
        %v565 = vld [vmem:[%s324 + $0x5b8] sm:$0xff]
        %v566 = vld [vmem:[%s324 + $0x5c0] sm:$0xff]
        %v567 = vld [vmem:[%s324 + $0x5c8] sm:$0xff]
        %v568 = vld [vmem:[%s324 + $0x5d0] sm:$0xff]
        %v569 = vld [vmem:[%s324 + $0x5d8] sm:$0xff]
        %v570 = vld [vmem:[%s324 + $0x5e0] sm:$0xff]
        %v571 = vld [vmem:[%s324 + $0x5e8] sm:$0xff]
        %v572 = vld [vmem:[%s324 + $0x5f0] sm:$0xff]
        %v573 = vld [vmem:[%s324 + $0x5f8] sm:$0xff]
        %v574 = vld [vmem:[%s324 + $0x600] sm:$0xff]
        %v575 = vld [vmem:[%s324 + $0x608] sm:$0xff]
        %v576 = vld [vmem:[%s324 + $0x610] sm:$0xff]
        %v577 = vld [vmem:[%s324 + $0x618] sm:$0xff]
        %v578 = vld [vmem:[%s324 + $0x620] sm:$0xff]
        %v579 = vld [vmem:[%s324 + $0x628] sm:$0xff]
        %v580 = vld [vmem:[%s324 + $0x630] sm:$0xff]
        %v581 = vld [vmem:[%s324 + $0x638] sm:$0xff]
        %v582 = vld [vmem:[%s324 + $0x640] sm:$0xff]
        %v583 = vld [vmem:[%s324 + $0x648] sm:$0xff]
        %v584 = vld [vmem:[%s324 + $0x650] sm:$0xff]
        %v585 = vld [vmem:[%s324 + $0x658] sm:$0xff]
        %v586 = vld [vmem:[%s324 + $0x660] sm:$0xff]
        %v587 = vld [vmem:[%s324 + $0x668] sm:$0xff]
        %v588 = vld [vmem:[%s324 + $0x670] sm:$0xff]
        %v589 = vld [vmem:[%s324 + $0x678] sm:$0xff]
        %v590 = vld [vmem:[%s324 + $0x680] sm:$0xff]
        %v591 = vld [vmem:[%s324 + $0x688] sm:$0xff]
        %v592 = vld [vmem:[%s324 + $0x690] sm:$0xff]
        %v593 = vld [vmem:[%s324 + $0x698] sm:$0xff]
        %v594 = vld [vmem:[%s324 + $0x6a0] sm:$0xff]
        %v595 = vld [vmem:[%s324 + $0x6a8] sm:$0xff]
        %v596 = vld [vmem:[%s324 + $0x6b0] sm:$0xff]
        %v597 = vld [vmem:[%s324 + $0x6b8] sm:$0xff]
        %v598 = vld [vmem:[%s324 + $0x6c0] sm:$0xff]
        %v599 = vld [vmem:[%s324 + $0x6c8] sm:$0xff]
        %v600 = vld [vmem:[%s324 + $0x6d0] sm:$0xff]
        %v601 = vld [vmem:[%s324 + $0x6d8] sm:$0xff]
        %v602 = vld [vmem:[%s324 + $0x6e0] sm:$0xff]
        %v603 = vld [vmem:[%s324 + $0x6e8] sm:$0xff]
        %v604 = vld [vmem:[%s324 + $0x6f0] sm:$0xff]
        %v605 = vld [vmem:[%s324 + $0x6f8] sm:$0xff]
        %v606 = vld [vmem:[%s324 + $0x700] sm:$0xff]
        %v607 = vld [vmem:[%s324 + $0x708] sm:$0xff]
        %v608 = vld [vmem:[%s324 + $0x710] sm:$0xff]
        %v609 = vld [vmem:[%s324 + $0x718] sm:$0xff]
        %v610 = vld [vmem:[%s324 + $0x720] sm:$0xff]
        %v611 = vld [vmem:[%s324 + $0x728] sm:$0xff]
        %v612 = vld [vmem:[%s324 + $0x730] sm:$0xff]
        %v613 = vld [vmem:[%s324 + $0x738] sm:$0xff]
        %v614 = vld [vmem:[%s324 + $0x740] sm:$0xff]
        %v615 = vld [vmem:[%s324 + $0x748] sm:$0xff]
        %v616 = vld [vmem:[%s324 + $0x750] sm:$0xff]
        %v617 = vld [vmem:[%s324 + $0x758] sm:$0xff]
        %v618 = vld [vmem:[%s324 + $0x760] sm:$0xff]
        %v619 = vld [vmem:[%s324 + $0x768] sm:$0xff]
        %v620 = vld [vmem:[%s324 + $0x770] sm:$0xff]
        %v621 = vld [vmem:[%s324 + $0x778] sm:$0xff]
        %v622 = vld [vmem:[%s324 + $0x780] sm:$0xff]
        %v623 = vld [vmem:[%s324 + $0x788] sm:$0xff]
        %v624 = vld [vmem:[%s324 + $0x790] sm:$0xff]
        %v625 = vld [vmem:[%s324 + $0x798] sm:$0xff]
        %v626 = vld [vmem:[%s324 + $0x7a0] sm:$0xff]
        %v627 = vld [vmem:[%s324 + $0x7a8] sm:$0xff]
        %v628 = vld [vmem:[%s324 + $0x7b0] sm:$0xff]
        %v629 = vld [vmem:[%s324 + $0x7b8] sm:$0xff]
        %v630 = vld [vmem:[%s324 + $0x7c0] sm:$0xff]
        %v631 = vld [vmem:[%s324 + $0x7c8] sm:$0xff]
        %v632 = vld [vmem:[%s324 + $0x7d0] sm:$0xff]
        %v633 = vld [vmem:[%s324 + $0x7d8] sm:$0xff]
        %v634 = vld [vmem:[%s324 + $0x7e0] sm:$0xff]
        %v635 = vld [vmem:[%s324 + $0x7e8] sm:$0xff]
        %v636 = vld [vmem:[%s324 + $0x7f0] sm:$0xff]
        %v637 = vld [vmem:[%s324 + $0x7f8] sm:$0xff]
        %v638 = vpack.c.bf16 %v414, %v382
        %v639 = vpack.c.bf16 %v415, %v383
        %v640 = vpack.c.bf16 %v416, %v384
        %v641 = vpack.c.bf16 %v417, %v385
        %v642 = vpack.c.bf16 %v418, %v386
        %v643 = vpack.c.bf16 %v419, %v387
        %v644 = vpack.c.bf16 %v420, %v388
        %v645 = vpack.c.bf16 %v421, %v389
        %v646 = vpack.c.bf16 %v422, %v390
        %v647 = vpack.c.bf16 %v423, %v391
        %v648 = vpack.c.bf16 %v424, %v392
        %v649 = vpack.c.bf16 %v425, %v393
        %v650 = vpack.c.bf16 %v426, %v394
        %v651 = vpack.c.bf16 %v427, %v395
        %v652 = vpack.c.bf16 %v428, %v396
        %v653 = vpack.c.bf16 %v429, %v397
        %v654 = vpack.c.bf16 %v430, %v398
        %v655 = vpack.c.bf16 %v431, %v399
        %v656 = vpack.c.bf16 %v432, %v400
        %v657 = vpack.c.bf16 %v433, %v401
        %v658 = vpack.c.bf16 %v434, %v402
        %v659 = vpack.c.bf16 %v435, %v403
        %v660 = vpack.c.bf16 %v436, %v404
        %v661 = vpack.c.bf16 %v437, %v405
        %v662 = vpack.c.bf16 %v438, %v406
        %v663 = vpack.c.bf16 %v439, %v407
        %v664 = vpack.c.bf16 %v440, %v408
        %v665 = vpack.c.bf16 %v441, %v409
        %v666 = vpack.c.bf16 %v442, %v410
        %v667 = vpack.c.bf16 %v443, %v411
        %v668 = vpack.c.bf16 %v444, %v412
        %v669 = vpack.c.bf16 %v445, %v413
        %v670 = vpack.c.bf16 %v478, %v446
        %v671 = vpack.c.bf16 %v479, %v447
        %v672 = vpack.c.bf16 %v480, %v448
        %v673 = vpack.c.bf16 %v481, %v449
        %v674 = vpack.c.bf16 %v482, %v450
        %v675 = vpack.c.bf16 %v483, %v451
        %v676 = vpack.c.bf16 %v484, %v452
        %v677 = vpack.c.bf16 %v485, %v453
        %v678 = vpack.c.bf16 %v486, %v454
        %v679 = vpack.c.bf16 %v487, %v455
        %v680 = vpack.c.bf16 %v488, %v456
        %v681 = vpack.c.bf16 %v489, %v457
        %v682 = vpack.c.bf16 %v490, %v458
        %v683 = vpack.c.bf16 %v491, %v459
        %v684 = vpack.c.bf16 %v492, %v460
        %v685 = vpack.c.bf16 %v493, %v461
        %v686 = vpack.c.bf16 %v494, %v462
        %v687 = vpack.c.bf16 %v495, %v463
        %v688 = vpack.c.bf16 %v496, %v464
        %v689 = vpack.c.bf16 %v497, %v465
        %v690 = vpack.c.bf16 %v498, %v466
        %v691 = vpack.c.bf16 %v499, %v467
        %v692 = vpack.c.bf16 %v500, %v468
        %v693 = vpack.c.bf16 %v501, %v469
        %v694 = vpack.c.bf16 %v502, %v470
        %v695 = vpack.c.bf16 %v503, %v471
        %v696 = vpack.c.bf16 %v504, %v472
        %v697 = vpack.c.bf16 %v505, %v473
        %v698 = vpack.c.bf16 %v506, %v474
        %v699 = vpack.c.bf16 %v507, %v475
        %v700 = vpack.c.bf16 %v508, %v476
        %v701 = vpack.c.bf16 %v509, %v477
        %v702 = vpack.c.bf16 %v542, %v510
        %v703 = vpack.c.bf16 %v543, %v511
        %v704 = vpack.c.bf16 %v544, %v512
        %v705 = vpack.c.bf16 %v545, %v513
        %v706 = vpack.c.bf16 %v546, %v514
        %v707 = vpack.c.bf16 %v547, %v515
        %v708 = vpack.c.bf16 %v548, %v516
        %v709 = vpack.c.bf16 %v549, %v517
        %v710 = vpack.c.bf16 %v550, %v518
        %v711 = vpack.c.bf16 %v551, %v519
        %v712 = vpack.c.bf16 %v552, %v520
        %v713 = vpack.c.bf16 %v553, %v521
        %v714 = vpack.c.bf16 %v554, %v522
        %v715 = vpack.c.bf16 %v555, %v523
        %v716 = vpack.c.bf16 %v556, %v524
        %v717 = vpack.c.bf16 %v557, %v525
        %v718 = vpack.c.bf16 %v558, %v526
        %v719 = vpack.c.bf16 %v559, %v527
        %v720 = vpack.c.bf16 %v560, %v528
        %v721 = vpack.c.bf16 %v561, %v529
        %v722 = vpack.c.bf16 %v562, %v530
        %v723 = vpack.c.bf16 %v563, %v531
        %v724 = vpack.c.bf16 %v564, %v532
        %v725 = vpack.c.bf16 %v565, %v533
        %v726 = vpack.c.bf16 %v566, %v534
        %v727 = vpack.c.bf16 %v567, %v535
        %v728 = vpack.c.bf16 %v568, %v536
        %v729 = vpack.c.bf16 %v569, %v537
        %v730 = vpack.c.bf16 %v570, %v538
        %v731 = vpack.c.bf16 %v571, %v539
        %v732 = vpack.c.bf16 %v572, %v540
        %v733 = vpack.c.bf16 %v573, %v541
        %v734 = vpack.c.bf16 %v606, %v574
        %v735 = vpack.c.bf16 %v607, %v575
        %v736 = vpack.c.bf16 %v608, %v576
        %v737 = vpack.c.bf16 %v609, %v577
        %v738 = vpack.c.bf16 %v610, %v578
        %v739 = vpack.c.bf16 %v611, %v579
        %v740 = vpack.c.bf16 %v612, %v580
        %v741 = vpack.c.bf16 %v613, %v581
        %v742 = vpack.c.bf16 %v614, %v582
        %v743 = vpack.c.bf16 %v615, %v583
        %v744 = vpack.c.bf16 %v616, %v584
        %v745 = vpack.c.bf16 %v617, %v585
        %v746 = vpack.c.bf16 %v618, %v586
        %v747 = vpack.c.bf16 %v619, %v587
        %v748 = vpack.c.bf16 %v620, %v588
        %v749 = vpack.c.bf16 %v621, %v589
        %v750 = vpack.c.bf16 %v622, %v590
        %v751 = vpack.c.bf16 %v623, %v591
        %v752 = vpack.c.bf16 %v624, %v592
        %v753 = vpack.c.bf16 %v625, %v593
        %v754 = vpack.c.bf16 %v626, %v594
        %v755 = vpack.c.bf16 %v627, %v595
        %v756 = vpack.c.bf16 %v628, %v596
        %v757 = vpack.c.bf16 %v629, %v597
        %v758 = vpack.c.bf16 %v630, %v598
        %v759 = vpack.c.bf16 %v631, %v599
        %v760 = vpack.c.bf16 %v632, %v600
        %v761 = vpack.c.bf16 %v633, %v601
        %v762 = vpack.c.bf16 %v634, %v602
        %v763 = vpack.c.bf16 %v635, %v603
        %v764 = vpack.c.bf16 %v636, %v604
        %v765 = vpack.c.bf16 %v637, %v605
        %v766 = vld [vmem:[#allocation5] sm:$0xf]
        %v767 = vld [vmem:[#allocation5 + $0x4] sm:$0xf]
        %v768 = vld [vmem:[#allocation5 + $0x8] sm:$0xf]
        %v769 = vld [vmem:[#allocation5 + $0xc] sm:$0xf]
        %v770 = vld [vmem:[#allocation5 + $0x10] sm:$0xf]
        %v771 = vld [vmem:[#allocation5 + $0x14] sm:$0xf]
        %v772 = vld [vmem:[#allocation5 + $0x18] sm:$0xf]
        %v773 = vld [vmem:[#allocation5 + $0x1c] sm:$0xf]
        %v774 = vld [vmem:[#allocation5 + $0x20] sm:$0xf]
        %v775 = vld [vmem:[#allocation5 + $0x24] sm:$0xf]
        %v776 = vld [vmem:[#allocation5 + $0x28] sm:$0xf]
        %v777 = vld [vmem:[#allocation5 + $0x2c] sm:$0xf]
        %v778 = vld [vmem:[#allocation5 + $0x30] sm:$0xf]
        %v779 = vld [vmem:[#allocation5 + $0x34] sm:$0xf]
        %v780 = vld [vmem:[#allocation5 + $0x38] sm:$0xf]
        %v781 = vld [vmem:[#allocation5 + $0x3c] sm:$0xf]
        %v782 = vld [vmem:[#allocation5 + $0x40] sm:$0xf]
        %v783 = vld [vmem:[#allocation5 + $0x44] sm:$0xf]
        %v784 = vld [vmem:[#allocation5 + $0x48] sm:$0xf]
        %v785 = vld [vmem:[#allocation5 + $0x4c] sm:$0xf]
        %v786 = vld [vmem:[#allocation5 + $0x50] sm:$0xf]
        %v787 = vld [vmem:[#allocation5 + $0x54] sm:$0xf]
        %v788 = vld [vmem:[#allocation5 + $0x58] sm:$0xf]
        %v789 = vld [vmem:[#allocation5 + $0x5c] sm:$0xf]
        %v790 = vld [vmem:[#allocation5 + $0x60] sm:$0xf]
        %v791 = vld [vmem:[#allocation5 + $0x64] sm:$0xf]
        %v792 = vld [vmem:[#allocation5 + $0x68] sm:$0xf]
        %v793 = vld [vmem:[#allocation5 + $0x6c] sm:$0xf]
        %v794 = vld [vmem:[#allocation5 + $0x70] sm:$0xf]
        %v795 = vld [vmem:[#allocation5 + $0x74] sm:$0xf]
        %v796 = vld [vmem:[#allocation5 + $0x78] sm:$0xf]
        %v797 = vld [vmem:[#allocation5 + $0x7c] sm:$0xf]
        %v798 = vld [vmem:[#allocation5 + $0x80] sm:$0xf]
        %v799 = vld [vmem:[#allocation5 + $0x84] sm:$0xf]
        %v800 = vld [vmem:[#allocation5 + $0x88] sm:$0xf]
        %v801 = vld [vmem:[#allocation5 + $0x8c] sm:$0xf]
        %v802 = vld [vmem:[#allocation5 + $0x90] sm:$0xf]
        %v803 = vld [vmem:[#allocation5 + $0x94] sm:$0xf]
        %v804 = vld [vmem:[#allocation5 + $0x98] sm:$0xf]
        %v805 = vld [vmem:[#allocation5 + $0x9c] sm:$0xf]
        %v806 = vld [vmem:[#allocation5 + $0xa0] sm:$0xf]
        %v807 = vld [vmem:[#allocation5 + $0xa4] sm:$0xf]
        %v808 = vld [vmem:[#allocation5 + $0xa8] sm:$0xf]
        %v809 = vld [vmem:[#allocation5 + $0xac] sm:$0xf]
        %v810 = vld [vmem:[#allocation5 + $0xb0] sm:$0xf]
        %v811 = vld [vmem:[#allocation5 + $0xb4] sm:$0xf]
        %v812 = vld [vmem:[#allocation5 + $0xb8] sm:$0xf]
        %v813 = vld [vmem:[#allocation5 + $0xbc] sm:$0xf]
        %v814 = vld [vmem:[#allocation5 + $0xc0] sm:$0xf]
        %v815 = vld [vmem:[#allocation5 + $0xc4] sm:$0xf]
        %v816 = vld [vmem:[#allocation5 + $0xc8] sm:$0xf]
        %v817 = vld [vmem:[#allocation5 + $0xcc] sm:$0xf]
        %v818 = vld [vmem:[#allocation5 + $0xd0] sm:$0xf]
        %v819 = vld [vmem:[#allocation5 + $0xd4] sm:$0xf]
        %v820 = vld [vmem:[#allocation5 + $0xd8] sm:$0xf]
        %v821 = vld [vmem:[#allocation5 + $0xdc] sm:$0xf]
        %v822 = vld [vmem:[#allocation5 + $0xe0] sm:$0xf]
        %v823 = vld [vmem:[#allocation5 + $0xe4] sm:$0xf]
        %v824 = vld [vmem:[#allocation5 + $0xe8] sm:$0xf]
        %v825 = vld [vmem:[#allocation5 + $0xec] sm:$0xf]
        %v826 = vld [vmem:[#allocation5 + $0xf0] sm:$0xf]
        %v827 = vld [vmem:[#allocation5 + $0xf4] sm:$0xf]
        %v828 = vld [vmem:[#allocation5 + $0xf8] sm:$0xf]
        %v829 = vld [vmem:[#allocation5 + $0xfc] sm:$0xf]
        %v830 = vld [vmem:[#allocation5 + $0x100] sm:$0xf]
        %v831 = vld [vmem:[#allocation5 + $0x104] sm:$0xf]
        %v832 = vld [vmem:[#allocation5 + $0x108] sm:$0xf]
        %v833 = vld [vmem:[#allocation5 + $0x10c] sm:$0xf]
        %v834 = vld [vmem:[#allocation5 + $0x110] sm:$0xf]
        %v835 = vld [vmem:[#allocation5 + $0x114] sm:$0xf]
        %v836 = vld [vmem:[#allocation5 + $0x118] sm:$0xf]
        %v837 = vld [vmem:[#allocation5 + $0x11c] sm:$0xf]
        %v838 = vld [vmem:[#allocation5 + $0x120] sm:$0xf]
        %v839 = vld [vmem:[#allocation5 + $0x124] sm:$0xf]
        %v840 = vld [vmem:[#allocation5 + $0x128] sm:$0xf]
        %v841 = vld [vmem:[#allocation5 + $0x12c] sm:$0xf]
        %v842 = vld [vmem:[#allocation5 + $0x130] sm:$0xf]
        %v843 = vld [vmem:[#allocation5 + $0x134] sm:$0xf]
        %v844 = vld [vmem:[#allocation5 + $0x138] sm:$0xf]
        %v845 = vld [vmem:[#allocation5 + $0x13c] sm:$0xf]
        %v846 = vld [vmem:[#allocation5 + $0x140] sm:$0xf]
        %v847 = vld [vmem:[#allocation5 + $0x144] sm:$0xf]
        %v848 = vld [vmem:[#allocation5 + $0x148] sm:$0xf]
        %v849 = vld [vmem:[#allocation5 + $0x14c] sm:$0xf]
        %v850 = vld [vmem:[#allocation5 + $0x150] sm:$0xf]
        %v851 = vld [vmem:[#allocation5 + $0x154] sm:$0xf]
        %v852 = vld [vmem:[#allocation5 + $0x158] sm:$0xf]
        %v853 = vld [vmem:[#allocation5 + $0x15c] sm:$0xf]
        %v854 = vld [vmem:[#allocation5 + $0x160] sm:$0xf]
        %v855 = vld [vmem:[#allocation5 + $0x164] sm:$0xf]
        %v856 = vld [vmem:[#allocation5 + $0x168] sm:$0xf]
        %v857 = vld [vmem:[#allocation5 + $0x16c] sm:$0xf]
        %v858 = vld [vmem:[#allocation5 + $0x170] sm:$0xf]
        %v859 = vld [vmem:[#allocation5 + $0x174] sm:$0xf]
        %v860 = vld [vmem:[#allocation5 + $0x178] sm:$0xf]
        %v861 = vld [vmem:[#allocation5 + $0x17c] sm:$0xf]
        %v862 = vld [vmem:[#allocation5 + $0x180] sm:$0xf]
        %v863 = vld [vmem:[#allocation5 + $0x184] sm:$0xf]
        %v864 = vld [vmem:[#allocation5 + $0x188] sm:$0xf]
        %v865 = vld [vmem:[#allocation5 + $0x18c] sm:$0xf]
        %v866 = vld [vmem:[#allocation5 + $0x190] sm:$0xf]
        %v867 = vld [vmem:[#allocation5 + $0x194] sm:$0xf]
        %v868 = vld [vmem:[#allocation5 + $0x198] sm:$0xf]
        %v869 = vld [vmem:[#allocation5 + $0x19c] sm:$0xf]
        %v870 = vld [vmem:[#allocation5 + $0x1a0] sm:$0xf]
        %v871 = vld [vmem:[#allocation5 + $0x1a4] sm:$0xf]
        %v872 = vld [vmem:[#allocation5 + $0x1a8] sm:$0xf]
        %v873 = vld [vmem:[#allocation5 + $0x1ac] sm:$0xf]
        %v874 = vld [vmem:[#allocation5 + $0x1b0] sm:$0xf]
        %v875 = vld [vmem:[#allocation5 + $0x1b4] sm:$0xf]
        %v876 = vld [vmem:[#allocation5 + $0x1b8] sm:$0xf]
        %v877 = vld [vmem:[#allocation5 + $0x1bc] sm:$0xf]
        %v878 = vld [vmem:[#allocation5 + $0x1c0] sm:$0xf]
        %v879 = vld [vmem:[#allocation5 + $0x1c4] sm:$0xf]
        %v880 = vld [vmem:[#allocation5 + $0x1c8] sm:$0xf]
        %v881 = vld [vmem:[#allocation5 + $0x1cc] sm:$0xf]
        %v882 = vld [vmem:[#allocation5 + $0x1d0] sm:$0xf]
        %v883 = vld [vmem:[#allocation5 + $0x1d4] sm:$0xf]
        %v884 = vld [vmem:[#allocation5 + $0x1d8] sm:$0xf]
        %v885 = vld [vmem:[#allocation5 + $0x1dc] sm:$0xf]
        %v886 = vld [vmem:[#allocation5 + $0x1e0] sm:$0xf]
        %v887 = vld [vmem:[#allocation5 + $0x1e4] sm:$0xf]
        %v888 = vld [vmem:[#allocation5 + $0x1e8] sm:$0xf]
        %v889 = vld [vmem:[#allocation5 + $0x1ec] sm:$0xf]
        %v890 = vld [vmem:[#allocation5 + $0x1f0] sm:$0xf]
        %v891 = vld [vmem:[#allocation5 + $0x1f4] sm:$0xf]
        %v892 = vld [vmem:[#allocation5 + $0x1f8] sm:$0xf]
        %v893 = vld [vmem:[#allocation5 + $0x1fc] sm:$0xf]
        %v894 = vld [vmem:[#allocation5 + $0x200] sm:$0xf]
        %v895 = vld [vmem:[#allocation5 + $0x204] sm:$0xf]
        %v896 = vld [vmem:[#allocation5 + $0x208] sm:$0xf]
        %v897 = vld [vmem:[#allocation5 + $0x20c] sm:$0xf]
        %v898 = vld [vmem:[#allocation5 + $0x210] sm:$0xf]
        %v899 = vld [vmem:[#allocation5 + $0x214] sm:$0xf]
        %v900 = vld [vmem:[#allocation5 + $0x218] sm:$0xf]
        %v901 = vld [vmem:[#allocation5 + $0x21c] sm:$0xf]
        %v902 = vld [vmem:[#allocation5 + $0x220] sm:$0xf]
        %v903 = vld [vmem:[#allocation5 + $0x224] sm:$0xf]
        %v904 = vld [vmem:[#allocation5 + $0x228] sm:$0xf]
        %v905 = vld [vmem:[#allocation5 + $0x22c] sm:$0xf]
        %v906 = vld [vmem:[#allocation5 + $0x230] sm:$0xf]
        %v907 = vld [vmem:[#allocation5 + $0x234] sm:$0xf]
        %v908 = vld [vmem:[#allocation5 + $0x238] sm:$0xf]
        %v909 = vld [vmem:[#allocation5 + $0x23c] sm:$0xf]
        %v910 = vld [vmem:[#allocation5 + $0x240] sm:$0xf]
        %v911 = vld [vmem:[#allocation5 + $0x244] sm:$0xf]
        %v912 = vld [vmem:[#allocation5 + $0x248] sm:$0xf]
        %v913 = vld [vmem:[#allocation5 + $0x24c] sm:$0xf]
        %v914 = vld [vmem:[#allocation5 + $0x250] sm:$0xf]
        %v915 = vld [vmem:[#allocation5 + $0x254] sm:$0xf]
        %v916 = vld [vmem:[#allocation5 + $0x258] sm:$0xf]
        %v917 = vld [vmem:[#allocation5 + $0x25c] sm:$0xf]
        %v918 = vld [vmem:[#allocation5 + $0x260] sm:$0xf]
        %v919 = vld [vmem:[#allocation5 + $0x264] sm:$0xf]
        %v920 = vld [vmem:[#allocation5 + $0x268] sm:$0xf]
        %v921 = vld [vmem:[#allocation5 + $0x26c] sm:$0xf]
        %v922 = vld [vmem:[#allocation5 + $0x270] sm:$0xf]
        %v923 = vld [vmem:[#allocation5 + $0x274] sm:$0xf]
        %v924 = vld [vmem:[#allocation5 + $0x278] sm:$0xf]
        %v925 = vld [vmem:[#allocation5 + $0x27c] sm:$0xf]
        %v926 = vld [vmem:[#allocation5 + $0x280] sm:$0xf]
        %v927 = vld [vmem:[#allocation5 + $0x284] sm:$0xf]
        %v928 = vld [vmem:[#allocation5 + $0x288] sm:$0xf]
        %v929 = vld [vmem:[#allocation5 + $0x28c] sm:$0xf]
        %v930 = vld [vmem:[#allocation5 + $0x290] sm:$0xf]
        %v931 = vld [vmem:[#allocation5 + $0x294] sm:$0xf]
        %v932 = vld [vmem:[#allocation5 + $0x298] sm:$0xf]
        %v933 = vld [vmem:[#allocation5 + $0x29c] sm:$0xf]
        %v934 = vld [vmem:[#allocation5 + $0x2a0] sm:$0xf]
        %v935 = vld [vmem:[#allocation5 + $0x2a4] sm:$0xf]
        %v936 = vld [vmem:[#allocation5 + $0x2a8] sm:$0xf]
        %v937 = vld [vmem:[#allocation5 + $0x2ac] sm:$0xf]
        %v938 = vld [vmem:[#allocation5 + $0x2b0] sm:$0xf]
        %v939 = vld [vmem:[#allocation5 + $0x2b4] sm:$0xf]
        %v940 = vld [vmem:[#allocation5 + $0x2b8] sm:$0xf]
        %v941 = vld [vmem:[#allocation5 + $0x2bc] sm:$0xf]
        %v942 = vld [vmem:[#allocation5 + $0x2c0] sm:$0xf]
        %v943 = vld [vmem:[#allocation5 + $0x2c4] sm:$0xf]
        %v944 = vld [vmem:[#allocation5 + $0x2c8] sm:$0xf]
        %v945 = vld [vmem:[#allocation5 + $0x2cc] sm:$0xf]
        %v946 = vld [vmem:[#allocation5 + $0x2d0] sm:$0xf]
        %v947 = vld [vmem:[#allocation5 + $0x2d4] sm:$0xf]
        %v948 = vld [vmem:[#allocation5 + $0x2d8] sm:$0xf]
        %v949 = vld [vmem:[#allocation5 + $0x2dc] sm:$0xf]
        %v950 = vld [vmem:[#allocation5 + $0x2e0] sm:$0xf]
        %v951 = vld [vmem:[#allocation5 + $0x2e4] sm:$0xf]
        %v952 = vld [vmem:[#allocation5 + $0x2e8] sm:$0xf]
        %v953 = vld [vmem:[#allocation5 + $0x2ec] sm:$0xf]
        %v954 = vld [vmem:[#allocation5 + $0x2f0] sm:$0xf]
        %v955 = vld [vmem:[#allocation5 + $0x2f4] sm:$0xf]
        %v956 = vld [vmem:[#allocation5 + $0x2f8] sm:$0xf]
        %v957 = vld [vmem:[#allocation5 + $0x2fc] sm:$0xf]
        %v958 = vld [vmem:[#allocation5 + $0x300] sm:$0xf]
        %v959 = vld [vmem:[#allocation5 + $0x304] sm:$0xf]
        %v960 = vld [vmem:[#allocation5 + $0x308] sm:$0xf]
        %v961 = vld [vmem:[#allocation5 + $0x30c] sm:$0xf]
        %v962 = vld [vmem:[#allocation5 + $0x310] sm:$0xf]
        %v963 = vld [vmem:[#allocation5 + $0x314] sm:$0xf]
        %v964 = vld [vmem:[#allocation5 + $0x318] sm:$0xf]
        %v965 = vld [vmem:[#allocation5 + $0x31c] sm:$0xf]
        %v966 = vld [vmem:[#allocation5 + $0x320] sm:$0xf]
        %v967 = vld [vmem:[#allocation5 + $0x324] sm:$0xf]
        %v968 = vld [vmem:[#allocation5 + $0x328] sm:$0xf]
        %v969 = vld [vmem:[#allocation5 + $0x32c] sm:$0xf]
        %v970 = vld [vmem:[#allocation5 + $0x330] sm:$0xf]
        %v971 = vld [vmem:[#allocation5 + $0x334] sm:$0xf]
        %v972 = vld [vmem:[#allocation5 + $0x338] sm:$0xf]
        %v973 = vld [vmem:[#allocation5 + $0x33c] sm:$0xf]
        %v974 = vld [vmem:[#allocation5 + $0x340] sm:$0xf]
        %v975 = vld [vmem:[#allocation5 + $0x344] sm:$0xf]
        %v976 = vld [vmem:[#allocation5 + $0x348] sm:$0xf]
        %v977 = vld [vmem:[#allocation5 + $0x34c] sm:$0xf]
        %v978 = vld [vmem:[#allocation5 + $0x350] sm:$0xf]
        %v979 = vld [vmem:[#allocation5 + $0x354] sm:$0xf]
        %v980 = vld [vmem:[#allocation5 + $0x358] sm:$0xf]
        %v981 = vld [vmem:[#allocation5 + $0x35c] sm:$0xf]
        %v982 = vld [vmem:[#allocation5 + $0x360] sm:$0xf]
        %v983 = vld [vmem:[#allocation5 + $0x364] sm:$0xf]
        %v984 = vld [vmem:[#allocation5 + $0x368] sm:$0xf]
        %v985 = vld [vmem:[#allocation5 + $0x36c] sm:$0xf]
        %v986 = vld [vmem:[#allocation5 + $0x370] sm:$0xf]
        %v987 = vld [vmem:[#allocation5 + $0x374] sm:$0xf]
        %v988 = vld [vmem:[#allocation5 + $0x378] sm:$0xf]
        %v989 = vld [vmem:[#allocation5 + $0x37c] sm:$0xf]
        %v990 = vld [vmem:[#allocation5 + $0x380] sm:$0xf]
        %v991 = vld [vmem:[#allocation5 + $0x384] sm:$0xf]
        %v992 = vld [vmem:[#allocation5 + $0x388] sm:$0xf]
        %v993 = vld [vmem:[#allocation5 + $0x38c] sm:$0xf]
        %v994 = vld [vmem:[#allocation5 + $0x390] sm:$0xf]
        %v995 = vld [vmem:[#allocation5 + $0x394] sm:$0xf]
        %v996 = vld [vmem:[#allocation5 + $0x398] sm:$0xf]
        %v997 = vld [vmem:[#allocation5 + $0x39c] sm:$0xf]
        %v998 = vld [vmem:[#allocation5 + $0x3a0] sm:$0xf]
        %v999 = vld [vmem:[#allocation5 + $0x3a4] sm:$0xf]
        %v1000 = vld [vmem:[#allocation5 + $0x3a8] sm:$0xf]
        %v1001 = vld [vmem:[#allocation5 + $0x3ac] sm:$0xf]
        %v1002 = vld [vmem:[#allocation5 + $0x3b0] sm:$0xf]
        %v1003 = vld [vmem:[#allocation5 + $0x3b4] sm:$0xf]
        %v1004 = vld [vmem:[#allocation5 + $0x3b8] sm:$0xf]
        %v1005 = vld [vmem:[#allocation5 + $0x3bc] sm:$0xf]
        %v1006 = vld [vmem:[#allocation5 + $0x3c0] sm:$0xf]
        %v1007 = vld [vmem:[#allocation5 + $0x3c4] sm:$0xf]
        %v1008 = vld [vmem:[#allocation5 + $0x3c8] sm:$0xf]
        %v1009 = vld [vmem:[#allocation5 + $0x3cc] sm:$0xf]
        %v1010 = vld [vmem:[#allocation5 + $0x3d0] sm:$0xf]
        %v1011 = vld [vmem:[#allocation5 + $0x3d4] sm:$0xf]
        %v1012 = vld [vmem:[#allocation5 + $0x3d8] sm:$0xf]
        %v1013 = vld [vmem:[#allocation5 + $0x3dc] sm:$0xf]
        %v1014 = vld [vmem:[#allocation5 + $0x3e0] sm:$0xf]
        %v1015 = vld [vmem:[#allocation5 + $0x3e4] sm:$0xf]
        %v1016 = vld [vmem:[#allocation5 + $0x3e8] sm:$0xf]
        %v1017 = vld [vmem:[#allocation5 + $0x3ec] sm:$0xf]
        %v1018 = vld [vmem:[#allocation5 + $0x3f0] sm:$0xf]
        %v1019 = vld [vmem:[#allocation5 + $0x3f4] sm:$0xf]
        %v1020 = vld [vmem:[#allocation5 + $0x3f8] sm:$0xf]
        %v1021 = vld [vmem:[#allocation5 + $0x3fc] sm:$0xf]
        %v1022 = vld [vmem:[#allocation5 + $0x400] sm:$0xf]
        %v1023 = vld [vmem:[#allocation5 + $0x404] sm:$0xf]
        %v1024 = vld [vmem:[#allocation5 + $0x408] sm:$0xf]
        %v1025 = vld [vmem:[#allocation5 + $0x40c] sm:$0xf]
        %v1026 = vld [vmem:[#allocation5 + $0x410] sm:$0xf]
        %v1027 = vld [vmem:[#allocation5 + $0x414] sm:$0xf]
        %v1028 = vld [vmem:[#allocation5 + $0x418] sm:$0xf]
        %v1029 = vld [vmem:[#allocation5 + $0x41c] sm:$0xf]
        %v1030 = vld [vmem:[#allocation5 + $0x420] sm:$0xf]
        %v1031 = vld [vmem:[#allocation5 + $0x424] sm:$0xf]
        %v1032 = vld [vmem:[#allocation5 + $0x428] sm:$0xf]
        %v1033 = vld [vmem:[#allocation5 + $0x42c] sm:$0xf]
        %v1034 = vld [vmem:[#allocation5 + $0x430] sm:$0xf]
        %v1035 = vld [vmem:[#allocation5 + $0x434] sm:$0xf]
        %v1036 = vld [vmem:[#allocation5 + $0x438] sm:$0xf]
        %v1037 = vld [vmem:[#allocation5 + $0x43c] sm:$0xf]
        %v1038 = vld [vmem:[#allocation5 + $0x440] sm:$0xf]
        %v1039 = vld [vmem:[#allocation5 + $0x444] sm:$0xf]
        %v1040 = vld [vmem:[#allocation5 + $0x448] sm:$0xf]
        %v1041 = vld [vmem:[#allocation5 + $0x44c] sm:$0xf]
        %v1042 = vld [vmem:[#allocation5 + $0x450] sm:$0xf]
        %v1043 = vld [vmem:[#allocation5 + $0x454] sm:$0xf]
        %v1044 = vld [vmem:[#allocation5 + $0x458] sm:$0xf]
        %v1045 = vld [vmem:[#allocation5 + $0x45c] sm:$0xf]
        %v1046 = vld [vmem:[#allocation5 + $0x460] sm:$0xf]
        %v1047 = vld [vmem:[#allocation5 + $0x464] sm:$0xf]
        %v1048 = vld [vmem:[#allocation5 + $0x468] sm:$0xf]
        %v1049 = vld [vmem:[#allocation5 + $0x46c] sm:$0xf]
        %v1050 = vld [vmem:[#allocation5 + $0x470] sm:$0xf]
        %v1051 = vld [vmem:[#allocation5 + $0x474] sm:$0xf]
        %v1052 = vld [vmem:[#allocation5 + $0x478] sm:$0xf]
        %v1053 = vld [vmem:[#allocation5 + $0x47c] sm:$0xf]
        %v1054 = vld [vmem:[#allocation5 + $0x480] sm:$0xf]
        %v1055 = vld [vmem:[#allocation5 + $0x484] sm:$0xf]
        %v1056 = vld [vmem:[#allocation5 + $0x488] sm:$0xf]
        %v1057 = vld [vmem:[#allocation5 + $0x48c] sm:$0xf]
        %v1058 = vld [vmem:[#allocation5 + $0x490] sm:$0xf]
        %v1059 = vld [vmem:[#allocation5 + $0x494] sm:$0xf]
        %v1060 = vld [vmem:[#allocation5 + $0x498] sm:$0xf]
        %v1061 = vld [vmem:[#allocation5 + $0x49c] sm:$0xf]
        %v1062 = vld [vmem:[#allocation5 + $0x4a0] sm:$0xf]
        %v1063 = vld [vmem:[#allocation5 + $0x4a4] sm:$0xf]
        %v1064 = vld [vmem:[#allocation5 + $0x4a8] sm:$0xf]
        %v1065 = vld [vmem:[#allocation5 + $0x4ac] sm:$0xf]
        %v1066 = vld [vmem:[#allocation5 + $0x4b0] sm:$0xf]
        %v1067 = vld [vmem:[#allocation5 + $0x4b4] sm:$0xf]
        %v1068 = vld [vmem:[#allocation5 + $0x4b8] sm:$0xf]
        %v1069 = vld [vmem:[#allocation5 + $0x4bc] sm:$0xf]
        %v1070 = vld [vmem:[#allocation5 + $0x4c0] sm:$0xf]
        %v1071 = vld [vmem:[#allocation5 + $0x4c4] sm:$0xf]
        %v1072 = vld [vmem:[#allocation5 + $0x4c8] sm:$0xf]
        %v1073 = vld [vmem:[#allocation5 + $0x4cc] sm:$0xf]
        %v1074 = vld [vmem:[#allocation5 + $0x4d0] sm:$0xf]
        %v1075 = vld [vmem:[#allocation5 + $0x4d4] sm:$0xf]
        %v1076 = vld [vmem:[#allocation5 + $0x4d8] sm:$0xf]
        %v1077 = vld [vmem:[#allocation5 + $0x4dc] sm:$0xf]
        %v1078 = vld [vmem:[#allocation5 + $0x4e0] sm:$0xf]
        %v1079 = vld [vmem:[#allocation5 + $0x4e4] sm:$0xf]
        %v1080 = vld [vmem:[#allocation5 + $0x4e8] sm:$0xf]
        %v1081 = vld [vmem:[#allocation5 + $0x4ec] sm:$0xf]
        %v1082 = vld [vmem:[#allocation5 + $0x4f0] sm:$0xf]
        %v1083 = vld [vmem:[#allocation5 + $0x4f4] sm:$0xf]
        %v1084 = vld [vmem:[#allocation5 + $0x4f8] sm:$0xf]
        %v1085 = vld [vmem:[#allocation5 + $0x4fc] sm:$0xf]
        %v1086 = vld [vmem:[#allocation5 + $0x500] sm:$0xf]
        %v1087 = vld [vmem:[#allocation5 + $0x504] sm:$0xf]
        %v1088 = vld [vmem:[#allocation5 + $0x508] sm:$0xf]
        %v1089 = vld [vmem:[#allocation5 + $0x50c] sm:$0xf]
        %v1090 = vld [vmem:[#allocation5 + $0x510] sm:$0xf]
        %v1091 = vld [vmem:[#allocation5 + $0x514] sm:$0xf]
        %v1092 = vld [vmem:[#allocation5 + $0x518] sm:$0xf]
        %v1093 = vld [vmem:[#allocation5 + $0x51c] sm:$0xf]
        %v1094 = vld [vmem:[#allocation5 + $0x520] sm:$0xf]
        %v1095 = vld [vmem:[#allocation5 + $0x524] sm:$0xf]
        %v1096 = vld [vmem:[#allocation5 + $0x528] sm:$0xf]
        %v1097 = vld [vmem:[#allocation5 + $0x52c] sm:$0xf]
        %v1098 = vld [vmem:[#allocation5 + $0x530] sm:$0xf]
        %v1099 = vld [vmem:[#allocation5 + $0x534] sm:$0xf]
        %v1100 = vld [vmem:[#allocation5 + $0x538] sm:$0xf]
        %v1101 = vld [vmem:[#allocation5 + $0x53c] sm:$0xf]
        %v1102 = vld [vmem:[#allocation5 + $0x540] sm:$0xf]
        %v1103 = vld [vmem:[#allocation5 + $0x544] sm:$0xf]
        %v1104 = vld [vmem:[#allocation5 + $0x548] sm:$0xf]
        %v1105 = vld [vmem:[#allocation5 + $0x54c] sm:$0xf]
        %v1106 = vld [vmem:[#allocation5 + $0x550] sm:$0xf]
        %v1107 = vld [vmem:[#allocation5 + $0x554] sm:$0xf]
        %v1108 = vld [vmem:[#allocation5 + $0x558] sm:$0xf]
        %v1109 = vld [vmem:[#allocation5 + $0x55c] sm:$0xf]
        %v1110 = vld [vmem:[#allocation5 + $0x560] sm:$0xf]
        %v1111 = vld [vmem:[#allocation5 + $0x564] sm:$0xf]
        %v1112 = vld [vmem:[#allocation5 + $0x568] sm:$0xf]
        %v1113 = vld [vmem:[#allocation5 + $0x56c] sm:$0xf]
        %v1114 = vld [vmem:[#allocation5 + $0x570] sm:$0xf]
        %v1115 = vld [vmem:[#allocation5 + $0x574] sm:$0xf]
        %v1116 = vld [vmem:[#allocation5 + $0x578] sm:$0xf]
        %v1117 = vld [vmem:[#allocation5 + $0x57c] sm:$0xf]
        %v1118 = vld [vmem:[#allocation5 + $0x580] sm:$0xf]
        %v1119 = vld [vmem:[#allocation5 + $0x584] sm:$0xf]
        %v1120 = vld [vmem:[#allocation5 + $0x588] sm:$0xf]
        %v1121 = vld [vmem:[#allocation5 + $0x58c] sm:$0xf]
        %v1122 = vld [vmem:[#allocation5 + $0x590] sm:$0xf]
        %v1123 = vld [vmem:[#allocation5 + $0x594] sm:$0xf]
        %v1124 = vld [vmem:[#allocation5 + $0x598] sm:$0xf]
        %v1125 = vld [vmem:[#allocation5 + $0x59c] sm:$0xf]
        %v1126 = vld [vmem:[#allocation5 + $0x5a0] sm:$0xf]
        %v1127 = vld [vmem:[#allocation5 + $0x5a4] sm:$0xf]
        %v1128 = vld [vmem:[#allocation5 + $0x5a8] sm:$0xf]
        %v1129 = vld [vmem:[#allocation5 + $0x5ac] sm:$0xf]
        %v1130 = vld [vmem:[#allocation5 + $0x5b0] sm:$0xf]
        %v1131 = vld [vmem:[#allocation5 + $0x5b4] sm:$0xf]
        %v1132 = vld [vmem:[#allocation5 + $0x5b8] sm:$0xf]
        %v1133 = vld [vmem:[#allocation5 + $0x5bc] sm:$0xf]
        %v1134 = vld [vmem:[#allocation5 + $0x5c0] sm:$0xf]
        %v1135 = vld [vmem:[#allocation5 + $0x5c4] sm:$0xf]
        %v1136 = vld [vmem:[#allocation5 + $0x5c8] sm:$0xf]
        %v1137 = vld [vmem:[#allocation5 + $0x5cc] sm:$0xf]
        %v1138 = vld [vmem:[#allocation5 + $0x5d0] sm:$0xf]
        %v1139 = vld [vmem:[#allocation5 + $0x5d4] sm:$0xf]
        %v1140 = vld [vmem:[#allocation5 + $0x5d8] sm:$0xf]
        %v1141 = vld [vmem:[#allocation5 + $0x5dc] sm:$0xf]
        %v1142 = vld [vmem:[#allocation5 + $0x5e0] sm:$0xf]
        %v1143 = vld [vmem:[#allocation5 + $0x5e4] sm:$0xf]
        %v1144 = vld [vmem:[#allocation5 + $0x5e8] sm:$0xf]
        %v1145 = vld [vmem:[#allocation5 + $0x5ec] sm:$0xf]
        %v1146 = vld [vmem:[#allocation5 + $0x5f0] sm:$0xf]
        %v1147 = vld [vmem:[#allocation5 + $0x5f4] sm:$0xf]
        %v1148 = vld [vmem:[#allocation5 + $0x5f8] sm:$0xf]
        %v1149 = vld [vmem:[#allocation5 + $0x5fc] sm:$0xf]
        %v1150 = vld [vmem:[#allocation5 + $0x600] sm:$0xf]
        %v1151 = vld [vmem:[#allocation5 + $0x604] sm:$0xf]
        %v1152 = vld [vmem:[#allocation5 + $0x608] sm:$0xf]
        %v1153 = vld [vmem:[#allocation5 + $0x60c] sm:$0xf]
        %v1154 = vld [vmem:[#allocation5 + $0x610] sm:$0xf]
        %v1155 = vld [vmem:[#allocation5 + $0x614] sm:$0xf]
        %v1156 = vld [vmem:[#allocation5 + $0x618] sm:$0xf]
        %v1157 = vld [vmem:[#allocation5 + $0x61c] sm:$0xf]
        %v1158 = vld [vmem:[#allocation5 + $0x620] sm:$0xf]
        %v1159 = vld [vmem:[#allocation5 + $0x624] sm:$0xf]
        %v1160 = vld [vmem:[#allocation5 + $0x628] sm:$0xf]
        %v1161 = vld [vmem:[#allocation5 + $0x62c] sm:$0xf]
        %v1162 = vld [vmem:[#allocation5 + $0x630] sm:$0xf]
        %v1163 = vld [vmem:[#allocation5 + $0x634] sm:$0xf]
        %v1164 = vld [vmem:[#allocation5 + $0x638] sm:$0xf]
        %v1165 = vld [vmem:[#allocation5 + $0x63c] sm:$0xf]
        %v1166 = vld [vmem:[#allocation5 + $0x640] sm:$0xf]
        %v1167 = vld [vmem:[#allocation5 + $0x644] sm:$0xf]
        %v1168 = vld [vmem:[#allocation5 + $0x648] sm:$0xf]
        %v1169 = vld [vmem:[#allocation5 + $0x64c] sm:$0xf]
        %v1170 = vld [vmem:[#allocation5 + $0x650] sm:$0xf]
        %v1171 = vld [vmem:[#allocation5 + $0x654] sm:$0xf]
        %v1172 = vld [vmem:[#allocation5 + $0x658] sm:$0xf]
        %v1173 = vld [vmem:[#allocation5 + $0x65c] sm:$0xf]
        %v1174 = vld [vmem:[#allocation5 + $0x660] sm:$0xf]
        %v1175 = vld [vmem:[#allocation5 + $0x664] sm:$0xf]
        %v1176 = vld [vmem:[#allocation5 + $0x668] sm:$0xf]
        %v1177 = vld [vmem:[#allocation5 + $0x66c] sm:$0xf]
        %v1178 = vld [vmem:[#allocation5 + $0x670] sm:$0xf]
        %v1179 = vld [vmem:[#allocation5 + $0x674] sm:$0xf]
        %v1180 = vld [vmem:[#allocation5 + $0x678] sm:$0xf]
        %v1181 = vld [vmem:[#allocation5 + $0x67c] sm:$0xf]
        %v1182 = vld [vmem:[#allocation5 + $0x680] sm:$0xf]
        %v1183 = vld [vmem:[#allocation5 + $0x684] sm:$0xf]
        %v1184 = vld [vmem:[#allocation5 + $0x688] sm:$0xf]
        %v1185 = vld [vmem:[#allocation5 + $0x68c] sm:$0xf]
        %v1186 = vld [vmem:[#allocation5 + $0x690] sm:$0xf]
        %v1187 = vld [vmem:[#allocation5 + $0x694] sm:$0xf]
        %v1188 = vld [vmem:[#allocation5 + $0x698] sm:$0xf]
        %v1189 = vld [vmem:[#allocation5 + $0x69c] sm:$0xf]
        %v1190 = vld [vmem:[#allocation5 + $0x6a0] sm:$0xf]
        %v1191 = vld [vmem:[#allocation5 + $0x6a4] sm:$0xf]
        %v1192 = vld [vmem:[#allocation5 + $0x6a8] sm:$0xf]
        %v1193 = vld [vmem:[#allocation5 + $0x6ac] sm:$0xf]
        %v1194 = vld [vmem:[#allocation5 + $0x6b0] sm:$0xf]
        %v1195 = vld [vmem:[#allocation5 + $0x6b4] sm:$0xf]
        %v1196 = vld [vmem:[#allocation5 + $0x6b8] sm:$0xf]
        %v1197 = vld [vmem:[#allocation5 + $0x6bc] sm:$0xf]
        %v1198 = vld [vmem:[#allocation5 + $0x6c0] sm:$0xf]
        %v1199 = vld [vmem:[#allocation5 + $0x6c4] sm:$0xf]
        %v1200 = vld [vmem:[#allocation5 + $0x6c8] sm:$0xf]
        %v1201 = vld [vmem:[#allocation5 + $0x6cc] sm:$0xf]
        %v1202 = vld [vmem:[#allocation5 + $0x6d0] sm:$0xf]
        %v1203 = vld [vmem:[#allocation5 + $0x6d4] sm:$0xf]
        %v1204 = vld [vmem:[#allocation5 + $0x6d8] sm:$0xf]
        %v1205 = vld [vmem:[#allocation5 + $0x6dc] sm:$0xf]
        %v1206 = vld [vmem:[#allocation5 + $0x6e0] sm:$0xf]
        %v1207 = vld [vmem:[#allocation5 + $0x6e4] sm:$0xf]
        %v1208 = vld [vmem:[#allocation5 + $0x6e8] sm:$0xf]
        %v1209 = vld [vmem:[#allocation5 + $0x6ec] sm:$0xf]
        %v1210 = vld [vmem:[#allocation5 + $0x6f0] sm:$0xf]
        %v1211 = vld [vmem:[#allocation5 + $0x6f4] sm:$0xf]
        %v1212 = vld [vmem:[#allocation5 + $0x6f8] sm:$0xf]
        %v1213 = vld [vmem:[#allocation5 + $0x6fc] sm:$0xf]
        %v1214 = vld [vmem:[#allocation5 + $0x700] sm:$0xf]
        %v1215 = vld [vmem:[#allocation5 + $0x704] sm:$0xf]
        %v1216 = vld [vmem:[#allocation5 + $0x708] sm:$0xf]
        %v1217 = vld [vmem:[#allocation5 + $0x70c] sm:$0xf]
        %v1218 = vld [vmem:[#allocation5 + $0x710] sm:$0xf]
        %v1219 = vld [vmem:[#allocation5 + $0x714] sm:$0xf]
        %v1220 = vld [vmem:[#allocation5 + $0x718] sm:$0xf]
        %v1221 = vld [vmem:[#allocation5 + $0x71c] sm:$0xf]
        %v1222 = vld [vmem:[#allocation5 + $0x720] sm:$0xf]
        %v1223 = vld [vmem:[#allocation5 + $0x724] sm:$0xf]
        %v1224 = vld [vmem:[#allocation5 + $0x728] sm:$0xf]
        %v1225 = vld [vmem:[#allocation5 + $0x72c] sm:$0xf]
        %v1226 = vld [vmem:[#allocation5 + $0x730] sm:$0xf]
        %v1227 = vld [vmem:[#allocation5 + $0x734] sm:$0xf]
        %v1228 = vld [vmem:[#allocation5 + $0x738] sm:$0xf]
        %v1229 = vld [vmem:[#allocation5 + $0x73c] sm:$0xf]
        %v1230 = vld [vmem:[#allocation5 + $0x740] sm:$0xf]
        %v1231 = vld [vmem:[#allocation5 + $0x744] sm:$0xf]
        %v1232 = vld [vmem:[#allocation5 + $0x748] sm:$0xf]
        %v1233 = vld [vmem:[#allocation5 + $0x74c] sm:$0xf]
        %v1234 = vld [vmem:[#allocation5 + $0x750] sm:$0xf]
        %v1235 = vld [vmem:[#allocation5 + $0x754] sm:$0xf]
        %v1236 = vld [vmem:[#allocation5 + $0x758] sm:$0xf]
        %v1237 = vld [vmem:[#allocation5 + $0x75c] sm:$0xf]
        %v1238 = vld [vmem:[#allocation5 + $0x760] sm:$0xf]
        %v1239 = vld [vmem:[#allocation5 + $0x764] sm:$0xf]
        %v1240 = vld [vmem:[#allocation5 + $0x768] sm:$0xf]
        %v1241 = vld [vmem:[#allocation5 + $0x76c] sm:$0xf]
        %v1242 = vld [vmem:[#allocation5 + $0x770] sm:$0xf]
        %v1243 = vld [vmem:[#allocation5 + $0x774] sm:$0xf]
        %v1244 = vld [vmem:[#allocation5 + $0x778] sm:$0xf]
        %v1245 = vld [vmem:[#allocation5 + $0x77c] sm:$0xf]
        %v1246 = vld [vmem:[#allocation5 + $0x780] sm:$0xf]
        %v1247 = vld [vmem:[#allocation5 + $0x784] sm:$0xf]
        %v1248 = vld [vmem:[#allocation5 + $0x788] sm:$0xf]
        %v1249 = vld [vmem:[#allocation5 + $0x78c] sm:$0xf]
        %v1250 = vld [vmem:[#allocation5 + $0x790] sm:$0xf]
        %v1251 = vld [vmem:[#allocation5 + $0x794] sm:$0xf]
        %v1252 = vld [vmem:[#allocation5 + $0x798] sm:$0xf]
        %v1253 = vld [vmem:[#allocation5 + $0x79c] sm:$0xf]
        %v1254 = vld [vmem:[#allocation5 + $0x7a0] sm:$0xf]
        %v1255 = vld [vmem:[#allocation5 + $0x7a4] sm:$0xf]
        %v1256 = vld [vmem:[#allocation5 + $0x7a8] sm:$0xf]
        %v1257 = vld [vmem:[#allocation5 + $0x7ac] sm:$0xf]
        %v1258 = vld [vmem:[#allocation5 + $0x7b0] sm:$0xf]
        %v1259 = vld [vmem:[#allocation5 + $0x7b4] sm:$0xf]
        %v1260 = vld [vmem:[#allocation5 + $0x7b8] sm:$0xf]
        %v1261 = vld [vmem:[#allocation5 + $0x7bc] sm:$0xf]
        %v1262 = vld [vmem:[#allocation5 + $0x7c0] sm:$0xf]
        %v1263 = vld [vmem:[#allocation5 + $0x7c4] sm:$0xf]
        %v1264 = vld [vmem:[#allocation5 + $0x7c8] sm:$0xf]
        %v1265 = vld [vmem:[#allocation5 + $0x7cc] sm:$0xf]
        %v1266 = vld [vmem:[#allocation5 + $0x7d0] sm:$0xf]
        %v1267 = vld [vmem:[#allocation5 + $0x7d4] sm:$0xf]
        %v1268 = vld [vmem:[#allocation5 + $0x7d8] sm:$0xf]
        %v1269 = vld [vmem:[#allocation5 + $0x7dc] sm:$0xf]
        %v1270 = vld [vmem:[#allocation5 + $0x7e0] sm:$0xf]
        %v1271 = vld [vmem:[#allocation5 + $0x7e4] sm:$0xf]
        %v1272 = vld [vmem:[#allocation5 + $0x7e8] sm:$0xf]
        %v1273 = vld [vmem:[#allocation5 + $0x7ec] sm:$0xf]
        %v1274 = vld [vmem:[#allocation5 + $0x7f0] sm:$0xf]
        %v1275 = vld [vmem:[#allocation5 + $0x7f4] sm:$0xf]
        %v1276 = vld [vmem:[#allocation5 + $0x7f8] sm:$0xf]
        %v1277 = vld [vmem:[#allocation5 + $0x7fc] sm:$0xf]
        %v1278 = vld [vmem:[#allocation7] sm:$0x1]
        %v1280 = vlaneseq
        %v1281 = vshrl.u32 %v1280, 7
        %v1282 = vsub.s32 0, %v1281
        %v1283 = vrot.slane %v1278, %v1282
        %v1797 = vunpack.c.l.b16 %v766
        %v1798 = vunpack.c.l.b16 %v767
        %v1799 = vunpack.c.l.b16 %v768
        %v1800 = vunpack.c.l.b16 %v769
        %v1801 = vunpack.c.l.b16 %v770
        %v1802 = vunpack.c.l.b16 %v771
        %v1803 = vunpack.c.l.b16 %v772
        %v1804 = vunpack.c.l.b16 %v773
        %v1805 = vunpack.c.l.b16 %v774
        %v1806 = vunpack.c.l.b16 %v775
        %v1807 = vunpack.c.l.b16 %v776
        %v1808 = vunpack.c.l.b16 %v777
        %v1809 = vunpack.c.l.b16 %v778
        %v1810 = vunpack.c.l.b16 %v779
        %v1811 = vunpack.c.l.b16 %v780
        %v1812 = vunpack.c.l.b16 %v781
        %v1813 = vunpack.c.l.b16 %v782
        %v1814 = vunpack.c.l.b16 %v783
        %v1815 = vunpack.c.l.b16 %v784
        %v1816 = vunpack.c.l.b16 %v785
        %v1817 = vunpack.c.l.b16 %v786
        %v1818 = vunpack.c.l.b16 %v787
        %v1819 = vunpack.c.l.b16 %v788
        %v1820 = vunpack.c.l.b16 %v789
        %v1821 = vunpack.c.l.b16 %v790
        %v1822 = vunpack.c.l.b16 %v791
        %v1823 = vunpack.c.l.b16 %v792
        %v1824 = vunpack.c.l.b16 %v793
        %v1825 = vunpack.c.l.b16 %v794
        %v1826 = vunpack.c.l.b16 %v795
        %v1827 = vunpack.c.l.b16 %v796
        %v1828 = vunpack.c.l.b16 %v797
        %v1829 = vunpack.c.l.b16 %v798
        %v1830 = vunpack.c.l.b16 %v799
        %v1831 = vunpack.c.l.b16 %v800
        %v1832 = vunpack.c.l.b16 %v801
        %v1833 = vunpack.c.l.b16 %v802
        %v1834 = vunpack.c.l.b16 %v803
        %v1835 = vunpack.c.l.b16 %v804
        %v1836 = vunpack.c.l.b16 %v805
        %v1837 = vunpack.c.l.b16 %v806
        %v1838 = vunpack.c.l.b16 %v807
        %v1839 = vunpack.c.l.b16 %v808
        %v1840 = vunpack.c.l.b16 %v809
        %v1841 = vunpack.c.l.b16 %v810
        %v1842 = vunpack.c.l.b16 %v811
        %v1843 = vunpack.c.l.b16 %v812
        %v1844 = vunpack.c.l.b16 %v813
        %v1845 = vunpack.c.l.b16 %v814
        %v1846 = vunpack.c.l.b16 %v815
        %v1847 = vunpack.c.l.b16 %v816
        %v1848 = vunpack.c.l.b16 %v817
        %v1849 = vunpack.c.l.b16 %v818
        %v1850 = vunpack.c.l.b16 %v819
        %v1851 = vunpack.c.l.b16 %v820
        %v1852 = vunpack.c.l.b16 %v821
        %v1853 = vunpack.c.l.b16 %v822
        %v1854 = vunpack.c.l.b16 %v823
        %v1855 = vunpack.c.l.b16 %v824
        %v1856 = vunpack.c.l.b16 %v825
        %v1857 = vunpack.c.l.b16 %v826
        %v1858 = vunpack.c.l.b16 %v827
        %v1859 = vunpack.c.l.b16 %v828
        %v1860 = vunpack.c.l.b16 %v829
        %v1861 = vunpack.c.l.b16 %v830
        %v1862 = vunpack.c.l.b16 %v831
        %v1863 = vunpack.c.l.b16 %v832
        %v1864 = vunpack.c.l.b16 %v833
        %v1865 = vunpack.c.l.b16 %v834
        %v1866 = vunpack.c.l.b16 %v835
        %v1867 = vunpack.c.l.b16 %v836
        %v1868 = vunpack.c.l.b16 %v837
        %v1869 = vunpack.c.l.b16 %v838
        %v1870 = vunpack.c.l.b16 %v839
        %v1871 = vunpack.c.l.b16 %v840
        %v1872 = vunpack.c.l.b16 %v841
        %v1873 = vunpack.c.l.b16 %v842
        %v1874 = vunpack.c.l.b16 %v843
        %v1875 = vunpack.c.l.b16 %v844
        %v1876 = vunpack.c.l.b16 %v845
        %v1877 = vunpack.c.l.b16 %v846
        %v1878 = vunpack.c.l.b16 %v847
        %v1879 = vunpack.c.l.b16 %v848
        %v1880 = vunpack.c.l.b16 %v849
        %v1881 = vunpack.c.l.b16 %v850
        %v1882 = vunpack.c.l.b16 %v851
        %v1883 = vunpack.c.l.b16 %v852
        %v1884 = vunpack.c.l.b16 %v853
        %v1885 = vunpack.c.l.b16 %v854
        %v1886 = vunpack.c.l.b16 %v855
        %v1887 = vunpack.c.l.b16 %v856
        %v1888 = vunpack.c.l.b16 %v857
        %v1889 = vunpack.c.l.b16 %v858
        %v1890 = vunpack.c.l.b16 %v859
        %v1891 = vunpack.c.l.b16 %v860
        %v1892 = vunpack.c.l.b16 %v861
        %v1893 = vunpack.c.l.b16 %v862
        %v1894 = vunpack.c.l.b16 %v863
        %v1895 = vunpack.c.l.b16 %v864
        %v1896 = vunpack.c.l.b16 %v865
        %v1897 = vunpack.c.l.b16 %v866
        %v1898 = vunpack.c.l.b16 %v867
        %v1899 = vunpack.c.l.b16 %v868
        %v1900 = vunpack.c.l.b16 %v869
        %v1901 = vunpack.c.l.b16 %v870
        %v1902 = vunpack.c.l.b16 %v871
        %v1903 = vunpack.c.l.b16 %v872
        %v1904 = vunpack.c.l.b16 %v873
        %v1905 = vunpack.c.l.b16 %v874
        %v1906 = vunpack.c.l.b16 %v875
        %v1907 = vunpack.c.l.b16 %v876
        %v1908 = vunpack.c.l.b16 %v877
        %v1909 = vunpack.c.l.b16 %v878
        %v1910 = vunpack.c.l.b16 %v879
        %v1911 = vunpack.c.l.b16 %v880
        %v1912 = vunpack.c.l.b16 %v881
        %v1913 = vunpack.c.l.b16 %v882
        %v1914 = vunpack.c.l.b16 %v883
        %v1915 = vunpack.c.l.b16 %v884
        %v1916 = vunpack.c.l.b16 %v885
        %v1917 = vunpack.c.l.b16 %v886
        %v1918 = vunpack.c.l.b16 %v887
        %v1919 = vunpack.c.l.b16 %v888
        %v1920 = vunpack.c.l.b16 %v889
        %v1921 = vunpack.c.l.b16 %v890
        %v1922 = vunpack.c.l.b16 %v891
        %v1923 = vunpack.c.l.b16 %v892
        %v1924 = vunpack.c.l.b16 %v893
        %v1925 = vunpack.c.l.b16 %v894
        %v1926 = vunpack.c.l.b16 %v895
        %v1927 = vunpack.c.l.b16 %v896
        %v1928 = vunpack.c.l.b16 %v897
        %v1929 = vunpack.c.l.b16 %v898
        %v1930 = vunpack.c.l.b16 %v899
        %v1931 = vunpack.c.l.b16 %v900
        %v1932 = vunpack.c.l.b16 %v901
        %v1933 = vunpack.c.l.b16 %v902
        %v1934 = vunpack.c.l.b16 %v903
        %v1935 = vunpack.c.l.b16 %v904
        %v1936 = vunpack.c.l.b16 %v905
        %v1937 = vunpack.c.l.b16 %v906
        %v1938 = vunpack.c.l.b16 %v907
        %v1939 = vunpack.c.l.b16 %v908
        %v1940 = vunpack.c.l.b16 %v909
        %v1941 = vunpack.c.l.b16 %v910
        %v1942 = vunpack.c.l.b16 %v911
        %v1943 = vunpack.c.l.b16 %v912
        %v1944 = vunpack.c.l.b16 %v913
        %v1945 = vunpack.c.l.b16 %v914
        %v1946 = vunpack.c.l.b16 %v915
        %v1947 = vunpack.c.l.b16 %v916
        %v1948 = vunpack.c.l.b16 %v917
        %v1949 = vunpack.c.l.b16 %v918
        %v1950 = vunpack.c.l.b16 %v919
        %v1951 = vunpack.c.l.b16 %v920
        %v1952 = vunpack.c.l.b16 %v921
        %v1953 = vunpack.c.l.b16 %v922
        %v1954 = vunpack.c.l.b16 %v923
        %v1955 = vunpack.c.l.b16 %v924
        %v1956 = vunpack.c.l.b16 %v925
        %v1957 = vunpack.c.l.b16 %v926
        %v1958 = vunpack.c.l.b16 %v927
        %v1959 = vunpack.c.l.b16 %v928
        %v1960 = vunpack.c.l.b16 %v929
        %v1961 = vunpack.c.l.b16 %v930
        %v1962 = vunpack.c.l.b16 %v931
        %v1963 = vunpack.c.l.b16 %v932
        %v1964 = vunpack.c.l.b16 %v933
        %v1965 = vunpack.c.l.b16 %v934
        %v1966 = vunpack.c.l.b16 %v935
        %v1967 = vunpack.c.l.b16 %v936
        %v1968 = vunpack.c.l.b16 %v937
        %v1969 = vunpack.c.l.b16 %v938
        %v1970 = vunpack.c.l.b16 %v939
        %v1971 = vunpack.c.l.b16 %v940
        %v1972 = vunpack.c.l.b16 %v941
        %v1973 = vunpack.c.l.b16 %v942
        %v1974 = vunpack.c.l.b16 %v943
        %v1975 = vunpack.c.l.b16 %v944
        %v1976 = vunpack.c.l.b16 %v945
        %v1977 = vunpack.c.l.b16 %v946
        %v1978 = vunpack.c.l.b16 %v947
        %v1979 = vunpack.c.l.b16 %v948
        %v1980 = vunpack.c.l.b16 %v949
        %v1981 = vunpack.c.l.b16 %v950
        %v1982 = vunpack.c.l.b16 %v951
        %v1983 = vunpack.c.l.b16 %v952
        %v1984 = vunpack.c.l.b16 %v953
        %v1985 = vunpack.c.l.b16 %v954
        %v1986 = vunpack.c.l.b16 %v955
        %v1987 = vunpack.c.l.b16 %v956
        %v1988 = vunpack.c.l.b16 %v957
        %v1989 = vunpack.c.l.b16 %v958
        %v1990 = vunpack.c.l.b16 %v959
        %v1991 = vunpack.c.l.b16 %v960
        %v1992 = vunpack.c.l.b16 %v961
        %v1993 = vunpack.c.l.b16 %v962
        %v1994 = vunpack.c.l.b16 %v963
        %v1995 = vunpack.c.l.b16 %v964
        %v1996 = vunpack.c.l.b16 %v965
        %v1997 = vunpack.c.l.b16 %v966
        %v1998 = vunpack.c.l.b16 %v967
        %v1999 = vunpack.c.l.b16 %v968
        %v2000 = vunpack.c.l.b16 %v969
        %v2001 = vunpack.c.l.b16 %v970
        %v2002 = vunpack.c.l.b16 %v971
        %v2003 = vunpack.c.l.b16 %v972
        %v2004 = vunpack.c.l.b16 %v973
        %v2005 = vunpack.c.l.b16 %v974
        %v2006 = vunpack.c.l.b16 %v975
        %v2007 = vunpack.c.l.b16 %v976
        %v2008 = vunpack.c.l.b16 %v977
        %v2009 = vunpack.c.l.b16 %v978
        %v2010 = vunpack.c.l.b16 %v979
        %v2011 = vunpack.c.l.b16 %v980
        %v2012 = vunpack.c.l.b16 %v981
        %v2013 = vunpack.c.l.b16 %v982
        %v2014 = vunpack.c.l.b16 %v983
        %v2015 = vunpack.c.l.b16 %v984
        %v2016 = vunpack.c.l.b16 %v985
        %v2017 = vunpack.c.l.b16 %v986
        %v2018 = vunpack.c.l.b16 %v987
        %v2019 = vunpack.c.l.b16 %v988
        %v2020 = vunpack.c.l.b16 %v989
        %v2021 = vunpack.c.l.b16 %v990
        %v2022 = vunpack.c.l.b16 %v991
        %v2023 = vunpack.c.l.b16 %v992
        %v2024 = vunpack.c.l.b16 %v993
        %v2025 = vunpack.c.l.b16 %v994
        %v2026 = vunpack.c.l.b16 %v995
        %v2027 = vunpack.c.l.b16 %v996
        %v2028 = vunpack.c.l.b16 %v997
        %v2029 = vunpack.c.l.b16 %v998
        %v2030 = vunpack.c.l.b16 %v999
        %v2031 = vunpack.c.l.b16 %v1000
        %v2032 = vunpack.c.l.b16 %v1001
        %v2033 = vunpack.c.l.b16 %v1002
        %v2034 = vunpack.c.l.b16 %v1003
        %v2035 = vunpack.c.l.b16 %v1004
        %v2036 = vunpack.c.l.b16 %v1005
        %v2037 = vunpack.c.l.b16 %v1006
        %v2038 = vunpack.c.l.b16 %v1007
        %v2039 = vunpack.c.l.b16 %v1008
        %v2040 = vunpack.c.l.b16 %v1009
        %v2041 = vunpack.c.l.b16 %v1010
        %v2042 = vunpack.c.l.b16 %v1011
        %v2043 = vunpack.c.l.b16 %v1012
        %v2044 = vunpack.c.l.b16 %v1013
        %v2045 = vunpack.c.l.b16 %v1014
        %v2046 = vunpack.c.l.b16 %v1015
        %v2047 = vunpack.c.l.b16 %v1016
        %v2048 = vunpack.c.l.b16 %v1017
        %v2049 = vunpack.c.l.b16 %v1018
        %v2050 = vunpack.c.l.b16 %v1019
        %v2051 = vunpack.c.l.b16 %v1020
        %v2052 = vunpack.c.l.b16 %v1021
        %v2053 = vunpack.c.l.b16 %v1022
        %v2054 = vunpack.c.l.b16 %v1023
        %v2055 = vunpack.c.l.b16 %v1024
        %v2056 = vunpack.c.l.b16 %v1025
        %v2057 = vunpack.c.l.b16 %v1026
        %v2058 = vunpack.c.l.b16 %v1027
        %v2059 = vunpack.c.l.b16 %v1028
        %v2060 = vunpack.c.l.b16 %v1029
        %v2061 = vunpack.c.l.b16 %v1030
        %v2062 = vunpack.c.l.b16 %v1031
        %v2063 = vunpack.c.l.b16 %v1032
        %v2064 = vunpack.c.l.b16 %v1033
        %v2065 = vunpack.c.l.b16 %v1034
        %v2066 = vunpack.c.l.b16 %v1035
        %v2067 = vunpack.c.l.b16 %v1036
        %v2068 = vunpack.c.l.b16 %v1037
        %v2069 = vunpack.c.l.b16 %v1038
        %v2070 = vunpack.c.l.b16 %v1039
        %v2071 = vunpack.c.l.b16 %v1040
        %v2072 = vunpack.c.l.b16 %v1041
        %v2073 = vunpack.c.l.b16 %v1042
        %v2074 = vunpack.c.l.b16 %v1043
        %v2075 = vunpack.c.l.b16 %v1044
        %v2076 = vunpack.c.l.b16 %v1045
        %v2077 = vunpack.c.l.b16 %v1046
        %v2078 = vunpack.c.l.b16 %v1047
        %v2079 = vunpack.c.l.b16 %v1048
        %v2080 = vunpack.c.l.b16 %v1049
        %v2081 = vunpack.c.l.b16 %v1050
        %v2082 = vunpack.c.l.b16 %v1051
        %v2083 = vunpack.c.l.b16 %v1052
        %v2084 = vunpack.c.l.b16 %v1053
        %v2085 = vunpack.c.l.b16 %v1054
        %v2086 = vunpack.c.l.b16 %v1055
        %v2087 = vunpack.c.l.b16 %v1056
        %v2088 = vunpack.c.l.b16 %v1057
        %v2089 = vunpack.c.l.b16 %v1058
        %v2090 = vunpack.c.l.b16 %v1059
        %v2091 = vunpack.c.l.b16 %v1060
        %v2092 = vunpack.c.l.b16 %v1061
        %v2093 = vunpack.c.l.b16 %v1062
        %v2094 = vunpack.c.l.b16 %v1063
        %v2095 = vunpack.c.l.b16 %v1064
        %v2096 = vunpack.c.l.b16 %v1065
        %v2097 = vunpack.c.l.b16 %v1066
        %v2098 = vunpack.c.l.b16 %v1067
        %v2099 = vunpack.c.l.b16 %v1068
        %v2100 = vunpack.c.l.b16 %v1069
        %v2101 = vunpack.c.l.b16 %v1070
        %v2102 = vunpack.c.l.b16 %v1071
        %v2103 = vunpack.c.l.b16 %v1072
        %v2104 = vunpack.c.l.b16 %v1073
        %v2105 = vunpack.c.l.b16 %v1074
        %v2106 = vunpack.c.l.b16 %v1075
        %v2107 = vunpack.c.l.b16 %v1076
        %v2108 = vunpack.c.l.b16 %v1077
        %v2109 = vunpack.c.l.b16 %v1078
        %v2110 = vunpack.c.l.b16 %v1079
        %v2111 = vunpack.c.l.b16 %v1080
        %v2112 = vunpack.c.l.b16 %v1081
        %v2113 = vunpack.c.l.b16 %v1082
        %v2114 = vunpack.c.l.b16 %v1083
        %v2115 = vunpack.c.l.b16 %v1084
        %v2116 = vunpack.c.l.b16 %v1085
        %v2117 = vunpack.c.l.b16 %v1086
        %v2118 = vunpack.c.l.b16 %v1087
        %v2119 = vunpack.c.l.b16 %v1088
        %v2120 = vunpack.c.l.b16 %v1089
        %v2121 = vunpack.c.l.b16 %v1090
        %v2122 = vunpack.c.l.b16 %v1091
        %v2123 = vunpack.c.l.b16 %v1092
        %v2124 = vunpack.c.l.b16 %v1093
        %v2125 = vunpack.c.l.b16 %v1094
        %v2126 = vunpack.c.l.b16 %v1095
        %v2127 = vunpack.c.l.b16 %v1096
        %v2128 = vunpack.c.l.b16 %v1097
        %v2129 = vunpack.c.l.b16 %v1098
        %v2130 = vunpack.c.l.b16 %v1099
        %v2131 = vunpack.c.l.b16 %v1100
        %v2132 = vunpack.c.l.b16 %v1101
        %v2133 = vunpack.c.l.b16 %v1102
        %v2134 = vunpack.c.l.b16 %v1103
        %v2135 = vunpack.c.l.b16 %v1104
        %v2136 = vunpack.c.l.b16 %v1105
        %v2137 = vunpack.c.l.b16 %v1106
        %v2138 = vunpack.c.l.b16 %v1107
        %v2139 = vunpack.c.l.b16 %v1108
        %v2140 = vunpack.c.l.b16 %v1109
        %v2141 = vunpack.c.l.b16 %v1110
        %v2142 = vunpack.c.l.b16 %v1111
        %v2143 = vunpack.c.l.b16 %v1112
        %v2144 = vunpack.c.l.b16 %v1113
        %v2145 = vunpack.c.l.b16 %v1114
        %v2146 = vunpack.c.l.b16 %v1115
        %v2147 = vunpack.c.l.b16 %v1116
        %v2148 = vunpack.c.l.b16 %v1117
        %v2149 = vunpack.c.l.b16 %v1118
        %v2150 = vunpack.c.l.b16 %v1119
        %v2151 = vunpack.c.l.b16 %v1120
        %v2152 = vunpack.c.l.b16 %v1121
        %v2153 = vunpack.c.l.b16 %v1122
        %v2154 = vunpack.c.l.b16 %v1123
        %v2155 = vunpack.c.l.b16 %v1124
        %v2156 = vunpack.c.l.b16 %v1125
        %v2157 = vunpack.c.l.b16 %v1126
        %v2158 = vunpack.c.l.b16 %v1127
        %v2159 = vunpack.c.l.b16 %v1128
        %v2160 = vunpack.c.l.b16 %v1129
        %v2161 = vunpack.c.l.b16 %v1130
        %v2162 = vunpack.c.l.b16 %v1131
        %v2163 = vunpack.c.l.b16 %v1132
        %v2164 = vunpack.c.l.b16 %v1133
        %v2165 = vunpack.c.l.b16 %v1134
        %v2166 = vunpack.c.l.b16 %v1135
        %v2167 = vunpack.c.l.b16 %v1136
        %v2168 = vunpack.c.l.b16 %v1137
        %v2169 = vunpack.c.l.b16 %v1138
        %v2170 = vunpack.c.l.b16 %v1139
        %v2171 = vunpack.c.l.b16 %v1140
        %v2172 = vunpack.c.l.b16 %v1141
        %v2173 = vunpack.c.l.b16 %v1142
        %v2174 = vunpack.c.l.b16 %v1143
        %v2175 = vunpack.c.l.b16 %v1144
        %v2176 = vunpack.c.l.b16 %v1145
        %v2177 = vunpack.c.l.b16 %v1146
        %v2178 = vunpack.c.l.b16 %v1147
        %v2179 = vunpack.c.l.b16 %v1148
        %v2180 = vunpack.c.l.b16 %v1149
        %v2181 = vunpack.c.l.b16 %v1150
        %v2182 = vunpack.c.l.b16 %v1151
        %v2183 = vunpack.c.l.b16 %v1152
        %v2184 = vunpack.c.l.b16 %v1153
        %v2185 = vunpack.c.l.b16 %v1154
        %v2186 = vunpack.c.l.b16 %v1155
        %v2187 = vunpack.c.l.b16 %v1156
        %v2188 = vunpack.c.l.b16 %v1157
        %v2189 = vunpack.c.l.b16 %v1158
        %v2190 = vunpack.c.l.b16 %v1159
        %v2191 = vunpack.c.l.b16 %v1160
        %v2192 = vunpack.c.l.b16 %v1161
        %v2193 = vunpack.c.l.b16 %v1162
        %v2194 = vunpack.c.l.b16 %v1163
        %v2195 = vunpack.c.l.b16 %v1164
        %v2196 = vunpack.c.l.b16 %v1165
        %v2197 = vunpack.c.l.b16 %v1166
        %v2198 = vunpack.c.l.b16 %v1167
        %v2199 = vunpack.c.l.b16 %v1168
        %v2200 = vunpack.c.l.b16 %v1169
        %v2201 = vunpack.c.l.b16 %v1170
        %v2202 = vunpack.c.l.b16 %v1171
        %v2203 = vunpack.c.l.b16 %v1172
        %v2204 = vunpack.c.l.b16 %v1173
        %v2205 = vunpack.c.l.b16 %v1174
        %v2206 = vunpack.c.l.b16 %v1175
        %v2207 = vunpack.c.l.b16 %v1176
        %v2208 = vunpack.c.l.b16 %v1177
        %v2209 = vunpack.c.l.b16 %v1178
        %v2210 = vunpack.c.l.b16 %v1179
        %v2211 = vunpack.c.l.b16 %v1180
        %v2212 = vunpack.c.l.b16 %v1181
        %v2213 = vunpack.c.l.b16 %v1182
        %v2214 = vunpack.c.l.b16 %v1183
        %v2215 = vunpack.c.l.b16 %v1184
        %v2216 = vunpack.c.l.b16 %v1185
        %v2217 = vunpack.c.l.b16 %v1186
        %v2218 = vunpack.c.l.b16 %v1187
        %v2219 = vunpack.c.l.b16 %v1188
        %v2220 = vunpack.c.l.b16 %v1189
        %v2221 = vunpack.c.l.b16 %v1190
        %v2222 = vunpack.c.l.b16 %v1191
        %v2223 = vunpack.c.l.b16 %v1192
        %v2224 = vunpack.c.l.b16 %v1193
        %v2225 = vunpack.c.l.b16 %v1194
        %v2226 = vunpack.c.l.b16 %v1195
        %v2227 = vunpack.c.l.b16 %v1196
        %v2228 = vunpack.c.l.b16 %v1197
        %v2229 = vunpack.c.l.b16 %v1198
        %v2230 = vunpack.c.l.b16 %v1199
        %v2231 = vunpack.c.l.b16 %v1200
        %v2232 = vunpack.c.l.b16 %v1201
        %v2233 = vunpack.c.l.b16 %v1202
        %v2234 = vunpack.c.l.b16 %v1203
        %v2235 = vunpack.c.l.b16 %v1204
        %v2236 = vunpack.c.l.b16 %v1205
        %v2237 = vunpack.c.l.b16 %v1206
        %v2238 = vunpack.c.l.b16 %v1207
        %v2239 = vunpack.c.l.b16 %v1208
        %v2240 = vunpack.c.l.b16 %v1209
        %v2241 = vunpack.c.l.b16 %v1210
        %v2242 = vunpack.c.l.b16 %v1211
        %v2243 = vunpack.c.l.b16 %v1212
        %v2244 = vunpack.c.l.b16 %v1213
        %v2245 = vunpack.c.l.b16 %v1214
        %v2246 = vunpack.c.l.b16 %v1215
        %v2247 = vunpack.c.l.b16 %v1216
        %v2248 = vunpack.c.l.b16 %v1217
        %v2249 = vunpack.c.l.b16 %v1218
        %v2250 = vunpack.c.l.b16 %v1219
        %v2251 = vunpack.c.l.b16 %v1220
        %v2252 = vunpack.c.l.b16 %v1221
        %v2253 = vunpack.c.l.b16 %v1222
        %v2254 = vunpack.c.l.b16 %v1223
        %v2255 = vunpack.c.l.b16 %v1224
        %v2256 = vunpack.c.l.b16 %v1225
        %v2257 = vunpack.c.l.b16 %v1226
        %v2258 = vunpack.c.l.b16 %v1227
        %v2259 = vunpack.c.l.b16 %v1228
        %v2260 = vunpack.c.l.b16 %v1229
        %v2261 = vunpack.c.l.b16 %v1230
        %v2262 = vunpack.c.l.b16 %v1231
        %v2263 = vunpack.c.l.b16 %v1232
        %v2264 = vunpack.c.l.b16 %v1233
        %v2265 = vunpack.c.l.b16 %v1234
        %v2266 = vunpack.c.l.b16 %v1235
        %v2267 = vunpack.c.l.b16 %v1236
        %v2268 = vunpack.c.l.b16 %v1237
        %v2269 = vunpack.c.l.b16 %v1238
        %v2270 = vunpack.c.l.b16 %v1239
        %v2271 = vunpack.c.l.b16 %v1240
        %v2272 = vunpack.c.l.b16 %v1241
        %v2273 = vunpack.c.l.b16 %v1242
        %v2274 = vunpack.c.l.b16 %v1243
        %v2275 = vunpack.c.l.b16 %v1244
        %v2276 = vunpack.c.l.b16 %v1245
        %v2277 = vunpack.c.l.b16 %v1246
        %v2278 = vunpack.c.l.b16 %v1247
        %v2279 = vunpack.c.l.b16 %v1248
        %v2280 = vunpack.c.l.b16 %v1249
        %v2281 = vunpack.c.l.b16 %v1250
        %v2282 = vunpack.c.l.b16 %v1251
        %v2283 = vunpack.c.l.b16 %v1252
        %v2284 = vunpack.c.l.b16 %v1253
        %v2285 = vunpack.c.l.b16 %v1254
        %v2286 = vunpack.c.l.b16 %v1255
        %v2287 = vunpack.c.l.b16 %v1256
        %v2288 = vunpack.c.l.b16 %v1257
        %v2289 = vunpack.c.l.b16 %v1258
        %v2290 = vunpack.c.l.b16 %v1259
        %v2291 = vunpack.c.l.b16 %v1260
        %v2292 = vunpack.c.l.b16 %v1261
        %v2293 = vunpack.c.l.b16 %v1262
        %v2294 = vunpack.c.l.b16 %v1263
        %v2295 = vunpack.c.l.b16 %v1264
        %v2296 = vunpack.c.l.b16 %v1265
        %v2297 = vunpack.c.l.b16 %v1266
        %v2298 = vunpack.c.l.b16 %v1267
        %v2299 = vunpack.c.l.b16 %v1268
        %v2300 = vunpack.c.l.b16 %v1269
        %v2301 = vunpack.c.l.b16 %v1270
        %v2302 = vunpack.c.l.b16 %v1271
        %v2303 = vunpack.c.l.b16 %v1272
        %v2304 = vunpack.c.l.b16 %v1273
        %v2305 = vunpack.c.l.b16 %v1274
        %v2306 = vunpack.c.l.b16 %v1275
        %v2307 = vunpack.c.l.b16 %v1276
        %v2308 = vunpack.c.l.b16 %v1277
        %v2309 = vpack.c.b16 %v1798, %v1797
        %v2310 = vpack.c.b16 %v1800, %v1799
        %v2311 = vpack.c.b16 %v1802, %v1801
        %v2312 = vpack.c.b16 %v1804, %v1803
        %v2313 = vpack.c.b16 %v1806, %v1805
        %v2314 = vpack.c.b16 %v1808, %v1807
        %v2315 = vpack.c.b16 %v1810, %v1809
        %v2316 = vpack.c.b16 %v1812, %v1811
        %v2317 = vpack.c.b16 %v1814, %v1813
        %v2318 = vpack.c.b16 %v1816, %v1815
        %v2319 = vpack.c.b16 %v1818, %v1817
        %v2320 = vpack.c.b16 %v1820, %v1819
        %v2321 = vpack.c.b16 %v1822, %v1821
        %v2322 = vpack.c.b16 %v1824, %v1823
        %v2323 = vpack.c.b16 %v1826, %v1825
        %v2324 = vpack.c.b16 %v1828, %v1827
        %v2325 = vpack.c.b16 %v1830, %v1829
        %v2326 = vpack.c.b16 %v1832, %v1831
        %v2327 = vpack.c.b16 %v1834, %v1833
        %v2328 = vpack.c.b16 %v1836, %v1835
        %v2329 = vpack.c.b16 %v1838, %v1837
        %v2330 = vpack.c.b16 %v1840, %v1839
        %v2331 = vpack.c.b16 %v1842, %v1841
        %v2332 = vpack.c.b16 %v1844, %v1843
        %v2333 = vpack.c.b16 %v1846, %v1845
        %v2334 = vpack.c.b16 %v1848, %v1847
        %v2335 = vpack.c.b16 %v1850, %v1849
        %v2336 = vpack.c.b16 %v1852, %v1851
        %v2337 = vpack.c.b16 %v1854, %v1853
        %v2338 = vpack.c.b16 %v1856, %v1855
        %v2339 = vpack.c.b16 %v1858, %v1857
        %v2340 = vpack.c.b16 %v1860, %v1859
        %v2341 = vpack.c.b16 %v1862, %v1861
        %v2342 = vpack.c.b16 %v1864, %v1863
        %v2343 = vpack.c.b16 %v1866, %v1865
        %v2344 = vpack.c.b16 %v1868, %v1867
        %v2345 = vpack.c.b16 %v1870, %v1869
        %v2346 = vpack.c.b16 %v1872, %v1871
        %v2347 = vpack.c.b16 %v1874, %v1873
        %v2348 = vpack.c.b16 %v1876, %v1875
        %v2349 = vpack.c.b16 %v1878, %v1877
        %v2350 = vpack.c.b16 %v1880, %v1879
        %v2351 = vpack.c.b16 %v1882, %v1881
        %v2352 = vpack.c.b16 %v1884, %v1883
        %v2353 = vpack.c.b16 %v1886, %v1885
        %v2354 = vpack.c.b16 %v1888, %v1887
        %v2355 = vpack.c.b16 %v1890, %v1889
        %v2356 = vpack.c.b16 %v1892, %v1891
        %v2357 = vpack.c.b16 %v1894, %v1893
        %v2358 = vpack.c.b16 %v1896, %v1895
        %v2359 = vpack.c.b16 %v1898, %v1897
        %v2360 = vpack.c.b16 %v1900, %v1899
        %v2361 = vpack.c.b16 %v1902, %v1901
        %v2362 = vpack.c.b16 %v1904, %v1903
        %v2363 = vpack.c.b16 %v1906, %v1905
        %v2364 = vpack.c.b16 %v1908, %v1907
        %v2365 = vpack.c.b16 %v1910, %v1909
        %v2366 = vpack.c.b16 %v1912, %v1911
        %v2367 = vpack.c.b16 %v1914, %v1913
        %v2368 = vpack.c.b16 %v1916, %v1915
        %v2369 = vpack.c.b16 %v1918, %v1917
        %v2370 = vpack.c.b16 %v1920, %v1919
        %v2371 = vpack.c.b16 %v1922, %v1921
        %v2372 = vpack.c.b16 %v1924, %v1923
        %v2373 = vpack.c.b16 %v1926, %v1925
        %v2374 = vpack.c.b16 %v1928, %v1927
        %v2375 = vpack.c.b16 %v1930, %v1929
        %v2376 = vpack.c.b16 %v1932, %v1931
        %v2377 = vpack.c.b16 %v1934, %v1933
        %v2378 = vpack.c.b16 %v1936, %v1935
        %v2379 = vpack.c.b16 %v1938, %v1937
        %v2380 = vpack.c.b16 %v1940, %v1939
        %v2381 = vpack.c.b16 %v1942, %v1941
        %v2382 = vpack.c.b16 %v1944, %v1943
        %v2383 = vpack.c.b16 %v1946, %v1945
        %v2384 = vpack.c.b16 %v1948, %v1947
        %v2385 = vpack.c.b16 %v1950, %v1949
        %v2386 = vpack.c.b16 %v1952, %v1951
        %v2387 = vpack.c.b16 %v1954, %v1953
        %v2388 = vpack.c.b16 %v1956, %v1955
        %v2389 = vpack.c.b16 %v1958, %v1957
        %v2390 = vpack.c.b16 %v1960, %v1959
        %v2391 = vpack.c.b16 %v1962, %v1961
        %v2392 = vpack.c.b16 %v1964, %v1963
        %v2393 = vpack.c.b16 %v1966, %v1965
        %v2394 = vpack.c.b16 %v1968, %v1967
        %v2395 = vpack.c.b16 %v1970, %v1969
        %v2396 = vpack.c.b16 %v1972, %v1971
        %v2397 = vpack.c.b16 %v1974, %v1973
        %v2398 = vpack.c.b16 %v1976, %v1975
        %v2399 = vpack.c.b16 %v1978, %v1977
        %v2400 = vpack.c.b16 %v1980, %v1979
        %v2401 = vpack.c.b16 %v1982, %v1981
        %v2402 = vpack.c.b16 %v1984, %v1983
        %v2403 = vpack.c.b16 %v1986, %v1985
        %v2404 = vpack.c.b16 %v1988, %v1987
        %v2405 = vpack.c.b16 %v1990, %v1989
        %v2406 = vpack.c.b16 %v1992, %v1991
        %v2407 = vpack.c.b16 %v1994, %v1993
        %v2408 = vpack.c.b16 %v1996, %v1995
        %v2409 = vpack.c.b16 %v1998, %v1997
        %v2410 = vpack.c.b16 %v2000, %v1999
        %v2411 = vpack.c.b16 %v2002, %v2001
        %v2412 = vpack.c.b16 %v2004, %v2003
        %v2413 = vpack.c.b16 %v2006, %v2005
        %v2414 = vpack.c.b16 %v2008, %v2007
        %v2415 = vpack.c.b16 %v2010, %v2009
        %v2416 = vpack.c.b16 %v2012, %v2011
        %v2417 = vpack.c.b16 %v2014, %v2013
        %v2418 = vpack.c.b16 %v2016, %v2015
        %v2419 = vpack.c.b16 %v2018, %v2017
        %v2420 = vpack.c.b16 %v2020, %v2019
        %v2421 = vpack.c.b16 %v2022, %v2021
        %v2422 = vpack.c.b16 %v2024, %v2023
        %v2423 = vpack.c.b16 %v2026, %v2025
        %v2424 = vpack.c.b16 %v2028, %v2027
        %v2425 = vpack.c.b16 %v2030, %v2029
        %v2426 = vpack.c.b16 %v2032, %v2031
        %v2427 = vpack.c.b16 %v2034, %v2033
        %v2428 = vpack.c.b16 %v2036, %v2035
        %v2429 = vpack.c.b16 %v2038, %v2037
        %v2430 = vpack.c.b16 %v2040, %v2039
        %v2431 = vpack.c.b16 %v2042, %v2041
        %v2432 = vpack.c.b16 %v2044, %v2043
        %v2433 = vpack.c.b16 %v2046, %v2045
        %v2434 = vpack.c.b16 %v2048, %v2047
        %v2435 = vpack.c.b16 %v2050, %v2049
        %v2436 = vpack.c.b16 %v2052, %v2051
        %v2437 = vpack.c.b16 %v2054, %v2053
        %v2438 = vpack.c.b16 %v2056, %v2055
        %v2439 = vpack.c.b16 %v2058, %v2057
        %v2440 = vpack.c.b16 %v2060, %v2059
        %v2441 = vpack.c.b16 %v2062, %v2061
        %v2442 = vpack.c.b16 %v2064, %v2063
        %v2443 = vpack.c.b16 %v2066, %v2065
        %v2444 = vpack.c.b16 %v2068, %v2067
        %v2445 = vpack.c.b16 %v2070, %v2069
        %v2446 = vpack.c.b16 %v2072, %v2071
        %v2447 = vpack.c.b16 %v2074, %v2073
        %v2448 = vpack.c.b16 %v2076, %v2075
        %v2449 = vpack.c.b16 %v2078, %v2077
        %v2450 = vpack.c.b16 %v2080, %v2079
        %v2451 = vpack.c.b16 %v2082, %v2081
        %v2452 = vpack.c.b16 %v2084, %v2083
        %v2453 = vpack.c.b16 %v2086, %v2085
        %v2454 = vpack.c.b16 %v2088, %v2087
        %v2455 = vpack.c.b16 %v2090, %v2089
        %v2456 = vpack.c.b16 %v2092, %v2091
        %v2457 = vpack.c.b16 %v2094, %v2093
        %v2458 = vpack.c.b16 %v2096, %v2095
        %v2459 = vpack.c.b16 %v2098, %v2097
        %v2460 = vpack.c.b16 %v2100, %v2099
        %v2461 = vpack.c.b16 %v2102, %v2101
        %v2462 = vpack.c.b16 %v2104, %v2103
        %v2463 = vpack.c.b16 %v2106, %v2105
        %v2464 = vpack.c.b16 %v2108, %v2107
        %v2465 = vpack.c.b16 %v2110, %v2109
        %v2466 = vpack.c.b16 %v2112, %v2111
        %v2467 = vpack.c.b16 %v2114, %v2113
        %v2468 = vpack.c.b16 %v2116, %v2115
        %v2469 = vpack.c.b16 %v2118, %v2117
        %v2470 = vpack.c.b16 %v2120, %v2119
        %v2471 = vpack.c.b16 %v2122, %v2121
        %v2472 = vpack.c.b16 %v2124, %v2123
        %v2473 = vpack.c.b16 %v2126, %v2125
        %v2474 = vpack.c.b16 %v2128, %v2127
        %v2475 = vpack.c.b16 %v2130, %v2129
        %v2476 = vpack.c.b16 %v2132, %v2131
        %v2477 = vpack.c.b16 %v2134, %v2133
        %v2478 = vpack.c.b16 %v2136, %v2135
        %v2479 = vpack.c.b16 %v2138, %v2137
        %v2480 = vpack.c.b16 %v2140, %v2139
        %v2481 = vpack.c.b16 %v2142, %v2141
        %v2482 = vpack.c.b16 %v2144, %v2143
        %v2483 = vpack.c.b16 %v2146, %v2145
        %v2484 = vpack.c.b16 %v2148, %v2147
        %v2485 = vpack.c.b16 %v2150, %v2149
        %v2486 = vpack.c.b16 %v2152, %v2151
        %v2487 = vpack.c.b16 %v2154, %v2153
        %v2488 = vpack.c.b16 %v2156, %v2155
        %v2489 = vpack.c.b16 %v2158, %v2157
        %v2490 = vpack.c.b16 %v2160, %v2159
        %v2491 = vpack.c.b16 %v2162, %v2161
        %v2492 = vpack.c.b16 %v2164, %v2163
        %v2493 = vpack.c.b16 %v2166, %v2165
        %v2494 = vpack.c.b16 %v2168, %v2167
        %v2495 = vpack.c.b16 %v2170, %v2169
        %v2496 = vpack.c.b16 %v2172, %v2171
        %v2497 = vpack.c.b16 %v2174, %v2173
        %v2498 = vpack.c.b16 %v2176, %v2175
        %v2499 = vpack.c.b16 %v2178, %v2177
        %v2500 = vpack.c.b16 %v2180, %v2179
        %v2501 = vpack.c.b16 %v2182, %v2181
        %v2502 = vpack.c.b16 %v2184, %v2183
        %v2503 = vpack.c.b16 %v2186, %v2185
        %v2504 = vpack.c.b16 %v2188, %v2187
        %v2505 = vpack.c.b16 %v2190, %v2189
        %v2506 = vpack.c.b16 %v2192, %v2191
        %v2507 = vpack.c.b16 %v2194, %v2193
        %v2508 = vpack.c.b16 %v2196, %v2195
        %v2509 = vpack.c.b16 %v2198, %v2197
        %v2510 = vpack.c.b16 %v2200, %v2199
        %v2511 = vpack.c.b16 %v2202, %v2201
        %v2512 = vpack.c.b16 %v2204, %v2203
        %v2513 = vpack.c.b16 %v2206, %v2205
        %v2514 = vpack.c.b16 %v2208, %v2207
        %v2515 = vpack.c.b16 %v2210, %v2209
        %v2516 = vpack.c.b16 %v2212, %v2211
        %v2517 = vpack.c.b16 %v2214, %v2213
        %v2518 = vpack.c.b16 %v2216, %v2215
        %v2519 = vpack.c.b16 %v2218, %v2217
        %v2520 = vpack.c.b16 %v2220, %v2219
        %v2521 = vpack.c.b16 %v2222, %v2221
        %v2522 = vpack.c.b16 %v2224, %v2223
        %v2523 = vpack.c.b16 %v2226, %v2225
        %v2524 = vpack.c.b16 %v2228, %v2227
        %v2525 = vpack.c.b16 %v2230, %v2229
        %v2526 = vpack.c.b16 %v2232, %v2231
        %v2527 = vpack.c.b16 %v2234, %v2233
        %v2528 = vpack.c.b16 %v2236, %v2235
        %v2529 = vpack.c.b16 %v2238, %v2237
        %v2530 = vpack.c.b16 %v2240, %v2239
        %v2531 = vpack.c.b16 %v2242, %v2241
        %v2532 = vpack.c.b16 %v2244, %v2243
        %v2533 = vpack.c.b16 %v2246, %v2245
        %v2534 = vpack.c.b16 %v2248, %v2247
        %v2535 = vpack.c.b16 %v2250, %v2249
        %v2536 = vpack.c.b16 %v2252, %v2251
        %v2537 = vpack.c.b16 %v2254, %v2253
        %v2538 = vpack.c.b16 %v2256, %v2255
        %v2539 = vpack.c.b16 %v2258, %v2257
        %v2540 = vpack.c.b16 %v2260, %v2259
        %v2541 = vpack.c.b16 %v2262, %v2261
        %v2542 = vpack.c.b16 %v2264, %v2263
        %v2543 = vpack.c.b16 %v2266, %v2265
        %v2544 = vpack.c.b16 %v2268, %v2267
        %v2545 = vpack.c.b16 %v2270, %v2269
        %v2546 = vpack.c.b16 %v2272, %v2271
        %v2547 = vpack.c.b16 %v2274, %v2273
        %v2548 = vpack.c.b16 %v2276, %v2275
        %v2549 = vpack.c.b16 %v2278, %v2277
        %v2550 = vpack.c.b16 %v2280, %v2279
        %v2551 = vpack.c.b16 %v2282, %v2281
        %v2552 = vpack.c.b16 %v2284, %v2283
        %v2553 = vpack.c.b16 %v2286, %v2285
        %v2554 = vpack.c.b16 %v2288, %v2287
        %v2555 = vpack.c.b16 %v2290, %v2289
        %v2556 = vpack.c.b16 %v2292, %v2291
        %v2557 = vpack.c.b16 %v2294, %v2293
        %v2558 = vpack.c.b16 %v2296, %v2295
        %v2559 = vpack.c.b16 %v2298, %v2297
        %v2560 = vpack.c.b16 %v2300, %v2299
        %v2561 = vpack.c.b16 %v2302, %v2301
        %v2562 = vpack.c.b16 %v2304, %v2303
        %v2563 = vpack.c.b16 %v2306, %v2305
        %v2564 = vpack.c.b16 %v2308, %v2307
        %2821 = vmatprep.subr.bf16.mxu0 0
        %2822 = vmatpush1.bf16.msra.mxu0 %v2316
        %2823 = vmatprep.subr.bf16.mxu0 0
        %2824 = vmatpush1.bf16.msra.mxu0 %v2315
        %2825 = vmatprep.subr.bf16.mxu0 0
        %2826 = vmatpush1.bf16.msra.mxu0 %v2314
        %2827 = vmatprep.subr.bf16.mxu0 0
        %2828 = vmatpush1.bf16.msra.mxu0 %v2313
        %2829 = vmatprep.subr.bf16.mxu0 0
        %2830 = vmatpush1.bf16.msra.mxu0 %v2312
        %2831 = vmatprep.subr.bf16.mxu0 0
        %2832 = vmatpush1.bf16.msra.mxu0 %v2311
        %2833 = vmatprep.subr.bf16.mxu0 0
        %2834 = vmatpush1.bf16.msra.mxu0 %v2310
        %2835 = vmatprep.subr.bf16.mxu0 0
        %2836 = vmatpush1.bf16.msra.mxu0 %v2309
        %2837 = vmatprep.subr.bf16.mxu0 0
        %2838 = vmatpush2.bf16.msra.mxu0 %v2324
        %2839 = vmatprep.subr.bf16.mxu0 0
        %2840 = vmatpush2.bf16.msra.mxu0 %v2323
        %2841 = vmatprep.subr.bf16.mxu0 0
        %2842 = vmatpush2.bf16.msra.mxu0 %v2322
        %2843 = vmatprep.subr.bf16.mxu0 0
        %2844 = vmatpush2.bf16.msra.mxu0 %v2321
        %2845 = vmatprep.subr.bf16.mxu0 0
        %2846 = vmatpush2.bf16.msra.mxu0 %v2320
        %2847 = vmatprep.subr.bf16.mxu0 0
        %2848 = vmatpush2.bf16.msra.mxu0 %v2319
        %2849 = vmatprep.subr.bf16.mxu0 0
        %2850 = vmatpush2.bf16.msra.mxu0 %v2318
        %2851 = vmatprep.subr.bf16.mxu0 0
        %2852 = vmatpush2.bf16.msra.mxu0 %v2317
        %2853 = vmatprep.mubr.bf16.mxu0 %v639
        %2854 = vmatmul.mubr.bf16.gmra.mxu0 %v638
        %v2855 = vpop.f32.mrf.mxu0
        %v2856 = vadd.f32 %v1283, %v2855
        %v2857 = vpop.f32.mrf.mxu0
        %v2858 = vpop.f32.mrf.mxu0
        %v2859 = vadd.f32 %v1283, %v2858
        %v2860 = vpop.f32.mrf.mxu0
        %2861 = vmatprep.mubr.bf16.mxu0 %v671
        %2862 = vmatmul.mubr.bf16.gmra.mxu0 %v670
        %v2863 = vpop.f32.mrf.mxu0
        %v2864 = vadd.f32 %v1283, %v2863
        %v2865 = vpop.f32.mrf.mxu0
        %v2866 = vpop.f32.mrf.mxu0
        %v2867 = vadd.f32 %v1283, %v2866
        %v2868 = vpop.f32.mrf.mxu0
        %2869 = vmatprep.mubr.bf16.mxu0 %v703
        %2870 = vmatmul.mubr.bf16.gmra.mxu0 %v702
        %v2871 = vpop.f32.mrf.mxu0
        %v2872 = vadd.f32 %v1283, %v2871
        %v2873 = vpop.f32.mrf.mxu0
        %v2874 = vpop.f32.mrf.mxu0
        %v2875 = vadd.f32 %v1283, %v2874
        %v2876 = vpop.f32.mrf.mxu0
        %2877 = vmatprep.mubr.bf16.mxu0 %v735
        %2878 = vmatmul.mubr.bf16.gmra.mxu0 %v734
        %v2879 = vpop.f32.mrf.mxu0
        %v2880 = vadd.f32 %v1283, %v2879
        %v2881 = vpop.f32.mrf.mxu0
        %v2882 = vpop.f32.mrf.mxu0
        %v2883 = vadd.f32 %v1283, %v2882
        %v2884 = vpop.f32.mrf.mxu0
        %2885 = vdwg.mxu0
        %2886 = vmatprep.subr.bf16.mxu0 0
        %2887 = vmatpush1.bf16.msra.mxu0 %v2332
        %2888 = vmatprep.subr.bf16.mxu0 0
        %2889 = vmatpush1.bf16.msra.mxu0 %v2331
        %2890 = vmatprep.subr.bf16.mxu0 0
        %2891 = vmatpush1.bf16.msra.mxu0 %v2330
        %2892 = vmatprep.subr.bf16.mxu0 0
        %2893 = vmatpush1.bf16.msra.mxu0 %v2329
        %2894 = vmatprep.subr.bf16.mxu0 0
        %2895 = vmatpush1.bf16.msra.mxu0 %v2328
        %2896 = vmatprep.subr.bf16.mxu0 0
        %2897 = vmatpush1.bf16.msra.mxu0 %v2327
        %2898 = vmatprep.subr.bf16.mxu0 0
        %2899 = vmatpush1.bf16.msra.mxu0 %v2326
        %2900 = vmatprep.subr.bf16.mxu0 0
        %2901 = vmatpush1.bf16.msra.mxu0 %v2325
        %2902 = vmatprep.subr.bf16.mxu0 0
        %2903 = vmatpush2.bf16.msra.mxu0 %v2340
        %2904 = vmatprep.subr.bf16.mxu0 0
        %2905 = vmatpush2.bf16.msra.mxu0 %v2339
        %2906 = vmatprep.subr.bf16.mxu0 0
        %2907 = vmatpush2.bf16.msra.mxu0 %v2338
        %2908 = vmatprep.subr.bf16.mxu0 0
        %2909 = vmatpush2.bf16.msra.mxu0 %v2337
        %2910 = vmatprep.subr.bf16.mxu0 0
        %2911 = vmatpush2.bf16.msra.mxu0 %v2336
        %2912 = vmatprep.subr.bf16.mxu0 0
        %2913 = vmatpush2.bf16.msra.mxu0 %v2335
        %2914 = vmatprep.subr.bf16.mxu0 0
        %2915 = vmatpush2.bf16.msra.mxu0 %v2334
        %2916 = vmatprep.subr.bf16.mxu0 0
        %2917 = vmatpush2.bf16.msra.mxu0 %v2333
        %2918 = vmatprep.mubr.bf16.mxu0 %v641
        %2919 = vmatmul.mubr.bf16.gmra.mxu0 %v640
        %v2920 = vpop.f32.mrf.mxu0
        %v2921 = vadd.f32 %v2856, %v2920
        %v2922 = vpop.f32.mrf.mxu0
        %v2923 = vpop.f32.mrf.mxu0
        %v2924 = vadd.f32 %v2859, %v2923
        %v2925 = vpop.f32.mrf.mxu0
        %2926 = vmatprep.mubr.bf16.mxu0 %v673
        %2927 = vmatmul.mubr.bf16.gmra.mxu0 %v672
        %v2928 = vpop.f32.mrf.mxu0
        %v2929 = vadd.f32 %v2864, %v2928
        %v2930 = vpop.f32.mrf.mxu0
        %v2931 = vpop.f32.mrf.mxu0
        %v2932 = vadd.f32 %v2867, %v2931
        %v2933 = vpop.f32.mrf.mxu0
        %2934 = vmatprep.mubr.bf16.mxu0 %v705
        %2935 = vmatmul.mubr.bf16.gmra.mxu0 %v704
        %v2936 = vpop.f32.mrf.mxu0
        %v2937 = vadd.f32 %v2872, %v2936
        %v2938 = vpop.f32.mrf.mxu0
        %v2939 = vpop.f32.mrf.mxu0
        %v2940 = vadd.f32 %v2875, %v2939
        %v2941 = vpop.f32.mrf.mxu0
        %2942 = vmatprep.mubr.bf16.mxu0 %v737
        %2943 = vmatmul.mubr.bf16.gmra.mxu0 %v736
        %v2944 = vpop.f32.mrf.mxu0
        %v2945 = vadd.f32 %v2880, %v2944
        %v2946 = vpop.f32.mrf.mxu0
        %v2947 = vpop.f32.mrf.mxu0
        %v2948 = vadd.f32 %v2883, %v2947
        %v2949 = vpop.f32.mrf.mxu0
        %2950 = vdwg.mxu0
        %2951 = vmatprep.subr.bf16.mxu0 0
        %2952 = vmatpush1.bf16.msra.mxu0 %v2348
        %2953 = vmatprep.subr.bf16.mxu0 0
        %2954 = vmatpush1.bf16.msra.mxu0 %v2347
        %2955 = vmatprep.subr.bf16.mxu0 0
        %2956 = vmatpush1.bf16.msra.mxu0 %v2346
        %2957 = vmatprep.subr.bf16.mxu0 0
        %2958 = vmatpush1.bf16.msra.mxu0 %v2345
        %2959 = vmatprep.subr.bf16.mxu0 0
        %2960 = vmatpush1.bf16.msra.mxu0 %v2344
        %2961 = vmatprep.subr.bf16.mxu0 0
        %2962 = vmatpush1.bf16.msra.mxu0 %v2343
        %2963 = vmatprep.subr.bf16.mxu0 0
        %2964 = vmatpush1.bf16.msra.mxu0 %v2342
        %2965 = vmatprep.subr.bf16.mxu0 0
        %2966 = vmatpush1.bf16.msra.mxu0 %v2341
        %2967 = vmatprep.subr.bf16.mxu0 0
        %2968 = vmatpush2.bf16.msra.mxu0 %v2356
        %2969 = vmatprep.subr.bf16.mxu0 0
        %2970 = vmatpush2.bf16.msra.mxu0 %v2355
        %2971 = vmatprep.subr.bf16.mxu0 0
        %2972 = vmatpush2.bf16.msra.mxu0 %v2354
        %2973 = vmatprep.subr.bf16.mxu0 0
        %2974 = vmatpush2.bf16.msra.mxu0 %v2353
        %2975 = vmatprep.subr.bf16.mxu0 0
        %2976 = vmatpush2.bf16.msra.mxu0 %v2352
        %2977 = vmatprep.subr.bf16.mxu0 0
        %2978 = vmatpush2.bf16.msra.mxu0 %v2351
        %2979 = vmatprep.subr.bf16.mxu0 0
        %2980 = vmatpush2.bf16.msra.mxu0 %v2350
        %2981 = vmatprep.subr.bf16.mxu0 0
        %2982 = vmatpush2.bf16.msra.mxu0 %v2349
        %2983 = vmatprep.mubr.bf16.mxu0 %v643
        %2984 = vmatmul.mubr.bf16.gmra.mxu0 %v642
        %v2985 = vpop.f32.mrf.mxu0
        %v2986 = vadd.f32 %v2921, %v2985
        %v2987 = vpop.f32.mrf.mxu0
        %v2988 = vpop.f32.mrf.mxu0
        %v2989 = vadd.f32 %v2924, %v2988
        %v2990 = vpop.f32.mrf.mxu0
        %2991 = vmatprep.mubr.bf16.mxu0 %v675
        %2992 = vmatmul.mubr.bf16.gmra.mxu0 %v674
        %v2993 = vpop.f32.mrf.mxu0
        %v2994 = vadd.f32 %v2929, %v2993
        %v2995 = vpop.f32.mrf.mxu0
        %v2996 = vpop.f32.mrf.mxu0
        %v2997 = vadd.f32 %v2932, %v2996
        %v2998 = vpop.f32.mrf.mxu0
        %2999 = vmatprep.mubr.bf16.mxu0 %v707
        %3000 = vmatmul.mubr.bf16.gmra.mxu0 %v706
        %v3001 = vpop.f32.mrf.mxu0
        %v3002 = vadd.f32 %v2937, %v3001
        %v3003 = vpop.f32.mrf.mxu0
        %v3004 = vpop.f32.mrf.mxu0
        %v3005 = vadd.f32 %v2940, %v3004
        %v3006 = vpop.f32.mrf.mxu0
        %3007 = vmatprep.mubr.bf16.mxu0 %v739
        %3008 = vmatmul.mubr.bf16.gmra.mxu0 %v738
        %v3009 = vpop.f32.mrf.mxu0
        %v3010 = vadd.f32 %v2945, %v3009
        %v3011 = vpop.f32.mrf.mxu0
        %v3012 = vpop.f32.mrf.mxu0
        %v3013 = vadd.f32 %v2948, %v3012
        %v3014 = vpop.f32.mrf.mxu0
        %3015 = vdwg.mxu0
        %3016 = vmatprep.subr.bf16.mxu0 0
        %3017 = vmatpush1.bf16.msra.mxu0 %v2364
        %3018 = vmatprep.subr.bf16.mxu0 0
        %3019 = vmatpush1.bf16.msra.mxu0 %v2363
        %3020 = vmatprep.subr.bf16.mxu0 0
        %3021 = vmatpush1.bf16.msra.mxu0 %v2362
        %3022 = vmatprep.subr.bf16.mxu0 0
        %3023 = vmatpush1.bf16.msra.mxu0 %v2361
        %3024 = vmatprep.subr.bf16.mxu0 0
        %3025 = vmatpush1.bf16.msra.mxu0 %v2360
        %3026 = vmatprep.subr.bf16.mxu0 0
        %3027 = vmatpush1.bf16.msra.mxu0 %v2359
        %3028 = vmatprep.subr.bf16.mxu0 0
        %3029 = vmatpush1.bf16.msra.mxu0 %v2358
        %3030 = vmatprep.subr.bf16.mxu0 0
        %3031 = vmatpush1.bf16.msra.mxu0 %v2357
        %3032 = vmatprep.subr.bf16.mxu0 0
        %3033 = vmatpush2.bf16.msra.mxu0 %v2372
        %3034 = vmatprep.subr.bf16.mxu0 0
        %3035 = vmatpush2.bf16.msra.mxu0 %v2371
        %3036 = vmatprep.subr.bf16.mxu0 0
        %3037 = vmatpush2.bf16.msra.mxu0 %v2370
        %3038 = vmatprep.subr.bf16.mxu0 0
        %3039 = vmatpush2.bf16.msra.mxu0 %v2369
        %3040 = vmatprep.subr.bf16.mxu0 0
        %3041 = vmatpush2.bf16.msra.mxu0 %v2368
        %3042 = vmatprep.subr.bf16.mxu0 0
        %3043 = vmatpush2.bf16.msra.mxu0 %v2367
        %3044 = vmatprep.subr.bf16.mxu0 0
        %3045 = vmatpush2.bf16.msra.mxu0 %v2366
        %3046 = vmatprep.subr.bf16.mxu0 0
        %3047 = vmatpush2.bf16.msra.mxu0 %v2365
        %3048 = vmatprep.mubr.bf16.mxu0 %v645
        %3049 = vmatmul.mubr.bf16.gmra.mxu0 %v644
        %v3050 = vpop.f32.mrf.mxu0
        %v3051 = vadd.f32 %v2986, %v3050
        %v3052 = vpop.f32.mrf.mxu0
        %v3053 = vpop.f32.mrf.mxu0
        %v3054 = vadd.f32 %v2989, %v3053
        %v3055 = vpop.f32.mrf.mxu0
        %3056 = vmatprep.mubr.bf16.mxu0 %v677
        %3057 = vmatmul.mubr.bf16.gmra.mxu0 %v676
        %v3058 = vpop.f32.mrf.mxu0
        %v3059 = vadd.f32 %v2994, %v3058
        %v3060 = vpop.f32.mrf.mxu0
        %v3061 = vpop.f32.mrf.mxu0
        %v3062 = vadd.f32 %v2997, %v3061
        %v3063 = vpop.f32.mrf.mxu0
        %3064 = vmatprep.mubr.bf16.mxu0 %v709
        %3065 = vmatmul.mubr.bf16.gmra.mxu0 %v708
        %v3066 = vpop.f32.mrf.mxu0
        %v3067 = vadd.f32 %v3002, %v3066
        %v3068 = vpop.f32.mrf.mxu0
        %v3069 = vpop.f32.mrf.mxu0
        %v3070 = vadd.f32 %v3005, %v3069
        %v3071 = vpop.f32.mrf.mxu0
        %3072 = vmatprep.mubr.bf16.mxu0 %v741
        %3073 = vmatmul.mubr.bf16.gmra.mxu0 %v740
        %v3074 = vpop.f32.mrf.mxu0
        %v3075 = vadd.f32 %v3010, %v3074
        %v3076 = vpop.f32.mrf.mxu0
        %v3077 = vpop.f32.mrf.mxu0
        %v3078 = vadd.f32 %v3013, %v3077
        %v3079 = vpop.f32.mrf.mxu0
        %3080 = vdwg.mxu0
        %3081 = vmatprep.subr.bf16.mxu0 0
        %3082 = vmatpush1.bf16.msra.mxu0 %v2380
        %3083 = vmatprep.subr.bf16.mxu0 0
        %3084 = vmatpush1.bf16.msra.mxu0 %v2379
        %3085 = vmatprep.subr.bf16.mxu0 0
        %3086 = vmatpush1.bf16.msra.mxu0 %v2378
        %3087 = vmatprep.subr.bf16.mxu0 0
        %3088 = vmatpush1.bf16.msra.mxu0 %v2377
        %3089 = vmatprep.subr.bf16.mxu0 0
        %3090 = vmatpush1.bf16.msra.mxu0 %v2376
        %3091 = vmatprep.subr.bf16.mxu0 0
        %3092 = vmatpush1.bf16.msra.mxu0 %v2375
        %3093 = vmatprep.subr.bf16.mxu0 0
        %3094 = vmatpush1.bf16.msra.mxu0 %v2374
        %3095 = vmatprep.subr.bf16.mxu0 0
        %3096 = vmatpush1.bf16.msra.mxu0 %v2373
        %3097 = vmatprep.subr.bf16.mxu0 0
        %3098 = vmatpush2.bf16.msra.mxu0 %v2388
        %3099 = vmatprep.subr.bf16.mxu0 0
        %3100 = vmatpush2.bf16.msra.mxu0 %v2387
        %3101 = vmatprep.subr.bf16.mxu0 0
        %3102 = vmatpush2.bf16.msra.mxu0 %v2386
        %3103 = vmatprep.subr.bf16.mxu0 0
        %3104 = vmatpush2.bf16.msra.mxu0 %v2385
        %3105 = vmatprep.subr.bf16.mxu0 0
        %3106 = vmatpush2.bf16.msra.mxu0 %v2384
        %3107 = vmatprep.subr.bf16.mxu0 0
        %3108 = vmatpush2.bf16.msra.mxu0 %v2383
        %3109 = vmatprep.subr.bf16.mxu0 0
        %3110 = vmatpush2.bf16.msra.mxu0 %v2382
        %3111 = vmatprep.subr.bf16.mxu0 0
        %3112 = vmatpush2.bf16.msra.mxu0 %v2381
        %3113 = vmatprep.mubr.bf16.mxu0 %v647
        %3114 = vmatmul.mubr.bf16.gmra.mxu0 %v646
        %v3115 = vpop.f32.mrf.mxu0
        %v3116 = vadd.f32 %v3051, %v3115
        %v3117 = vpop.f32.mrf.mxu0
        %v3118 = vpop.f32.mrf.mxu0
        %v3119 = vadd.f32 %v3054, %v3118
        %v3120 = vpop.f32.mrf.mxu0
        %3121 = vmatprep.mubr.bf16.mxu0 %v679
        %3122 = vmatmul.mubr.bf16.gmra.mxu0 %v678
        %v3123 = vpop.f32.mrf.mxu0
        %v3124 = vadd.f32 %v3059, %v3123
        %v3125 = vpop.f32.mrf.mxu0
        %v3126 = vpop.f32.mrf.mxu0
        %v3127 = vadd.f32 %v3062, %v3126
        %v3128 = vpop.f32.mrf.mxu0
        %3129 = vmatprep.mubr.bf16.mxu0 %v711
        %3130 = vmatmul.mubr.bf16.gmra.mxu0 %v710
        %v3131 = vpop.f32.mrf.mxu0
        %v3132 = vadd.f32 %v3067, %v3131
        %v3133 = vpop.f32.mrf.mxu0
        %v3134 = vpop.f32.mrf.mxu0
        %v3135 = vadd.f32 %v3070, %v3134
        %v3136 = vpop.f32.mrf.mxu0
        %3137 = vmatprep.mubr.bf16.mxu0 %v743
        %3138 = vmatmul.mubr.bf16.gmra.mxu0 %v742
        %v3139 = vpop.f32.mrf.mxu0
        %v3140 = vadd.f32 %v3075, %v3139
        %v3141 = vpop.f32.mrf.mxu0
        %v3142 = vpop.f32.mrf.mxu0
        %v3143 = vadd.f32 %v3078, %v3142
        %v3144 = vpop.f32.mrf.mxu0
        %3145 = vdwg.mxu0
        %3146 = vmatprep.subr.bf16.mxu0 0
        %3147 = vmatpush1.bf16.msra.mxu0 %v2396
        %3148 = vmatprep.subr.bf16.mxu0 0
        %3149 = vmatpush1.bf16.msra.mxu0 %v2395
        %3150 = vmatprep.subr.bf16.mxu0 0
        %3151 = vmatpush1.bf16.msra.mxu0 %v2394
        %3152 = vmatprep.subr.bf16.mxu0 0
        %3153 = vmatpush1.bf16.msra.mxu0 %v2393
        %3154 = vmatprep.subr.bf16.mxu0 0
        %3155 = vmatpush1.bf16.msra.mxu0 %v2392
        %3156 = vmatprep.subr.bf16.mxu0 0
        %3157 = vmatpush1.bf16.msra.mxu0 %v2391
        %3158 = vmatprep.subr.bf16.mxu0 0
        %3159 = vmatpush1.bf16.msra.mxu0 %v2390
        %3160 = vmatprep.subr.bf16.mxu0 0
        %3161 = vmatpush1.bf16.msra.mxu0 %v2389
        %3162 = vmatprep.subr.bf16.mxu0 0
        %3163 = vmatpush2.bf16.msra.mxu0 %v2404
        %3164 = vmatprep.subr.bf16.mxu0 0
        %3165 = vmatpush2.bf16.msra.mxu0 %v2403
        %3166 = vmatprep.subr.bf16.mxu0 0
        %3167 = vmatpush2.bf16.msra.mxu0 %v2402
        %3168 = vmatprep.subr.bf16.mxu0 0
        %3169 = vmatpush2.bf16.msra.mxu0 %v2401
        %3170 = vmatprep.subr.bf16.mxu0 0
        %3171 = vmatpush2.bf16.msra.mxu0 %v2400
        %3172 = vmatprep.subr.bf16.mxu0 0
        %3173 = vmatpush2.bf16.msra.mxu0 %v2399
        %3174 = vmatprep.subr.bf16.mxu0 0
        %3175 = vmatpush2.bf16.msra.mxu0 %v2398
        %3176 = vmatprep.subr.bf16.mxu0 0
        %3177 = vmatpush2.bf16.msra.mxu0 %v2397
        %3178 = vmatprep.mubr.bf16.mxu0 %v649
        %3179 = vmatmul.mubr.bf16.gmra.mxu0 %v648
        %v3180 = vpop.f32.mrf.mxu0
        %v3181 = vadd.f32 %v3116, %v3180
        %v3182 = vpop.f32.mrf.mxu0
        %v3183 = vpop.f32.mrf.mxu0
        %v3184 = vadd.f32 %v3119, %v3183
        %v3185 = vpop.f32.mrf.mxu0
        %3186 = vmatprep.mubr.bf16.mxu0 %v681
        %3187 = vmatmul.mubr.bf16.gmra.mxu0 %v680
        %v3188 = vpop.f32.mrf.mxu0
        %v3189 = vadd.f32 %v3124, %v3188
        %v3190 = vpop.f32.mrf.mxu0
        %v3191 = vpop.f32.mrf.mxu0
        %v3192 = vadd.f32 %v3127, %v3191
        %v3193 = vpop.f32.mrf.mxu0
        %3194 = vmatprep.mubr.bf16.mxu0 %v713
        %3195 = vmatmul.mubr.bf16.gmra.mxu0 %v712
        %v3196 = vpop.f32.mrf.mxu0
        %v3197 = vadd.f32 %v3132, %v3196
        %v3198 = vpop.f32.mrf.mxu0
        %v3199 = vpop.f32.mrf.mxu0
        %v3200 = vadd.f32 %v3135, %v3199
        %v3201 = vpop.f32.mrf.mxu0
        %3202 = vmatprep.mubr.bf16.mxu0 %v745
        %3203 = vmatmul.mubr.bf16.gmra.mxu0 %v744
        %v3204 = vpop.f32.mrf.mxu0
        %v3205 = vadd.f32 %v3140, %v3204
        %v3206 = vpop.f32.mrf.mxu0
        %v3207 = vpop.f32.mrf.mxu0
        %v3208 = vadd.f32 %v3143, %v3207
        %v3209 = vpop.f32.mrf.mxu0
        %3210 = vdwg.mxu0
        %3211 = vmatprep.subr.bf16.mxu0 0
        %3212 = vmatpush1.bf16.msra.mxu0 %v2412
        %3213 = vmatprep.subr.bf16.mxu0 0
        %3214 = vmatpush1.bf16.msra.mxu0 %v2411
        %3215 = vmatprep.subr.bf16.mxu0 0
        %3216 = vmatpush1.bf16.msra.mxu0 %v2410
        %3217 = vmatprep.subr.bf16.mxu0 0
        %3218 = vmatpush1.bf16.msra.mxu0 %v2409
        %3219 = vmatprep.subr.bf16.mxu0 0
        %3220 = vmatpush1.bf16.msra.mxu0 %v2408
        %3221 = vmatprep.subr.bf16.mxu0 0
        %3222 = vmatpush1.bf16.msra.mxu0 %v2407
        %3223 = vmatprep.subr.bf16.mxu0 0
        %3224 = vmatpush1.bf16.msra.mxu0 %v2406
        %3225 = vmatprep.subr.bf16.mxu0 0
        %3226 = vmatpush1.bf16.msra.mxu0 %v2405
        %3227 = vmatprep.subr.bf16.mxu0 0
        %3228 = vmatpush2.bf16.msra.mxu0 %v2420
        %3229 = vmatprep.subr.bf16.mxu0 0
        %3230 = vmatpush2.bf16.msra.mxu0 %v2419
        %3231 = vmatprep.subr.bf16.mxu0 0
        %3232 = vmatpush2.bf16.msra.mxu0 %v2418
        %3233 = vmatprep.subr.bf16.mxu0 0
        %3234 = vmatpush2.bf16.msra.mxu0 %v2417
        %3235 = vmatprep.subr.bf16.mxu0 0
        %3236 = vmatpush2.bf16.msra.mxu0 %v2416
        %3237 = vmatprep.subr.bf16.mxu0 0
        %3238 = vmatpush2.bf16.msra.mxu0 %v2415
        %3239 = vmatprep.subr.bf16.mxu0 0
        %3240 = vmatpush2.bf16.msra.mxu0 %v2414
        %3241 = vmatprep.subr.bf16.mxu0 0
        %3242 = vmatpush2.bf16.msra.mxu0 %v2413
        %3243 = vmatprep.mubr.bf16.mxu0 %v651
        %3244 = vmatmul.mubr.bf16.gmra.mxu0 %v650
        %v3245 = vpop.f32.mrf.mxu0
        %v3246 = vadd.f32 %v3181, %v3245
        %v3247 = vpop.f32.mrf.mxu0
        %v3248 = vpop.f32.mrf.mxu0
        %v3249 = vadd.f32 %v3184, %v3248
        %v3250 = vpop.f32.mrf.mxu0
        %3251 = vmatprep.mubr.bf16.mxu0 %v683
        %3252 = vmatmul.mubr.bf16.gmra.mxu0 %v682
        %v3253 = vpop.f32.mrf.mxu0
        %v3254 = vadd.f32 %v3189, %v3253
        %v3255 = vpop.f32.mrf.mxu0
        %v3256 = vpop.f32.mrf.mxu0
        %v3257 = vadd.f32 %v3192, %v3256
        %v3258 = vpop.f32.mrf.mxu0
        %3259 = vmatprep.mubr.bf16.mxu0 %v715
        %3260 = vmatmul.mubr.bf16.gmra.mxu0 %v714
        %v3261 = vpop.f32.mrf.mxu0
        %v3262 = vadd.f32 %v3197, %v3261
        %v3263 = vpop.f32.mrf.mxu0
        %v3264 = vpop.f32.mrf.mxu0
        %v3265 = vadd.f32 %v3200, %v3264
        %v3266 = vpop.f32.mrf.mxu0
        %3267 = vmatprep.mubr.bf16.mxu0 %v747
        %3268 = vmatmul.mubr.bf16.gmra.mxu0 %v746
        %v3269 = vpop.f32.mrf.mxu0
        %v3270 = vadd.f32 %v3205, %v3269
        %v3271 = vpop.f32.mrf.mxu0
        %v3272 = vpop.f32.mrf.mxu0
        %v3273 = vadd.f32 %v3208, %v3272
        %v3274 = vpop.f32.mrf.mxu0
        %3275 = vdwg.mxu0
        %3276 = vmatprep.subr.bf16.mxu0 0
        %3277 = vmatpush1.bf16.msra.mxu0 %v2428
        %3278 = vmatprep.subr.bf16.mxu0 0
        %3279 = vmatpush1.bf16.msra.mxu0 %v2427
        %3280 = vmatprep.subr.bf16.mxu0 0
        %3281 = vmatpush1.bf16.msra.mxu0 %v2426
        %3282 = vmatprep.subr.bf16.mxu0 0
        %3283 = vmatpush1.bf16.msra.mxu0 %v2425
        %3284 = vmatprep.subr.bf16.mxu0 0
        %3285 = vmatpush1.bf16.msra.mxu0 %v2424
        %3286 = vmatprep.subr.bf16.mxu0 0
        %3287 = vmatpush1.bf16.msra.mxu0 %v2423
        %3288 = vmatprep.subr.bf16.mxu0 0
        %3289 = vmatpush1.bf16.msra.mxu0 %v2422
        %3290 = vmatprep.subr.bf16.mxu0 0
        %3291 = vmatpush1.bf16.msra.mxu0 %v2421
        %3292 = vmatprep.subr.bf16.mxu0 0
        %3293 = vmatpush2.bf16.msra.mxu0 %v2436
        %3294 = vmatprep.subr.bf16.mxu0 0
        %3295 = vmatpush2.bf16.msra.mxu0 %v2435
        %3296 = vmatprep.subr.bf16.mxu0 0
        %3297 = vmatpush2.bf16.msra.mxu0 %v2434
        %3298 = vmatprep.subr.bf16.mxu0 0
        %3299 = vmatpush2.bf16.msra.mxu0 %v2433
        %3300 = vmatprep.subr.bf16.mxu0 0
        %3301 = vmatpush2.bf16.msra.mxu0 %v2432
        %3302 = vmatprep.subr.bf16.mxu0 0
        %3303 = vmatpush2.bf16.msra.mxu0 %v2431
        %3304 = vmatprep.subr.bf16.mxu0 0
        %3305 = vmatpush2.bf16.msra.mxu0 %v2430
        %3306 = vmatprep.subr.bf16.mxu0 0
        %3307 = vmatpush2.bf16.msra.mxu0 %v2429
        %3308 = vmatprep.mubr.bf16.mxu0 %v653
        %3309 = vmatmul.mubr.bf16.gmra.mxu0 %v652
        %v3310 = vpop.f32.mrf.mxu0
        %v3311 = vadd.f32 %v3246, %v3310
        %v3312 = vpop.f32.mrf.mxu0
        %v3313 = vpop.f32.mrf.mxu0
        %v3314 = vadd.f32 %v3249, %v3313
        %v3315 = vpop.f32.mrf.mxu0
        %3316 = vmatprep.mubr.bf16.mxu0 %v685
        %3317 = vmatmul.mubr.bf16.gmra.mxu0 %v684
        %v3318 = vpop.f32.mrf.mxu0
        %v3319 = vadd.f32 %v3254, %v3318
        %v3320 = vpop.f32.mrf.mxu0
        %v3321 = vpop.f32.mrf.mxu0
        %v3322 = vadd.f32 %v3257, %v3321
        %v3323 = vpop.f32.mrf.mxu0
        %3324 = vmatprep.mubr.bf16.mxu0 %v717
        %3325 = vmatmul.mubr.bf16.gmra.mxu0 %v716
        %v3326 = vpop.f32.mrf.mxu0
        %v3327 = vadd.f32 %v3262, %v3326
        %v3328 = vpop.f32.mrf.mxu0
        %v3329 = vpop.f32.mrf.mxu0
        %v3330 = vadd.f32 %v3265, %v3329
        %v3331 = vpop.f32.mrf.mxu0
        %3332 = vmatprep.mubr.bf16.mxu0 %v749
        %3333 = vmatmul.mubr.bf16.gmra.mxu0 %v748
        %v3334 = vpop.f32.mrf.mxu0
        %v3335 = vadd.f32 %v3270, %v3334
        %v3336 = vpop.f32.mrf.mxu0
        %v3337 = vpop.f32.mrf.mxu0
        %v3338 = vadd.f32 %v3273, %v3337
        %v3339 = vpop.f32.mrf.mxu0
        %3340 = vdwg.mxu0
        %3341 = vmatprep.subr.bf16.mxu0 0
        %3342 = vmatpush1.bf16.msra.mxu0 %v2444
        %3343 = vmatprep.subr.bf16.mxu0 0
        %3344 = vmatpush1.bf16.msra.mxu0 %v2443
        %3345 = vmatprep.subr.bf16.mxu0 0
        %3346 = vmatpush1.bf16.msra.mxu0 %v2442
        %3347 = vmatprep.subr.bf16.mxu0 0
        %3348 = vmatpush1.bf16.msra.mxu0 %v2441
        %3349 = vmatprep.subr.bf16.mxu0 0
        %3350 = vmatpush1.bf16.msra.mxu0 %v2440
        %3351 = vmatprep.subr.bf16.mxu0 0
        %3352 = vmatpush1.bf16.msra.mxu0 %v2439
        %3353 = vmatprep.subr.bf16.mxu0 0
        %3354 = vmatpush1.bf16.msra.mxu0 %v2438
        %3355 = vmatprep.subr.bf16.mxu0 0
        %3356 = vmatpush1.bf16.msra.mxu0 %v2437
        %3357 = vmatprep.subr.bf16.mxu0 0
        %3358 = vmatpush2.bf16.msra.mxu0 %v2452
        %3359 = vmatprep.subr.bf16.mxu0 0
        %3360 = vmatpush2.bf16.msra.mxu0 %v2451
        %3361 = vmatprep.subr.bf16.mxu0 0
        %3362 = vmatpush2.bf16.msra.mxu0 %v2450
        %3363 = vmatprep.subr.bf16.mxu0 0
        %3364 = vmatpush2.bf16.msra.mxu0 %v2449
        %3365 = vmatprep.subr.bf16.mxu0 0
        %3366 = vmatpush2.bf16.msra.mxu0 %v2448
        %3367 = vmatprep.subr.bf16.mxu0 0
        %3368 = vmatpush2.bf16.msra.mxu0 %v2447
        %3369 = vmatprep.subr.bf16.mxu0 0
        %3370 = vmatpush2.bf16.msra.mxu0 %v2446
        %3371 = vmatprep.subr.bf16.mxu0 0
        %3372 = vmatpush2.bf16.msra.mxu0 %v2445
        %3373 = vmatprep.mubr.bf16.mxu0 %v655
        %3374 = vmatmul.mubr.bf16.gmra.mxu0 %v654
        %v3375 = vpop.f32.mrf.mxu0
        %v3376 = vadd.f32 %v3311, %v3375
        %v3377 = vpop.f32.mrf.mxu0
        %v3378 = vpop.f32.mrf.mxu0
        %v3379 = vadd.f32 %v3314, %v3378
        %v3380 = vpop.f32.mrf.mxu0
        %3381 = vmatprep.mubr.bf16.mxu0 %v687
        %3382 = vmatmul.mubr.bf16.gmra.mxu0 %v686
        %v3383 = vpop.f32.mrf.mxu0
        %v3384 = vadd.f32 %v3319, %v3383
        %v3385 = vpop.f32.mrf.mxu0
        %v3386 = vpop.f32.mrf.mxu0
        %v3387 = vadd.f32 %v3322, %v3386
        %v3388 = vpop.f32.mrf.mxu0
        %3389 = vmatprep.mubr.bf16.mxu0 %v719
        %3390 = vmatmul.mubr.bf16.gmra.mxu0 %v718
        %v3391 = vpop.f32.mrf.mxu0
        %v3392 = vadd.f32 %v3327, %v3391
        %v3393 = vpop.f32.mrf.mxu0
        %v3394 = vpop.f32.mrf.mxu0
        %v3395 = vadd.f32 %v3330, %v3394
        %v3396 = vpop.f32.mrf.mxu0
        %3397 = vmatprep.mubr.bf16.mxu0 %v751
        %3398 = vmatmul.mubr.bf16.gmra.mxu0 %v750
        %v3399 = vpop.f32.mrf.mxu0
        %v3400 = vadd.f32 %v3335, %v3399
        %v3401 = vpop.f32.mrf.mxu0
        %v3402 = vpop.f32.mrf.mxu0
        %v3403 = vadd.f32 %v3338, %v3402
        %v3404 = vpop.f32.mrf.mxu0
        %3405 = vdwg.mxu0
        %3406 = vmatprep.subr.bf16.mxu0 0
        %3407 = vmatpush1.bf16.msra.mxu0 %v2460
        %3408 = vmatprep.subr.bf16.mxu0 0
        %3409 = vmatpush1.bf16.msra.mxu0 %v2459
        %3410 = vmatprep.subr.bf16.mxu0 0
        %3411 = vmatpush1.bf16.msra.mxu0 %v2458
        %3412 = vmatprep.subr.bf16.mxu0 0
        %3413 = vmatpush1.bf16.msra.mxu0 %v2457
        %3414 = vmatprep.subr.bf16.mxu0 0
        %3415 = vmatpush1.bf16.msra.mxu0 %v2456
        %3416 = vmatprep.subr.bf16.mxu0 0
        %3417 = vmatpush1.bf16.msra.mxu0 %v2455
        %3418 = vmatprep.subr.bf16.mxu0 0
        %3419 = vmatpush1.bf16.msra.mxu0 %v2454
        %3420 = vmatprep.subr.bf16.mxu0 0
        %3421 = vmatpush1.bf16.msra.mxu0 %v2453
        %3422 = vmatprep.subr.bf16.mxu0 0
        %3423 = vmatpush2.bf16.msra.mxu0 %v2468
        %3424 = vmatprep.subr.bf16.mxu0 0
        %3425 = vmatpush2.bf16.msra.mxu0 %v2467
        %3426 = vmatprep.subr.bf16.mxu0 0
        %3427 = vmatpush2.bf16.msra.mxu0 %v2466
        %3428 = vmatprep.subr.bf16.mxu0 0
        %3429 = vmatpush2.bf16.msra.mxu0 %v2465
        %3430 = vmatprep.subr.bf16.mxu0 0
        %3431 = vmatpush2.bf16.msra.mxu0 %v2464
        %3432 = vmatprep.subr.bf16.mxu0 0
        %3433 = vmatpush2.bf16.msra.mxu0 %v2463
        %3434 = vmatprep.subr.bf16.mxu0 0
        %3435 = vmatpush2.bf16.msra.mxu0 %v2462
        %3436 = vmatprep.subr.bf16.mxu0 0
        %3437 = vmatpush2.bf16.msra.mxu0 %v2461
        %3438 = vmatprep.mubr.bf16.mxu0 %v657
        %3439 = vmatmul.mubr.bf16.gmra.mxu0 %v656
        %v3440 = vpop.f32.mrf.mxu0
        %v3441 = vadd.f32 %v3376, %v3440
        %v3442 = vpop.f32.mrf.mxu0
        %v3443 = vpop.f32.mrf.mxu0
        %v3444 = vadd.f32 %v3379, %v3443
        %v3445 = vpop.f32.mrf.mxu0
        %3446 = vmatprep.mubr.bf16.mxu0 %v689
        %3447 = vmatmul.mubr.bf16.gmra.mxu0 %v688
        %v3448 = vpop.f32.mrf.mxu0
        %v3449 = vadd.f32 %v3384, %v3448
        %v3450 = vpop.f32.mrf.mxu0
        %v3451 = vpop.f32.mrf.mxu0
        %v3452 = vadd.f32 %v3387, %v3451
        %v3453 = vpop.f32.mrf.mxu0
        %3454 = vmatprep.mubr.bf16.mxu0 %v721
        %3455 = vmatmul.mubr.bf16.gmra.mxu0 %v720
        %v3456 = vpop.f32.mrf.mxu0
        %v3457 = vadd.f32 %v3392, %v3456
        %v3458 = vpop.f32.mrf.mxu0
        %v3459 = vpop.f32.mrf.mxu0
        %v3460 = vadd.f32 %v3395, %v3459
        %v3461 = vpop.f32.mrf.mxu0
        %3462 = vmatprep.mubr.bf16.mxu0 %v753
        %3463 = vmatmul.mubr.bf16.gmra.mxu0 %v752
        %v3464 = vpop.f32.mrf.mxu0
        %v3465 = vadd.f32 %v3400, %v3464
        %v3466 = vpop.f32.mrf.mxu0
        %v3467 = vpop.f32.mrf.mxu0
        %v3468 = vadd.f32 %v3403, %v3467
        %v3469 = vpop.f32.mrf.mxu0
        %3470 = vdwg.mxu0
        %3471 = vmatprep.subr.bf16.mxu0 0
        %3472 = vmatpush1.bf16.msra.mxu0 %v2476
        %3473 = vmatprep.subr.bf16.mxu0 0
        %3474 = vmatpush1.bf16.msra.mxu0 %v2475
        %3475 = vmatprep.subr.bf16.mxu0 0
        %3476 = vmatpush1.bf16.msra.mxu0 %v2474
        %3477 = vmatprep.subr.bf16.mxu0 0
        %3478 = vmatpush1.bf16.msra.mxu0 %v2473
        %3479 = vmatprep.subr.bf16.mxu0 0
        %3480 = vmatpush1.bf16.msra.mxu0 %v2472
        %3481 = vmatprep.subr.bf16.mxu0 0
        %3482 = vmatpush1.bf16.msra.mxu0 %v2471
        %3483 = vmatprep.subr.bf16.mxu0 0
        %3484 = vmatpush1.bf16.msra.mxu0 %v2470
        %3485 = vmatprep.subr.bf16.mxu0 0
        %3486 = vmatpush1.bf16.msra.mxu0 %v2469
        %3487 = vmatprep.subr.bf16.mxu0 0
        %3488 = vmatpush2.bf16.msra.mxu0 %v2484
        %3489 = vmatprep.subr.bf16.mxu0 0
        %3490 = vmatpush2.bf16.msra.mxu0 %v2483
        %3491 = vmatprep.subr.bf16.mxu0 0
        %3492 = vmatpush2.bf16.msra.mxu0 %v2482
        %3493 = vmatprep.subr.bf16.mxu0 0
        %3494 = vmatpush2.bf16.msra.mxu0 %v2481
        %3495 = vmatprep.subr.bf16.mxu0 0
        %3496 = vmatpush2.bf16.msra.mxu0 %v2480
        %3497 = vmatprep.subr.bf16.mxu0 0
        %3498 = vmatpush2.bf16.msra.mxu0 %v2479
        %3499 = vmatprep.subr.bf16.mxu0 0
        %3500 = vmatpush2.bf16.msra.mxu0 %v2478
        %3501 = vmatprep.subr.bf16.mxu0 0
        %3502 = vmatpush2.bf16.msra.mxu0 %v2477
        %3503 = vmatprep.mubr.bf16.mxu0 %v659
        %3504 = vmatmul.mubr.bf16.gmra.mxu0 %v658
        %v3505 = vpop.f32.mrf.mxu0
        %v3506 = vadd.f32 %v3441, %v3505
        %v3507 = vpop.f32.mrf.mxu0
        %v3508 = vpop.f32.mrf.mxu0
        %v3509 = vadd.f32 %v3444, %v3508
        %v3510 = vpop.f32.mrf.mxu0
        %3511 = vmatprep.mubr.bf16.mxu0 %v691
        %3512 = vmatmul.mubr.bf16.gmra.mxu0 %v690
        %v3513 = vpop.f32.mrf.mxu0
        %v3514 = vadd.f32 %v3449, %v3513
        %v3515 = vpop.f32.mrf.mxu0
        %v3516 = vpop.f32.mrf.mxu0
        %v3517 = vadd.f32 %v3452, %v3516
        %v3518 = vpop.f32.mrf.mxu0
        %3519 = vmatprep.mubr.bf16.mxu0 %v723
        %3520 = vmatmul.mubr.bf16.gmra.mxu0 %v722
        %v3521 = vpop.f32.mrf.mxu0
        %v3522 = vadd.f32 %v3457, %v3521
        %v3523 = vpop.f32.mrf.mxu0
        %v3524 = vpop.f32.mrf.mxu0
        %v3525 = vadd.f32 %v3460, %v3524
        %v3526 = vpop.f32.mrf.mxu0
        %3527 = vmatprep.mubr.bf16.mxu0 %v755
        %3528 = vmatmul.mubr.bf16.gmra.mxu0 %v754
        %v3529 = vpop.f32.mrf.mxu0
        %v3530 = vadd.f32 %v3465, %v3529
        %v3531 = vpop.f32.mrf.mxu0
        %v3532 = vpop.f32.mrf.mxu0
        %v3533 = vadd.f32 %v3468, %v3532
        %v3534 = vpop.f32.mrf.mxu0
        %3535 = vdwg.mxu0
        %3536 = vmatprep.subr.bf16.mxu0 0
        %3537 = vmatpush1.bf16.msra.mxu0 %v2492
        %3538 = vmatprep.subr.bf16.mxu0 0
        %3539 = vmatpush1.bf16.msra.mxu0 %v2491
        %3540 = vmatprep.subr.bf16.mxu0 0
        %3541 = vmatpush1.bf16.msra.mxu0 %v2490
        %3542 = vmatprep.subr.bf16.mxu0 0
        %3543 = vmatpush1.bf16.msra.mxu0 %v2489
        %3544 = vmatprep.subr.bf16.mxu0 0
        %3545 = vmatpush1.bf16.msra.mxu0 %v2488
        %3546 = vmatprep.subr.bf16.mxu0 0
        %3547 = vmatpush1.bf16.msra.mxu0 %v2487
        %3548 = vmatprep.subr.bf16.mxu0 0
        %3549 = vmatpush1.bf16.msra.mxu0 %v2486
        %3550 = vmatprep.subr.bf16.mxu0 0
        %3551 = vmatpush1.bf16.msra.mxu0 %v2485
        %3552 = vmatprep.subr.bf16.mxu0 0
        %3553 = vmatpush2.bf16.msra.mxu0 %v2500
        %3554 = vmatprep.subr.bf16.mxu0 0
        %3555 = vmatpush2.bf16.msra.mxu0 %v2499
        %3556 = vmatprep.subr.bf16.mxu0 0
        %3557 = vmatpush2.bf16.msra.mxu0 %v2498
        %3558 = vmatprep.subr.bf16.mxu0 0
        %3559 = vmatpush2.bf16.msra.mxu0 %v2497
        %3560 = vmatprep.subr.bf16.mxu0 0
        %3561 = vmatpush2.bf16.msra.mxu0 %v2496
        %3562 = vmatprep.subr.bf16.mxu0 0
        %3563 = vmatpush2.bf16.msra.mxu0 %v2495
        %3564 = vmatprep.subr.bf16.mxu0 0
        %3565 = vmatpush2.bf16.msra.mxu0 %v2494
        %3566 = vmatprep.subr.bf16.mxu0 0
        %3567 = vmatpush2.bf16.msra.mxu0 %v2493
        %3568 = vmatprep.mubr.bf16.mxu0 %v661
        %3569 = vmatmul.mubr.bf16.gmra.mxu0 %v660
        %v3570 = vpop.f32.mrf.mxu0
        %v3571 = vadd.f32 %v3506, %v3570
        %v3572 = vpop.f32.mrf.mxu0
        %v3573 = vpop.f32.mrf.mxu0
        %v3574 = vadd.f32 %v3509, %v3573
        %v3575 = vpop.f32.mrf.mxu0
        %3576 = vmatprep.mubr.bf16.mxu0 %v693
        %3577 = vmatmul.mubr.bf16.gmra.mxu0 %v692
        %v3578 = vpop.f32.mrf.mxu0
        %v3579 = vadd.f32 %v3514, %v3578
        %v3580 = vpop.f32.mrf.mxu0
        %v3581 = vpop.f32.mrf.mxu0
        %v3582 = vadd.f32 %v3517, %v3581
        %v3583 = vpop.f32.mrf.mxu0
        %3584 = vmatprep.mubr.bf16.mxu0 %v725
        %3585 = vmatmul.mubr.bf16.gmra.mxu0 %v724
        %v3586 = vpop.f32.mrf.mxu0
        %v3587 = vadd.f32 %v3522, %v3586
        %v3588 = vpop.f32.mrf.mxu0
        %v3589 = vpop.f32.mrf.mxu0
        %v3590 = vadd.f32 %v3525, %v3589
        %v3591 = vpop.f32.mrf.mxu0
        %3592 = vmatprep.mubr.bf16.mxu0 %v757
        %3593 = vmatmul.mubr.bf16.gmra.mxu0 %v756
        %v3594 = vpop.f32.mrf.mxu0
        %v3595 = vadd.f32 %v3530, %v3594
        %v3596 = vpop.f32.mrf.mxu0
        %v3597 = vpop.f32.mrf.mxu0
        %v3598 = vadd.f32 %v3533, %v3597
        %v3599 = vpop.f32.mrf.mxu0
        %3600 = vdwg.mxu0
        %3601 = vmatprep.subr.bf16.mxu0 0
        %3602 = vmatpush1.bf16.msra.mxu0 %v2508
        %3603 = vmatprep.subr.bf16.mxu0 0
        %3604 = vmatpush1.bf16.msra.mxu0 %v2507
        %3605 = vmatprep.subr.bf16.mxu0 0
        %3606 = vmatpush1.bf16.msra.mxu0 %v2506
        %3607 = vmatprep.subr.bf16.mxu0 0
        %3608 = vmatpush1.bf16.msra.mxu0 %v2505
        %3609 = vmatprep.subr.bf16.mxu0 0
        %3610 = vmatpush1.bf16.msra.mxu0 %v2504
        %3611 = vmatprep.subr.bf16.mxu0 0
        %3612 = vmatpush1.bf16.msra.mxu0 %v2503
        %3613 = vmatprep.subr.bf16.mxu0 0
        %3614 = vmatpush1.bf16.msra.mxu0 %v2502
        %3615 = vmatprep.subr.bf16.mxu0 0
        %3616 = vmatpush1.bf16.msra.mxu0 %v2501
        %3617 = vmatprep.subr.bf16.mxu0 0
        %3618 = vmatpush2.bf16.msra.mxu0 %v2516
        %3619 = vmatprep.subr.bf16.mxu0 0
        %3620 = vmatpush2.bf16.msra.mxu0 %v2515
        %3621 = vmatprep.subr.bf16.mxu0 0
        %3622 = vmatpush2.bf16.msra.mxu0 %v2514
        %3623 = vmatprep.subr.bf16.mxu0 0
        %3624 = vmatpush2.bf16.msra.mxu0 %v2513
        %3625 = vmatprep.subr.bf16.mxu0 0
        %3626 = vmatpush2.bf16.msra.mxu0 %v2512
        %3627 = vmatprep.subr.bf16.mxu0 0
        %3628 = vmatpush2.bf16.msra.mxu0 %v2511
        %3629 = vmatprep.subr.bf16.mxu0 0
        %3630 = vmatpush2.bf16.msra.mxu0 %v2510
        %3631 = vmatprep.subr.bf16.mxu0 0
        %3632 = vmatpush2.bf16.msra.mxu0 %v2509
        %3633 = vmatprep.mubr.bf16.mxu0 %v663
        %3634 = vmatmul.mubr.bf16.gmra.mxu0 %v662
        %v3635 = vpop.f32.mrf.mxu0
        %v3636 = vadd.f32 %v3571, %v3635
        %v3637 = vpop.f32.mrf.mxu0
        %v3638 = vpop.f32.mrf.mxu0
        %v3639 = vadd.f32 %v3574, %v3638
        %v3640 = vpop.f32.mrf.mxu0
        %3641 = vmatprep.mubr.bf16.mxu0 %v695
        %3642 = vmatmul.mubr.bf16.gmra.mxu0 %v694
        %v3643 = vpop.f32.mrf.mxu0
        %v3644 = vadd.f32 %v3579, %v3643
        %v3645 = vpop.f32.mrf.mxu0
        %v3646 = vpop.f32.mrf.mxu0
        %v3647 = vadd.f32 %v3582, %v3646
        %v3648 = vpop.f32.mrf.mxu0
        %3649 = vmatprep.mubr.bf16.mxu0 %v727
        %3650 = vmatmul.mubr.bf16.gmra.mxu0 %v726
        %v3651 = vpop.f32.mrf.mxu0
        %v3652 = vadd.f32 %v3587, %v3651
        %v3653 = vpop.f32.mrf.mxu0
        %v3654 = vpop.f32.mrf.mxu0
        %v3655 = vadd.f32 %v3590, %v3654
        %v3656 = vpop.f32.mrf.mxu0
        %3657 = vmatprep.mubr.bf16.mxu0 %v759
        %3658 = vmatmul.mubr.bf16.gmra.mxu0 %v758
        %v3659 = vpop.f32.mrf.mxu0
        %v3660 = vadd.f32 %v3595, %v3659
        %v3661 = vpop.f32.mrf.mxu0
        %v3662 = vpop.f32.mrf.mxu0
        %v3663 = vadd.f32 %v3598, %v3662
        %v3664 = vpop.f32.mrf.mxu0
        %3665 = vdwg.mxu0
        %3666 = vmatprep.subr.bf16.mxu0 0
        %3667 = vmatpush1.bf16.msra.mxu0 %v2524
        %3668 = vmatprep.subr.bf16.mxu0 0
        %3669 = vmatpush1.bf16.msra.mxu0 %v2523
        %3670 = vmatprep.subr.bf16.mxu0 0
        %3671 = vmatpush1.bf16.msra.mxu0 %v2522
        %3672 = vmatprep.subr.bf16.mxu0 0
        %3673 = vmatpush1.bf16.msra.mxu0 %v2521
        %3674 = vmatprep.subr.bf16.mxu0 0
        %3675 = vmatpush1.bf16.msra.mxu0 %v2520
        %3676 = vmatprep.subr.bf16.mxu0 0
        %3677 = vmatpush1.bf16.msra.mxu0 %v2519
        %3678 = vmatprep.subr.bf16.mxu0 0
        %3679 = vmatpush1.bf16.msra.mxu0 %v2518
        %3680 = vmatprep.subr.bf16.mxu0 0
        %3681 = vmatpush1.bf16.msra.mxu0 %v2517
        %3682 = vmatprep.subr.bf16.mxu0 0
        %3683 = vmatpush2.bf16.msra.mxu0 %v2532
        %3684 = vmatprep.subr.bf16.mxu0 0
        %3685 = vmatpush2.bf16.msra.mxu0 %v2531
        %3686 = vmatprep.subr.bf16.mxu0 0
        %3687 = vmatpush2.bf16.msra.mxu0 %v2530
        %3688 = vmatprep.subr.bf16.mxu0 0
        %3689 = vmatpush2.bf16.msra.mxu0 %v2529
        %3690 = vmatprep.subr.bf16.mxu0 0
        %3691 = vmatpush2.bf16.msra.mxu0 %v2528
        %3692 = vmatprep.subr.bf16.mxu0 0
        %3693 = vmatpush2.bf16.msra.mxu0 %v2527
        %3694 = vmatprep.subr.bf16.mxu0 0
        %3695 = vmatpush2.bf16.msra.mxu0 %v2526
        %3696 = vmatprep.subr.bf16.mxu0 0
        %3697 = vmatpush2.bf16.msra.mxu0 %v2525
        %3698 = vmatprep.mubr.bf16.mxu0 %v665
        %3699 = vmatmul.mubr.bf16.gmra.mxu0 %v664
        %v3700 = vpop.f32.mrf.mxu0
        %v3701 = vadd.f32 %v3636, %v3700
        %v3702 = vpop.f32.mrf.mxu0
        %v3703 = vpop.f32.mrf.mxu0
        %v3704 = vadd.f32 %v3639, %v3703
        %v3705 = vpop.f32.mrf.mxu0
        %3706 = vmatprep.mubr.bf16.mxu0 %v697
        %3707 = vmatmul.mubr.bf16.gmra.mxu0 %v696
        %v3708 = vpop.f32.mrf.mxu0
        %v3709 = vadd.f32 %v3644, %v3708
        %v3710 = vpop.f32.mrf.mxu0
        %v3711 = vpop.f32.mrf.mxu0
        %v3712 = vadd.f32 %v3647, %v3711
        %v3713 = vpop.f32.mrf.mxu0
        %3714 = vmatprep.mubr.bf16.mxu0 %v729
        %3715 = vmatmul.mubr.bf16.gmra.mxu0 %v728
        %v3716 = vpop.f32.mrf.mxu0
        %v3717 = vadd.f32 %v3652, %v3716
        %v3718 = vpop.f32.mrf.mxu0
        %v3719 = vpop.f32.mrf.mxu0
        %v3720 = vadd.f32 %v3655, %v3719
        %v3721 = vpop.f32.mrf.mxu0
        %3722 = vmatprep.mubr.bf16.mxu0 %v761
        %3723 = vmatmul.mubr.bf16.gmra.mxu0 %v760
        %v3724 = vpop.f32.mrf.mxu0
        %v3725 = vadd.f32 %v3660, %v3724
        %v3726 = vpop.f32.mrf.mxu0
        %v3727 = vpop.f32.mrf.mxu0
        %v3728 = vadd.f32 %v3663, %v3727
        %v3729 = vpop.f32.mrf.mxu0
        %3730 = vdwg.mxu0
        %3731 = vmatprep.subr.bf16.mxu0 0
        %3732 = vmatpush1.bf16.msra.mxu0 %v2540
        %3733 = vmatprep.subr.bf16.mxu0 0
        %3734 = vmatpush1.bf16.msra.mxu0 %v2539
        %3735 = vmatprep.subr.bf16.mxu0 0
        %3736 = vmatpush1.bf16.msra.mxu0 %v2538
        %3737 = vmatprep.subr.bf16.mxu0 0
        %3738 = vmatpush1.bf16.msra.mxu0 %v2537
        %3739 = vmatprep.subr.bf16.mxu0 0
        %3740 = vmatpush1.bf16.msra.mxu0 %v2536
        %3741 = vmatprep.subr.bf16.mxu0 0
        %3742 = vmatpush1.bf16.msra.mxu0 %v2535
        %3743 = vmatprep.subr.bf16.mxu0 0
        %3744 = vmatpush1.bf16.msra.mxu0 %v2534
        %3745 = vmatprep.subr.bf16.mxu0 0
        %3746 = vmatpush1.bf16.msra.mxu0 %v2533
        %3747 = vmatprep.subr.bf16.mxu0 0
        %3748 = vmatpush2.bf16.msra.mxu0 %v2548
        %3749 = vmatprep.subr.bf16.mxu0 0
        %3750 = vmatpush2.bf16.msra.mxu0 %v2547
        %3751 = vmatprep.subr.bf16.mxu0 0
        %3752 = vmatpush2.bf16.msra.mxu0 %v2546
        %3753 = vmatprep.subr.bf16.mxu0 0
        %3754 = vmatpush2.bf16.msra.mxu0 %v2545
        %3755 = vmatprep.subr.bf16.mxu0 0
        %3756 = vmatpush2.bf16.msra.mxu0 %v2544
        %3757 = vmatprep.subr.bf16.mxu0 0
        %3758 = vmatpush2.bf16.msra.mxu0 %v2543
        %3759 = vmatprep.subr.bf16.mxu0 0
        %3760 = vmatpush2.bf16.msra.mxu0 %v2542
        %3761 = vmatprep.subr.bf16.mxu0 0
        %3762 = vmatpush2.bf16.msra.mxu0 %v2541
        %3763 = vmatprep.mubr.bf16.mxu0 %v667
        %3764 = vmatmul.mubr.bf16.gmra.mxu0 %v666
        %v3765 = vpop.f32.mrf.mxu0
        %v3766 = vadd.f32 %v3701, %v3765
        %v3767 = vpop.f32.mrf.mxu0
        %v3768 = vpop.f32.mrf.mxu0
        %v3769 = vadd.f32 %v3704, %v3768
        %v3770 = vpop.f32.mrf.mxu0
        %3771 = vmatprep.mubr.bf16.mxu0 %v699
        %3772 = vmatmul.mubr.bf16.gmra.mxu0 %v698
        %v3773 = vpop.f32.mrf.mxu0
        %v3774 = vadd.f32 %v3709, %v3773
        %v3775 = vpop.f32.mrf.mxu0
        %v3776 = vpop.f32.mrf.mxu0
        %v3777 = vadd.f32 %v3712, %v3776
        %v3778 = vpop.f32.mrf.mxu0
        %3779 = vmatprep.mubr.bf16.mxu0 %v731
        %3780 = vmatmul.mubr.bf16.gmra.mxu0 %v730
        %v3781 = vpop.f32.mrf.mxu0
        %v3782 = vadd.f32 %v3717, %v3781
        %v3783 = vpop.f32.mrf.mxu0
        %v3784 = vpop.f32.mrf.mxu0
        %v3785 = vadd.f32 %v3720, %v3784
        %v3786 = vpop.f32.mrf.mxu0
        %3787 = vmatprep.mubr.bf16.mxu0 %v763
        %3788 = vmatmul.mubr.bf16.gmra.mxu0 %v762
        %v3789 = vpop.f32.mrf.mxu0
        %v3790 = vadd.f32 %v3725, %v3789
        %v3791 = vpop.f32.mrf.mxu0
        %v3792 = vpop.f32.mrf.mxu0
        %v3793 = vadd.f32 %v3728, %v3792
        %v3794 = vpop.f32.mrf.mxu0
        %3795 = vdwg.mxu0
        %3796 = vmatprep.subr.bf16.mxu0 0
        %3797 = vmatpush1.bf16.msra.mxu0 %v2556
        %3798 = vmatprep.subr.bf16.mxu0 0
        %3799 = vmatpush1.bf16.msra.mxu0 %v2555
        %3800 = vmatprep.subr.bf16.mxu0 0
        %3801 = vmatpush1.bf16.msra.mxu0 %v2554
        %3802 = vmatprep.subr.bf16.mxu0 0
        %3803 = vmatpush1.bf16.msra.mxu0 %v2553
        %3804 = vmatprep.subr.bf16.mxu0 0
        %3805 = vmatpush1.bf16.msra.mxu0 %v2552
        %3806 = vmatprep.subr.bf16.mxu0 0
        %3807 = vmatpush1.bf16.msra.mxu0 %v2551
        %3808 = vmatprep.subr.bf16.mxu0 0
        %3809 = vmatpush1.bf16.msra.mxu0 %v2550
        %3810 = vmatprep.subr.bf16.mxu0 0
        %3811 = vmatpush1.bf16.msra.mxu0 %v2549
        %3812 = vmatprep.subr.bf16.mxu0 0
        %3813 = vmatpush2.bf16.msra.mxu0 %v2564
        %3814 = vmatprep.subr.bf16.mxu0 0
        %3815 = vmatpush2.bf16.msra.mxu0 %v2563
        %3816 = vmatprep.subr.bf16.mxu0 0
        %3817 = vmatpush2.bf16.msra.mxu0 %v2562
        %3818 = vmatprep.subr.bf16.mxu0 0
        %3819 = vmatpush2.bf16.msra.mxu0 %v2561
        %3820 = vmatprep.subr.bf16.mxu0 0
        %3821 = vmatpush2.bf16.msra.mxu0 %v2560
        %3822 = vmatprep.subr.bf16.mxu0 0
        %3823 = vmatpush2.bf16.msra.mxu0 %v2559
        %3824 = vmatprep.subr.bf16.mxu0 0
        %3825 = vmatpush2.bf16.msra.mxu0 %v2558
        %3826 = vmatprep.subr.bf16.mxu0 0
        %3827 = vmatpush2.bf16.msra.mxu0 %v2557
        %3828 = vmatprep.mubr.bf16.mxu0 %v669
        %3829 = vmatmul.mubr.bf16.gmra.mxu0 %v668
        %v3830 = vpop.f32.mrf.mxu0
        %v3831 = vadd.f32 %v3766, %v3830
        %v3832 = vpop.f32.mrf.mxu0
        %v3833 = vpop.f32.mrf.mxu0
        %v3834 = vadd.f32 %v3769, %v3833
        %v3835 = vpop.f32.mrf.mxu0
        %3836 = vmatprep.mubr.bf16.mxu0 %v701
        %3837 = vmatmul.mubr.bf16.gmra.mxu0 %v700
        %v3838 = vpop.f32.mrf.mxu0
        %v3839 = vadd.f32 %v3774, %v3838
        %v3840 = vpop.f32.mrf.mxu0
        %v3841 = vpop.f32.mrf.mxu0
        %v3842 = vadd.f32 %v3777, %v3841
        %v3843 = vpop.f32.mrf.mxu0
        %3844 = vmatprep.mubr.bf16.mxu0 %v733
        %3845 = vmatmul.mubr.bf16.gmra.mxu0 %v732
        %v3846 = vpop.f32.mrf.mxu0
        %v3847 = vadd.f32 %v3782, %v3846
        %v3848 = vpop.f32.mrf.mxu0
        %v3849 = vpop.f32.mrf.mxu0
        %v3850 = vadd.f32 %v3785, %v3849
        %v3851 = vpop.f32.mrf.mxu0
        %3852 = vmatprep.mubr.bf16.mxu0 %v765
        %3853 = vmatmul.mubr.bf16.gmra.mxu0 %v764
        %v3854 = vpop.f32.mrf.mxu0
        %v3855 = vadd.f32 %v3790, %v3854
        %v3856 = vpop.f32.mrf.mxu0
        %v3857 = vpop.f32.mrf.mxu0
        %v3858 = vadd.f32 %v3793, %v3857
        %v3859 = vpop.f32.mrf.mxu0
        %3860 = vdwg.mxu0
        %vm3861 = vcmp.ge.f32.partialorder %v3831, 0.0
        %vm3862 = vcmp.ge.f32.partialorder %v3834, 0.0
        %vm3863 = vcmp.ge.f32.partialorder %v3839, 0.0
        %vm3864 = vcmp.ge.f32.partialorder %v3842, 0.0
        %vm3865 = vcmp.ge.f32.partialorder %v3847, 0.0
        %vm3866 = vcmp.ge.f32.partialorder %v3850, 0.0
        %vm3867 = vcmp.ge.f32.partialorder %v3855, 0.0
        %vm3868 = vcmp.ge.f32.partialorder %v3858, 0.0
        %v3869 = vmul.f32 %v3831, 0.2
        %v3870 = vmul.f32 %v3834, 0.2
        %v3871 = vmul.f32 %v3839, 0.2
        %v3872 = vmul.f32 %v3842, 0.2
        %v3873 = vmul.f32 %v3847, 0.2
        %v3874 = vmul.f32 %v3850, 0.2
        %v3875 = vmul.f32 %v3855, 0.2
        %v3876 = vmul.f32 %v3858, 0.2
        %v3877 = vsel %vm3861, %v3831, %v3869
        %v3878 = vsel %vm3862, %v3834, %v3870
        %v3879 = vsel %vm3863, %v3839, %v3871
        %v3880 = vsel %vm3864, %v3842, %v3872
        %v3881 = vsel %vm3865, %v3847, %v3873
        %v3882 = vsel %vm3866, %v3850, %v3874
        %v3883 = vsel %vm3867, %v3855, %v3875
        %v3884 = vsel %vm3868, %v3858, %v3876
        %v3885 = vpack.c.bf16 %v3878, %v3877
        %v3886 = vpack.c.bf16 %v3880, %v3879
        %v3887 = vpack.c.bf16 %v3882, %v3881
        %v3888 = vpack.c.bf16 %v3884, %v3883
        %v3889 = vld [vmem:[#allocation8] sm:$0xf]
        %v3890 = vld [vmem:[#allocation8 + $0x4] sm:$0xf]
        %v3891 = vld [vmem:[#allocation8 + $0x8] sm:$0xf]
        %v3892 = vld [vmem:[#allocation8 + $0xc] sm:$0xf]
        %v3893 = vld [vmem:[#allocation8 + $0x10] sm:$0xf]
        %v3894 = vld [vmem:[#allocation8 + $0x14] sm:$0xf]
        %v3895 = vld [vmem:[#allocation8 + $0x18] sm:$0xf]
        %v3896 = vld [vmem:[#allocation8 + $0x1c] sm:$0xf]
        %v3897 = vld [vmem:[#allocation8 + $0x20] sm:$0xf]
        %v3898 = vld [vmem:[#allocation8 + $0x24] sm:$0xf]
        %v3899 = vld [vmem:[#allocation8 + $0x28] sm:$0xf]
        %v3900 = vld [vmem:[#allocation8 + $0x2c] sm:$0xf]
        %v3901 = vld [vmem:[#allocation8 + $0x30] sm:$0xf]
        %v3902 = vld [vmem:[#allocation8 + $0x34] sm:$0xf]
        %v3903 = vld [vmem:[#allocation8 + $0x38] sm:$0xf]
        %v3904 = vld [vmem:[#allocation8 + $0x3c] sm:$0xf]
        %v3905 = vld [vmem:[#allocation10] sm:$0x1]
        %v3907 = vlaneseq
        %v3908 = vshrl.u32 %v3907, 7
        %v3909 = vsub.s32 0, %v3908
        %v3910 = vrot.slane %v3905, %v3909
        %v3928 = vunpack.c.l.b16 %v3889
        %v3929 = vunpack.c.l.b16 %v3890
        %v3930 = vunpack.c.l.b16 %v3891
        %v3931 = vunpack.c.l.b16 %v3892
        %v3932 = vunpack.c.l.b16 %v3893
        %v3933 = vunpack.c.l.b16 %v3894
        %v3934 = vunpack.c.l.b16 %v3895
        %v3935 = vunpack.c.l.b16 %v3896
        %v3936 = vunpack.c.l.b16 %v3897
        %v3937 = vunpack.c.l.b16 %v3898
        %v3938 = vunpack.c.l.b16 %v3899
        %v3939 = vunpack.c.l.b16 %v3900
        %v3940 = vunpack.c.l.b16 %v3901
        %v3941 = vunpack.c.l.b16 %v3902
        %v3942 = vunpack.c.l.b16 %v3903
        %v3943 = vunpack.c.l.b16 %v3904
        %v3944 = vpack.c.b16 %v3929, %v3928
        %v3945 = vpack.c.b16 %v3931, %v3930
        %v3946 = vpack.c.b16 %v3933, %v3932
        %v3947 = vpack.c.b16 %v3935, %v3934
        %v3948 = vpack.c.b16 %v3937, %v3936
        %v3949 = vpack.c.b16 %v3939, %v3938
        %v3950 = vpack.c.b16 %v3941, %v3940
        %v3951 = vpack.c.b16 %v3943, %v3942
        %3960 = vmatprep.subr.bf16.mxu0 0
        %3961 = vmatpush1.bf16.msra.mxu0 %v3951
        %3962 = vmatprep.subr.bf16.mxu0 0
        %3963 = vmatpush1.bf16.msra.mxu0 %v3950
        %3964 = vmatprep.subr.bf16.mxu0 0
        %3965 = vmatpush1.bf16.msra.mxu0 %v3949
        %3966 = vmatprep.subr.bf16.mxu0 0
        %3967 = vmatpush1.bf16.msra.mxu0 %v3948
        %3968 = vmatprep.subr.bf16.mxu0 0
        %3969 = vmatpush1.bf16.msra.mxu0 %v3947
        %3970 = vmatprep.subr.bf16.mxu0 0
        %3971 = vmatpush1.bf16.msra.mxu0 %v3946
        %3972 = vmatprep.subr.bf16.mxu0 0
        %3973 = vmatpush1.bf16.msra.mxu0 %v3945
        %3974 = vmatprep.subr.bf16.mxu0 0
        %3975 = vmatpush1.bf16.msra.mxu0 %v3944
        %3976 = vmatprep.subr.bf16.mxu0 0
        %3977 = vmatpush2.bf16.msra.mxu0 0
        %3978 = vmatprep.subr.bf16.mxu0 0
        %3979 = vmatpush2.bf16.msra.mxu0 0
        %3980 = vmatprep.subr.bf16.mxu0 0
        %3981 = vmatpush2.bf16.msra.mxu0 0
        %3982 = vmatprep.subr.bf16.mxu0 0
        %3983 = vmatpush2.bf16.msra.mxu0 0
        %3984 = vmatprep.subr.bf16.mxu0 0
        %3985 = vmatpush2.bf16.msra.mxu0 0
        %3986 = vmatprep.subr.bf16.mxu0 0
        %3987 = vmatpush2.bf16.msra.mxu0 0
        %3988 = vmatprep.subr.bf16.mxu0 0
        %3989 = vmatpush2.bf16.msra.mxu0 0
        %3990 = vmatprep.subr.bf16.mxu0 0
        %3991 = vmatpush2.bf16.msra.mxu0 0
        %3992 = vmatprep.mubr.bf16.mxu0 0
        %3993 = vmatmul.mubr.bf16.gmra.mxu0 %v3885
        %v3994 = vpop.f32.mrf.mxu0
        %v3995 = vadd.f32 %v3910, %v3994
        %v3996 = vpop.f32.mrf.mxu0
        %v3997 = vpop.f32.mrf.mxu0
        %v3998 = vadd.f32 %v3910, %v3997
        %v3999 = vpop.f32.mrf.mxu0
        %4000 = vmatprep.mubr.bf16.mxu0 0
        %4001 = vmatmul.mubr.bf16.gmra.mxu0 %v3886
        %v4002 = vpop.f32.mrf.mxu0
        %v4003 = vadd.f32 %v3910, %v4002
        %v4004 = vpop.f32.mrf.mxu0
        %v4005 = vpop.f32.mrf.mxu0
        %v4006 = vadd.f32 %v3910, %v4005
        %v4007 = vpop.f32.mrf.mxu0
        %4008 = vmatprep.mubr.bf16.mxu0 0
        %4009 = vmatmul.mubr.bf16.gmra.mxu0 %v3887
        %v4010 = vpop.f32.mrf.mxu0
        %v4011 = vadd.f32 %v3910, %v4010
        %v4012 = vpop.f32.mrf.mxu0
        %v4013 = vpop.f32.mrf.mxu0
        %v4014 = vadd.f32 %v3910, %v4013
        %v4015 = vpop.f32.mrf.mxu0
        %4016 = vmatprep.mubr.bf16.mxu0 0
        %4017 = vmatmul.mubr.bf16.gmra.mxu0 %v3888
        %v4018 = vpop.f32.mrf.mxu0
        %v4019 = vadd.f32 %v3910, %v4018
        %v4020 = vpop.f32.mrf.mxu0
        %v4021 = vpop.f32.mrf.mxu0
        %v4022 = vadd.f32 %v3910, %v4021
        %v4023 = vpop.f32.mrf.mxu0
        %4024 = vdwg.mxu0
        %vm4025 = vcmp.ge.f32.partialorder %v3995, 0.0
        %vm4026 = vcmp.ge.f32.partialorder %v3998, 0.0
        %vm4027 = vcmp.ge.f32.partialorder %v4003, 0.0
        %vm4028 = vcmp.ge.f32.partialorder %v4006, 0.0
        %vm4029 = vcmp.ge.f32.partialorder %v4011, 0.0
        %vm4030 = vcmp.ge.f32.partialorder %v4014, 0.0
        %vm4031 = vcmp.ge.f32.partialorder %v4019, 0.0
        %vm4032 = vcmp.ge.f32.partialorder %v4022, 0.0
        %v4033 = vmul.f32 %v3995, 0.2
        %v4034 = vmul.f32 %v3998, 0.2
        %v4035 = vmul.f32 %v4003, 0.2
        %v4036 = vmul.f32 %v4006, 0.2
        %v4037 = vmul.f32 %v4011, 0.2
        %v4038 = vmul.f32 %v4014, 0.2
        %v4039 = vmul.f32 %v4019, 0.2
        %v4040 = vmul.f32 %v4022, 0.2
        %v4041 = vsel %vm4025, %v3995, %v4033
        %v4042 = vsel %vm4026, %v3998, %v4034
        %v4043 = vsel %vm4027, %v4003, %v4035
        %v4044 = vsel %vm4028, %v4006, %v4036
        %v4045 = vsel %vm4029, %v4011, %v4037
        %v4046 = vsel %vm4030, %v4014, %v4038
        %v4047 = vsel %vm4031, %v4019, %v4039
        %v4048 = vsel %vm4032, %v4022, %v4040
        %v4049 = vpack.c.bf16 %v4042, %v4041
        %v4050 = vpack.c.bf16 %v4044, %v4043
        %v4051 = vpack.c.bf16 %v4046, %v4045
        %v4052 = vpack.c.bf16 %v4048, %v4047
        %v4053 = vld [vmem:[#allocation11] sm:$0xff]
        %v4054 = vld [vmem:[#allocation11 + $0x8] sm:$0xff]
        %v4055 = vld [vmem:[#allocation11 + $0x10] sm:$0xff]
        %v4056 = vld [vmem:[#allocation11 + $0x18] sm:$0xff]
        %v4057 = vld [vmem:[#allocation11 + $0x20] sm:$0xff]
        %v4058 = vld [vmem:[#allocation11 + $0x28] sm:$0xff]
        %v4059 = vld [vmem:[#allocation11 + $0x30] sm:$0xff]
        %v4060 = vld [vmem:[#allocation11 + $0x38] sm:$0xff]
        %v4061 = vld [vmem:[#allocation11 + $0x40] sm:$0xff]
        %v4062 = vld [vmem:[#allocation11 + $0x48] sm:$0xff]
        %v4063 = vld [vmem:[#allocation11 + $0x50] sm:$0xff]
        %v4064 = vld [vmem:[#allocation11 + $0x58] sm:$0xff]
        %v4065 = vld [vmem:[#allocation11 + $0x60] sm:$0xff]
        %v4066 = vld [vmem:[#allocation11 + $0x68] sm:$0xff]
        %v4067 = vld [vmem:[#allocation11 + $0x70] sm:$0xff]
        %v4068 = vld [vmem:[#allocation11 + $0x78] sm:$0xff]
        %v4069 = vld [vmem:[#allocation11 + $0x80] sm:$0xff]
        %v4070 = vld [vmem:[#allocation11 + $0x88] sm:$0xff]
        %v4071 = vld [vmem:[#allocation11 + $0x90] sm:$0xff]
        %v4072 = vld [vmem:[#allocation11 + $0x98] sm:$0xff]
        %v4073 = vld [vmem:[#allocation11 + $0xa0] sm:$0xff]
        %v4074 = vld [vmem:[#allocation11 + $0xa8] sm:$0xff]
        %v4075 = vld [vmem:[#allocation11 + $0xb0] sm:$0xff]
        %v4076 = vld [vmem:[#allocation11 + $0xb8] sm:$0xff]
        %v4077 = vld [vmem:[#allocation11 + $0xc0] sm:$0xff]
        %v4078 = vld [vmem:[#allocation11 + $0xc8] sm:$0xff]
        %v4079 = vld [vmem:[#allocation11 + $0xd0] sm:$0xff]
        %v4080 = vld [vmem:[#allocation11 + $0xd8] sm:$0xff]
        %v4081 = vld [vmem:[#allocation11 + $0xe0] sm:$0xff]
        %v4082 = vld [vmem:[#allocation11 + $0xe8] sm:$0xff]
        %v4083 = vld [vmem:[#allocation11 + $0xf0] sm:$0xff]
        %v4084 = vld [vmem:[#allocation11 + $0xf8] sm:$0xff]
        %v4085 = vld [vmem:[#allocation11 + $0x100] sm:$0xff]
        %v4086 = vld [vmem:[#allocation11 + $0x108] sm:$0xff]
        %v4087 = vld [vmem:[#allocation11 + $0x110] sm:$0xff]
        %v4088 = vld [vmem:[#allocation11 + $0x118] sm:$0xff]
        %v4089 = vld [vmem:[#allocation11 + $0x120] sm:$0xff]
        %v4090 = vld [vmem:[#allocation11 + $0x128] sm:$0xff]
        %v4091 = vld [vmem:[#allocation11 + $0x130] sm:$0xff]
        %v4092 = vld [vmem:[#allocation11 + $0x138] sm:$0xff]
        %v4093 = vld [vmem:[#allocation11 + $0x140] sm:$0xff]
        %v4094 = vld [vmem:[#allocation11 + $0x148] sm:$0xff]
        %v4095 = vld [vmem:[#allocation11 + $0x150] sm:$0xff]
        %v4096 = vld [vmem:[#allocation11 + $0x158] sm:$0xff]
        %v4097 = vld [vmem:[#allocation11 + $0x160] sm:$0xff]
        %v4098 = vld [vmem:[#allocation11 + $0x168] sm:$0xff]
        %v4099 = vld [vmem:[#allocation11 + $0x170] sm:$0xff]
        %v4100 = vld [vmem:[#allocation11 + $0x178] sm:$0xff]
        %v4101 = vld [vmem:[#allocation11 + $0x180] sm:$0xff]
        %v4102 = vld [vmem:[#allocation11 + $0x188] sm:$0xff]
        %v4103 = vld [vmem:[#allocation11 + $0x190] sm:$0xff]
        %v4104 = vld [vmem:[#allocation11 + $0x198] sm:$0xff]
        %v4105 = vld [vmem:[#allocation11 + $0x1a0] sm:$0xff]
        %v4106 = vld [vmem:[#allocation11 + $0x1a8] sm:$0xff]
        %v4107 = vld [vmem:[#allocation11 + $0x1b0] sm:$0xff]
        %v4108 = vld [vmem:[#allocation11 + $0x1b8] sm:$0xff]
        %v4109 = vld [vmem:[#allocation11 + $0x1c0] sm:$0xff]
        %v4110 = vld [vmem:[#allocation11 + $0x1c8] sm:$0xff]
        %v4111 = vld [vmem:[#allocation11 + $0x1d0] sm:$0xff]
        %v4112 = vld [vmem:[#allocation11 + $0x1d8] sm:$0xff]
        %v4113 = vld [vmem:[#allocation11 + $0x1e0] sm:$0xff]
        %v4114 = vld [vmem:[#allocation11 + $0x1e8] sm:$0xff]
        %v4115 = vld [vmem:[#allocation11 + $0x1f0] sm:$0xff]
        %v4116 = vld [vmem:[#allocation11 + $0x1f8] sm:$0xff]
        %v4117 = vld [vmem:[#allocation11 + $0x200] sm:$0xff]
        %v4118 = vld [vmem:[#allocation11 + $0x208] sm:$0xff]
        %v4119 = vld [vmem:[#allocation11 + $0x210] sm:$0xff]
        %v4120 = vld [vmem:[#allocation11 + $0x218] sm:$0xff]
        %v4121 = vld [vmem:[#allocation11 + $0x220] sm:$0xff]
        %v4122 = vld [vmem:[#allocation11 + $0x228] sm:$0xff]
        %v4123 = vld [vmem:[#allocation11 + $0x230] sm:$0xff]
        %v4124 = vld [vmem:[#allocation11 + $0x238] sm:$0xff]
        %v4125 = vld [vmem:[#allocation11 + $0x240] sm:$0xff]
        %v4126 = vld [vmem:[#allocation11 + $0x248] sm:$0xff]
        %v4127 = vld [vmem:[#allocation11 + $0x250] sm:$0xff]
        %v4128 = vld [vmem:[#allocation11 + $0x258] sm:$0xff]
        %v4129 = vld [vmem:[#allocation11 + $0x260] sm:$0xff]
        %v4130 = vld [vmem:[#allocation11 + $0x268] sm:$0xff]
        %v4131 = vld [vmem:[#allocation11 + $0x270] sm:$0xff]
        %v4132 = vld [vmem:[#allocation11 + $0x278] sm:$0xff]
        %v4133 = vld [vmem:[#allocation11 + $0x280] sm:$0xff]
        %v4134 = vld [vmem:[#allocation11 + $0x288] sm:$0xff]
        %v4135 = vld [vmem:[#allocation11 + $0x290] sm:$0xff]
        %v4136 = vld [vmem:[#allocation11 + $0x298] sm:$0xff]
        %v4137 = vld [vmem:[#allocation11 + $0x2a0] sm:$0xff]
        %v4138 = vld [vmem:[#allocation11 + $0x2a8] sm:$0xff]
        %v4139 = vld [vmem:[#allocation11 + $0x2b0] sm:$0xff]
        %v4140 = vld [vmem:[#allocation11 + $0x2b8] sm:$0xff]
        %v4141 = vld [vmem:[#allocation11 + $0x2c0] sm:$0xff]
        %v4142 = vld [vmem:[#allocation11 + $0x2c8] sm:$0xff]
        %v4143 = vld [vmem:[#allocation11 + $0x2d0] sm:$0xff]
        %v4144 = vld [vmem:[#allocation11 + $0x2d8] sm:$0xff]
        %v4145 = vld [vmem:[#allocation11 + $0x2e0] sm:$0xff]
        %v4146 = vld [vmem:[#allocation11 + $0x2e8] sm:$0xff]
        %v4147 = vld [vmem:[#allocation11 + $0x2f0] sm:$0xff]
        %v4148 = vld [vmem:[#allocation11 + $0x2f8] sm:$0xff]
        %v4149 = vld [vmem:[#allocation11 + $0x300] sm:$0xff]
        %v4150 = vld [vmem:[#allocation11 + $0x308] sm:$0xff]
        %v4151 = vld [vmem:[#allocation11 + $0x310] sm:$0xff]
        %v4152 = vld [vmem:[#allocation11 + $0x318] sm:$0xff]
        %v4153 = vld [vmem:[#allocation11 + $0x320] sm:$0xff]
        %v4154 = vld [vmem:[#allocation11 + $0x328] sm:$0xff]
        %v4155 = vld [vmem:[#allocation11 + $0x330] sm:$0xff]
        %v4156 = vld [vmem:[#allocation11 + $0x338] sm:$0xff]
        %v4157 = vld [vmem:[#allocation11 + $0x340] sm:$0xff]
        %v4158 = vld [vmem:[#allocation11 + $0x348] sm:$0xff]
        %v4159 = vld [vmem:[#allocation11 + $0x350] sm:$0xff]
        %v4160 = vld [vmem:[#allocation11 + $0x358] sm:$0xff]
        %v4161 = vld [vmem:[#allocation11 + $0x360] sm:$0xff]
        %v4162 = vld [vmem:[#allocation11 + $0x368] sm:$0xff]
        %v4163 = vld [vmem:[#allocation11 + $0x370] sm:$0xff]
        %v4164 = vld [vmem:[#allocation11 + $0x378] sm:$0xff]
        %v4165 = vld [vmem:[#allocation11 + $0x380] sm:$0xff]
        %v4166 = vld [vmem:[#allocation11 + $0x388] sm:$0xff]
        %v4167 = vld [vmem:[#allocation11 + $0x390] sm:$0xff]
        %v4168 = vld [vmem:[#allocation11 + $0x398] sm:$0xff]
        %v4169 = vld [vmem:[#allocation11 + $0x3a0] sm:$0xff]
        %v4170 = vld [vmem:[#allocation11 + $0x3a8] sm:$0xff]
        %v4171 = vld [vmem:[#allocation11 + $0x3b0] sm:$0xff]
        %v4172 = vld [vmem:[#allocation11 + $0x3b8] sm:$0xff]
        %v4173 = vld [vmem:[#allocation11 + $0x3c0] sm:$0xff]
        %v4174 = vld [vmem:[#allocation11 + $0x3c8] sm:$0xff]
        %v4175 = vld [vmem:[#allocation11 + $0x3d0] sm:$0xff]
        %v4176 = vld [vmem:[#allocation11 + $0x3d8] sm:$0xff]
        %v4177 = vld [vmem:[#allocation11 + $0x3e0] sm:$0xff]
        %v4178 = vld [vmem:[#allocation11 + $0x3e8] sm:$0xff]
        %v4179 = vld [vmem:[#allocation11 + $0x3f0] sm:$0xff]
        %v4180 = vld [vmem:[#allocation11 + $0x3f8] sm:$0xff]
        %v4181 = vld [vmem:[#allocation13] sm:$0xff]
        %v4182 = vld [vmem:[#allocation13 + $0x8] sm:$0xff]
        %v4185 = vlaneseq
        %v4186 = vshrl.u32 %v4185, 7
        %v4187 = vsub.s32 0, %v4186
        %v4188 = vrot.slane %v4181, %v4187
        %v4189 = vlaneseq
        %v4190 = vshrl.u32 %v4189, 7
        %v4191 = vsub.s32 1, %v4190
        %v4192 = vrot.slane %v4181, %v4191
        %v4193 = vlaneseq
        %v4194 = vshrl.u32 %v4193, 7
        %v4195 = vsub.s32 2, %v4194
        %v4196 = vrot.slane %v4181, %v4195
        %v4197 = vlaneseq
        %v4198 = vshrl.u32 %v4197, 7
        %v4199 = vsub.s32 3, %v4198
        %v4200 = vrot.slane %v4181, %v4199
        %v4201 = vlaneseq
        %v4202 = vshrl.u32 %v4201, 7
        %v4203 = vsub.s32 4, %v4202
        %v4204 = vrot.slane %v4181, %v4203
        %v4205 = vlaneseq
        %v4206 = vshrl.u32 %v4205, 7
        %v4207 = vsub.s32 5, %v4206
        %v4208 = vrot.slane %v4181, %v4207
        %v4209 = vlaneseq
        %v4210 = vshrl.u32 %v4209, 7
        %v4211 = vsub.s32 6, %v4210
        %v4212 = vrot.slane %v4181, %v4211
        %v4213 = vlaneseq
        %v4214 = vshrl.u32 %v4213, 7
        %v4215 = vsub.s32 7, %v4214
        %v4216 = vrot.slane %v4181, %v4215
        %v4217 = vlaneseq
        %v4218 = vshrl.u32 %v4217, 7
        %v4219 = vsub.s32 0, %v4218
        %v4220 = vrot.slane %v4182, %v4219
        %v4221 = vlaneseq
        %v4222 = vshrl.u32 %v4221, 7
        %v4223 = vsub.s32 1, %v4222
        %v4224 = vrot.slane %v4182, %v4223
        %v4225 = vlaneseq
        %v4226 = vshrl.u32 %v4225, 7
        %v4227 = vsub.s32 2, %v4226
        %v4228 = vrot.slane %v4182, %v4227
        %v4229 = vlaneseq
        %v4230 = vshrl.u32 %v4229, 7
        %v4231 = vsub.s32 3, %v4230
        %v4232 = vrot.slane %v4182, %v4231
        %v4233 = vlaneseq
        %v4234 = vshrl.u32 %v4233, 7
        %v4235 = vsub.s32 4, %v4234
        %v4236 = vrot.slane %v4182, %v4235
        %v4237 = vlaneseq
        %v4238 = vshrl.u32 %v4237, 7
        %v4239 = vsub.s32 5, %v4238
        %v4240 = vrot.slane %v4182, %v4239
        %v4241 = vlaneseq
        %v4242 = vshrl.u32 %v4241, 7
        %v4243 = vsub.s32 6, %v4242
        %v4244 = vrot.slane %v4182, %v4243
        %v4245 = vlaneseq
        %v4246 = vshrl.u32 %v4245, 7
        %v4247 = vsub.s32 7, %v4246
        %v4248 = vrot.slane %v4182, %v4247
        %v4393 = vunpack.c.l.b16 %v4053
        %v4394 = vunpack.c.h.b16 %v4053
        %v4395 = vunpack.c.l.b16 %v4054
        %v4396 = vunpack.c.h.b16 %v4054
        %v4397 = vunpack.c.l.b16 %v4055
        %v4398 = vunpack.c.h.b16 %v4055
        %v4399 = vunpack.c.l.b16 %v4056
        %v4400 = vunpack.c.h.b16 %v4056
        %v4401 = vunpack.c.l.b16 %v4057
        %v4402 = vunpack.c.h.b16 %v4057
        %v4403 = vunpack.c.l.b16 %v4058
        %v4404 = vunpack.c.h.b16 %v4058
        %v4405 = vunpack.c.l.b16 %v4059
        %v4406 = vunpack.c.h.b16 %v4059
        %v4407 = vunpack.c.l.b16 %v4060
        %v4408 = vunpack.c.h.b16 %v4060
        %v4409 = vunpack.c.l.b16 %v4061
        %v4410 = vunpack.c.h.b16 %v4061
        %v4411 = vunpack.c.l.b16 %v4062
        %v4412 = vunpack.c.h.b16 %v4062
        %v4413 = vunpack.c.l.b16 %v4063
        %v4414 = vunpack.c.h.b16 %v4063
        %v4415 = vunpack.c.l.b16 %v4064
        %v4416 = vunpack.c.h.b16 %v4064
        %v4417 = vunpack.c.l.b16 %v4065
        %v4418 = vunpack.c.h.b16 %v4065
        %v4419 = vunpack.c.l.b16 %v4066
        %v4420 = vunpack.c.h.b16 %v4066
        %v4421 = vunpack.c.l.b16 %v4067
        %v4422 = vunpack.c.h.b16 %v4067
        %v4423 = vunpack.c.l.b16 %v4068
        %v4424 = vunpack.c.h.b16 %v4068
        %v4425 = vunpack.c.l.b16 %v4069
        %v4426 = vunpack.c.h.b16 %v4069
        %v4427 = vunpack.c.l.b16 %v4070
        %v4428 = vunpack.c.h.b16 %v4070
        %v4429 = vunpack.c.l.b16 %v4071
        %v4430 = vunpack.c.h.b16 %v4071
        %v4431 = vunpack.c.l.b16 %v4072
        %v4432 = vunpack.c.h.b16 %v4072
        %v4433 = vunpack.c.l.b16 %v4073
        %v4434 = vunpack.c.h.b16 %v4073
        %v4435 = vunpack.c.l.b16 %v4074
        %v4436 = vunpack.c.h.b16 %v4074
        %v4437 = vunpack.c.l.b16 %v4075
        %v4438 = vunpack.c.h.b16 %v4075
        %v4439 = vunpack.c.l.b16 %v4076
        %v4440 = vunpack.c.h.b16 %v4076
        %v4441 = vunpack.c.l.b16 %v4077
        %v4442 = vunpack.c.h.b16 %v4077
        %v4443 = vunpack.c.l.b16 %v4078
        %v4444 = vunpack.c.h.b16 %v4078
        %v4445 = vunpack.c.l.b16 %v4079
        %v4446 = vunpack.c.h.b16 %v4079
        %v4447 = vunpack.c.l.b16 %v4080
        %v4448 = vunpack.c.h.b16 %v4080
        %v4449 = vunpack.c.l.b16 %v4081
        %v4450 = vunpack.c.h.b16 %v4081
        %v4451 = vunpack.c.l.b16 %v4082
        %v4452 = vunpack.c.h.b16 %v4082
        %v4453 = vunpack.c.l.b16 %v4083
        %v4454 = vunpack.c.h.b16 %v4083
        %v4455 = vunpack.c.l.b16 %v4084
        %v4456 = vunpack.c.h.b16 %v4084
        %v4457 = vunpack.c.l.b16 %v4085
        %v4458 = vunpack.c.h.b16 %v4085
        %v4459 = vunpack.c.l.b16 %v4086
        %v4460 = vunpack.c.h.b16 %v4086
        %v4461 = vunpack.c.l.b16 %v4087
        %v4462 = vunpack.c.h.b16 %v4087
        %v4463 = vunpack.c.l.b16 %v4088
        %v4464 = vunpack.c.h.b16 %v4088
        %v4465 = vunpack.c.l.b16 %v4089
        %v4466 = vunpack.c.h.b16 %v4089
        %v4467 = vunpack.c.l.b16 %v4090
        %v4468 = vunpack.c.h.b16 %v4090
        %v4469 = vunpack.c.l.b16 %v4091
        %v4470 = vunpack.c.h.b16 %v4091
        %v4471 = vunpack.c.l.b16 %v4092
        %v4472 = vunpack.c.h.b16 %v4092
        %v4473 = vunpack.c.l.b16 %v4093
        %v4474 = vunpack.c.h.b16 %v4093
        %v4475 = vunpack.c.l.b16 %v4094
        %v4476 = vunpack.c.h.b16 %v4094
        %v4477 = vunpack.c.l.b16 %v4095
        %v4478 = vunpack.c.h.b16 %v4095
        %v4479 = vunpack.c.l.b16 %v4096
        %v4480 = vunpack.c.h.b16 %v4096
        %v4481 = vunpack.c.l.b16 %v4097
        %v4482 = vunpack.c.h.b16 %v4097
        %v4483 = vunpack.c.l.b16 %v4098
        %v4484 = vunpack.c.h.b16 %v4098
        %v4485 = vunpack.c.l.b16 %v4099
        %v4486 = vunpack.c.h.b16 %v4099
        %v4487 = vunpack.c.l.b16 %v4100
        %v4488 = vunpack.c.h.b16 %v4100
        %v4489 = vunpack.c.l.b16 %v4101
        %v4490 = vunpack.c.h.b16 %v4101
        %v4491 = vunpack.c.l.b16 %v4102
        %v4492 = vunpack.c.h.b16 %v4102
        %v4493 = vunpack.c.l.b16 %v4103
        %v4494 = vunpack.c.h.b16 %v4103
        %v4495 = vunpack.c.l.b16 %v4104
        %v4496 = vunpack.c.h.b16 %v4104
        %v4497 = vunpack.c.l.b16 %v4105
        %v4498 = vunpack.c.h.b16 %v4105
        %v4499 = vunpack.c.l.b16 %v4106
        %v4500 = vunpack.c.h.b16 %v4106
        %v4501 = vunpack.c.l.b16 %v4107
        %v4502 = vunpack.c.h.b16 %v4107
        %v4503 = vunpack.c.l.b16 %v4108
        %v4504 = vunpack.c.h.b16 %v4108
        %v4505 = vunpack.c.l.b16 %v4109
        %v4506 = vunpack.c.h.b16 %v4109
        %v4507 = vunpack.c.l.b16 %v4110
        %v4508 = vunpack.c.h.b16 %v4110
        %v4509 = vunpack.c.l.b16 %v4111
        %v4510 = vunpack.c.h.b16 %v4111
        %v4511 = vunpack.c.l.b16 %v4112
        %v4512 = vunpack.c.h.b16 %v4112
        %v4513 = vunpack.c.l.b16 %v4113
        %v4514 = vunpack.c.h.b16 %v4113
        %v4515 = vunpack.c.l.b16 %v4114
        %v4516 = vunpack.c.h.b16 %v4114
        %v4517 = vunpack.c.l.b16 %v4115
        %v4518 = vunpack.c.h.b16 %v4115
        %v4519 = vunpack.c.l.b16 %v4116
        %v4520 = vunpack.c.h.b16 %v4116
        %v4521 = vunpack.c.l.b16 %v4117
        %v4522 = vunpack.c.h.b16 %v4117
        %v4523 = vunpack.c.l.b16 %v4118
        %v4524 = vunpack.c.h.b16 %v4118
        %v4525 = vunpack.c.l.b16 %v4119
        %v4526 = vunpack.c.h.b16 %v4119
        %v4527 = vunpack.c.l.b16 %v4120
        %v4528 = vunpack.c.h.b16 %v4120
        %v4529 = vunpack.c.l.b16 %v4121
        %v4530 = vunpack.c.h.b16 %v4121
        %v4531 = vunpack.c.l.b16 %v4122
        %v4532 = vunpack.c.h.b16 %v4122
        %v4533 = vunpack.c.l.b16 %v4123
        %v4534 = vunpack.c.h.b16 %v4123
        %v4535 = vunpack.c.l.b16 %v4124
        %v4536 = vunpack.c.h.b16 %v4124
        %v4537 = vunpack.c.l.b16 %v4125
        %v4538 = vunpack.c.h.b16 %v4125
        %v4539 = vunpack.c.l.b16 %v4126
        %v4540 = vunpack.c.h.b16 %v4126
        %v4541 = vunpack.c.l.b16 %v4127
        %v4542 = vunpack.c.h.b16 %v4127
        %v4543 = vunpack.c.l.b16 %v4128
        %v4544 = vunpack.c.h.b16 %v4128
        %v4545 = vunpack.c.l.b16 %v4129
        %v4546 = vunpack.c.h.b16 %v4129
        %v4547 = vunpack.c.l.b16 %v4130
        %v4548 = vunpack.c.h.b16 %v4130
        %v4549 = vunpack.c.l.b16 %v4131
        %v4550 = vunpack.c.h.b16 %v4131
        %v4551 = vunpack.c.l.b16 %v4132
        %v4552 = vunpack.c.h.b16 %v4132
        %v4553 = vunpack.c.l.b16 %v4133
        %v4554 = vunpack.c.h.b16 %v4133
        %v4555 = vunpack.c.l.b16 %v4134
        %v4556 = vunpack.c.h.b16 %v4134
        %v4557 = vunpack.c.l.b16 %v4135
        %v4558 = vunpack.c.h.b16 %v4135
        %v4559 = vunpack.c.l.b16 %v4136
        %v4560 = vunpack.c.h.b16 %v4136
        %v4561 = vunpack.c.l.b16 %v4137
        %v4562 = vunpack.c.h.b16 %v4137
        %v4563 = vunpack.c.l.b16 %v4138
        %v4564 = vunpack.c.h.b16 %v4138
        %v4565 = vunpack.c.l.b16 %v4139
        %v4566 = vunpack.c.h.b16 %v4139
        %v4567 = vunpack.c.l.b16 %v4140
        %v4568 = vunpack.c.h.b16 %v4140
        %v4569 = vunpack.c.l.b16 %v4141
        %v4570 = vunpack.c.h.b16 %v4141
        %v4571 = vunpack.c.l.b16 %v4142
        %v4572 = vunpack.c.h.b16 %v4142
        %v4573 = vunpack.c.l.b16 %v4143
        %v4574 = vunpack.c.h.b16 %v4143
        %v4575 = vunpack.c.l.b16 %v4144
        %v4576 = vunpack.c.h.b16 %v4144
        %v4577 = vunpack.c.l.b16 %v4145
        %v4578 = vunpack.c.h.b16 %v4145
        %v4579 = vunpack.c.l.b16 %v4146
        %v4580 = vunpack.c.h.b16 %v4146
        %v4581 = vunpack.c.l.b16 %v4147
        %v4582 = vunpack.c.h.b16 %v4147
        %v4583 = vunpack.c.l.b16 %v4148
        %v4584 = vunpack.c.h.b16 %v4148
        %v4585 = vunpack.c.l.b16 %v4149
        %v4586 = vunpack.c.h.b16 %v4149
        %v4587 = vunpack.c.l.b16 %v4150
        %v4588 = vunpack.c.h.b16 %v4150
        %v4589 = vunpack.c.l.b16 %v4151
        %v4590 = vunpack.c.h.b16 %v4151
        %v4591 = vunpack.c.l.b16 %v4152
        %v4592 = vunpack.c.h.b16 %v4152
        %v4593 = vunpack.c.l.b16 %v4153
        %v4594 = vunpack.c.h.b16 %v4153
        %v4595 = vunpack.c.l.b16 %v4154
        %v4596 = vunpack.c.h.b16 %v4154
        %v4597 = vunpack.c.l.b16 %v4155
        %v4598 = vunpack.c.h.b16 %v4155
        %v4599 = vunpack.c.l.b16 %v4156
        %v4600 = vunpack.c.h.b16 %v4156
        %v4601 = vunpack.c.l.b16 %v4157
        %v4602 = vunpack.c.h.b16 %v4157
        %v4603 = vunpack.c.l.b16 %v4158
        %v4604 = vunpack.c.h.b16 %v4158
        %v4605 = vunpack.c.l.b16 %v4159
        %v4606 = vunpack.c.h.b16 %v4159
        %v4607 = vunpack.c.l.b16 %v4160
        %v4608 = vunpack.c.h.b16 %v4160
        %v4609 = vunpack.c.l.b16 %v4161
        %v4610 = vunpack.c.h.b16 %v4161
        %v4611 = vunpack.c.l.b16 %v4162
        %v4612 = vunpack.c.h.b16 %v4162
        %v4613 = vunpack.c.l.b16 %v4163
        %v4614 = vunpack.c.h.b16 %v4163
        %v4615 = vunpack.c.l.b16 %v4164
        %v4616 = vunpack.c.h.b16 %v4164
        %v4617 = vunpack.c.l.b16 %v4165
        %v4618 = vunpack.c.h.b16 %v4165
        %v4619 = vunpack.c.l.b16 %v4166
        %v4620 = vunpack.c.h.b16 %v4166
        %v4621 = vunpack.c.l.b16 %v4167
        %v4622 = vunpack.c.h.b16 %v4167
        %v4623 = vunpack.c.l.b16 %v4168
        %v4624 = vunpack.c.h.b16 %v4168
        %v4625 = vunpack.c.l.b16 %v4169
        %v4626 = vunpack.c.h.b16 %v4169
        %v4627 = vunpack.c.l.b16 %v4170
        %v4628 = vunpack.c.h.b16 %v4170
        %v4629 = vunpack.c.l.b16 %v4171
        %v4630 = vunpack.c.h.b16 %v4171
        %v4631 = vunpack.c.l.b16 %v4172
        %v4632 = vunpack.c.h.b16 %v4172
        %v4633 = vunpack.c.l.b16 %v4173
        %v4634 = vunpack.c.h.b16 %v4173
        %v4635 = vunpack.c.l.b16 %v4174
        %v4636 = vunpack.c.h.b16 %v4174
        %v4637 = vunpack.c.l.b16 %v4175
        %v4638 = vunpack.c.h.b16 %v4175
        %v4639 = vunpack.c.l.b16 %v4176
        %v4640 = vunpack.c.h.b16 %v4176
        %v4641 = vunpack.c.l.b16 %v4177
        %v4642 = vunpack.c.h.b16 %v4177
        %v4643 = vunpack.c.l.b16 %v4178
        %v4644 = vunpack.c.h.b16 %v4178
        %v4645 = vunpack.c.l.b16 %v4179
        %v4646 = vunpack.c.h.b16 %v4179
        %v4647 = vunpack.c.l.b16 %v4180
        %v4648 = vunpack.c.h.b16 %v4180
        %v4649 = vpack.c.b16 %v4409, %v4393
        %v4650 = vpack.c.b16 %v4410, %v4394
        %v4651 = vpack.c.b16 %v4411, %v4395
        %v4652 = vpack.c.b16 %v4412, %v4396
        %v4653 = vpack.c.b16 %v4413, %v4397
        %v4654 = vpack.c.b16 %v4414, %v4398
        %v4655 = vpack.c.b16 %v4415, %v4399
        %v4656 = vpack.c.b16 %v4416, %v4400
        %v4657 = vpack.c.b16 %v4417, %v4401
        %v4658 = vpack.c.b16 %v4418, %v4402
        %v4659 = vpack.c.b16 %v4419, %v4403
        %v4660 = vpack.c.b16 %v4420, %v4404
        %v4661 = vpack.c.b16 %v4421, %v4405
        %v4662 = vpack.c.b16 %v4422, %v4406
        %v4663 = vpack.c.b16 %v4423, %v4407
        %v4664 = vpack.c.b16 %v4424, %v4408
        %v4665 = vpack.c.b16 %v4441, %v4425
        %v4666 = vpack.c.b16 %v4442, %v4426
        %v4667 = vpack.c.b16 %v4443, %v4427
        %v4668 = vpack.c.b16 %v4444, %v4428
        %v4669 = vpack.c.b16 %v4445, %v4429
        %v4670 = vpack.c.b16 %v4446, %v4430
        %v4671 = vpack.c.b16 %v4447, %v4431
        %v4672 = vpack.c.b16 %v4448, %v4432
        %v4673 = vpack.c.b16 %v4449, %v4433
        %v4674 = vpack.c.b16 %v4450, %v4434
        %v4675 = vpack.c.b16 %v4451, %v4435
        %v4676 = vpack.c.b16 %v4452, %v4436
        %v4677 = vpack.c.b16 %v4453, %v4437
        %v4678 = vpack.c.b16 %v4454, %v4438
        %v4679 = vpack.c.b16 %v4455, %v4439
        %v4680 = vpack.c.b16 %v4456, %v4440
        %v4681 = vpack.c.b16 %v4473, %v4457
        %v4682 = vpack.c.b16 %v4474, %v4458
        %v4683 = vpack.c.b16 %v4475, %v4459
        %v4684 = vpack.c.b16 %v4476, %v4460
        %v4685 = vpack.c.b16 %v4477, %v4461
        %v4686 = vpack.c.b16 %v4478, %v4462
        %v4687 = vpack.c.b16 %v4479, %v4463
        %v4688 = vpack.c.b16 %v4480, %v4464
        %v4689 = vpack.c.b16 %v4481, %v4465
        %v4690 = vpack.c.b16 %v4482, %v4466
        %v4691 = vpack.c.b16 %v4483, %v4467
        %v4692 = vpack.c.b16 %v4484, %v4468
        %v4693 = vpack.c.b16 %v4485, %v4469
        %v4694 = vpack.c.b16 %v4486, %v4470
        %v4695 = vpack.c.b16 %v4487, %v4471
        %v4696 = vpack.c.b16 %v4488, %v4472
        %v4697 = vpack.c.b16 %v4505, %v4489
        %v4698 = vpack.c.b16 %v4506, %v4490
        %v4699 = vpack.c.b16 %v4507, %v4491
        %v4700 = vpack.c.b16 %v4508, %v4492
        %v4701 = vpack.c.b16 %v4509, %v4493
        %v4702 = vpack.c.b16 %v4510, %v4494
        %v4703 = vpack.c.b16 %v4511, %v4495
        %v4704 = vpack.c.b16 %v4512, %v4496
        %v4705 = vpack.c.b16 %v4513, %v4497
        %v4706 = vpack.c.b16 %v4514, %v4498
        %v4707 = vpack.c.b16 %v4515, %v4499
        %v4708 = vpack.c.b16 %v4516, %v4500
        %v4709 = vpack.c.b16 %v4517, %v4501
        %v4710 = vpack.c.b16 %v4518, %v4502
        %v4711 = vpack.c.b16 %v4519, %v4503
        %v4712 = vpack.c.b16 %v4520, %v4504
        %v4713 = vpack.c.b16 %v4537, %v4521
        %v4714 = vpack.c.b16 %v4538, %v4522
        %v4715 = vpack.c.b16 %v4539, %v4523
        %v4716 = vpack.c.b16 %v4540, %v4524
        %v4717 = vpack.c.b16 %v4541, %v4525
        %v4718 = vpack.c.b16 %v4542, %v4526
        %v4719 = vpack.c.b16 %v4543, %v4527
        %v4720 = vpack.c.b16 %v4544, %v4528
        %v4721 = vpack.c.b16 %v4545, %v4529
        %v4722 = vpack.c.b16 %v4546, %v4530
        %v4723 = vpack.c.b16 %v4547, %v4531
        %v4724 = vpack.c.b16 %v4548, %v4532
        %v4725 = vpack.c.b16 %v4549, %v4533
        %v4726 = vpack.c.b16 %v4550, %v4534
        %v4727 = vpack.c.b16 %v4551, %v4535
        %v4728 = vpack.c.b16 %v4552, %v4536
        %v4729 = vpack.c.b16 %v4569, %v4553
        %v4730 = vpack.c.b16 %v4570, %v4554
        %v4731 = vpack.c.b16 %v4571, %v4555
        %v4732 = vpack.c.b16 %v4572, %v4556
        %v4733 = vpack.c.b16 %v4573, %v4557
        %v4734 = vpack.c.b16 %v4574, %v4558
        %v4735 = vpack.c.b16 %v4575, %v4559
        %v4736 = vpack.c.b16 %v4576, %v4560
        %v4737 = vpack.c.b16 %v4577, %v4561
        %v4738 = vpack.c.b16 %v4578, %v4562
        %v4739 = vpack.c.b16 %v4579, %v4563
        %v4740 = vpack.c.b16 %v4580, %v4564
        %v4741 = vpack.c.b16 %v4581, %v4565
        %v4742 = vpack.c.b16 %v4582, %v4566
        %v4743 = vpack.c.b16 %v4583, %v4567
        %v4744 = vpack.c.b16 %v4584, %v4568
        %v4745 = vpack.c.b16 %v4601, %v4585
        %v4746 = vpack.c.b16 %v4602, %v4586
        %v4747 = vpack.c.b16 %v4603, %v4587
        %v4748 = vpack.c.b16 %v4604, %v4588
        %v4749 = vpack.c.b16 %v4605, %v4589
        %v4750 = vpack.c.b16 %v4606, %v4590
        %v4751 = vpack.c.b16 %v4607, %v4591
        %v4752 = vpack.c.b16 %v4608, %v4592
        %v4753 = vpack.c.b16 %v4609, %v4593
        %v4754 = vpack.c.b16 %v4610, %v4594
        %v4755 = vpack.c.b16 %v4611, %v4595
        %v4756 = vpack.c.b16 %v4612, %v4596
        %v4757 = vpack.c.b16 %v4613, %v4597
        %v4758 = vpack.c.b16 %v4614, %v4598
        %v4759 = vpack.c.b16 %v4615, %v4599
        %v4760 = vpack.c.b16 %v4616, %v4600
        %v4761 = vpack.c.b16 %v4633, %v4617
        %v4762 = vpack.c.b16 %v4634, %v4618
        %v4763 = vpack.c.b16 %v4635, %v4619
        %v4764 = vpack.c.b16 %v4636, %v4620
        %v4765 = vpack.c.b16 %v4637, %v4621
        %v4766 = vpack.c.b16 %v4638, %v4622
        %v4767 = vpack.c.b16 %v4639, %v4623
        %v4768 = vpack.c.b16 %v4640, %v4624
        %v4769 = vpack.c.b16 %v4641, %v4625
        %v4770 = vpack.c.b16 %v4642, %v4626
        %v4771 = vpack.c.b16 %v4643, %v4627
        %v4772 = vpack.c.b16 %v4644, %v4628
        %v4773 = vpack.c.b16 %v4645, %v4629
        %v4774 = vpack.c.b16 %v4646, %v4630
        %v4775 = vpack.c.b16 %v4647, %v4631
        %v4776 = vpack.c.b16 %v4648, %v4632
        %4905 = vmatprep.subr.bf16.mxu0 %v4762
        %4906 = vmatpush1.bf16.msra.mxu0 %v4761
        %4907 = vmatprep.subr.bf16.mxu0 %v4746
        %4908 = vmatpush1.bf16.msra.mxu0 %v4745
        %4909 = vmatprep.subr.bf16.mxu0 %v4730
        %4910 = vmatpush1.bf16.msra.mxu0 %v4729
        %4911 = vmatprep.subr.bf16.mxu0 %v4714
        %4912 = vmatpush1.bf16.msra.mxu0 %v4713
        %4913 = vmatprep.subr.bf16.mxu0 %v4698
        %4914 = vmatpush1.bf16.msra.mxu0 %v4697
        %4915 = vmatprep.subr.bf16.mxu0 %v4682
        %4916 = vmatpush1.bf16.msra.mxu0 %v4681
        %4917 = vmatprep.subr.bf16.mxu0 %v4666
        %4918 = vmatpush1.bf16.msra.mxu0 %v4665
        %4919 = vmatprep.subr.bf16.mxu0 %v4650
        %4920 = vmatpush1.bf16.msra.mxu0 %v4649
        %4921 = vmatprep.subr.bf16.mxu0 0
        %4922 = vmatpush2.bf16.msra.mxu0 0
        %4923 = vmatprep.subr.bf16.mxu0 0
        %4924 = vmatpush2.bf16.msra.mxu0 0
        %4925 = vmatprep.subr.bf16.mxu0 0
        %4926 = vmatpush2.bf16.msra.mxu0 0
        %4927 = vmatprep.subr.bf16.mxu0 0
        %4928 = vmatpush2.bf16.msra.mxu0 0
        %4929 = vmatprep.subr.bf16.mxu0 0
        %4930 = vmatpush2.bf16.msra.mxu0 0
        %4931 = vmatprep.subr.bf16.mxu0 0
        %4932 = vmatpush2.bf16.msra.mxu0 0
        %4933 = vmatprep.subr.bf16.mxu0 0
        %4934 = vmatpush2.bf16.msra.mxu0 0
        %4935 = vmatprep.subr.bf16.mxu0 0
        %4936 = vmatpush2.bf16.msra.mxu0 0
        %4937 = vmatprep.mubr.bf16.mxu0 0
        %4938 = vmatmul.mubr.bf16.gmra.mxu0 %v4049
        %v4939 = vpop.f32.mrf.mxu0
        %v4940 = vadd.f32 %v4188, %v4939
        %v4941 = vpop.f32.mrf.mxu0
        %v4942 = vadd.f32 %v4192, %v4941
        %v4943 = vpop.f32.mrf.mxu0
        %v4944 = vadd.f32 %v4188, %v4943
        %v4945 = vpop.f32.mrf.mxu0
        %v4946 = vadd.f32 %v4192, %v4945
        %4947 = vmatprep.mubr.bf16.mxu0 0
        %4948 = vmatmul.mubr.bf16.gmra.mxu0 %v4050
        %v4949 = vpop.f32.mrf.mxu0
        %v4950 = vadd.f32 %v4188, %v4949
        %v4951 = vpop.f32.mrf.mxu0
        %v4952 = vadd.f32 %v4192, %v4951
        %v4953 = vpop.f32.mrf.mxu0
        %v4954 = vadd.f32 %v4188, %v4953
        %v4955 = vpop.f32.mrf.mxu0
        %v4956 = vadd.f32 %v4192, %v4955
        %4957 = vmatprep.mubr.bf16.mxu0 0
        %4958 = vmatmul.mubr.bf16.gmra.mxu0 %v4051
        %v4959 = vpop.f32.mrf.mxu0
        %v4960 = vadd.f32 %v4188, %v4959
        %v4961 = vpop.f32.mrf.mxu0
        %v4962 = vadd.f32 %v4192, %v4961
        %v4963 = vpop.f32.mrf.mxu0
        %v4964 = vadd.f32 %v4188, %v4963
        %v4965 = vpop.f32.mrf.mxu0
        %v4966 = vadd.f32 %v4192, %v4965
        %4967 = vmatprep.mubr.bf16.mxu0 0
        %4968 = vmatmul.mubr.bf16.gmra.mxu0 %v4052
        %v4969 = vpop.f32.mrf.mxu0
        %v4970 = vadd.f32 %v4188, %v4969
        %v4971 = vpop.f32.mrf.mxu0
        %v4972 = vadd.f32 %v4192, %v4971
        %v4973 = vpop.f32.mrf.mxu0
        %v4974 = vadd.f32 %v4188, %v4973
        %v4975 = vpop.f32.mrf.mxu0
        %v4976 = vadd.f32 %v4192, %v4975
        %4977 = vdwg.mxu0
        %4978 = vmatprep.subr.bf16.mxu0 %v4764
        %4979 = vmatpush1.bf16.msra.mxu0 %v4763
        %4980 = vmatprep.subr.bf16.mxu0 %v4748
        %4981 = vmatpush1.bf16.msra.mxu0 %v4747
        %4982 = vmatprep.subr.bf16.mxu0 %v4732
        %4983 = vmatpush1.bf16.msra.mxu0 %v4731
        %4984 = vmatprep.subr.bf16.mxu0 %v4716
        %4985 = vmatpush1.bf16.msra.mxu0 %v4715
        %4986 = vmatprep.subr.bf16.mxu0 %v4700
        %4987 = vmatpush1.bf16.msra.mxu0 %v4699
        %4988 = vmatprep.subr.bf16.mxu0 %v4684
        %4989 = vmatpush1.bf16.msra.mxu0 %v4683
        %4990 = vmatprep.subr.bf16.mxu0 %v4668
        %4991 = vmatpush1.bf16.msra.mxu0 %v4667
        %4992 = vmatprep.subr.bf16.mxu0 %v4652
        %4993 = vmatpush1.bf16.msra.mxu0 %v4651
        %4994 = vmatprep.subr.bf16.mxu0 0
        %4995 = vmatpush2.bf16.msra.mxu0 0
        %4996 = vmatprep.subr.bf16.mxu0 0
        %4997 = vmatpush2.bf16.msra.mxu0 0
        %4998 = vmatprep.subr.bf16.mxu0 0
        %4999 = vmatpush2.bf16.msra.mxu0 0
        %5000 = vmatprep.subr.bf16.mxu0 0
        %5001 = vmatpush2.bf16.msra.mxu0 0
        %5002 = vmatprep.subr.bf16.mxu0 0
        %5003 = vmatpush2.bf16.msra.mxu0 0
        %5004 = vmatprep.subr.bf16.mxu0 0
        %5005 = vmatpush2.bf16.msra.mxu0 0
        %5006 = vmatprep.subr.bf16.mxu0 0
        %5007 = vmatpush2.bf16.msra.mxu0 0
        %5008 = vmatprep.subr.bf16.mxu0 0
        %5009 = vmatpush2.bf16.msra.mxu0 0
        %5010 = vmatprep.mubr.bf16.mxu0 0
        %5011 = vmatmul.mubr.bf16.gmra.mxu0 %v4049
        %v5012 = vpop.f32.mrf.mxu0
        %v5013 = vadd.f32 %v4196, %v5012
        %v5014 = vpop.f32.mrf.mxu0
        %v5015 = vadd.f32 %v4200, %v5014
        %v5016 = vpop.f32.mrf.mxu0
        %v5017 = vadd.f32 %v4196, %v5016
        %v5018 = vpop.f32.mrf.mxu0
        %v5019 = vadd.f32 %v4200, %v5018
        %5020 = vmatprep.mubr.bf16.mxu0 0
        %5021 = vmatmul.mubr.bf16.gmra.mxu0 %v4050
        %v5022 = vpop.f32.mrf.mxu0
        %v5023 = vadd.f32 %v4196, %v5022
        %v5024 = vpop.f32.mrf.mxu0
        %v5025 = vadd.f32 %v4200, %v5024
        %v5026 = vpop.f32.mrf.mxu0
        %v5027 = vadd.f32 %v4196, %v5026
        %v5028 = vpop.f32.mrf.mxu0
        %v5029 = vadd.f32 %v4200, %v5028
        %5030 = vmatprep.mubr.bf16.mxu0 0
        %5031 = vmatmul.mubr.bf16.gmra.mxu0 %v4051
        %v5032 = vpop.f32.mrf.mxu0
        %v5033 = vadd.f32 %v4196, %v5032
        %v5034 = vpop.f32.mrf.mxu0
        %v5035 = vadd.f32 %v4200, %v5034
        %v5036 = vpop.f32.mrf.mxu0
        %v5037 = vadd.f32 %v4196, %v5036
        %v5038 = vpop.f32.mrf.mxu0
        %v5039 = vadd.f32 %v4200, %v5038
        %5040 = vmatprep.mubr.bf16.mxu0 0
        %5041 = vmatmul.mubr.bf16.gmra.mxu0 %v4052
        %v5042 = vpop.f32.mrf.mxu0
        %v5043 = vadd.f32 %v4196, %v5042
        %v5044 = vpop.f32.mrf.mxu0
        %v5045 = vadd.f32 %v4200, %v5044
        %v5046 = vpop.f32.mrf.mxu0
        %v5047 = vadd.f32 %v4196, %v5046
        %v5048 = vpop.f32.mrf.mxu0
        %v5049 = vadd.f32 %v4200, %v5048
        %5050 = vdwg.mxu0
        %5051 = vmatprep.subr.bf16.mxu0 %v4766
        %5052 = vmatpush1.bf16.msra.mxu0 %v4765
        %5053 = vmatprep.subr.bf16.mxu0 %v4750
        %5054 = vmatpush1.bf16.msra.mxu0 %v4749
        %5055 = vmatprep.subr.bf16.mxu0 %v4734
        %5056 = vmatpush1.bf16.msra.mxu0 %v4733
        %5057 = vmatprep.subr.bf16.mxu0 %v4718
        %5058 = vmatpush1.bf16.msra.mxu0 %v4717
        %5059 = vmatprep.subr.bf16.mxu0 %v4702
        %5060 = vmatpush1.bf16.msra.mxu0 %v4701
        %5061 = vmatprep.subr.bf16.mxu0 %v4686
        %5062 = vmatpush1.bf16.msra.mxu0 %v4685
        %5063 = vmatprep.subr.bf16.mxu0 %v4670
        %5064 = vmatpush1.bf16.msra.mxu0 %v4669
        %5065 = vmatprep.subr.bf16.mxu0 %v4654
        %5066 = vmatpush1.bf16.msra.mxu0 %v4653
        %5067 = vmatprep.subr.bf16.mxu0 0
        %5068 = vmatpush2.bf16.msra.mxu0 0
        %5069 = vmatprep.subr.bf16.mxu0 0
        %5070 = vmatpush2.bf16.msra.mxu0 0
        %5071 = vmatprep.subr.bf16.mxu0 0
        %5072 = vmatpush2.bf16.msra.mxu0 0
        %5073 = vmatprep.subr.bf16.mxu0 0
        %5074 = vmatpush2.bf16.msra.mxu0 0
        %5075 = vmatprep.subr.bf16.mxu0 0
        %5076 = vmatpush2.bf16.msra.mxu0 0
        %5077 = vmatprep.subr.bf16.mxu0 0
        %5078 = vmatpush2.bf16.msra.mxu0 0
        %5079 = vmatprep.subr.bf16.mxu0 0
        %5080 = vmatpush2.bf16.msra.mxu0 0
        %5081 = vmatprep.subr.bf16.mxu0 0
        %5082 = vmatpush2.bf16.msra.mxu0 0
        %5083 = vmatprep.mubr.bf16.mxu0 0
        %5084 = vmatmul.mubr.bf16.gmra.mxu0 %v4049
        %v5085 = vpop.f32.mrf.mxu0
        %v5086 = vadd.f32 %v4204, %v5085
        %v5087 = vpop.f32.mrf.mxu0
        %v5088 = vadd.f32 %v4208, %v5087
        %v5089 = vpop.f32.mrf.mxu0
        %v5090 = vadd.f32 %v4204, %v5089
        %v5091 = vpop.f32.mrf.mxu0
        %v5092 = vadd.f32 %v4208, %v5091
        %5093 = vmatprep.mubr.bf16.mxu0 0
        %5094 = vmatmul.mubr.bf16.gmra.mxu0 %v4050
        %v5095 = vpop.f32.mrf.mxu0
        %v5096 = vadd.f32 %v4204, %v5095
        %v5097 = vpop.f32.mrf.mxu0
        %v5098 = vadd.f32 %v4208, %v5097
        %v5099 = vpop.f32.mrf.mxu0
        %v5100 = vadd.f32 %v4204, %v5099
        %v5101 = vpop.f32.mrf.mxu0
        %v5102 = vadd.f32 %v4208, %v5101
        %5103 = vmatprep.mubr.bf16.mxu0 0
        %5104 = vmatmul.mubr.bf16.gmra.mxu0 %v4051
        %v5105 = vpop.f32.mrf.mxu0
        %v5106 = vadd.f32 %v4204, %v5105
        %v5107 = vpop.f32.mrf.mxu0
        %v5108 = vadd.f32 %v4208, %v5107
        %v5109 = vpop.f32.mrf.mxu0
        %v5110 = vadd.f32 %v4204, %v5109
        %v5111 = vpop.f32.mrf.mxu0
        %v5112 = vadd.f32 %v4208, %v5111
        %5113 = vmatprep.mubr.bf16.mxu0 0
        %5114 = vmatmul.mubr.bf16.gmra.mxu0 %v4052
        %v5115 = vpop.f32.mrf.mxu0
        %v5116 = vadd.f32 %v4204, %v5115
        %v5117 = vpop.f32.mrf.mxu0
        %v5118 = vadd.f32 %v4208, %v5117
        %v5119 = vpop.f32.mrf.mxu0
        %v5120 = vadd.f32 %v4204, %v5119
        %v5121 = vpop.f32.mrf.mxu0
        %v5122 = vadd.f32 %v4208, %v5121
        %5123 = vdwg.mxu0
        %5124 = vmatprep.subr.bf16.mxu0 %v4768
        %5125 = vmatpush1.bf16.msra.mxu0 %v4767
        %5126 = vmatprep.subr.bf16.mxu0 %v4752
        %5127 = vmatpush1.bf16.msra.mxu0 %v4751
        %5128 = vmatprep.subr.bf16.mxu0 %v4736
        %5129 = vmatpush1.bf16.msra.mxu0 %v4735
        %5130 = vmatprep.subr.bf16.mxu0 %v4720
        %5131 = vmatpush1.bf16.msra.mxu0 %v4719
        %5132 = vmatprep.subr.bf16.mxu0 %v4704
        %5133 = vmatpush1.bf16.msra.mxu0 %v4703
        %5134 = vmatprep.subr.bf16.mxu0 %v4688
        %5135 = vmatpush1.bf16.msra.mxu0 %v4687
        %5136 = vmatprep.subr.bf16.mxu0 %v4672
        %5137 = vmatpush1.bf16.msra.mxu0 %v4671
        %5138 = vmatprep.subr.bf16.mxu0 %v4656
        %5139 = vmatpush1.bf16.msra.mxu0 %v4655
        %5140 = vmatprep.subr.bf16.mxu0 0
        %5141 = vmatpush2.bf16.msra.mxu0 0
        %5142 = vmatprep.subr.bf16.mxu0 0
        %5143 = vmatpush2.bf16.msra.mxu0 0
        %5144 = vmatprep.subr.bf16.mxu0 0
        %5145 = vmatpush2.bf16.msra.mxu0 0
        %5146 = vmatprep.subr.bf16.mxu0 0
        %5147 = vmatpush2.bf16.msra.mxu0 0
        %5148 = vmatprep.subr.bf16.mxu0 0
        %5149 = vmatpush2.bf16.msra.mxu0 0
        %5150 = vmatprep.subr.bf16.mxu0 0
        %5151 = vmatpush2.bf16.msra.mxu0 0
        %5152 = vmatprep.subr.bf16.mxu0 0
        %5153 = vmatpush2.bf16.msra.mxu0 0
        %5154 = vmatprep.subr.bf16.mxu0 0
        %5155 = vmatpush2.bf16.msra.mxu0 0
        %5156 = vmatprep.mubr.bf16.mxu0 0
        %5157 = vmatmul.mubr.bf16.gmra.mxu0 %v4049
        %v5158 = vpop.f32.mrf.mxu0
        %v5159 = vadd.f32 %v4212, %v5158
        %v5160 = vpop.f32.mrf.mxu0
        %v5161 = vadd.f32 %v4216, %v5160
        %v5162 = vpop.f32.mrf.mxu0
        %v5163 = vadd.f32 %v4212, %v5162
        %v5164 = vpop.f32.mrf.mxu0
        %v5165 = vadd.f32 %v4216, %v5164
        %5166 = vmatprep.mubr.bf16.mxu0 0
        %5167 = vmatmul.mubr.bf16.gmra.mxu0 %v4050
        %v5168 = vpop.f32.mrf.mxu0
        %v5169 = vadd.f32 %v4212, %v5168
        %v5170 = vpop.f32.mrf.mxu0
        %v5171 = vadd.f32 %v4216, %v5170
        %v5172 = vpop.f32.mrf.mxu0
        %v5173 = vadd.f32 %v4212, %v5172
        %v5174 = vpop.f32.mrf.mxu0
        %v5175 = vadd.f32 %v4216, %v5174
        %5176 = vmatprep.mubr.bf16.mxu0 0
        %5177 = vmatmul.mubr.bf16.gmra.mxu0 %v4051
        %v5178 = vpop.f32.mrf.mxu0
        %v5179 = vadd.f32 %v4212, %v5178
        %v5180 = vpop.f32.mrf.mxu0
        %v5181 = vadd.f32 %v4216, %v5180
        %v5182 = vpop.f32.mrf.mxu0
        %v5183 = vadd.f32 %v4212, %v5182
        %v5184 = vpop.f32.mrf.mxu0
        %v5185 = vadd.f32 %v4216, %v5184
        %5186 = vmatprep.mubr.bf16.mxu0 0
        %5187 = vmatmul.mubr.bf16.gmra.mxu0 %v4052
        %v5188 = vpop.f32.mrf.mxu0
        %v5189 = vadd.f32 %v4212, %v5188
        %v5190 = vpop.f32.mrf.mxu0
        %v5191 = vadd.f32 %v4216, %v5190
        %v5192 = vpop.f32.mrf.mxu0
        %v5193 = vadd.f32 %v4212, %v5192
        %v5194 = vpop.f32.mrf.mxu0
        %v5195 = vadd.f32 %v4216, %v5194
        %5196 = vdwg.mxu0
        %5197 = vmatprep.subr.bf16.mxu0 %v4770
        %5198 = vmatpush1.bf16.msra.mxu0 %v4769
        %5199 = vmatprep.subr.bf16.mxu0 %v4754
        %5200 = vmatpush1.bf16.msra.mxu0 %v4753
        %5201 = vmatprep.subr.bf16.mxu0 %v4738
        %5202 = vmatpush1.bf16.msra.mxu0 %v4737
        %5203 = vmatprep.subr.bf16.mxu0 %v4722
        %5204 = vmatpush1.bf16.msra.mxu0 %v4721
        %5205 = vmatprep.subr.bf16.mxu0 %v4706
        %5206 = vmatpush1.bf16.msra.mxu0 %v4705
        %5207 = vmatprep.subr.bf16.mxu0 %v4690
        %5208 = vmatpush1.bf16.msra.mxu0 %v4689
        %5209 = vmatprep.subr.bf16.mxu0 %v4674
        %5210 = vmatpush1.bf16.msra.mxu0 %v4673
        %5211 = vmatprep.subr.bf16.mxu0 %v4658
        %5212 = vmatpush1.bf16.msra.mxu0 %v4657
        %5213 = vmatprep.subr.bf16.mxu0 0
        %5214 = vmatpush2.bf16.msra.mxu0 0
        %5215 = vmatprep.subr.bf16.mxu0 0
        %5216 = vmatpush2.bf16.msra.mxu0 0
        %5217 = vmatprep.subr.bf16.mxu0 0
        %5218 = vmatpush2.bf16.msra.mxu0 0
        %5219 = vmatprep.subr.bf16.mxu0 0
        %5220 = vmatpush2.bf16.msra.mxu0 0
        %5221 = vmatprep.subr.bf16.mxu0 0
        %5222 = vmatpush2.bf16.msra.mxu0 0
        %5223 = vmatprep.subr.bf16.mxu0 0
        %5224 = vmatpush2.bf16.msra.mxu0 0
        %5225 = vmatprep.subr.bf16.mxu0 0
        %5226 = vmatpush2.bf16.msra.mxu0 0
        %5227 = vmatprep.subr.bf16.mxu0 0
        %5228 = vmatpush2.bf16.msra.mxu0 0
        %5229 = vmatprep.mubr.bf16.mxu0 0
        %5230 = vmatmul.mubr.bf16.gmra.mxu0 %v4049
        %v5231 = vpop.f32.mrf.mxu0
        %v5232 = vadd.f32 %v4220, %v5231
        %v5233 = vpop.f32.mrf.mxu0
        %v5234 = vadd.f32 %v4224, %v5233
        %v5235 = vpop.f32.mrf.mxu0
        %v5236 = vadd.f32 %v4220, %v5235
        %v5237 = vpop.f32.mrf.mxu0
        %v5238 = vadd.f32 %v4224, %v5237
        %5239 = vmatprep.mubr.bf16.mxu0 0
        %5240 = vmatmul.mubr.bf16.gmra.mxu0 %v4050
        %v5241 = vpop.f32.mrf.mxu0
        %v5242 = vadd.f32 %v4220, %v5241
        %v5243 = vpop.f32.mrf.mxu0
        %v5244 = vadd.f32 %v4224, %v5243
        %v5245 = vpop.f32.mrf.mxu0
        %v5246 = vadd.f32 %v4220, %v5245
        %v5247 = vpop.f32.mrf.mxu0
        %v5248 = vadd.f32 %v4224, %v5247
        %5249 = vmatprep.mubr.bf16.mxu0 0
        %5250 = vmatmul.mubr.bf16.gmra.mxu0 %v4051
        %v5251 = vpop.f32.mrf.mxu0
        %v5252 = vadd.f32 %v4220, %v5251
        %v5253 = vpop.f32.mrf.mxu0
        %v5254 = vadd.f32 %v4224, %v5253
        %v5255 = vpop.f32.mrf.mxu0
        %v5256 = vadd.f32 %v4220, %v5255
        %v5257 = vpop.f32.mrf.mxu0
        %v5258 = vadd.f32 %v4224, %v5257
        %5259 = vmatprep.mubr.bf16.mxu0 0
        %5260 = vmatmul.mubr.bf16.gmra.mxu0 %v4052
        %v5261 = vpop.f32.mrf.mxu0
        %v5262 = vadd.f32 %v4220, %v5261
        %v5263 = vpop.f32.mrf.mxu0
        %v5264 = vadd.f32 %v4224, %v5263
        %v5265 = vpop.f32.mrf.mxu0
        %v5266 = vadd.f32 %v4220, %v5265
        %v5267 = vpop.f32.mrf.mxu0
        %v5268 = vadd.f32 %v4224, %v5267
        %5269 = vdwg.mxu0
        %5270 = vmatprep.subr.bf16.mxu0 %v4772
        %5271 = vmatpush1.bf16.msra.mxu0 %v4771
        %5272 = vmatprep.subr.bf16.mxu0 %v4756
        %5273 = vmatpush1.bf16.msra.mxu0 %v4755
        %5274 = vmatprep.subr.bf16.mxu0 %v4740
        %5275 = vmatpush1.bf16.msra.mxu0 %v4739
        %5276 = vmatprep.subr.bf16.mxu0 %v4724
        %5277 = vmatpush1.bf16.msra.mxu0 %v4723
        %5278 = vmatprep.subr.bf16.mxu0 %v4708
        %5279 = vmatpush1.bf16.msra.mxu0 %v4707
        %5280 = vmatprep.subr.bf16.mxu0 %v4692
        %5281 = vmatpush1.bf16.msra.mxu0 %v4691
        %5282 = vmatprep.subr.bf16.mxu0 %v4676
        %5283 = vmatpush1.bf16.msra.mxu0 %v4675
        %5284 = vmatprep.subr.bf16.mxu0 %v4660
        %5285 = vmatpush1.bf16.msra.mxu0 %v4659
        %5286 = vmatprep.subr.bf16.mxu0 0
        %5287 = vmatpush2.bf16.msra.mxu0 0
        %5288 = vmatprep.subr.bf16.mxu0 0
        %5289 = vmatpush2.bf16.msra.mxu0 0
        %5290 = vmatprep.subr.bf16.mxu0 0
        %5291 = vmatpush2.bf16.msra.mxu0 0
        %5292 = vmatprep.subr.bf16.mxu0 0
        %5293 = vmatpush2.bf16.msra.mxu0 0
        %5294 = vmatprep.subr.bf16.mxu0 0
        %5295 = vmatpush2.bf16.msra.mxu0 0
        %5296 = vmatprep.subr.bf16.mxu0 0
        %5297 = vmatpush2.bf16.msra.mxu0 0
        %5298 = vmatprep.subr.bf16.mxu0 0
        %5299 = vmatpush2.bf16.msra.mxu0 0
        %5300 = vmatprep.subr.bf16.mxu0 0
        %5301 = vmatpush2.bf16.msra.mxu0 0
        %5302 = vmatprep.mubr.bf16.mxu0 0
        %5303 = vmatmul.mubr.bf16.gmra.mxu0 %v4049
        %v5304 = vpop.f32.mrf.mxu0
        %v5305 = vadd.f32 %v4228, %v5304
        %v5306 = vpop.f32.mrf.mxu0
        %v5307 = vadd.f32 %v4232, %v5306
        %v5308 = vpop.f32.mrf.mxu0
        %v5309 = vadd.f32 %v4228, %v5308
        %v5310 = vpop.f32.mrf.mxu0
        %v5311 = vadd.f32 %v4232, %v5310
        %5312 = vmatprep.mubr.bf16.mxu0 0
        %5313 = vmatmul.mubr.bf16.gmra.mxu0 %v4050
        %v5314 = vpop.f32.mrf.mxu0
        %v5315 = vadd.f32 %v4228, %v5314
        %v5316 = vpop.f32.mrf.mxu0
        %v5317 = vadd.f32 %v4232, %v5316
        %v5318 = vpop.f32.mrf.mxu0
        %v5319 = vadd.f32 %v4228, %v5318
        %v5320 = vpop.f32.mrf.mxu0
        %v5321 = vadd.f32 %v4232, %v5320
        %5322 = vmatprep.mubr.bf16.mxu0 0
        %5323 = vmatmul.mubr.bf16.gmra.mxu0 %v4051
        %v5324 = vpop.f32.mrf.mxu0
        %v5325 = vadd.f32 %v4228, %v5324
        %v5326 = vpop.f32.mrf.mxu0
        %v5327 = vadd.f32 %v4232, %v5326
        %v5328 = vpop.f32.mrf.mxu0
        %v5329 = vadd.f32 %v4228, %v5328
        %v5330 = vpop.f32.mrf.mxu0
        %v5331 = vadd.f32 %v4232, %v5330
        %5332 = vmatprep.mubr.bf16.mxu0 0
        %5333 = vmatmul.mubr.bf16.gmra.mxu0 %v4052
        %v5334 = vpop.f32.mrf.mxu0
        %v5335 = vadd.f32 %v4228, %v5334
        %v5336 = vpop.f32.mrf.mxu0
        %v5337 = vadd.f32 %v4232, %v5336
        %v5338 = vpop.f32.mrf.mxu0
        %v5339 = vadd.f32 %v4228, %v5338
        %v5340 = vpop.f32.mrf.mxu0
        %v5341 = vadd.f32 %v4232, %v5340
        %5342 = vdwg.mxu0
        %5343 = vmatprep.subr.bf16.mxu0 %v4774
        %5344 = vmatpush1.bf16.msra.mxu0 %v4773
        %5345 = vmatprep.subr.bf16.mxu0 %v4758
        %5346 = vmatpush1.bf16.msra.mxu0 %v4757
        %5347 = vmatprep.subr.bf16.mxu0 %v4742
        %5348 = vmatpush1.bf16.msra.mxu0 %v4741
        %5349 = vmatprep.subr.bf16.mxu0 %v4726
        %5350 = vmatpush1.bf16.msra.mxu0 %v4725
        %5351 = vmatprep.subr.bf16.mxu0 %v4710
        %5352 = vmatpush1.bf16.msra.mxu0 %v4709
        %5353 = vmatprep.subr.bf16.mxu0 %v4694
        %5354 = vmatpush1.bf16.msra.mxu0 %v4693
        %5355 = vmatprep.subr.bf16.mxu0 %v4678
        %5356 = vmatpush1.bf16.msra.mxu0 %v4677
        %5357 = vmatprep.subr.bf16.mxu0 %v4662
        %5358 = vmatpush1.bf16.msra.mxu0 %v4661
        %5359 = vmatprep.subr.bf16.mxu0 0
        %5360 = vmatpush2.bf16.msra.mxu0 0
        %5361 = vmatprep.subr.bf16.mxu0 0
        %5362 = vmatpush2.bf16.msra.mxu0 0
        %5363 = vmatprep.subr.bf16.mxu0 0
        %5364 = vmatpush2.bf16.msra.mxu0 0
        %5365 = vmatprep.subr.bf16.mxu0 0
        %5366 = vmatpush2.bf16.msra.mxu0 0
        %5367 = vmatprep.subr.bf16.mxu0 0
        %5368 = vmatpush2.bf16.msra.mxu0 0
        %5369 = vmatprep.subr.bf16.mxu0 0
        %5370 = vmatpush2.bf16.msra.mxu0 0
        %5371 = vmatprep.subr.bf16.mxu0 0
        %5372 = vmatpush2.bf16.msra.mxu0 0
        %5373 = vmatprep.subr.bf16.mxu0 0
        %5374 = vmatpush2.bf16.msra.mxu0 0
        %5375 = vmatprep.mubr.bf16.mxu0 0
        %5376 = vmatmul.mubr.bf16.gmra.mxu0 %v4049
        %v5377 = vpop.f32.mrf.mxu0
        %v5378 = vadd.f32 %v4236, %v5377
        %v5379 = vpop.f32.mrf.mxu0
        %v5380 = vadd.f32 %v4240, %v5379
        %v5381 = vpop.f32.mrf.mxu0
        %v5382 = vadd.f32 %v4236, %v5381
        %v5383 = vpop.f32.mrf.mxu0
        %v5384 = vadd.f32 %v4240, %v5383
        %5385 = vmatprep.mubr.bf16.mxu0 0
        %5386 = vmatmul.mubr.bf16.gmra.mxu0 %v4050
        %v5387 = vpop.f32.mrf.mxu0
        %v5388 = vadd.f32 %v4236, %v5387
        %v5389 = vpop.f32.mrf.mxu0
        %v5390 = vadd.f32 %v4240, %v5389
        %v5391 = vpop.f32.mrf.mxu0
        %v5392 = vadd.f32 %v4236, %v5391
        %v5393 = vpop.f32.mrf.mxu0
        %v5394 = vadd.f32 %v4240, %v5393
        %5395 = vmatprep.mubr.bf16.mxu0 0
        %5396 = vmatmul.mubr.bf16.gmra.mxu0 %v4051
        %v5397 = vpop.f32.mrf.mxu0
        %v5398 = vadd.f32 %v4236, %v5397
        %v5399 = vpop.f32.mrf.mxu0
        %v5400 = vadd.f32 %v4240, %v5399
        %v5401 = vpop.f32.mrf.mxu0
        %v5402 = vadd.f32 %v4236, %v5401
        %v5403 = vpop.f32.mrf.mxu0
        %v5404 = vadd.f32 %v4240, %v5403
        %5405 = vmatprep.mubr.bf16.mxu0 0
        %5406 = vmatmul.mubr.bf16.gmra.mxu0 %v4052
        %v5407 = vpop.f32.mrf.mxu0
        %v5408 = vadd.f32 %v4236, %v5407
        %v5409 = vpop.f32.mrf.mxu0
        %v5410 = vadd.f32 %v4240, %v5409
        %v5411 = vpop.f32.mrf.mxu0
        %v5412 = vadd.f32 %v4236, %v5411
        %v5413 = vpop.f32.mrf.mxu0
        %v5414 = vadd.f32 %v4240, %v5413
        %5415 = vdwg.mxu0
        %5416 = vmatprep.subr.bf16.mxu0 %v4776
        %5417 = vmatpush1.bf16.msra.mxu0 %v4775
        %5418 = vmatprep.subr.bf16.mxu0 %v4760
        %5419 = vmatpush1.bf16.msra.mxu0 %v4759
        %5420 = vmatprep.subr.bf16.mxu0 %v4744
        %5421 = vmatpush1.bf16.msra.mxu0 %v4743
        %5422 = vmatprep.subr.bf16.mxu0 %v4728
        %5423 = vmatpush1.bf16.msra.mxu0 %v4727
        %5424 = vmatprep.subr.bf16.mxu0 %v4712
        %5425 = vmatpush1.bf16.msra.mxu0 %v4711
        %5426 = vmatprep.subr.bf16.mxu0 %v4696
        %5427 = vmatpush1.bf16.msra.mxu0 %v4695
        %5428 = vmatprep.subr.bf16.mxu0 %v4680
        %5429 = vmatpush1.bf16.msra.mxu0 %v4679
        %5430 = vmatprep.subr.bf16.mxu0 %v4664
        %5431 = vmatpush1.bf16.msra.mxu0 %v4663
        %5432 = vmatprep.subr.bf16.mxu0 0
        %5433 = vmatpush2.bf16.msra.mxu0 0
        %5434 = vmatprep.subr.bf16.mxu0 0
        %5435 = vmatpush2.bf16.msra.mxu0 0
        %5436 = vmatprep.subr.bf16.mxu0 0
        %5437 = vmatpush2.bf16.msra.mxu0 0
        %5438 = vmatprep.subr.bf16.mxu0 0
        %5439 = vmatpush2.bf16.msra.mxu0 0
        %5440 = vmatprep.subr.bf16.mxu0 0
        %5441 = vmatpush2.bf16.msra.mxu0 0
        %5442 = vmatprep.subr.bf16.mxu0 0
        %5443 = vmatpush2.bf16.msra.mxu0 0
        %5444 = vmatprep.subr.bf16.mxu0 0
        %5445 = vmatpush2.bf16.msra.mxu0 0
        %5446 = vmatprep.subr.bf16.mxu0 0
        %5447 = vmatpush2.bf16.msra.mxu0 0
        %5448 = vmatprep.mubr.bf16.mxu0 0
        %5449 = vmatmul.mubr.bf16.gmra.mxu0 %v4049
        %v5450 = vpop.f32.mrf.mxu0
        %v5451 = vadd.f32 %v4244, %v5450
        %v5452 = vpop.f32.mrf.mxu0
        %v5453 = vadd.f32 %v4248, %v5452
        %v5454 = vpop.f32.mrf.mxu0
        %v5455 = vadd.f32 %v4244, %v5454
        %v5456 = vpop.f32.mrf.mxu0
        %v5457 = vadd.f32 %v4248, %v5456
        %5458 = vmatprep.mubr.bf16.mxu0 0
        %5459 = vmatmul.mubr.bf16.gmra.mxu0 %v4050
        %v5460 = vpop.f32.mrf.mxu0
        %v5461 = vadd.f32 %v4244, %v5460
        %v5462 = vpop.f32.mrf.mxu0
        %v5463 = vadd.f32 %v4248, %v5462
        %v5464 = vpop.f32.mrf.mxu0
        %v5465 = vadd.f32 %v4244, %v5464
        %v5466 = vpop.f32.mrf.mxu0
        %v5467 = vadd.f32 %v4248, %v5466
        %5468 = vmatprep.mubr.bf16.mxu0 0
        %5469 = vmatmul.mubr.bf16.gmra.mxu0 %v4051
        %v5470 = vpop.f32.mrf.mxu0
        %v5471 = vadd.f32 %v4244, %v5470
        %v5472 = vpop.f32.mrf.mxu0
        %v5473 = vadd.f32 %v4248, %v5472
        %v5474 = vpop.f32.mrf.mxu0
        %v5475 = vadd.f32 %v4244, %v5474
        %v5476 = vpop.f32.mrf.mxu0
        %v5477 = vadd.f32 %v4248, %v5476
        %5478 = vmatprep.mubr.bf16.mxu0 0
        %5479 = vmatmul.mubr.bf16.gmra.mxu0 %v4052
        %v5480 = vpop.f32.mrf.mxu0
        %v5481 = vadd.f32 %v4244, %v5480
        %v5482 = vpop.f32.mrf.mxu0
        %v5483 = vadd.f32 %v4248, %v5482
        %v5484 = vpop.f32.mrf.mxu0
        %v5485 = vadd.f32 %v4244, %v5484
        %v5486 = vpop.f32.mrf.mxu0
        %v5487 = vadd.f32 %v4248, %v5486
        %5488 = vdwg.mxu0
        %v5489 = vtanh.pop %v4940
        %v5490 = vtanh.pop %v4942
        %v5491 = vtanh.pop %v5013
        %v5492 = vtanh.pop %v5015
        %v5493 = vtanh.pop %v5086
        %v5494 = vtanh.pop %v5088
        %v5495 = vtanh.pop %v5159
        %v5496 = vtanh.pop %v5161
        %v5497 = vtanh.pop %v5232
        %v5498 = vtanh.pop %v5234
        %v5499 = vtanh.pop %v5305
        %v5500 = vtanh.pop %v5307
        %v5501 = vtanh.pop %v5378
        %v5502 = vtanh.pop %v5380
        %v5503 = vtanh.pop %v5451
        %v5504 = vtanh.pop %v5453
        %v5505 = vtanh.pop %v4944
        %v5506 = vtanh.pop %v4946
        %v5507 = vtanh.pop %v5017
        %v5508 = vtanh.pop %v5019
        %v5509 = vtanh.pop %v5090
        %v5510 = vtanh.pop %v5092
        %v5511 = vtanh.pop %v5163
        %v5512 = vtanh.pop %v5165
        %v5513 = vtanh.pop %v5236
        %v5514 = vtanh.pop %v5238
        %v5515 = vtanh.pop %v5309
        %v5516 = vtanh.pop %v5311
        %v5517 = vtanh.pop %v5382
        %v5518 = vtanh.pop %v5384
        %v5519 = vtanh.pop %v5455
        %v5520 = vtanh.pop %v5457
        %v5521 = vtanh.pop %v4950
        %v5522 = vtanh.pop %v4952
        %v5523 = vtanh.pop %v5023
        %v5524 = vtanh.pop %v5025
        %v5525 = vtanh.pop %v5096
        %v5526 = vtanh.pop %v5098
        %v5527 = vtanh.pop %v5169
        %v5528 = vtanh.pop %v5171
        %v5529 = vtanh.pop %v5242
        %v5530 = vtanh.pop %v5244
        %v5531 = vtanh.pop %v5315
        %v5532 = vtanh.pop %v5317
        %v5533 = vtanh.pop %v5388
        %v5534 = vtanh.pop %v5390
        %v5535 = vtanh.pop %v5461
        %v5536 = vtanh.pop %v5463
        %v5537 = vtanh.pop %v4954
        %v5538 = vtanh.pop %v4956
        %v5539 = vtanh.pop %v5027
        %v5540 = vtanh.pop %v5029
        %v5541 = vtanh.pop %v5100
        %v5542 = vtanh.pop %v5102
        %v5543 = vtanh.pop %v5173
        %v5544 = vtanh.pop %v5175
        %v5545 = vtanh.pop %v5246
        %v5546 = vtanh.pop %v5248
        %v5547 = vtanh.pop %v5319
        %v5548 = vtanh.pop %v5321
        %v5549 = vtanh.pop %v5392
        %v5550 = vtanh.pop %v5394
        %v5551 = vtanh.pop %v5465
        %v5552 = vtanh.pop %v5467
        %v5553 = vtanh.pop %v4960
        %v5554 = vtanh.pop %v4962
        %v5555 = vtanh.pop %v5033
        %v5556 = vtanh.pop %v5035
        %v5557 = vtanh.pop %v5106
        %v5558 = vtanh.pop %v5108
        %v5559 = vtanh.pop %v5179
        %v5560 = vtanh.pop %v5181
        %v5561 = vtanh.pop %v5252
        %v5562 = vtanh.pop %v5254
        %v5563 = vtanh.pop %v5325
        %v5564 = vtanh.pop %v5327
        %v5565 = vtanh.pop %v5398
        %v5566 = vtanh.pop %v5400
        %v5567 = vtanh.pop %v5471
        %v5568 = vtanh.pop %v5473
        %v5569 = vtanh.pop %v4964
        %v5570 = vtanh.pop %v4966
        %v5571 = vtanh.pop %v5037
        %v5572 = vtanh.pop %v5039
        %v5573 = vtanh.pop %v5110
        %v5574 = vtanh.pop %v5112
        %v5575 = vtanh.pop %v5183
        %v5576 = vtanh.pop %v5185
        %v5577 = vtanh.pop %v5256
        %v5578 = vtanh.pop %v5258
        %v5579 = vtanh.pop %v5329
        %v5580 = vtanh.pop %v5331
        %v5581 = vtanh.pop %v5402
        %v5582 = vtanh.pop %v5404
        %v5583 = vtanh.pop %v5475
        %v5584 = vtanh.pop %v5477
        %v5585 = vtanh.pop %v4970
        %v5586 = vtanh.pop %v4972
        %v5587 = vtanh.pop %v5043
        %v5588 = vtanh.pop %v5045
        %v5589 = vtanh.pop %v5116
        %v5590 = vtanh.pop %v5118
        %v5591 = vtanh.pop %v5189
        %v5592 = vtanh.pop %v5191
        %v5593 = vtanh.pop %v5262
        %v5594 = vtanh.pop %v5264
        %v5595 = vtanh.pop %v5335
        %v5596 = vtanh.pop %v5337
        %v5597 = vtanh.pop %v5408
        %v5598 = vtanh.pop %v5410
        %v5599 = vtanh.pop %v5481
        %v5600 = vtanh.pop %v5483
        %v5601 = vtanh.pop %v4974
        %v5602 = vtanh.pop %v4976
        %v5603 = vtanh.pop %v5047
        %v5604 = vtanh.pop %v5049
        %v5605 = vtanh.pop %v5120
        %v5606 = vtanh.pop %v5122
        %v5607 = vtanh.pop %v5193
        %v5608 = vtanh.pop %v5195
        %v5609 = vtanh.pop %v5266
        %v5610 = vtanh.pop %v5268
        %v5611 = vtanh.pop %v5339
        %v5612 = vtanh.pop %v5341
        %v5613 = vtanh.pop %v5412
        %v5614 = vtanh.pop %v5414
        %v5615 = vtanh.pop %v5485
        %v5616 = vtanh.pop %v5487
        %5617 = vst [vmem:[%s378] sm:$0xff] %v5489
        %5618 = vst [vmem:[%s378 + $0x8] sm:$0xff] %v5490
        %5619 = vst [vmem:[%s378 + $0x10] sm:$0xff] %v5491
        %5620 = vst [vmem:[%s378 + $0x18] sm:$0xff] %v5492
        %5621 = vst [vmem:[%s378 + $0x20] sm:$0xff] %v5493
        %5622 = vst [vmem:[%s378 + $0x28] sm:$0xff] %v5494
        %5623 = vst [vmem:[%s378 + $0x30] sm:$0xff] %v5495
        %5624 = vst [vmem:[%s378 + $0x38] sm:$0xff] %v5496
        %5625 = vst [vmem:[%s378 + $0x40] sm:$0xff] %v5497
        %5626 = vst [vmem:[%s378 + $0x48] sm:$0xff] %v5498
        %5627 = vst [vmem:[%s378 + $0x50] sm:$0xff] %v5499
        %5628 = vst [vmem:[%s378 + $0x58] sm:$0xff] %v5500
        %5629 = vst [vmem:[%s378 + $0x60] sm:$0xff] %v5501
        %5630 = vst [vmem:[%s378 + $0x68] sm:$0xff] %v5502
        %5631 = vst [vmem:[%s378 + $0x70] sm:$0xff] %v5503
        %5632 = vst [vmem:[%s378 + $0x78] sm:$0xff] %v5504
        %5633 = vst [vmem:[%s378 + $0x80] sm:$0xff] %v5505
        %5634 = vst [vmem:[%s378 + $0x88] sm:$0xff] %v5506
        %5635 = vst [vmem:[%s378 + $0x90] sm:$0xff] %v5507
        %5636 = vst [vmem:[%s378 + $0x98] sm:$0xff] %v5508
        %5637 = vst [vmem:[%s378 + $0xa0] sm:$0xff] %v5509
        %5638 = vst [vmem:[%s378 + $0xa8] sm:$0xff] %v5510
        %5639 = vst [vmem:[%s378 + $0xb0] sm:$0xff] %v5511
        %5640 = vst [vmem:[%s378 + $0xb8] sm:$0xff] %v5512
        %5641 = vst [vmem:[%s378 + $0xc0] sm:$0xff] %v5513
        %5642 = vst [vmem:[%s378 + $0xc8] sm:$0xff] %v5514
        %5643 = vst [vmem:[%s378 + $0xd0] sm:$0xff] %v5515
        %5644 = vst [vmem:[%s378 + $0xd8] sm:$0xff] %v5516
        %5645 = vst [vmem:[%s378 + $0xe0] sm:$0xff] %v5517
        %5646 = vst [vmem:[%s378 + $0xe8] sm:$0xff] %v5518
        %5647 = vst [vmem:[%s378 + $0xf0] sm:$0xff] %v5519
        %5648 = vst [vmem:[%s378 + $0xf8] sm:$0xff] %v5520
        %5649 = vst [vmem:[%s378 + $0x100] sm:$0xff] %v5521
        %5650 = vst [vmem:[%s378 + $0x108] sm:$0xff] %v5522
        %5651 = vst [vmem:[%s378 + $0x110] sm:$0xff] %v5523
        %5652 = vst [vmem:[%s378 + $0x118] sm:$0xff] %v5524
        %5653 = vst [vmem:[%s378 + $0x120] sm:$0xff] %v5525
        %5654 = vst [vmem:[%s378 + $0x128] sm:$0xff] %v5526
        %5655 = vst [vmem:[%s378 + $0x130] sm:$0xff] %v5527
        %5656 = vst [vmem:[%s378 + $0x138] sm:$0xff] %v5528
        %5657 = vst [vmem:[%s378 + $0x140] sm:$0xff] %v5529
        %5658 = vst [vmem:[%s378 + $0x148] sm:$0xff] %v5530
        %5659 = vst [vmem:[%s378 + $0x150] sm:$0xff] %v5531
        %5660 = vst [vmem:[%s378 + $0x158] sm:$0xff] %v5532
        %5661 = vst [vmem:[%s378 + $0x160] sm:$0xff] %v5533
        %5662 = vst [vmem:[%s378 + $0x168] sm:$0xff] %v5534
        %5663 = vst [vmem:[%s378 + $0x170] sm:$0xff] %v5535
        %5664 = vst [vmem:[%s378 + $0x178] sm:$0xff] %v5536
        %5665 = vst [vmem:[%s378 + $0x180] sm:$0xff] %v5537
        %5666 = vst [vmem:[%s378 + $0x188] sm:$0xff] %v5538
        %5667 = vst [vmem:[%s378 + $0x190] sm:$0xff] %v5539
        %5668 = vst [vmem:[%s378 + $0x198] sm:$0xff] %v5540
        %5669 = vst [vmem:[%s378 + $0x1a0] sm:$0xff] %v5541
        %5670 = vst [vmem:[%s378 + $0x1a8] sm:$0xff] %v5542
        %5671 = vst [vmem:[%s378 + $0x1b0] sm:$0xff] %v5543
        %5672 = vst [vmem:[%s378 + $0x1b8] sm:$0xff] %v5544
        %5673 = vst [vmem:[%s378 + $0x1c0] sm:$0xff] %v5545
        %5674 = vst [vmem:[%s378 + $0x1c8] sm:$0xff] %v5546
        %5675 = vst [vmem:[%s378 + $0x1d0] sm:$0xff] %v5547
        %5676 = vst [vmem:[%s378 + $0x1d8] sm:$0xff] %v5548
        %5677 = vst [vmem:[%s378 + $0x1e0] sm:$0xff] %v5549
        %5678 = vst [vmem:[%s378 + $0x1e8] sm:$0xff] %v5550
        %5679 = vst [vmem:[%s378 + $0x1f0] sm:$0xff] %v5551
        %5680 = vst [vmem:[%s378 + $0x1f8] sm:$0xff] %v5552
        %5681 = vst [vmem:[%s378 + $0x200] sm:$0xff] %v5553
        %5682 = vst [vmem:[%s378 + $0x208] sm:$0xff] %v5554
        %5683 = vst [vmem:[%s378 + $0x210] sm:$0xff] %v5555
        %5684 = vst [vmem:[%s378 + $0x218] sm:$0xff] %v5556
        %5685 = vst [vmem:[%s378 + $0x220] sm:$0xff] %v5557
        %5686 = vst [vmem:[%s378 + $0x228] sm:$0xff] %v5558
        %5687 = vst [vmem:[%s378 + $0x230] sm:$0xff] %v5559
        %5688 = vst [vmem:[%s378 + $0x238] sm:$0xff] %v5560
        %5689 = vst [vmem:[%s378 + $0x240] sm:$0xff] %v5561
        %5690 = vst [vmem:[%s378 + $0x248] sm:$0xff] %v5562
        %5691 = vst [vmem:[%s378 + $0x250] sm:$0xff] %v5563
        %5692 = vst [vmem:[%s378 + $0x258] sm:$0xff] %v5564
        %5693 = vst [vmem:[%s378 + $0x260] sm:$0xff] %v5565
        %5694 = vst [vmem:[%s378 + $0x268] sm:$0xff] %v5566
        %5695 = vst [vmem:[%s378 + $0x270] sm:$0xff] %v5567
        %5696 = vst [vmem:[%s378 + $0x278] sm:$0xff] %v5568
        %5697 = vst [vmem:[%s378 + $0x280] sm:$0xff] %v5569
        %5698 = vst [vmem:[%s378 + $0x288] sm:$0xff] %v5570
        %5699 = vst [vmem:[%s378 + $0x290] sm:$0xff] %v5571
        %5700 = vst [vmem:[%s378 + $0x298] sm:$0xff] %v5572
        %5701 = vst [vmem:[%s378 + $0x2a0] sm:$0xff] %v5573
        %5702 = vst [vmem:[%s378 + $0x2a8] sm:$0xff] %v5574
        %5703 = vst [vmem:[%s378 + $0x2b0] sm:$0xff] %v5575
        %5704 = vst [vmem:[%s378 + $0x2b8] sm:$0xff] %v5576
        %5705 = vst [vmem:[%s378 + $0x2c0] sm:$0xff] %v5577
        %5706 = vst [vmem:[%s378 + $0x2c8] sm:$0xff] %v5578
        %5707 = vst [vmem:[%s378 + $0x2d0] sm:$0xff] %v5579
        %5708 = vst [vmem:[%s378 + $0x2d8] sm:$0xff] %v5580
        %5709 = vst [vmem:[%s378 + $0x2e0] sm:$0xff] %v5581
        %5710 = vst [vmem:[%s378 + $0x2e8] sm:$0xff] %v5582
        %5711 = vst [vmem:[%s378 + $0x2f0] sm:$0xff] %v5583
        %5712 = vst [vmem:[%s378 + $0x2f8] sm:$0xff] %v5584
        %5713 = vst [vmem:[%s378 + $0x300] sm:$0xff] %v5585
        %5714 = vst [vmem:[%s378 + $0x308] sm:$0xff] %v5586
        %5715 = vst [vmem:[%s378 + $0x310] sm:$0xff] %v5587
        %5716 = vst [vmem:[%s378 + $0x318] sm:$0xff] %v5588
        %5717 = vst [vmem:[%s378 + $0x320] sm:$0xff] %v5589
        %5718 = vst [vmem:[%s378 + $0x328] sm:$0xff] %v5590
        %5719 = vst [vmem:[%s378 + $0x330] sm:$0xff] %v5591
        %5720 = vst [vmem:[%s378 + $0x338] sm:$0xff] %v5592
        %5721 = vst [vmem:[%s378 + $0x340] sm:$0xff] %v5593
        %5722 = vst [vmem:[%s378 + $0x348] sm:$0xff] %v5594
        %5723 = vst [vmem:[%s378 + $0x350] sm:$0xff] %v5595
        %5724 = vst [vmem:[%s378 + $0x358] sm:$0xff] %v5596
        %5725 = vst [vmem:[%s378 + $0x360] sm:$0xff] %v5597
        %5726 = vst [vmem:[%s378 + $0x368] sm:$0xff] %v5598
        %5727 = vst [vmem:[%s378 + $0x370] sm:$0xff] %v5599
        %5728 = vst [vmem:[%s378 + $0x378] sm:$0xff] %v5600
        %5729 = vst [vmem:[%s378 + $0x380] sm:$0xff] %v5601
        %5730 = vst [vmem:[%s378 + $0x388] sm:$0xff] %v5602
        %5731 = vst [vmem:[%s378 + $0x390] sm:$0xff] %v5603
        %5732 = vst [vmem:[%s378 + $0x398] sm:$0xff] %v5604
        %5733 = vst [vmem:[%s378 + $0x3a0] sm:$0xff] %v5605
        %5734 = vst [vmem:[%s378 + $0x3a8] sm:$0xff] %v5606
        %5735 = vst [vmem:[%s378 + $0x3b0] sm:$0xff] %v5607
        %5736 = vst [vmem:[%s378 + $0x3b8] sm:$0xff] %v5608
        %5737 = vst [vmem:[%s378 + $0x3c0] sm:$0xff] %v5609
        %5738 = vst [vmem:[%s378 + $0x3c8] sm:$0xff] %v5610
        %5739 = vst [vmem:[%s378 + $0x3d0] sm:$0xff] %v5611
        %5740 = vst [vmem:[%s378 + $0x3d8] sm:$0xff] %v5612
        %5741 = vst [vmem:[%s378 + $0x3e0] sm:$0xff] %v5613
        %5742 = vst [vmem:[%s378 + $0x3e8] sm:$0xff] %v5614
        %5743 = vst [vmem:[%s378 + $0x3f0] sm:$0xff] %v5615
        %5744 = vst [vmem:[%s378 + $0x3f8] sm:$0xff] %v5616
        %s5745 = sand.u32 %s187, 1
        %s5746 = scalar_lea.sflag [#allocation4], %s5745
        %s5747 = sand.u32 %s187, 1
        %s5748 = smul.addr %s5747, 1024
        %s5749 = scalar_lea.vmem [#allocation14], %s5748
        // Predicated region
        $region77: #{paper_generator_forward.1} parent=47 // pred_check
          %p5750 = pneg %p197
        $region78: #{paper_generator_forward.1} parent=47 // pred_check_branch
          %5752 = sbr.rel (%p5750) target = $region80
        $region79: #{paper_generator_forward.1} parent=47 // pred_region
          %s5753 = smul.u32 8, %s27
          %s5755 = ssub.s32 16384, 16384
          %5756 = vsyncadd %s5746, %s5755
          %s5757 = smul.addr %s5753, 16
          %s5758 = smul.addr %s5757, 128
          %s5759 = scalar_lea.hbm %s7, %s5758
          %s5760 = sshll.u32 %s5749, 4
          %s5761 = int_to_ptr.vmem [resolvable:$true] %s5760
          %5766 = dma.vmem_to_hbm [thread:$0]  %s5761, 16384, %s5759, %s5746, 2048, 2048, 128
        $region80: #{paper_generator_forward.1} parent=47 // pred_fallthru
          _
      $region48: #{paper_generator_forward.1} parent=5 // pred_fallthru
        _
      %p5767 = scmp.le.s32.totalorder 2, %s22
      // Predicated region
      $region81: #{paper_generator_forward.1} parent=5 // pred_check
        %p5768 = pneg %p5767
      $region82: #{paper_generator_forward.1} parent=5 // pred_check_branch
        %5770 = sbr.rel (%p5768) target = $region84
      $region83: #{paper_generator_forward.1} parent=5 // pred_region
        %s5771 = ssub.s32 %s22, 2
        // Predicated region
        $region85: #{paper_generator_forward.1} parent=83 // pred_check
          %p5772 = pneg %p203
        $region86: #{paper_generator_forward.1} parent=83 // pred_check_branch
          %5774 = sbr.rel (%p5772) target = $region88
        $region87: #{paper_generator_forward.1} parent=83 // pred_region
          %s5775 = sand.u32 %s188, 1
          %s5776 = scalar_lea.sflag [#allocation4], %s5775
          %s5777 = sand.u32 %s188, 1
          %s5778 = smul.addr %s5777, 1024
          %s5779 = scalar_lea.vmem [#allocation14], %s5778
          %5780 = dma.done %s5776, 16384
        $region88: #{paper_generator_forward.1} parent=83 // pred_fallthru
          _
      $region84: #{paper_generator_forward.1} parent=5 // pred_fallthru
        _
    $region6: #{paper_generator_forward.1} parent=1 // loop_footer
      %s26 = sadd.s32 1, %s22
    $region7: #{paper_generator_forward.1} parent=1 // loop_footer_branch
      %21 = sbr.rel target = $region3
    $region8: #{paper_generator_forward.1} parent=1 // loop_exit
      _
    %5781 = vsyncpa [#allocation3], 1
    %s5782 = scalar_lea.sflag [#allocation3], 1
    %5783 = vsyncpa %s5782, 1
    %5784 = vsyncpa [#allocation6], 1
    %5785 = vsyncpa [#allocation9], 1
    %5786 = vsyncpa [#allocation12], 1
    %5787 = vsyncpa [#allocation4], 1
    %s5788 = scalar_lea.sflag [#allocation4], 1
    %5789 = vsyncpa %s5788, 1

</llo_original>
